<compile_context>
chip_gen: v7x
topology: tpu7x:2x2x1
jax: 0.10.0
libtpu: 0.0.40
codegen_flags: <defaults>
</compile_context>

<pallas_src>
import jax
import jax.numpy as jnp
from jax import lax
from jax.experimental import pallas as pl
from jax.experimental.pallas import tpu as pltpu

NEG_SLOPE = 0.01                       # nn.LeakyReLU default
CHANNELS = (1, 16, 32, 64)
LENGTHS = (1000, 500, 250, 125)
CD_CH = 8
LIN_DIM = 1000


# ---------------------------------------------------------------------------
# In-kernel helpers (operate on (C, L) values, L on lanes)
# ---------------------------------------------------------------------------
def _lrelu(x):
    return jnp.where(x >= 0, x, NEG_SLOPE * x)


def _shift_right_zero(x):
    """out[:, l] = x[:, l-1]; out[:, 0] = 0  (left zero-pad)."""
    c, l = x.shape
    col = lax.broadcasted_iota(jnp.int32, (c, l), 1)
    return jnp.where(col == 0, 0.0, pltpu.roll(x, shift=1, axis=1))


def _shift_left_zero(x):
    """out[:, l] = x[:, l+1]; out[:, L-1] = 0  (right zero-pad)."""
    c, l = x.shape
    col = lax.broadcasted_iota(jnp.int32, (c, l), 1)
    return jnp.where(col == l - 1, 0.0, pltpu.roll(x, shift=l - 1, axis=1))


def _tap(w, x):
    """(Cout, Cin) x (Cin, L) -> (Cout, L); Cin == 1 handled as a VPU broadcast."""
    if x.shape[0] == 1:
        return w * x
    return jnp.dot(w, x, preferred_element_type=jnp.float32)


def _conv3(x, w_ref):
    """k=3, stride=1, padding=1 conv (no bias/activation).

    x: (Cin, L) value; w_ref: (3, Cout, Cin) ref  ->  (Cout, L)."""
    return (_tap(w_ref[0], _shift_right_zero(x))
            + _tap(w_ref[1], x)
            + _tap(w_ref[2], _shift_left_zero(x)))


def _block(x, w1_ref, b1_ref, w2_ref, b2_ref, dec_ref):
    """ContrastiveMLP_New: conv(s1)+LReLU, conv(s2)+LReLU.  (Cin,L)->(Cout,L//2)."""
    a = _lrelu(_conv3(x, w1_ref) + b1_ref[...])                        # (Cout, L)
    z = _conv3(a, w2_ref)                                              # stride-1 positions
    y = jnp.dot(z, dec_ref[...], preferred_element_type=jnp.float32)   # keep even cols
    return _lrelu(y + b2_ref[...])                                     # (Cout, L//2)


# ---------------------------------------------------------------------------
# Fused kernel: whole network for one batch row
# ---------------------------------------------------------------------------
def _fused_kernel(x_ref,
                  w1a, b1a, w1b, b1b, d1,
                  w2a, b2a, w2b, b2b, d2,
                  w3a, b3a, w3b, b3b, d3,
                  cdw, cdb, lw, lb,
                  o_ref):
    act = x_ref[0]                                      # (1, 1000)
    act = _block(act, w1a, b1a, w1b, b1b, d1)           # (16, 500)
    act = _block(act, w2a, b2a, w2b, b2b, d2)           # (32, 250)
    act = _block(act, w3a, b3a, w3b, b3b, d3)           # (64, 125)

    # channel_down: 1x1 conv 64 -> 8, + LeakyReLU
    act = _lrelu(jnp.dot(cdw[...], act, preferred_element_type=jnp.float32)
                 + cdb[...])                            # (8, 125)

    # flatten (channel-major == torch .view) + Linear(1000,1000) + LeakyReLU.
    # lw is pre-packed as (8, 125, 1000) with lw[c, l, o] == l_w[o, 125*c + l].
    y = lb[...]                                         # (1, 1000)
    for c in range(CD_CH):
        y = y + jnp.dot(act[c:c + 1, :], lw[c],
                        preferred_element_type=jnp.float32)
    o_ref[0] = _lrelu(y)


# ---------------------------------------------------------------------------
# pallas_call wrapper
# ---------------------------------------------------------------------------
def _const_spec(arr):
    nd = arr.ndim
    return pl.BlockSpec(arr.shape, lambda b, _nd=nd: (0,) * _nd)


def forward(packed, x):
    """x: (B, 1000) float32 -> (B, 1000) float32."""
    b, l0 = x.shape
    assert l0 == LENGTHS[0]
    x3 = x.reshape(b, 1, l0)

    in_specs = [pl.BlockSpec((1, 1, l0), lambda i: (i, 0, 0))]
    in_specs += [_const_spec(p) for p in packed]

    out = pl.pallas_call(
        _fused_kernel,
        out_shape=jax.ShapeDtypeStruct((b, 1, LIN_DIM), jnp.float32),
        grid=(b,),
        in_specs=in_specs,
        out_specs=pl.BlockSpec((1, 1, LIN_DIM), lambda i: (i, 0, 0)),
        compiler_params=pltpu.CompilerParams(
            dimension_semantics=("parallel",),
            vmem_limit_bytes=48 * 1024 * 1024,   # headroom over v5e's 16 MiB default
        ),
    )(x3, *packed)
    return out.reshape(b, LIN_DIM)


# ---------------------------------------------------------------------------
# Parameters: deterministic synthetic init in PyTorch parameter shapes,
# packed ONCE into kernel layout (no per-forward transposes of l_w).
# ---------------------------------------------------------------------------
def init_params(key):
    keys = jax.random.split(key, 16)
    ki = 0

    def _p(shape):
        nonlocal ki
        p = 0.05 * jax.random.normal(keys[ki], shape, jnp.float32)
        ki += 1
        return p

    params = {"convs": []}
    for cin, cout in zip(CHANNELS[:-1], CHANNELS[1:]):
        params["convs"].append({
            "w1": _p((cout, cin, 3)),  "b1": _p((cout,)),    # Conv1d k=3 s=1 p=1
            "w2": _p((cout, cout, 3)), "b2": _p((cout,)),    # Conv1d k=3 s=2 p=1
        })
    params["cd_w"] = _p((CD_CH, CHANNELS[-1], 1))             # channel_down 1x1
    params["cd_b"] = _p((CD_CH,))
    params["l_w"] = _p((LIN_DIM, LIN_DIM))                    # Linear (out, in)
    params["l_b"] = _p((LIN_DIM,))
    return params


def pack_params(params):
    """One-time conversion from PyTorch shapes to the kernel layout."""
    packed = []
    for blk, l in zip(params["convs"], LENGTHS[:-1]):
        packed.append(jnp.transpose(blk["w1"], (2, 0, 1)))    # (3, Cout, Cin)
        packed.append(blk["b1"].reshape(-1, 1))               # (Cout, 1)
        packed.append(jnp.transpose(blk["w2"], (2, 0, 1)))    # (3, Cout, Cout)
        packed.append(blk["b2"].reshape(-1, 1))               # (Cout, 1)
        # 0/1 decimation matrix selecting even columns: (L, L//2)
        dec = (jnp.arange(l)[:, None] == 2 * jnp.arange(l // 2)[None, :])
        packed.append(dec.astype(jnp.float32))
    packed.append(params["cd_w"][:, :, 0])                    # (8, 64)
    packed.append(params["cd_b"].reshape(-1, 1))              # (8, 1)
    lw = params["l_w"].reshape(LIN_DIM, CD_CH, LENGTHS[-1])   # (1000, 8, 125)
    packed.append(jnp.transpose(lw, (1, 2, 0)))               # (8, 125, 1000)
    packed.append(params["l_b"].reshape(1, -1))               # (1, 1000)
    return tuple(packed)


# ---------------------------------------------------------------------------
# Pure-JAX (XLA) reference for validation
# ---------------------------------------------------------------------------
def _ref_forward(params, x):
    def conv(h, w, bias, stride, padding):
        y = lax.conv_general_dilated(
            h, w, window_strides=(stride,), padding=[(padding, padding)],
            dimension_numbers=("NCH", "OIH", "NCH"),
            precision=lax.Precision.HIGHEST)
        return y + bias[None, :, None]

    h = x[:, None, :]
    for blk in params["convs"]:
        h = jax.nn.leaky_relu(conv(h, blk["w1"], blk["b1"], 1, 1), NEG_SLOPE)
        h = jax.nn.leaky_relu(conv(h, blk["w2"], blk["b2"], 2, 1), NEG_SLOPE)
    h = jax.nn.leaky_relu(conv(h, params["cd_w"], params["cd_b"], 1, 0), NEG_SLOPE)
    h = h.reshape(h.shape[0], -1)
    h = jnp.dot(h, params["l_w"].T, precision=lax.Precision.HIGHEST) + params["l_b"]
    return jax.nn.leaky_relu(h, NEG_SLOPE)


if __name__ == "__main__":
    import numpy as np

    key = jax.random.PRNGKey(0)
    pkey, xkey = jax.random.split(key)
    params = init_params(pkey)
    packed = pack_params(params)                  # weight packing done once, up front

    # Length must be 1000 so the flatten (8 * 125) matches Linear(1000, 1000).
    x = jax.random.normal(xkey, (2, LENGTHS[0]), jnp.float32)

    fwd = jax.jit(forward)
    y = fwd(packed, x)
    jax.block_until_ready(y)
    assert y.shape == (2, LIN_DIM) and y.dtype == jnp.float32

    y_ref = _ref_forward(params, x)
    np.testing.assert_allclose(np.asarray(y), np.asarray(y_ref),
                               rtol=2e-3, atol=1e-4)

    print("KERNEL_OK")
</pallas_src>

<mosaic_0001>
module attributes {stable_mosaic.version = 11 : i64} {
  func.func @_fused_kernel(%arg0: i32, %arg1: memref<1x1x1000xf32, #tpu.memory_space<vmem>>, %arg2: memref<3x16x1xf32, #tpu.memory_space<vmem>>, %arg3: memref<16x1xf32, #tpu.memory_space<vmem>>, %arg4: memref<3x16x16xf32, #tpu.memory_space<vmem>>, %arg5: memref<16x1xf32, #tpu.memory_space<vmem>>, %arg6: memref<1000x500xf32, #tpu.memory_space<vmem>>, %arg7: memref<3x32x16xf32, #tpu.memory_space<vmem>>, %arg8: memref<32x1xf32, #tpu.memory_space<vmem>>, %arg9: memref<3x32x32xf32, #tpu.memory_space<vmem>>, %arg10: memref<32x1xf32, #tpu.memory_space<vmem>>, %arg11: memref<500x250xf32, #tpu.memory_space<vmem>>, %arg12: memref<3x64x32xf32, #tpu.memory_space<vmem>>, %arg13: memref<64x1xf32, #tpu.memory_space<vmem>>, %arg14: memref<3x64x64xf32, #tpu.memory_space<vmem>>, %arg15: memref<64x1xf32, #tpu.memory_space<vmem>>, %arg16: memref<250x125xf32, #tpu.memory_space<vmem>>, %arg17: memref<8x64xf32, #tpu.memory_space<vmem>>, %arg18: memref<8x1xf32, #tpu.memory_space<vmem>>, %arg19: memref<8x125x1000xf32, #tpu.memory_space<vmem>>, %arg20: memref<1x1000xf32, #tpu.memory_space<vmem>>, %arg21: memref<1x1x1000xf32, #tpu.memory_space<vmem>>) attributes {dimension_semantics = [#tpu.dimension_semantics<parallel>], iteration_bounds = array<i64: 2>, scalar_prefetch = 0 : i64, scratch_operands = 0 : i64, tpu.core_type = #tpu.core_type<tc>, window_params = [{transform_indices = @transform_0, window_bounds = array<i64: 1, 1, 1000>}, {pipeline_mode = #tpu.pipeline_mode<synchronous>, transform_indices = @transform_1, window_bounds = array<i64: 3, 16, 1>}, {pipeline_mode = #tpu.pipeline_mode<synchronous>, transform_indices = @transform_2, window_bounds = array<i64: 16, 1>}, {pipeline_mode = #tpu.pipeline_mode<synchronous>, transform_indices = @transform_3, window_bounds = array<i64: 3, 16, 16>}, {pipeline_mode = #tpu.pipeline_mode<synchronous>, transform_indices = @transform_4, window_bounds = array<i64: 16, 1>}, {pipeline_mode = #tpu.pipeline_mode<synchronous>, transform_indices = @transform_5, window_bounds = array<i64: 1000, 500>}, {pipeline_mode = #tpu.pipeline_mode<synchronous>, transform_indices = @transform_6, window_bounds = array<i64: 3, 32, 16>}, {pipeline_mode = #tpu.pipeline_mode<synchronous>, transform_indices = @transform_7, window_bounds = array<i64: 32, 1>}, {pipeline_mode = #tpu.pipeline_mode<synchronous>, transform_indices = @transform_8, window_bounds = array<i64: 3, 32, 32>}, {pipeline_mode = #tpu.pipeline_mode<synchronous>, transform_indices = @transform_9, window_bounds = array<i64: 32, 1>}, {pipeline_mode = #tpu.pipeline_mode<synchronous>, transform_indices = @transform_10, window_bounds = array<i64: 500, 250>}, {pipeline_mode = #tpu.pipeline_mode<synchronous>, transform_indices = @transform_11, window_bounds = array<i64: 3, 64, 32>}, {pipeline_mode = #tpu.pipeline_mode<synchronous>, transform_indices = @transform_12, window_bounds = array<i64: 64, 1>}, {pipeline_mode = #tpu.pipeline_mode<synchronous>, transform_indices = @transform_13, window_bounds = array<i64: 3, 64, 64>}, {pipeline_mode = #tpu.pipeline_mode<synchronous>, transform_indices = @transform_14, window_bounds = array<i64: 64, 1>}, {pipeline_mode = #tpu.pipeline_mode<synchronous>, transform_indices = @transform_15, window_bounds = array<i64: 250, 125>}, {pipeline_mode = #tpu.pipeline_mode<synchronous>, transform_indices = @transform_16, window_bounds = array<i64: 8, 64>}, {pipeline_mode = #tpu.pipeline_mode<synchronous>, transform_indices = @transform_17, window_bounds = array<i64: 8, 1>}, {pipeline_mode = #tpu.pipeline_mode<synchronous>, transform_indices = @transform_18, window_bounds = array<i64: 8, 125, 1000>}, {pipeline_mode = #tpu.pipeline_mode<synchronous>, transform_indices = @transform_19, window_bounds = array<i64: 1, 1000>}, {transform_indices = @transform_20, window_bounds = array<i64: 1, 1, 1000>}]} {
    %c0 = arith.constant 0 : index
    %c0_0 = arith.constant 0 : index
    %c0_1 = arith.constant 0 : index
    %0 = vector.load %arg1[%c0, %c0_0, %c0_1] : memref<1x1x1000xf32, #tpu.memory_space<vmem>>, vector<1x1x1000xf32>
    %1 = vector.shape_cast %0 : vector<1x1x1000xf32> to vector<1x1000xf32>
    %c0_2 = arith.constant 0 : index
    %c0_3 = arith.constant 0 : index
    %c0_4 = arith.constant 0 : index
    %2 = vector.load %arg2[%c0_2, %c0_3, %c0_4] : memref<3x16x1xf32, #tpu.memory_space<vmem>>, vector<1x16x1xf32>
    %3 = vector.shape_cast %2 : vector<1x16x1xf32> to vector<16x1xf32>
    %4 = tpu.iota {dimensions = array<i32: 1>} : vector<1x1000xi32>
    %c0_i32 = arith.constant 0 : i32
    %5 = vector.broadcast %c0_i32 : i32 to vector<1x1000xi32>
    %6 = arith.cmpi eq, %4, %5 : vector<1x1000xi32>
    %c1_i32 = arith.constant 1 : i32
    %7 = tpu.dynamic_rotate %1 by %c1_i32 dim 1 : vector<1x1000xf32>, i32 -> vector<1x1000xf32>
    %cst = arith.constant 0.000000e+00 : f32
    %8 = vector.broadcast %cst : f32 to vector<1x1000xf32>
    %9 = arith.select %6, %8, %7 : vector<1x1000xi1>, vector<1x1000xf32>
    %10 = vector.broadcast %3 : vector<16x1xf32> to vector<16x1000xf32>
    %11 = vector.broadcast %9 : vector<1x1000xf32> to vector<16x1000xf32>
    %12 = arith.mulf %10, %11 : vector<16x1000xf32>
    %c1 = arith.constant 1 : index
    %c0_5 = arith.constant 0 : index
    %c0_6 = arith.constant 0 : index
    %13 = vector.load %arg2[%c1, %c0_5, %c0_6] : memref<3x16x1xf32, #tpu.memory_space<vmem>>, vector<1x16x1xf32>
    %14 = vector.shape_cast %13 : vector<1x16x1xf32> to vector<16x1xf32>
    %15 = vector.broadcast %14 : vector<16x1xf32> to vector<16x1000xf32>
    %16 = vector.broadcast %1 : vector<1x1000xf32> to vector<16x1000xf32>
    %17 = arith.mulf %15, %16 : vector<16x1000xf32>
    %18 = arith.addf %12, %17 : vector<16x1000xf32>
    %c2 = arith.constant 2 : index
    %c0_7 = arith.constant 0 : index
    %c0_8 = arith.constant 0 : index
    %19 = vector.load %arg2[%c2, %c0_7, %c0_8] : memref<3x16x1xf32, #tpu.memory_space<vmem>>, vector<1x16x1xf32>
    %20 = vector.shape_cast %19 : vector<1x16x1xf32> to vector<16x1xf32>
    %21 = tpu.iota {dimensions = array<i32: 1>} : vector<1x1000xi32>
    %c999_i32 = arith.constant 999 : i32
    %22 = vector.broadcast %c999_i32 : i32 to vector<1x1000xi32>
    %23 = arith.cmpi eq, %21, %22 : vector<1x1000xi32>
    %c999_i32_9 = arith.constant 999 : i32
    %24 = tpu.dynamic_rotate %1 by %c999_i32_9 dim 1 : vector<1x1000xf32>, i32 -> vector<1x1000xf32>
    %cst_10 = arith.constant 0.000000e+00 : f32
    %25 = vector.broadcast %cst_10 : f32 to vector<1x1000xf32>
    %26 = arith.select %23, %25, %24 : vector<1x1000xi1>, vector<1x1000xf32>
    %27 = vector.broadcast %20 : vector<16x1xf32> to vector<16x1000xf32>
    %28 = vector.broadcast %26 : vector<1x1000xf32> to vector<16x1000xf32>
    %29 = arith.mulf %27, %28 : vector<16x1000xf32>
    %30 = arith.addf %18, %29 : vector<16x1000xf32>
    %c0_11 = arith.constant 0 : index
    %c0_12 = arith.constant 0 : index
    %31 = vector.load %arg3[%c0_11, %c0_12] : memref<16x1xf32, #tpu.memory_space<vmem>>, vector<16x1xf32>
    %32 = vector.broadcast %31 : vector<16x1xf32> to vector<16x1000xf32>
    %33 = arith.addf %30, %32 : vector<16x1000xf32>
    %cst_13 = arith.constant 0.000000e+00 : f32
    %34 = vector.broadcast %cst_13 : f32 to vector<16x1000xf32>
    %35 = arith.cmpf oge, %33, %34 : vector<16x1000xf32>
    %cst_14 = arith.constant 0.00999999977 : f32
    %36 = vector.broadcast %cst_14 : f32 to vector<16x1000xf32>
    %37 = arith.mulf %36, %33 : vector<16x1000xf32>
    %38 = arith.select %35, %33, %37 : vector<16x1000xi1>, vector<16x1000xf32>
    %c0_15 = arith.constant 0 : index
    %c0_16 = arith.constant 0 : index
    %c0_17 = arith.constant 0 : index
    %39 = vector.load %arg4[%c0_15, %c0_16, %c0_17] : memref<3x16x16xf32, #tpu.memory_space<vmem>>, vector<1x16x16xf32>
    %40 = vector.shape_cast %39 : vector<1x16x16xf32> to vector<16x16xf32>
    %41 = tpu.iota {dimensions = array<i32: 1>} : vector<16x1000xi32>
    %c0_i32_18 = arith.constant 0 : i32
    %42 = vector.broadcast %c0_i32_18 : i32 to vector<16x1000xi32>
    %43 = arith.cmpi eq, %41, %42 : vector<16x1000xi32>
    %c1_i32_19 = arith.constant 1 : i32
    %44 = tpu.dynamic_rotate %38 by %c1_i32_19 dim 1 : vector<16x1000xf32>, i32 -> vector<16x1000xf32>
    %cst_20 = arith.constant 0.000000e+00 : f32
    %45 = vector.broadcast %cst_20 : f32 to vector<16x1000xf32>
    %46 = arith.select %43, %45, %44 : vector<16x1000xi1>, vector<16x1000xf32>
    %cst_21 = arith.constant dense<0.000000e+00> : vector<16x1000xf32>
    %47 = tpu.matmul %40, %46, %cst_21 {dimension_numbers = #tpu.dot_dimension_numbers<[1], [0], [0], [1], [0, 0, 1, 1], [], []>} : vector<16x16xf32>, vector<16x1000xf32>, vector<16x1000xf32> -> vector<16x1000xf32>
    %c1_22 = arith.constant 1 : index
    %c0_23 = arith.constant 0 : index
    %c0_24 = arith.constant 0 : index
    %48 = vector.load %arg4[%c1_22, %c0_23, %c0_24] : memref<3x16x16xf32, #tpu.memory_space<vmem>>, vector<1x16x16xf32>
    %49 = vector.shape_cast %48 : vector<1x16x16xf32> to vector<16x16xf32>
    %cst_25 = arith.constant dense<0.000000e+00> : vector<16x1000xf32>
    %50 = tpu.matmul %49, %38, %cst_25 {dimension_numbers = #tpu.dot_dimension_numbers<[1], [0], [0], [1], [0, 0, 1, 1], [], []>} : vector<16x16xf32>, vector<16x1000xf32>, vector<16x1000xf32> -> vector<16x1000xf32>
    %51 = arith.addf %47, %50 : vector<16x1000xf32>
    %c2_26 = arith.constant 2 : index
    %c0_27 = arith.constant 0 : index
    %c0_28 = arith.constant 0 : index
    %52 = vector.load %arg4[%c2_26, %c0_27, %c0_28] : memref<3x16x16xf32, #tpu.memory_space<vmem>>, vector<1x16x16xf32>
    %53 = vector.shape_cast %52 : vector<1x16x16xf32> to vector<16x16xf32>
    %54 = tpu.iota {dimensions = array<i32: 1>} : vector<16x1000xi32>
    %c999_i32_29 = arith.constant 999 : i32
    %55 = vector.broadcast %c999_i32_29 : i32 to vector<16x1000xi32>
    %56 = arith.cmpi eq, %54, %55 : vector<16x1000xi32>
    %c999_i32_30 = arith.constant 999 : i32
    %57 = tpu.dynamic_rotate %38 by %c999_i32_30 dim 1 : vector<16x1000xf32>, i32 -> vector<16x1000xf32>
    %cst_31 = arith.constant 0.000000e+00 : f32
    %58 = vector.broadcast %cst_31 : f32 to vector<16x1000xf32>
    %59 = arith.select %56, %58, %57 : vector<16x1000xi1>, vector<16x1000xf32>
    %cst_32 = arith.constant dense<0.000000e+00> : vector<16x1000xf32>
    %60 = tpu.matmul %53, %59, %cst_32 {dimension_numbers = #tpu.dot_dimension_numbers<[1], [0], [0], [1], [0, 0, 1, 1], [], []>} : vector<16x16xf32>, vector<16x1000xf32>, vector<16x1000xf32> -> vector<16x1000xf32>
    %61 = arith.addf %51, %60 : vector<16x1000xf32>
    %c0_33 = arith.constant 0 : index
    %c0_34 = arith.constant 0 : index
    %62 = vector.load %arg6[%c0_33, %c0_34] : memref<1000x500xf32, #tpu.memory_space<vmem>>, vector<1000x500xf32>
    %cst_35 = arith.constant dense<0.000000e+00> : vector<16x500xf32>
    %63 = tpu.matmul %61, %62, %cst_35 {dimension_numbers = #tpu.dot_dimension_numbers<[1], [0], [0], [1], [0, 0, 1, 1], [], []>} : vector<16x1000xf32>, vector<1000x500xf32>, vector<16x500xf32> -> vector<16x500xf32>
    %c0_36 = arith.constant 0 : index
    %c0_37 = arith.constant 0 : index
    %64 = vector.load %arg5[%c0_36, %c0_37] : memref<16x1xf32, #tpu.memory_space<vmem>>, vector<16x1xf32>
    %65 = vector.broadcast %64 : vector<16x1xf32> to vector<16x500xf32>
    %66 = arith.addf %63, %65 : vector<16x500xf32>
    %cst_38 = arith.constant 0.000000e+00 : f32
    %67 = vector.broadcast %cst_38 : f32 to vector<16x500xf32>
    %68 = arith.cmpf oge, %66, %67 : vector<16x500xf32>
    %cst_39 = arith.constant 0.00999999977 : f32
    %69 = vector.broadcast %cst_39 : f32 to vector<16x500xf32>
    %70 = arith.mulf %69, %66 : vector<16x500xf32>
    %71 = arith.select %68, %66, %70 : vector<16x500xi1>, vector<16x500xf32>
    %c0_40 = arith.constant 0 : index
    %c0_41 = arith.constant 0 : index
    %c0_42 = arith.constant 0 : index
    %72 = vector.load %arg7[%c0_40, %c0_41, %c0_42] : memref<3x32x16xf32, #tpu.memory_space<vmem>>, vector<1x32x16xf32>
    %73 = vector.shape_cast %72 : vector<1x32x16xf32> to vector<32x16xf32>
    %74 = tpu.iota {dimensions = array<i32: 1>} : vector<16x500xi32>
    %c0_i32_43 = arith.constant 0 : i32
    %75 = vector.broadcast %c0_i32_43 : i32 to vector<16x500xi32>
    %76 = arith.cmpi eq, %74, %75 : vector<16x500xi32>
    %c1_i32_44 = arith.constant 1 : i32
    %77 = tpu.dynamic_rotate %71 by %c1_i32_44 dim 1 : vector<16x500xf32>, i32 -> vector<16x500xf32>
    %cst_45 = arith.constant 0.000000e+00 : f32
    %78 = vector.broadcast %cst_45 : f32 to vector<16x500xf32>
    %79 = arith.select %76, %78, %77 : vector<16x500xi1>, vector<16x500xf32>
    %cst_46 = arith.constant dense<0.000000e+00> : vector<32x500xf32>
    %80 = tpu.matmul %73, %79, %cst_46 {dimension_numbers = #tpu.dot_dimension_numbers<[1], [0], [0], [1], [0, 0, 1, 1], [], []>} : vector<32x16xf32>, vector<16x500xf32>, vector<32x500xf32> -> vector<32x500xf32>
    %c1_47 = arith.constant 1 : index
    %c0_48 = arith.constant 0 : index
    %c0_49 = arith.constant 0 : index
    %81 = vector.load %arg7[%c1_47, %c0_48, %c0_49] : memref<3x32x16xf32, #tpu.memory_space<vmem>>, vector<1x32x16xf32>
    %82 = vector.shape_cast %81 : vector<1x32x16xf32> to vector<32x16xf32>
    %cst_50 = arith.constant dense<0.000000e+00> : vector<32x500xf32>
    %83 = tpu.matmul %82, %71, %cst_50 {dimension_numbers = #tpu.dot_dimension_numbers<[1], [0], [0], [1], [0, 0, 1, 1], [], []>} : vector<32x16xf32>, vector<16x500xf32>, vector<32x500xf32> -> vector<32x500xf32>
    %84 = arith.addf %80, %83 : vector<32x500xf32>
    %c2_51 = arith.constant 2 : index
    %c0_52 = arith.constant 0 : index
    %c0_53 = arith.constant 0 : index
    %85 = vector.load %arg7[%c2_51, %c0_52, %c0_53] : memref<3x32x16xf32, #tpu.memory_space<vmem>>, vector<1x32x16xf32>
    %86 = vector.shape_cast %85 : vector<1x32x16xf32> to vector<32x16xf32>
    %87 = tpu.iota {dimensions = array<i32: 1>} : vector<16x500xi32>
    %c499_i32 = arith.constant 499 : i32
    %88 = vector.broadcast %c499_i32 : i32 to vector<16x500xi32>
    %89 = arith.cmpi eq, %87, %88 : vector<16x500xi32>
    %c499_i32_54 = arith.constant 499 : i32
    %90 = tpu.dynamic_rotate %71 by %c499_i32_54 dim 1 : vector<16x500xf32>, i32 -> vector<16x500xf32>
    %cst_55 = arith.constant 0.000000e+00 : f32
    %91 = vector.broadcast %cst_55 : f32 to vector<16x500xf32>
    %92 = arith.select %89, %91, %90 : vector<16x500xi1>, vector<16x500xf32>
    %cst_56 = arith.constant dense<0.000000e+00> : vector<32x500xf32>
    %93 = tpu.matmul %86, %92, %cst_56 {dimension_numbers = #tpu.dot_dimension_numbers<[1], [0], [0], [1], [0, 0, 1, 1], [], []>} : vector<32x16xf32>, vector<16x500xf32>, vector<32x500xf32> -> vector<32x500xf32>
    %94 = arith.addf %84, %93 : vector<32x500xf32>
    %c0_57 = arith.constant 0 : index
    %c0_58 = arith.constant 0 : index
    %95 = vector.load %arg8[%c0_57, %c0_58] : memref<32x1xf32, #tpu.memory_space<vmem>>, vector<32x1xf32>
    %96 = vector.broadcast %95 : vector<32x1xf32> to vector<32x500xf32>
    %97 = arith.addf %94, %96 : vector<32x500xf32>
    %cst_59 = arith.constant 0.000000e+00 : f32
    %98 = vector.broadcast %cst_59 : f32 to vector<32x500xf32>
    %99 = arith.cmpf oge, %97, %98 : vector<32x500xf32>
    %cst_60 = arith.constant 0.00999999977 : f32
    %100 = vector.broadcast %cst_60 : f32 to vector<32x500xf32>
    %101 = arith.mulf %100, %97 : vector<32x500xf32>
    %102 = arith.select %99, %97, %101 : vector<32x500xi1>, vector<32x500xf32>
    %c0_61 = arith.constant 0 : index
    %c0_62 = arith.constant 0 : index
    %c0_63 = arith.constant 0 : index
    %103 = vector.load %arg9[%c0_61, %c0_62, %c0_63] : memref<3x32x32xf32, #tpu.memory_space<vmem>>, vector<1x32x32xf32>
    %104 = vector.shape_cast %103 : vector<1x32x32xf32> to vector<32x32xf32>
    %105 = tpu.iota {dimensions = array<i32: 1>} : vector<32x500xi32>
    %c0_i32_64 = arith.constant 0 : i32
    %106 = vector.broadcast %c0_i32_64 : i32 to vector<32x500xi32>
    %107 = arith.cmpi eq, %105, %106 : vector<32x500xi32>
    %c1_i32_65 = arith.constant 1 : i32
    %108 = tpu.dynamic_rotate %102 by %c1_i32_65 dim 1 : vector<32x500xf32>, i32 -> vector<32x500xf32>
    %cst_66 = arith.constant 0.000000e+00 : f32
    %109 = vector.broadcast %cst_66 : f32 to vector<32x500xf32>
    %110 = arith.select %107, %109, %108 : vector<32x500xi1>, vector<32x500xf32>
    %cst_67 = arith.constant dense<0.000000e+00> : vector<32x500xf32>
    %111 = tpu.matmul %104, %110, %cst_67 {dimension_numbers = #tpu.dot_dimension_numbers<[1], [0], [0], [1], [0, 0, 1, 1], [], []>} : vector<32x32xf32>, vector<32x500xf32>, vector<32x500xf32> -> vector<32x500xf32>
    %c1_68 = arith.constant 1 : index
    %c0_69 = arith.constant 0 : index
    %c0_70 = arith.constant 0 : index
    %112 = vector.load %arg9[%c1_68, %c0_69, %c0_70] : memref<3x32x32xf32, #tpu.memory_space<vmem>>, vector<1x32x32xf32>
    %113 = vector.shape_cast %112 : vector<1x32x32xf32> to vector<32x32xf32>
    %cst_71 = arith.constant dense<0.000000e+00> : vector<32x500xf32>
    %114 = tpu.matmul %113, %102, %cst_71 {dimension_numbers = #tpu.dot_dimension_numbers<[1], [0], [0], [1], [0, 0, 1, 1], [], []>} : vector<32x32xf32>, vector<32x500xf32>, vector<32x500xf32> -> vector<32x500xf32>
    %115 = arith.addf %111, %114 : vector<32x500xf32>
    %c2_72 = arith.constant 2 : index
    %c0_73 = arith.constant 0 : index
    %c0_74 = arith.constant 0 : index
    %116 = vector.load %arg9[%c2_72, %c0_73, %c0_74] : memref<3x32x32xf32, #tpu.memory_space<vmem>>, vector<1x32x32xf32>
    %117 = vector.shape_cast %116 : vector<1x32x32xf32> to vector<32x32xf32>
    %118 = tpu.iota {dimensions = array<i32: 1>} : vector<32x500xi32>
    %c499_i32_75 = arith.constant 499 : i32
    %119 = vector.broadcast %c499_i32_75 : i32 to vector<32x500xi32>
    %120 = arith.cmpi eq, %118, %119 : vector<32x500xi32>
    %c499_i32_76 = arith.constant 499 : i32
    %121 = tpu.dynamic_rotate %102 by %c499_i32_76 dim 1 : vector<32x500xf32>, i32 -> vector<32x500xf32>
    %cst_77 = arith.constant 0.000000e+00 : f32
    %122 = vector.broadcast %cst_77 : f32 to vector<32x500xf32>
    %123 = arith.select %120, %122, %121 : vector<32x500xi1>, vector<32x500xf32>
    %cst_78 = arith.constant dense<0.000000e+00> : vector<32x500xf32>
    %124 = tpu.matmul %117, %123, %cst_78 {dimension_numbers = #tpu.dot_dimension_numbers<[1], [0], [0], [1], [0, 0, 1, 1], [], []>} : vector<32x32xf32>, vector<32x500xf32>, vector<32x500xf32> -> vector<32x500xf32>
    %125 = arith.addf %115, %124 : vector<32x500xf32>
    %c0_79 = arith.constant 0 : index
    %c0_80 = arith.constant 0 : index
    %126 = vector.load %arg11[%c0_79, %c0_80] : memref<500x250xf32, #tpu.memory_space<vmem>>, vector<500x250xf32>
    %cst_81 = arith.constant dense<0.000000e+00> : vector<32x250xf32>
    %127 = tpu.matmul %125, %126, %cst_81 {dimension_numbers = #tpu.dot_dimension_numbers<[1], [0], [0], [1], [0, 0, 1, 1], [], []>} : vector<32x500xf32>, vector<500x250xf32>, vector<32x250xf32> -> vector<32x250xf32>
    %c0_82 = arith.constant 0 : index
    %c0_83 = arith.constant 0 : index
    %128 = vector.load %arg10[%c0_82, %c0_83] : memref<32x1xf32, #tpu.memory_space<vmem>>, vector<32x1xf32>
    %129 = vector.broadcast %128 : vector<32x1xf32> to vector<32x250xf32>
    %130 = arith.addf %127, %129 : vector<32x250xf32>
    %cst_84 = arith.constant 0.000000e+00 : f32
    %131 = vector.broadcast %cst_84 : f32 to vector<32x250xf32>
    %132 = arith.cmpf oge, %130, %131 : vector<32x250xf32>
    %cst_85 = arith.constant 0.00999999977 : f32
    %133 = vector.broadcast %cst_85 : f32 to vector<32x250xf32>
    %134 = arith.mulf %133, %130 : vector<32x250xf32>
    %135 = arith.select %132, %130, %134 : vector<32x250xi1>, vector<32x250xf32>
    %c0_86 = arith.constant 0 : index
    %c0_87 = arith.constant 0 : index
    %c0_88 = arith.constant 0 : index
    %136 = vector.load %arg12[%c0_86, %c0_87, %c0_88] : memref<3x64x32xf32, #tpu.memory_space<vmem>>, vector<1x64x32xf32>
    %137 = vector.shape_cast %136 : vector<1x64x32xf32> to vector<64x32xf32>
    %138 = tpu.iota {dimensions = array<i32: 1>} : vector<32x250xi32>
    %c0_i32_89 = arith.constant 0 : i32
    %139 = vector.broadcast %c0_i32_89 : i32 to vector<32x250xi32>
    %140 = arith.cmpi eq, %138, %139 : vector<32x250xi32>
    %c1_i32_90 = arith.constant 1 : i32
    %141 = tpu.dynamic_rotate %135 by %c1_i32_90 dim 1 : vector<32x250xf32>, i32 -> vector<32x250xf32>
    %cst_91 = arith.constant 0.000000e+00 : f32
    %142 = vector.broadcast %cst_91 : f32 to vector<32x250xf32>
    %143 = arith.select %140, %142, %141 : vector<32x250xi1>, vector<32x250xf32>
    %cst_92 = arith.constant dense<0.000000e+00> : vector<64x250xf32>
    %144 = tpu.matmul %137, %143, %cst_92 {dimension_numbers = #tpu.dot_dimension_numbers<[1], [0], [0], [1], [0, 0, 1, 1], [], []>} : vector<64x32xf32>, vector<32x250xf32>, vector<64x250xf32> -> vector<64x250xf32>
    %c1_93 = arith.constant 1 : index
    %c0_94 = arith.constant 0 : index
    %c0_95 = arith.constant 0 : index
    %145 = vector.load %arg12[%c1_93, %c0_94, %c0_95] : memref<3x64x32xf32, #tpu.memory_space<vmem>>, vector<1x64x32xf32>
    %146 = vector.shape_cast %145 : vector<1x64x32xf32> to vector<64x32xf32>
    %cst_96 = arith.constant dense<0.000000e+00> : vector<64x250xf32>
    %147 = tpu.matmul %146, %135, %cst_96 {dimension_numbers = #tpu.dot_dimension_numbers<[1], [0], [0], [1], [0, 0, 1, 1], [], []>} : vector<64x32xf32>, vector<32x250xf32>, vector<64x250xf32> -> vector<64x250xf32>
    %148 = arith.addf %144, %147 : vector<64x250xf32>
    %c2_97 = arith.constant 2 : index
    %c0_98 = arith.constant 0 : index
    %c0_99 = arith.constant 0 : index
    %149 = vector.load %arg12[%c2_97, %c0_98, %c0_99] : memref<3x64x32xf32, #tpu.memory_space<vmem>>, vector<1x64x32xf32>
    %150 = vector.shape_cast %149 : vector<1x64x32xf32> to vector<64x32xf32>
    %151 = tpu.iota {dimensions = array<i32: 1>} : vector<32x250xi32>
    %c249_i32 = arith.constant 249 : i32
    %152 = vector.broadcast %c249_i32 : i32 to vector<32x250xi32>
    %153 = arith.cmpi eq, %151, %152 : vector<32x250xi32>
    %c249_i32_100 = arith.constant 249 : i32
    %154 = tpu.dynamic_rotate %135 by %c249_i32_100 dim 1 : vector<32x250xf32>, i32 -> vector<32x250xf32>
    %cst_101 = arith.constant 0.000000e+00 : f32
    %155 = vector.broadcast %cst_101 : f32 to vector<32x250xf32>
    %156 = arith.select %153, %155, %154 : vector<32x250xi1>, vector<32x250xf32>
    %cst_102 = arith.constant dense<0.000000e+00> : vector<64x250xf32>
    %157 = tpu.matmul %150, %156, %cst_102 {dimension_numbers = #tpu.dot_dimension_numbers<[1], [0], [0], [1], [0, 0, 1, 1], [], []>} : vector<64x32xf32>, vector<32x250xf32>, vector<64x250xf32> -> vector<64x250xf32>
    %158 = arith.addf %148, %157 : vector<64x250xf32>
    %c0_103 = arith.constant 0 : index
    %c0_104 = arith.constant 0 : index
    %159 = vector.load %arg13[%c0_103, %c0_104] : memref<64x1xf32, #tpu.memory_space<vmem>>, vector<64x1xf32>
    %160 = vector.broadcast %159 : vector<64x1xf32> to vector<64x250xf32>
    %161 = arith.addf %158, %160 : vector<64x250xf32>
    %cst_105 = arith.constant 0.000000e+00 : f32
    %162 = vector.broadcast %cst_105 : f32 to vector<64x250xf32>
    %163 = arith.cmpf oge, %161, %162 : vector<64x250xf32>
    %cst_106 = arith.constant 0.00999999977 : f32
    %164 = vector.broadcast %cst_106 : f32 to vector<64x250xf32>
    %165 = arith.mulf %164, %161 : vector<64x250xf32>
    %166 = arith.select %163, %161, %165 : vector<64x250xi1>, vector<64x250xf32>
    %c0_107 = arith.constant 0 : index
    %c0_108 = arith.constant 0 : index
    %c0_109 = arith.constant 0 : index
    %167 = vector.load %arg14[%c0_107, %c0_108, %c0_109] : memref<3x64x64xf32, #tpu.memory_space<vmem>>, vector<1x64x64xf32>
    %168 = vector.shape_cast %167 : vector<1x64x64xf32> to vector<64x64xf32>
    %169 = tpu.iota {dimensions = array<i32: 1>} : vector<64x250xi32>
    %c0_i32_110 = arith.constant 0 : i32
    %170 = vector.broadcast %c0_i32_110 : i32 to vector<64x250xi32>
    %171 = arith.cmpi eq, %169, %170 : vector<64x250xi32>
    %c1_i32_111 = arith.constant 1 : i32
    %172 = tpu.dynamic_rotate %166 by %c1_i32_111 dim 1 : vector<64x250xf32>, i32 -> vector<64x250xf32>
    %cst_112 = arith.constant 0.000000e+00 : f32
    %173 = vector.broadcast %cst_112 : f32 to vector<64x250xf32>
    %174 = arith.select %171, %173, %172 : vector<64x250xi1>, vector<64x250xf32>
    %cst_113 = arith.constant dense<0.000000e+00> : vector<64x250xf32>
    %175 = tpu.matmul %168, %174, %cst_113 {dimension_numbers = #tpu.dot_dimension_numbers<[1], [0], [0], [1], [0, 0, 1, 1], [], []>} : vector<64x64xf32>, vector<64x250xf32>, vector<64x250xf32> -> vector<64x250xf32>
    %c1_114 = arith.constant 1 : index
    %c0_115 = arith.constant 0 : index
    %c0_116 = arith.constant 0 : index
    %176 = vector.load %arg14[%c1_114, %c0_115, %c0_116] : memref<3x64x64xf32, #tpu.memory_space<vmem>>, vector<1x64x64xf32>
    %177 = vector.shape_cast %176 : vector<1x64x64xf32> to vector<64x64xf32>
    %cst_117 = arith.constant dense<0.000000e+00> : vector<64x250xf32>
    %178 = tpu.matmul %177, %166, %cst_117 {dimension_numbers = #tpu.dot_dimension_numbers<[1], [0], [0], [1], [0, 0, 1, 1], [], []>} : vector<64x64xf32>, vector<64x250xf32>, vector<64x250xf32> -> vector<64x250xf32>
    %179 = arith.addf %175, %178 : vector<64x250xf32>
    %c2_118 = arith.constant 2 : index
    %c0_119 = arith.constant 0 : index
    %c0_120 = arith.constant 0 : index
    %180 = vector.load %arg14[%c2_118, %c0_119, %c0_120] : memref<3x64x64xf32, #tpu.memory_space<vmem>>, vector<1x64x64xf32>
    %181 = vector.shape_cast %180 : vector<1x64x64xf32> to vector<64x64xf32>
    %182 = tpu.iota {dimensions = array<i32: 1>} : vector<64x250xi32>
    %c249_i32_121 = arith.constant 249 : i32
    %183 = vector.broadcast %c249_i32_121 : i32 to vector<64x250xi32>
    %184 = arith.cmpi eq, %182, %183 : vector<64x250xi32>
    %c249_i32_122 = arith.constant 249 : i32
    %185 = tpu.dynamic_rotate %166 by %c249_i32_122 dim 1 : vector<64x250xf32>, i32 -> vector<64x250xf32>
    %cst_123 = arith.constant 0.000000e+00 : f32
    %186 = vector.broadcast %cst_123 : f32 to vector<64x250xf32>
    %187 = arith.select %184, %186, %185 : vector<64x250xi1>, vector<64x250xf32>
    %cst_124 = arith.constant dense<0.000000e+00> : vector<64x250xf32>
    %188 = tpu.matmul %181, %187, %cst_124 {dimension_numbers = #tpu.dot_dimension_numbers<[1], [0], [0], [1], [0, 0, 1, 1], [], []>} : vector<64x64xf32>, vector<64x250xf32>, vector<64x250xf32> -> vector<64x250xf32>
    %189 = arith.addf %179, %188 : vector<64x250xf32>
    %c0_125 = arith.constant 0 : index
    %c0_126 = arith.constant 0 : index
    %190 = vector.load %arg16[%c0_125, %c0_126] : memref<250x125xf32, #tpu.memory_space<vmem>>, vector<250x125xf32>
    %cst_127 = arith.constant dense<0.000000e+00> : vector<64x125xf32>
    %191 = tpu.matmul %189, %190, %cst_127 {dimension_numbers = #tpu.dot_dimension_numbers<[1], [0], [0], [1], [0, 0, 1, 1], [], []>} : vector<64x250xf32>, vector<250x125xf32>, vector<64x125xf32> -> vector<64x125xf32>
    %c0_128 = arith.constant 0 : index
    %c0_129 = arith.constant 0 : index
    %192 = vector.load %arg15[%c0_128, %c0_129] : memref<64x1xf32, #tpu.memory_space<vmem>>, vector<64x1xf32>
    %193 = vector.broadcast %192 : vector<64x1xf32> to vector<64x125xf32>
    %194 = arith.addf %191, %193 : vector<64x125xf32>
    %cst_130 = arith.constant 0.000000e+00 : f32
    %195 = vector.broadcast %cst_130 : f32 to vector<64x125xf32>
    %196 = arith.cmpf oge, %194, %195 : vector<64x125xf32>
    %cst_131 = arith.constant 0.00999999977 : f32
    %197 = vector.broadcast %cst_131 : f32 to vector<64x125xf32>
    %198 = arith.mulf %197, %194 : vector<64x125xf32>
    %199 = arith.select %196, %194, %198 : vector<64x125xi1>, vector<64x125xf32>
    %c0_132 = arith.constant 0 : index
    %c0_133 = arith.constant 0 : index
    %200 = vector.load %arg17[%c0_132, %c0_133] : memref<8x64xf32, #tpu.memory_space<vmem>>, vector<8x64xf32>
    %cst_134 = arith.constant dense<0.000000e+00> : vector<8x125xf32>
    %201 = tpu.matmul %200, %199, %cst_134 {dimension_numbers = #tpu.dot_dimension_numbers<[1], [0], [0], [1], [0, 0, 1, 1], [], []>} : vector<8x64xf32>, vector<64x125xf32>, vector<8x125xf32> -> vector<8x125xf32>
    %c0_135 = arith.constant 0 : index
    %c0_136 = arith.constant 0 : index
    %202 = vector.load %arg18[%c0_135, %c0_136] : memref<8x1xf32, #tpu.memory_space<vmem>>, vector<8x1xf32>
    %203 = vector.broadcast %202 : vector<8x1xf32> to vector<8x125xf32>
    %204 = arith.addf %201, %203 : vector<8x125xf32>
    %cst_137 = arith.constant 0.000000e+00 : f32
    %205 = vector.broadcast %cst_137 : f32 to vector<8x125xf32>
    %206 = arith.cmpf oge, %204, %205 : vector<8x125xf32>
    %cst_138 = arith.constant 0.00999999977 : f32
    %207 = vector.broadcast %cst_138 : f32 to vector<8x125xf32>
    %208 = arith.mulf %207, %204 : vector<8x125xf32>
    %209 = arith.select %206, %204, %208 : vector<8x125xi1>, vector<8x125xf32>
    %c0_139 = arith.constant 0 : index
    %c0_140 = arith.constant 0 : index
    %210 = vector.load %arg20[%c0_139, %c0_140] : memref<1x1000xf32, #tpu.memory_space<vmem>>, vector<1x1000xf32>
    %211 = vector.extract_strided_slice %209 {offsets = [0, 0], sizes = [1, 125], strides = [1, 1]} : vector<8x125xf32> to vector<1x125xf32>
    %c0_141 = arith.constant 0 : index
    %c0_142 = arith.constant 0 : index
    %c0_143 = arith.constant 0 : index
    %212 = vector.load %arg19[%c0_141, %c0_142, %c0_143] : memref<8x125x1000xf32, #tpu.memory_space<vmem>>, vector<1x125x1000xf32>
    %213 = vector.shape_cast %212 : vector<1x125x1000xf32> to vector<125x1000xf32>
    %cst_144 = arith.constant dense<0.000000e+00> : vector<1x1000xf32>
    %214 = tpu.matmul %211, %213, %cst_144 {dimension_numbers = #tpu.dot_dimension_numbers<[1], [0], [0], [1], [0, 0, 1, 1], [], []>} : vector<1x125xf32>, vector<125x1000xf32>, vector<1x1000xf32> -> vector<1x1000xf32>
    %215 = arith.addf %210, %214 : vector<1x1000xf32>
    %216 = vector.extract_strided_slice %209 {offsets = [1, 0], sizes = [1, 125], strides = [1, 1]} : vector<8x125xf32> to vector<1x125xf32>
    %c1_145 = arith.constant 1 : index
    %c0_146 = arith.constant 0 : index
    %c0_147 = arith.constant 0 : index
    %217 = vector.load %arg19[%c1_145, %c0_146, %c0_147] : memref<8x125x1000xf32, #tpu.memory_space<vmem>>, vector<1x125x1000xf32>
    %218 = vector.shape_cast %217 : vector<1x125x1000xf32> to vector<125x1000xf32>
    %cst_148 = arith.constant dense<0.000000e+00> : vector<1x1000xf32>
    %219 = tpu.matmul %216, %218, %cst_148 {dimension_numbers = #tpu.dot_dimension_numbers<[1], [0], [0], [1], [0, 0, 1, 1], [], []>} : vector<1x125xf32>, vector<125x1000xf32>, vector<1x1000xf32> -> vector<1x1000xf32>
    %220 = arith.addf %215, %219 : vector<1x1000xf32>
    %221 = vector.extract_strided_slice %209 {offsets = [2, 0], sizes = [1, 125], strides = [1, 1]} : vector<8x125xf32> to vector<1x125xf32>
    %c2_149 = arith.constant 2 : index
    %c0_150 = arith.constant 0 : index
    %c0_151 = arith.constant 0 : index
    %222 = vector.load %arg19[%c2_149, %c0_150, %c0_151] : memref<8x125x1000xf32, #tpu.memory_space<vmem>>, vector<1x125x1000xf32>
    %223 = vector.shape_cast %222 : vector<1x125x1000xf32> to vector<125x1000xf32>
    %cst_152 = arith.constant dense<0.000000e+00> : vector<1x1000xf32>
    %224 = tpu.matmul %221, %223, %cst_152 {dimension_numbers = #tpu.dot_dimension_numbers<[1], [0], [0], [1], [0, 0, 1, 1], [], []>} : vector<1x125xf32>, vector<125x1000xf32>, vector<1x1000xf32> -> vector<1x1000xf32>
    %225 = arith.addf %220, %224 : vector<1x1000xf32>
    %226 = vector.extract_strided_slice %209 {offsets = [3, 0], sizes = [1, 125], strides = [1, 1]} : vector<8x125xf32> to vector<1x125xf32>
    %c3 = arith.constant 3 : index
    %c0_153 = arith.constant 0 : index
    %c0_154 = arith.constant 0 : index
    %227 = vector.load %arg19[%c3, %c0_153, %c0_154] : memref<8x125x1000xf32, #tpu.memory_space<vmem>>, vector<1x125x1000xf32>
    %228 = vector.shape_cast %227 : vector<1x125x1000xf32> to vector<125x1000xf32>
    %cst_155 = arith.constant dense<0.000000e+00> : vector<1x1000xf32>
    %229 = tpu.matmul %226, %228, %cst_155 {dimension_numbers = #tpu.dot_dimension_numbers<[1], [0], [0], [1], [0, 0, 1, 1], [], []>} : vector<1x125xf32>, vector<125x1000xf32>, vector<1x1000xf32> -> vector<1x1000xf32>
    %230 = arith.addf %225, %229 : vector<1x1000xf32>
    %231 = vector.extract_strided_slice %209 {offsets = [4, 0], sizes = [1, 125], strides = [1, 1]} : vector<8x125xf32> to vector<1x125xf32>
    %c4 = arith.constant 4 : index
    %c0_156 = arith.constant 0 : index
    %c0_157 = arith.constant 0 : index
    %232 = vector.load %arg19[%c4, %c0_156, %c0_157] : memref<8x125x1000xf32, #tpu.memory_space<vmem>>, vector<1x125x1000xf32>
    %233 = vector.shape_cast %232 : vector<1x125x1000xf32> to vector<125x1000xf32>
    %cst_158 = arith.constant dense<0.000000e+00> : vector<1x1000xf32>
    %234 = tpu.matmul %231, %233, %cst_158 {dimension_numbers = #tpu.dot_dimension_numbers<[1], [0], [0], [1], [0, 0, 1, 1], [], []>} : vector<1x125xf32>, vector<125x1000xf32>, vector<1x1000xf32> -> vector<1x1000xf32>
    %235 = arith.addf %230, %234 : vector<1x1000xf32>
    %236 = vector.extract_strided_slice %209 {offsets = [5, 0], sizes = [1, 125], strides = [1, 1]} : vector<8x125xf32> to vector<1x125xf32>
    %c5 = arith.constant 5 : index
    %c0_159 = arith.constant 0 : index
    %c0_160 = arith.constant 0 : index
    %237 = vector.load %arg19[%c5, %c0_159, %c0_160] : memref<8x125x1000xf32, #tpu.memory_space<vmem>>, vector<1x125x1000xf32>
    %238 = vector.shape_cast %237 : vector<1x125x1000xf32> to vector<125x1000xf32>
    %cst_161 = arith.constant dense<0.000000e+00> : vector<1x1000xf32>
    %239 = tpu.matmul %236, %238, %cst_161 {dimension_numbers = #tpu.dot_dimension_numbers<[1], [0], [0], [1], [0, 0, 1, 1], [], []>} : vector<1x125xf32>, vector<125x1000xf32>, vector<1x1000xf32> -> vector<1x1000xf32>
    %240 = arith.addf %235, %239 : vector<1x1000xf32>
    %241 = vector.extract_strided_slice %209 {offsets = [6, 0], sizes = [1, 125], strides = [1, 1]} : vector<8x125xf32> to vector<1x125xf32>
    %c6 = arith.constant 6 : index
    %c0_162 = arith.constant 0 : index
    %c0_163 = arith.constant 0 : index
    %242 = vector.load %arg19[%c6, %c0_162, %c0_163] : memref<8x125x1000xf32, #tpu.memory_space<vmem>>, vector<1x125x1000xf32>
    %243 = vector.shape_cast %242 : vector<1x125x1000xf32> to vector<125x1000xf32>
    %cst_164 = arith.constant dense<0.000000e+00> : vector<1x1000xf32>
    %244 = tpu.matmul %241, %243, %cst_164 {dimension_numbers = #tpu.dot_dimension_numbers<[1], [0], [0], [1], [0, 0, 1, 1], [], []>} : vector<1x125xf32>, vector<125x1000xf32>, vector<1x1000xf32> -> vector<1x1000xf32>
    %245 = arith.addf %240, %244 : vector<1x1000xf32>
    %246 = vector.extract_strided_slice %209 {offsets = [7, 0], sizes = [1, 125], strides = [1, 1]} : vector<8x125xf32> to vector<1x125xf32>
    %c7 = arith.constant 7 : index
    %c0_165 = arith.constant 0 : index
    %c0_166 = arith.constant 0 : index
    %247 = vector.load %arg19[%c7, %c0_165, %c0_166] : memref<8x125x1000xf32, #tpu.memory_space<vmem>>, vector<1x125x1000xf32>
    %248 = vector.shape_cast %247 : vector<1x125x1000xf32> to vector<125x1000xf32>
    %cst_167 = arith.constant dense<0.000000e+00> : vector<1x1000xf32>
    %249 = tpu.matmul %246, %248, %cst_167 {dimension_numbers = #tpu.dot_dimension_numbers<[1], [0], [0], [1], [0, 0, 1, 1], [], []>} : vector<1x125xf32>, vector<125x1000xf32>, vector<1x1000xf32> -> vector<1x1000xf32>
    %250 = arith.addf %245, %249 : vector<1x1000xf32>
    %cst_168 = arith.constant 0.000000e+00 : f32
    %251 = vector.broadcast %cst_168 : f32 to vector<1x1000xf32>
    %252 = arith.cmpf oge, %250, %251 : vector<1x1000xf32>
    %cst_169 = arith.constant 0.00999999977 : f32
    %253 = vector.broadcast %cst_169 : f32 to vector<1x1000xf32>
    %254 = arith.mulf %253, %250 : vector<1x1000xf32>
    %255 = arith.select %252, %250, %254 : vector<1x1000xi1>, vector<1x1000xf32>
    %c0_170 = arith.constant 0 : index
    %c0_171 = arith.constant 0 : index
    %c0_172 = arith.constant 0 : index
    %256 = vector.load %arg21[%c0_170, %c0_171, %c0_172] : memref<1x1x1000xf32, #tpu.memory_space<vmem>>, vector<1x1x1000xf32>
    %257 = vector.shape_cast %256 : vector<1x1x1000xf32> to vector<1x1000xf32>
    %258 = vector.shape_cast %255 : vector<1x1000xf32> to vector<1x1x1000xf32>
    tpu.vector_store %arg21[%c0_170, %c0_171, %c0_172], %258 {strides = array<i32>} : memref<1x1x1000xf32, #tpu.memory_space<vmem>>, vector<1x1x1000xf32>,
    return
  }
  func.func @transform_0(%arg0: i32) -> (i32, i32, i32) {
    %c0_i32 = arith.constant 0 : i32
    %c0_i32_0 = arith.constant 0 : i32
    %c0_i32_1 = arith.constant 0 : i32
    return %arg0, %c0_i32, %c0_i32_0 : i32, i32, i32
  }
  func.func @transform_1(%arg0: i32) -> (i32, i32, i32) {
    %c0_i32 = arith.constant 0 : i32
    %c0_i32_0 = arith.constant 0 : i32
    %c0_i32_1 = arith.constant 0 : i32
    %c0_i32_2 = arith.constant 0 : i32
    return %c0_i32, %c0_i32_0, %c0_i32_1 : i32, i32, i32
  }
  func.func @transform_2(%arg0: i32) -> (i32, i32) {
    %c0_i32 = arith.constant 0 : i32
    %c0_i32_0 = arith.constant 0 : i32
    %c0_i32_1 = arith.constant 0 : i32
    return %c0_i32, %c0_i32_0 : i32, i32
  }
  func.func @transform_3(%arg0: i32) -> (i32, i32, i32) {
    %c0_i32 = arith.constant 0 : i32
    %c0_i32_0 = arith.constant 0 : i32
    %c0_i32_1 = arith.constant 0 : i32
    %c0_i32_2 = arith.constant 0 : i32
    return %c0_i32, %c0_i32_0, %c0_i32_1 : i32, i32, i32
  }
  func.func @transform_4(%arg0: i32) -> (i32, i32) {
    %c0_i32 = arith.constant 0 : i32
    %c0_i32_0 = arith.constant 0 : i32
    %c0_i32_1 = arith.constant 0 : i32
    return %c0_i32, %c0_i32_0 : i32, i32
  }
  func.func @transform_5(%arg0: i32) -> (i32, i32) {
    %c0_i32 = arith.constant 0 : i32
    %c0_i32_0 = arith.constant 0 : i32
    %c0_i32_1 = arith.constant 0 : i32
    return %c0_i32, %c0_i32_0 : i32, i32
  }
  func.func @transform_6(%arg0: i32) -> (i32, i32, i32) {
    %c0_i32 = arith.constant 0 : i32
    %c0_i32_0 = arith.constant 0 : i32
    %c0_i32_1 = arith.constant 0 : i32
    %c0_i32_2 = arith.constant 0 : i32
    return %c0_i32, %c0_i32_0, %c0_i32_1 : i32, i32, i32
  }
  func.func @transform_7(%arg0: i32) -> (i32, i32) {
    %c0_i32 = arith.constant 0 : i32
    %c0_i32_0 = arith.constant 0 : i32
    %c0_i32_1 = arith.constant 0 : i32
    return %c0_i32, %c0_i32_0 : i32, i32
  }
  func.func @transform_8(%arg0: i32) -> (i32, i32, i32) {
    %c0_i32 = arith.constant 0 : i32
    %c0_i32_0 = arith.constant 0 : i32
    %c0_i32_1 = arith.constant 0 : i32
    %c0_i32_2 = arith.constant 0 : i32
    return %c0_i32, %c0_i32_0, %c0_i32_1 : i32, i32, i32
  }
  func.func @transform_9(%arg0: i32) -> (i32, i32) {
    %c0_i32 = arith.constant 0 : i32
    %c0_i32_0 = arith.constant 0 : i32
    %c0_i32_1 = arith.constant 0 : i32
    return %c0_i32, %c0_i32_0 : i32, i32
  }
  func.func @transform_10(%arg0: i32) -> (i32, i32) {
    %c0_i32 = arith.constant 0 : i32
    %c0_i32_0 = arith.constant 0 : i32
    %c0_i32_1 = arith.constant 0 : i32
    return %c0_i32, %c0_i32_0 : i32, i32
  }
  func.func @transform_11(%arg0: i32) -> (i32, i32, i32) {
    %c0_i32 = arith.constant 0 : i32
    %c0_i32_0 = arith.constant 0 : i32
    %c0_i32_1 = arith.constant 0 : i32
    %c0_i32_2 = arith.constant 0 : i32
    return %c0_i32, %c0_i32_0, %c0_i32_1 : i32, i32, i32
  }
  func.func @transform_12(%arg0: i32) -> (i32, i32) {
    %c0_i32 = arith.constant 0 : i32
    %c0_i32_0 = arith.constant 0 : i32
    %c0_i32_1 = arith.constant 0 : i32
    return %c0_i32, %c0_i32_0 : i32, i32
  }
  func.func @transform_13(%arg0: i32) -> (i32, i32, i32) {
    %c0_i32 = arith.constant 0 : i32
    %c0_i32_0 = arith.constant 0 : i32
    %c0_i32_1 = arith.constant 0 : i32
    %c0_i32_2 = arith.constant 0 : i32
    return %c0_i32, %c0_i32_0, %c0_i32_1 : i32, i32, i32
  }
  func.func @transform_14(%arg0: i32) -> (i32, i32) {
    %c0_i32 = arith.constant 0 : i32
    %c0_i32_0 = arith.constant 0 : i32
    %c0_i32_1 = arith.constant 0 : i32
    return %c0_i32, %c0_i32_0 : i32, i32
  }
  func.func @transform_15(%arg0: i32) -> (i32, i32) {
    %c0_i32 = arith.constant 0 : i32
    %c0_i32_0 = arith.constant 0 : i32
    %c0_i32_1 = arith.constant 0 : i32
    return %c0_i32, %c0_i32_0 : i32, i32
  }
  func.func @transform_16(%arg0: i32) -> (i32, i32) {
    %c0_i32 = arith.constant 0 : i32
    %c0_i32_0 = arith.constant 0 : i32
    %c0_i32_1 = arith.constant 0 : i32
    return %c0_i32, %c0_i32_0 : i32, i32
  }
  func.func @transform_17(%arg0: i32) -> (i32, i32) {
    %c0_i32 = arith.constant 0 : i32
    %c0_i32_0 = arith.constant 0 : i32
    %c0_i32_1 = arith.constant 0 : i32
    return %c0_i32, %c0_i32_0 : i32, i32
  }
  func.func @transform_18(%arg0: i32) -> (i32, i32, i32) {
    %c0_i32 = arith.constant 0 : i32
    %c0_i32_0 = arith.constant 0 : i32
    %c0_i32_1 = arith.constant 0 : i32
    %c0_i32_2 = arith.constant 0 : i32
    return %c0_i32, %c0_i32_0, %c0_i32_1 : i32, i32, i32
  }
  func.func @transform_19(%arg0: i32) -> (i32, i32) {
    %c0_i32 = arith.constant 0 : i32
    %c0_i32_0 = arith.constant 0 : i32
    %c0_i32_1 = arith.constant 0 : i32
    return %c0_i32, %c0_i32_0 : i32, i32
  }
  func.func @transform_20(%arg0: i32) -> (i32, i32, i32) {
    %c0_i32 = arith.constant 0 : i32
    %c0_i32_0 = arith.constant 0 : i32
    %c0_i32_1 = arith.constant 0 : i32
    return %arg0, %c0_i32, %c0_i32_0 : i32, i32, i32
  }
}

</mosaic_0001>

<llo_original>
// kernel: forward.1
$region0: #{forward.1}
  #allocation0 [shape = 'u32[]', space=smem, size = 0x4, offset = 0x4, fixed_abs, tag = 'smem constant byte address 0x4 - core index']
  #allocation1 [shape = 'u32[144,128]{1,0:T(1,128)}', space=vmem, size = 0x12000, scoped, tag = 'internal scratch']
  %s0 = inlined_call_operand.vmem [shape: f32[2,1,1000], index: 0, kind: input, shape index: {}]
  %s1 = inlined_call_operand.vmem [shape: f32[3,16,1], index: 1, kind: input, shape index: {}]
  %s2 = inlined_call_operand.vmem [shape: f32[16,1], index: 2, kind: input, shape index: {}]
  %s3 = inlined_call_operand.vmem [shape: f32[3,16,16], index: 3, kind: input, shape index: {}]
  %s4 = inlined_call_operand.vmem [shape: f32[16,1], index: 4, kind: input, shape index: {}]
  %s5 = inlined_call_operand.vmem [shape: f32[1000,500], index: 5, kind: input, shape index: {}]
  %s6 = inlined_call_operand.vmem [shape: f32[3,32,16], index: 6, kind: input, shape index: {}]
  %s7 = inlined_call_operand.vmem [shape: f32[32,1], index: 7, kind: input, shape index: {}]
  %s8 = inlined_call_operand.vmem [shape: f32[3,32,32], index: 8, kind: input, shape index: {}]
  %s9 = inlined_call_operand.vmem [shape: f32[32,1], index: 9, kind: input, shape index: {}]
  %s10 = inlined_call_operand.vmem [shape: f32[500,250], index: 10, kind: input, shape index: {}]
  %s11 = inlined_call_operand.vmem [shape: f32[3,64,32], index: 11, kind: input, shape index: {}]
  %s12 = inlined_call_operand.vmem [shape: f32[64,1], index: 12, kind: input, shape index: {}]
  %s13 = inlined_call_operand.vmem [shape: f32[3,64,64], index: 13, kind: input, shape index: {}]
  %s14 = inlined_call_operand.vmem [shape: f32[64,1], index: 14, kind: input, shape index: {}]
  %s15 = inlined_call_operand.vmem [shape: f32[250,125], index: 15, kind: input, shape index: {}]
  %s16 = inlined_call_operand.vmem [shape: f32[8,64], index: 16, kind: input, shape index: {}]
  %s17 = inlined_call_operand.vmem [shape: f32[8,1], index: 17, kind: input, shape index: {}]
  %s18 = inlined_call_operand.vmem [shape: f32[8,125,1000], index: 18, kind: input, shape index: {}]
  %s19 = inlined_call_operand.vmem [shape: f32[1,1000], index: 19, kind: input, shape index: {}]
  %s20 = inlined_call_operand.vmem [shape: f32[2,1,1000], index: 20, kind: output, shape index: {}]
  %s21 = sld [smem:[#allocation0]]
  $region113: #{forward.1} parent=0
    _
  %s23 = ssub.s32 1, %s21
  %s24 = scalar_select 0, %s23, %s21
  loop: start=0, step=1, limit=4
  $region2: #{forward.1} parent=0 // loop_pre_header
    _
  $region3: #{forward.1} parent=0 // loop_header
    %s26 = sphi 0, %s30
    %p27 = scmp.ge.s32.totalorder %s26, 4
    %s36 = sphi 0, %s38
    %s39 = sphi 0, %s36
    %s40 = sphi 0, %s39
    %s56 = sphi 0, %s40
    %s60 = sphi 0, %s60
    %s62 = sphi 0, %s60
    %s63 = sphi 0, %s62
    %s77 = sphi 0, %s63
    %s81 = sphi 0, %s81
    %s83 = sphi 0, %s81
    %s84 = sphi 0, %s83
    %s98 = sphi 0, %s84
    %s102 = sphi 0, %s102
    %s104 = sphi 0, %s102
    %s105 = sphi 0, %s104
    %s119 = sphi 0, %s105
    %s123 = sphi 0, %s123
    %s125 = sphi 0, %s123
    %s126 = sphi 0, %s125
    %s140 = sphi 0, %s126
    %s144 = sphi 0, %s144
    %s146 = sphi 0, %s144
    %s147 = sphi 0, %s146
    %s161 = sphi 0, %s147
    %s165 = sphi 0, %s165
    %s167 = sphi 0, %s165
    %s168 = sphi 0, %s167
    %s182 = sphi 0, %s168
    %s186 = sphi 0, %s186
    %s188 = sphi 0, %s186
    %s189 = sphi 0, %s188
    %s203 = sphi 0, %s189
    %s207 = sphi 0, %s207
    %s209 = sphi 0, %s207
    %s210 = sphi 0, %s209
    %s224 = sphi 0, %s210
    %s228 = sphi 0, %s228
    %s230 = sphi 0, %s228
    %s231 = sphi 0, %s230
    %s245 = sphi 0, %s231
    %s249 = sphi 0, %s249
    %s251 = sphi 0, %s249
    %s252 = sphi 0, %s251
    %s266 = sphi 0, %s252
    %s270 = sphi 0, %s270
    %s272 = sphi 0, %s270
    %s273 = sphi 0, %s272
    %s287 = sphi 0, %s273
    %s291 = sphi 0, %s291
    %s293 = sphi 0, %s291
    %s294 = sphi 0, %s293
    %s308 = sphi 0, %s294
    %s312 = sphi 0, %s312
    %s314 = sphi 0, %s312
    %s315 = sphi 0, %s314
    %s329 = sphi 0, %s315
    %s333 = sphi 0, %s333
    %s335 = sphi 0, %s333
    %s336 = sphi 0, %s335
    %s350 = sphi 0, %s336
    %s354 = sphi 0, %s354
    %s356 = sphi 0, %s354
    %s357 = sphi 0, %s356
    %s371 = sphi 0, %s357
    %s375 = sphi 0, %s375
    %s377 = sphi 0, %s375
    %s378 = sphi 0, %s377
    %s392 = sphi 0, %s378
    %s396 = sphi 0, %s396
    %s398 = sphi 0, %s396
    %s399 = sphi 0, %s398
    %s413 = sphi 0, %s399
    %s417 = sphi 0, %s417
    %s419 = sphi 0, %s417
    %s420 = sphi 0, %s419
    %s434 = sphi 0, %s420
    %s438 = sphi 0, %s438
    %s440 = sphi 0, %s438
    %s441 = sphi 0, %s440
    %s455 = sphi 0, %s441
    %s461 = sphi 0, %s463
    %s464 = sphi 0, %s461
    %s465 = sphi 0, %s464
    %s481 = sphi 0, %s465
  $region4: #{forward.1} parent=0 // loop_header_branch
    %29 = sbr.rel (%p27) target = $region8
  $region5: #{forward.1} parent=0 // loop_body
    %s31 = ssub.s32 %s26, 1
    %s32 = ssub.s32 %s26, 2
    %s33 = sadd.s32 %s26, 1
    %s34 = ssub.s32 %s26, %s33
    %p35 = scmp.eq.s32.totalorder %s34, 0
    %s37 = sadd.s32 %s36, 1
    %s38 = scalar_select %p35, %s36, %s37
    %p41 = pneg %p35
    %p42 = scmp.eq.s32.totalorder %s26, 1
    %p43 = por %p41, %p42
    %p44 = scmp.ne.s32.totalorder %s36, %s39
    %p45 = scmp.eq.s32.totalorder %s26, 0
    %p46 = por %p44, %p45
    %p47 = scmp.ne.s32.totalorder %s36, %s39
    %p48 = scmp.eq.s32.totalorder %s31, 1
    %p49 = por %p47, %p48
    %p50 = scmp.ne.s32.totalorder %s39, %s40
    %p51 = scmp.eq.s32.totalorder %s31, 0
    %p52 = por %p50, %p51
    %p53 = scmp.ne.s32.totalorder %s39, %s40
    %p54 = scmp.eq.s32.totalorder %s32, 1
    %p55 = por %p53, %p54
    %p57 = scmp.ne.s32.totalorder %s40, %s56
    %p58 = scmp.eq.s32.totalorder %s32, 0
    %p59 = por %p57, %p58
    %s61 = sadd.s32 %s60, 1
    %p64 = scmp.eq.s32.totalorder %s26, 1
    %p65 = scmp.ne.s32.totalorder %s60, %s62
    %p66 = scmp.eq.s32.totalorder %s26, 0
    %p67 = por %p65, %p66
    %p68 = scmp.ne.s32.totalorder %s60, %s62
    %p69 = scmp.eq.s32.totalorder %s31, 1
    %p70 = por %p68, %p69
    %p71 = scmp.ne.s32.totalorder %s62, %s63
    %p72 = scmp.eq.s32.totalorder %s31, 0
    %p73 = por %p71, %p72
    %p74 = scmp.ne.s32.totalorder %s62, %s63
    %p75 = scmp.eq.s32.totalorder %s32, 1
    %p76 = por %p74, %p75
    %p78 = scmp.ne.s32.totalorder %s63, %s77
    %p79 = scmp.eq.s32.totalorder %s32, 0
    %p80 = por %p78, %p79
    %s82 = sadd.s32 %s81, 1
    %p85 = scmp.eq.s32.totalorder %s26, 1
    %p86 = scmp.ne.s32.totalorder %s81, %s83
    %p87 = scmp.eq.s32.totalorder %s26, 0
    %p88 = por %p86, %p87
    %p89 = scmp.ne.s32.totalorder %s81, %s83
    %p90 = scmp.eq.s32.totalorder %s31, 1
    %p91 = por %p89, %p90
    %p92 = scmp.ne.s32.totalorder %s83, %s84
    %p93 = scmp.eq.s32.totalorder %s31, 0
    %p94 = por %p92, %p93
    %p95 = scmp.ne.s32.totalorder %s83, %s84
    %p96 = scmp.eq.s32.totalorder %s32, 1
    %p97 = por %p95, %p96
    %p99 = scmp.ne.s32.totalorder %s84, %s98
    %p100 = scmp.eq.s32.totalorder %s32, 0
    %p101 = por %p99, %p100
    %s103 = sadd.s32 %s102, 1
    %p106 = scmp.eq.s32.totalorder %s26, 1
    %p107 = scmp.ne.s32.totalorder %s102, %s104
    %p108 = scmp.eq.s32.totalorder %s26, 0
    %p109 = por %p107, %p108
    %p110 = scmp.ne.s32.totalorder %s102, %s104
    %p111 = scmp.eq.s32.totalorder %s31, 1
    %p112 = por %p110, %p111
    %p113 = scmp.ne.s32.totalorder %s104, %s105
    %p114 = scmp.eq.s32.totalorder %s31, 0
    %p115 = por %p113, %p114
    %p116 = scmp.ne.s32.totalorder %s104, %s105
    %p117 = scmp.eq.s32.totalorder %s32, 1
    %p118 = por %p116, %p117
    %p120 = scmp.ne.s32.totalorder %s105, %s119
    %p121 = scmp.eq.s32.totalorder %s32, 0
    %p122 = por %p120, %p121
    %s124 = sadd.s32 %s123, 1
    %p127 = scmp.eq.s32.totalorder %s26, 1
    %p128 = scmp.ne.s32.totalorder %s123, %s125
    %p129 = scmp.eq.s32.totalorder %s26, 0
    %p130 = por %p128, %p129
    %p131 = scmp.ne.s32.totalorder %s123, %s125
    %p132 = scmp.eq.s32.totalorder %s31, 1
    %p133 = por %p131, %p132
    %p134 = scmp.ne.s32.totalorder %s125, %s126
    %p135 = scmp.eq.s32.totalorder %s31, 0
    %p136 = por %p134, %p135
    %p137 = scmp.ne.s32.totalorder %s125, %s126
    %p138 = scmp.eq.s32.totalorder %s32, 1
    %p139 = por %p137, %p138
    %p141 = scmp.ne.s32.totalorder %s126, %s140
    %p142 = scmp.eq.s32.totalorder %s32, 0
    %p143 = por %p141, %p142
    %s145 = sadd.s32 %s144, 1
    %p148 = scmp.eq.s32.totalorder %s26, 1
    %p149 = scmp.ne.s32.totalorder %s144, %s146
    %p150 = scmp.eq.s32.totalorder %s26, 0
    %p151 = por %p149, %p150
    %p152 = scmp.ne.s32.totalorder %s144, %s146
    %p153 = scmp.eq.s32.totalorder %s31, 1
    %p154 = por %p152, %p153
    %p155 = scmp.ne.s32.totalorder %s146, %s147
    %p156 = scmp.eq.s32.totalorder %s31, 0
    %p157 = por %p155, %p156
    %p158 = scmp.ne.s32.totalorder %s146, %s147
    %p159 = scmp.eq.s32.totalorder %s32, 1
    %p160 = por %p158, %p159
    %p162 = scmp.ne.s32.totalorder %s147, %s161
    %p163 = scmp.eq.s32.totalorder %s32, 0
    %p164 = por %p162, %p163
    %s166 = sadd.s32 %s165, 1
    %p169 = scmp.eq.s32.totalorder %s26, 1
    %p170 = scmp.ne.s32.totalorder %s165, %s167
    %p171 = scmp.eq.s32.totalorder %s26, 0
    %p172 = por %p170, %p171
    %p173 = scmp.ne.s32.totalorder %s165, %s167
    %p174 = scmp.eq.s32.totalorder %s31, 1
    %p175 = por %p173, %p174
    %p176 = scmp.ne.s32.totalorder %s167, %s168
    %p177 = scmp.eq.s32.totalorder %s31, 0
    %p178 = por %p176, %p177
    %p179 = scmp.ne.s32.totalorder %s167, %s168
    %p180 = scmp.eq.s32.totalorder %s32, 1
    %p181 = por %p179, %p180
    %p183 = scmp.ne.s32.totalorder %s168, %s182
    %p184 = scmp.eq.s32.totalorder %s32, 0
    %p185 = por %p183, %p184
    %s187 = sadd.s32 %s186, 1
    %p190 = scmp.eq.s32.totalorder %s26, 1
    %p191 = scmp.ne.s32.totalorder %s186, %s188
    %p192 = scmp.eq.s32.totalorder %s26, 0
    %p193 = por %p191, %p192
    %p194 = scmp.ne.s32.totalorder %s186, %s188
    %p195 = scmp.eq.s32.totalorder %s31, 1
    %p196 = por %p194, %p195
    %p197 = scmp.ne.s32.totalorder %s188, %s189
    %p198 = scmp.eq.s32.totalorder %s31, 0
    %p199 = por %p197, %p198
    %p200 = scmp.ne.s32.totalorder %s188, %s189
    %p201 = scmp.eq.s32.totalorder %s32, 1
    %p202 = por %p200, %p201
    %p204 = scmp.ne.s32.totalorder %s189, %s203
    %p205 = scmp.eq.s32.totalorder %s32, 0
    %p206 = por %p204, %p205
    %s208 = sadd.s32 %s207, 1
    %p211 = scmp.eq.s32.totalorder %s26, 1
    %p212 = scmp.ne.s32.totalorder %s207, %s209
    %p213 = scmp.eq.s32.totalorder %s26, 0
    %p214 = por %p212, %p213
    %p215 = scmp.ne.s32.totalorder %s207, %s209
    %p216 = scmp.eq.s32.totalorder %s31, 1
    %p217 = por %p215, %p216
    %p218 = scmp.ne.s32.totalorder %s209, %s210
    %p219 = scmp.eq.s32.totalorder %s31, 0
    %p220 = por %p218, %p219
    %p221 = scmp.ne.s32.totalorder %s209, %s210
    %p222 = scmp.eq.s32.totalorder %s32, 1
    %p223 = por %p221, %p222
    %p225 = scmp.ne.s32.totalorder %s210, %s224
    %p226 = scmp.eq.s32.totalorder %s32, 0
    %p227 = por %p225, %p226
    %s229 = sadd.s32 %s228, 1
    %p232 = scmp.eq.s32.totalorder %s26, 1
    %p233 = scmp.ne.s32.totalorder %s228, %s230
    %p234 = scmp.eq.s32.totalorder %s26, 0
    %p235 = por %p233, %p234
    %p236 = scmp.ne.s32.totalorder %s228, %s230
    %p237 = scmp.eq.s32.totalorder %s31, 1
    %p238 = por %p236, %p237
    %p239 = scmp.ne.s32.totalorder %s230, %s231
    %p240 = scmp.eq.s32.totalorder %s31, 0
    %p241 = por %p239, %p240
    %p242 = scmp.ne.s32.totalorder %s230, %s231
    %p243 = scmp.eq.s32.totalorder %s32, 1
    %p244 = por %p242, %p243
    %p246 = scmp.ne.s32.totalorder %s231, %s245
    %p247 = scmp.eq.s32.totalorder %s32, 0
    %p248 = por %p246, %p247
    %s250 = sadd.s32 %s249, 1
    %p253 = scmp.eq.s32.totalorder %s26, 1
    %p254 = scmp.ne.s32.totalorder %s249, %s251
    %p255 = scmp.eq.s32.totalorder %s26, 0
    %p256 = por %p254, %p255
    %p257 = scmp.ne.s32.totalorder %s249, %s251
    %p258 = scmp.eq.s32.totalorder %s31, 1
    %p259 = por %p257, %p258
    %p260 = scmp.ne.s32.totalorder %s251, %s252
    %p261 = scmp.eq.s32.totalorder %s31, 0
    %p262 = por %p260, %p261
    %p263 = scmp.ne.s32.totalorder %s251, %s252
    %p264 = scmp.eq.s32.totalorder %s32, 1
    %p265 = por %p263, %p264
    %p267 = scmp.ne.s32.totalorder %s252, %s266
    %p268 = scmp.eq.s32.totalorder %s32, 0
    %p269 = por %p267, %p268
    %s271 = sadd.s32 %s270, 1
    %p274 = scmp.eq.s32.totalorder %s26, 1
    %p275 = scmp.ne.s32.totalorder %s270, %s272
    %p276 = scmp.eq.s32.totalorder %s26, 0
    %p277 = por %p275, %p276
    %p278 = scmp.ne.s32.totalorder %s270, %s272
    %p279 = scmp.eq.s32.totalorder %s31, 1
    %p280 = por %p278, %p279
    %p281 = scmp.ne.s32.totalorder %s272, %s273
    %p282 = scmp.eq.s32.totalorder %s31, 0
    %p283 = por %p281, %p282
    %p284 = scmp.ne.s32.totalorder %s272, %s273
    %p285 = scmp.eq.s32.totalorder %s32, 1
    %p286 = por %p284, %p285
    %p288 = scmp.ne.s32.totalorder %s273, %s287
    %p289 = scmp.eq.s32.totalorder %s32, 0
    %p290 = por %p288, %p289
    %s292 = sadd.s32 %s291, 1
    %p295 = scmp.eq.s32.totalorder %s26, 1
    %p296 = scmp.ne.s32.totalorder %s291, %s293
    %p297 = scmp.eq.s32.totalorder %s26, 0
    %p298 = por %p296, %p297
    %p299 = scmp.ne.s32.totalorder %s291, %s293
    %p300 = scmp.eq.s32.totalorder %s31, 1
    %p301 = por %p299, %p300
    %p302 = scmp.ne.s32.totalorder %s293, %s294
    %p303 = scmp.eq.s32.totalorder %s31, 0
    %p304 = por %p302, %p303
    %p305 = scmp.ne.s32.totalorder %s293, %s294
    %p306 = scmp.eq.s32.totalorder %s32, 1
    %p307 = por %p305, %p306
    %p309 = scmp.ne.s32.totalorder %s294, %s308
    %p310 = scmp.eq.s32.totalorder %s32, 0
    %p311 = por %p309, %p310
    %s313 = sadd.s32 %s312, 1
    %p316 = scmp.eq.s32.totalorder %s26, 1
    %p317 = scmp.ne.s32.totalorder %s312, %s314
    %p318 = scmp.eq.s32.totalorder %s26, 0
    %p319 = por %p317, %p318
    %p320 = scmp.ne.s32.totalorder %s312, %s314
    %p321 = scmp.eq.s32.totalorder %s31, 1
    %p322 = por %p320, %p321
    %p323 = scmp.ne.s32.totalorder %s314, %s315
    %p324 = scmp.eq.s32.totalorder %s31, 0
    %p325 = por %p323, %p324
    %p326 = scmp.ne.s32.totalorder %s314, %s315
    %p327 = scmp.eq.s32.totalorder %s32, 1
    %p328 = por %p326, %p327
    %p330 = scmp.ne.s32.totalorder %s315, %s329
    %p331 = scmp.eq.s32.totalorder %s32, 0
    %p332 = por %p330, %p331
    %s334 = sadd.s32 %s333, 1
    %p337 = scmp.eq.s32.totalorder %s26, 1
    %p338 = scmp.ne.s32.totalorder %s333, %s335
    %p339 = scmp.eq.s32.totalorder %s26, 0
    %p340 = por %p338, %p339
    %p341 = scmp.ne.s32.totalorder %s333, %s335
    %p342 = scmp.eq.s32.totalorder %s31, 1
    %p343 = por %p341, %p342
    %p344 = scmp.ne.s32.totalorder %s335, %s336
    %p345 = scmp.eq.s32.totalorder %s31, 0
    %p346 = por %p344, %p345
    %p347 = scmp.ne.s32.totalorder %s335, %s336
    %p348 = scmp.eq.s32.totalorder %s32, 1
    %p349 = por %p347, %p348
    %p351 = scmp.ne.s32.totalorder %s336, %s350
    %p352 = scmp.eq.s32.totalorder %s32, 0
    %p353 = por %p351, %p352
    %s355 = sadd.s32 %s354, 1
    %p358 = scmp.eq.s32.totalorder %s26, 1
    %p359 = scmp.ne.s32.totalorder %s354, %s356
    %p360 = scmp.eq.s32.totalorder %s26, 0
    %p361 = por %p359, %p360
    %p362 = scmp.ne.s32.totalorder %s354, %s356
    %p363 = scmp.eq.s32.totalorder %s31, 1
    %p364 = por %p362, %p363
    %p365 = scmp.ne.s32.totalorder %s356, %s357
    %p366 = scmp.eq.s32.totalorder %s31, 0
    %p367 = por %p365, %p366
    %p368 = scmp.ne.s32.totalorder %s356, %s357
    %p369 = scmp.eq.s32.totalorder %s32, 1
    %p370 = por %p368, %p369
    %p372 = scmp.ne.s32.totalorder %s357, %s371
    %p373 = scmp.eq.s32.totalorder %s32, 0
    %p374 = por %p372, %p373
    %s376 = sadd.s32 %s375, 1
    %p379 = scmp.eq.s32.totalorder %s26, 1
    %p380 = scmp.ne.s32.totalorder %s375, %s377
    %p381 = scmp.eq.s32.totalorder %s26, 0
    %p382 = por %p380, %p381
    %p383 = scmp.ne.s32.totalorder %s375, %s377
    %p384 = scmp.eq.s32.totalorder %s31, 1
    %p385 = por %p383, %p384
    %p386 = scmp.ne.s32.totalorder %s377, %s378
    %p387 = scmp.eq.s32.totalorder %s31, 0
    %p388 = por %p386, %p387
    %p389 = scmp.ne.s32.totalorder %s377, %s378
    %p390 = scmp.eq.s32.totalorder %s32, 1
    %p391 = por %p389, %p390
    %p393 = scmp.ne.s32.totalorder %s378, %s392
    %p394 = scmp.eq.s32.totalorder %s32, 0
    %p395 = por %p393, %p394
    %s397 = sadd.s32 %s396, 1
    %p400 = scmp.eq.s32.totalorder %s26, 1
    %p401 = scmp.ne.s32.totalorder %s396, %s398
    %p402 = scmp.eq.s32.totalorder %s26, 0
    %p403 = por %p401, %p402
    %p404 = scmp.ne.s32.totalorder %s396, %s398
    %p405 = scmp.eq.s32.totalorder %s31, 1
    %p406 = por %p404, %p405
    %p407 = scmp.ne.s32.totalorder %s398, %s399
    %p408 = scmp.eq.s32.totalorder %s31, 0
    %p409 = por %p407, %p408
    %p410 = scmp.ne.s32.totalorder %s398, %s399
    %p411 = scmp.eq.s32.totalorder %s32, 1
    %p412 = por %p410, %p411
    %p414 = scmp.ne.s32.totalorder %s399, %s413
    %p415 = scmp.eq.s32.totalorder %s32, 0
    %p416 = por %p414, %p415
    %s418 = sadd.s32 %s417, 1
    %p421 = scmp.eq.s32.totalorder %s26, 1
    %p422 = scmp.ne.s32.totalorder %s417, %s419
    %p423 = scmp.eq.s32.totalorder %s26, 0
    %p424 = por %p422, %p423
    %p425 = scmp.ne.s32.totalorder %s417, %s419
    %p426 = scmp.eq.s32.totalorder %s31, 1
    %p427 = por %p425, %p426
    %p428 = scmp.ne.s32.totalorder %s419, %s420
    %p429 = scmp.eq.s32.totalorder %s31, 0
    %p430 = por %p428, %p429
    %p431 = scmp.ne.s32.totalorder %s419, %s420
    %p432 = scmp.eq.s32.totalorder %s32, 1
    %p433 = por %p431, %p432
    %p435 = scmp.ne.s32.totalorder %s420, %s434
    %p436 = scmp.eq.s32.totalorder %s32, 0
    %p437 = por %p435, %p436
    %s439 = sadd.s32 %s438, 1
    %p442 = scmp.eq.s32.totalorder %s26, 1
    %p443 = scmp.ne.s32.totalorder %s438, %s440
    %p444 = scmp.eq.s32.totalorder %s26, 0
    %p445 = por %p443, %p444
    %p446 = scmp.ne.s32.totalorder %s438, %s440
    %p447 = scmp.eq.s32.totalorder %s31, 1
    %p448 = por %p446, %p447
    %p449 = scmp.ne.s32.totalorder %s440, %s441
    %p450 = scmp.eq.s32.totalorder %s31, 0
    %p451 = por %p449, %p450
    %p452 = scmp.ne.s32.totalorder %s440, %s441
    %p453 = scmp.eq.s32.totalorder %s32, 1
    %p454 = por %p452, %p453
    %p456 = scmp.ne.s32.totalorder %s441, %s455
    %p457 = scmp.eq.s32.totalorder %s32, 0
    %p458 = por %p456, %p457
    %s459 = ssub.s32 %s26, %s33
    %p460 = scmp.eq.s32.totalorder %s459, 0
    %s462 = sadd.s32 %s461, 1
    %s463 = scalar_select %p460, %s461, %s462
    %p466 = pneg %p460
    %p467 = scmp.eq.s32.totalorder %s26, 1
    %p468 = por %p466, %p467
    %p469 = scmp.ne.s32.totalorder %s461, %s464
    %p470 = scmp.eq.s32.totalorder %s26, 0
    %p471 = por %p469, %p470
    %p472 = scmp.ne.s32.totalorder %s461, %s464
    %p473 = scmp.eq.s32.totalorder %s31, 1
    %p474 = por %p472, %p473
    %p475 = scmp.ne.s32.totalorder %s464, %s465
    %p476 = scmp.eq.s32.totalorder %s31, 0
    %p477 = por %p475, %p476
    %p478 = scmp.ne.s32.totalorder %s464, %s465
    %p479 = scmp.eq.s32.totalorder %s32, 1
    %p480 = por %p478, %p479
    %p482 = scmp.ne.s32.totalorder %s465, %s481
    %p483 = scmp.eq.s32.totalorder %s32, 0
    %p484 = por %p482, %p483
    %p485 = scmp.le.s32.totalorder 1, %s26
    %p486 = scmp.lt.s32.totalorder %s26, 3
    %p487 = pnand %p485, %p486
    %p488 = pneg %p487
    // Predicated region
    $region9: #{forward.1} parent=5 // pred_check
      _
    $region10: #{forward.1} parent=5 // pred_check_branch
      %490 = sbr.rel (%p487) target = $region12
    $region11: #{forward.1} parent=5 // pred_region
      %s491 = ssub.s32 %s26, 1
      // Predicated region
      $region13: #{forward.1} parent=11 // pred_check
        %p492 = pneg %p73
      $region14: #{forward.1} parent=11 // pred_check_branch
        %494 = sbr.rel (%p492) target = $region16
      $region15: #{forward.1} parent=11 // pred_region
        _
      $region16: #{forward.1} parent=11 // pred_fallthru
        _
      // Predicated region
      $region17: #{forward.1} parent=11 // pred_check
        %p495 = pneg %p94
      $region18: #{forward.1} parent=11 // pred_check_branch
        %497 = sbr.rel (%p495) target = $region20
      $region19: #{forward.1} parent=11 // pred_region
        _
      $region20: #{forward.1} parent=11 // pred_fallthru
        _
      // Predicated region
      $region21: #{forward.1} parent=11 // pred_check
        %p498 = pneg %p115
      $region22: #{forward.1} parent=11 // pred_check_branch
        %500 = sbr.rel (%p498) target = $region24
      $region23: #{forward.1} parent=11 // pred_region
        _
      $region24: #{forward.1} parent=11 // pred_fallthru
        _
      // Predicated region
      $region25: #{forward.1} parent=11 // pred_check
        %p501 = pneg %p136
      $region26: #{forward.1} parent=11 // pred_check_branch
        %503 = sbr.rel (%p501) target = $region28
      $region27: #{forward.1} parent=11 // pred_region
        _
      $region28: #{forward.1} parent=11 // pred_fallthru
        _
      // Predicated region
      $region29: #{forward.1} parent=11 // pred_check
        %p504 = pneg %p157
      $region30: #{forward.1} parent=11 // pred_check_branch
        %506 = sbr.rel (%p504) target = $region32
      $region31: #{forward.1} parent=11 // pred_region
        _
      $region32: #{forward.1} parent=11 // pred_fallthru
        _
      // Predicated region
      $region33: #{forward.1} parent=11 // pred_check
        %p507 = pneg %p178
      $region34: #{forward.1} parent=11 // pred_check_branch
        %509 = sbr.rel (%p507) target = $region36
      $region35: #{forward.1} parent=11 // pred_region
        _
      $region36: #{forward.1} parent=11 // pred_fallthru
        _
      // Predicated region
      $region37: #{forward.1} parent=11 // pred_check
        %p510 = pneg %p199
      $region38: #{forward.1} parent=11 // pred_check_branch
        %512 = sbr.rel (%p510) target = $region40
      $region39: #{forward.1} parent=11 // pred_region
        _
      $region40: #{forward.1} parent=11 // pred_fallthru
        _
      // Predicated region
      $region41: #{forward.1} parent=11 // pred_check
        %p513 = pneg %p220
      $region42: #{forward.1} parent=11 // pred_check_branch
        %515 = sbr.rel (%p513) target = $region44
      $region43: #{forward.1} parent=11 // pred_region
        _
      $region44: #{forward.1} parent=11 // pred_fallthru
        _
      // Predicated region
      $region45: #{forward.1} parent=11 // pred_check
        %p516 = pneg %p241
      $region46: #{forward.1} parent=11 // pred_check_branch
        %518 = sbr.rel (%p516) target = $region48
      $region47: #{forward.1} parent=11 // pred_region
        _
      $region48: #{forward.1} parent=11 // pred_fallthru
        _
      // Predicated region
      $region49: #{forward.1} parent=11 // pred_check
        %p519 = pneg %p262
      $region50: #{forward.1} parent=11 // pred_check_branch
        %521 = sbr.rel (%p519) target = $region52
      $region51: #{forward.1} parent=11 // pred_region
        _
      $region52: #{forward.1} parent=11 // pred_fallthru
        _
      // Predicated region
      $region53: #{forward.1} parent=11 // pred_check
        %p522 = pneg %p283
      $region54: #{forward.1} parent=11 // pred_check_branch
        %524 = sbr.rel (%p522) target = $region56
      $region55: #{forward.1} parent=11 // pred_region
        _
      $region56: #{forward.1} parent=11 // pred_fallthru
        _
      // Predicated region
      $region57: #{forward.1} parent=11 // pred_check
        %p525 = pneg %p304
      $region58: #{forward.1} parent=11 // pred_check_branch
        %527 = sbr.rel (%p525) target = $region60
      $region59: #{forward.1} parent=11 // pred_region
        _
      $region60: #{forward.1} parent=11 // pred_fallthru
        _
      // Predicated region
      $region61: #{forward.1} parent=11 // pred_check
        %p528 = pneg %p325
      $region62: #{forward.1} parent=11 // pred_check_branch
        %530 = sbr.rel (%p528) target = $region64
      $region63: #{forward.1} parent=11 // pred_region
        _
      $region64: #{forward.1} parent=11 // pred_fallthru
        _
      // Predicated region
      $region65: #{forward.1} parent=11 // pred_check
        %p531 = pneg %p346
      $region66: #{forward.1} parent=11 // pred_check_branch
        %533 = sbr.rel (%p531) target = $region68
      $region67: #{forward.1} parent=11 // pred_region
        _
      $region68: #{forward.1} parent=11 // pred_fallthru
        _
      // Predicated region
      $region69: #{forward.1} parent=11 // pred_check
        %p534 = pneg %p367
      $region70: #{forward.1} parent=11 // pred_check_branch
        %536 = sbr.rel (%p534) target = $region72
      $region71: #{forward.1} parent=11 // pred_region
        _
      $region72: #{forward.1} parent=11 // pred_fallthru
        _
      // Predicated region
      $region73: #{forward.1} parent=11 // pred_check
        %p537 = pneg %p388
      $region74: #{forward.1} parent=11 // pred_check_branch
        %539 = sbr.rel (%p537) target = $region76
      $region75: #{forward.1} parent=11 // pred_region
        _
      $region76: #{forward.1} parent=11 // pred_fallthru
        _
      // Predicated region
      $region77: #{forward.1} parent=11 // pred_check
        %p540 = pneg %p409
      $region78: #{forward.1} parent=11 // pred_check_branch
        %542 = sbr.rel (%p540) target = $region80
      $region79: #{forward.1} parent=11 // pred_region
        _
      $region80: #{forward.1} parent=11 // pred_fallthru
        _
      // Predicated region
      $region81: #{forward.1} parent=11 // pred_check
        %p543 = pneg %p430
      $region82: #{forward.1} parent=11 // pred_check_branch
        %545 = sbr.rel (%p543) target = $region84
      $region83: #{forward.1} parent=11 // pred_region
        _
      $region84: #{forward.1} parent=11 // pred_fallthru
        _
      // Predicated region
      $region85: #{forward.1} parent=11 // pred_check
        %p546 = pneg %p451
      $region86: #{forward.1} parent=11 // pred_check_branch
        %548 = sbr.rel (%p546) target = $region88
      $region87: #{forward.1} parent=11 // pred_region
        _
      $region88: #{forward.1} parent=11 // pred_fallthru
        _
    $region12: #{forward.1} parent=5 // pred_fallthru
      _
    %p549 = scmp.lt.s32.totalorder %s26, 2
    // Predicated region
    $region89: #{forward.1} parent=5 // pred_check
      %p550 = pneg %p549
    $region90: #{forward.1} parent=5 // pred_check_branch
      %552 = sbr.rel (%p550) target = $region92
    $region91: #{forward.1} parent=5 // pred_region
      // Predicated region
      $region93: #{forward.1} parent=91 // pred_check
        %p553 = pneg %p46
      $region94: #{forward.1} parent=91 // pred_check_branch
        %555 = sbr.rel (%p553) target = $region96
      $region95: #{forward.1} parent=91 // pred_region
        %p556 = scmp.lt.s32.totalorder %s26, 1
        %s557 = scalar_select %p556, %s26, 1
        %s558 = smul.addr %s557, 8
        %s559 = scalar_lea.vmem %s0, %s558
      $region96: #{forward.1} parent=91 // pred_fallthru
        _
    $region92: #{forward.1} parent=5 // pred_fallthru
      _
    %p560 = scmp.le.s32.totalorder 1, %s26
    %p561 = scmp.lt.s32.totalorder %s26, 3
    %p562 = pnand %p560, %p561
    %p563 = pneg %p562
    // Predicated region
    $region97: #{forward.1} parent=5 // pred_check
      _
    $region98: #{forward.1} parent=5 // pred_check_branch
      %565 = sbr.rel (%p562) target = $region100
    $region99: #{forward.1} parent=5 // pred_region
      %s566 = ssub.s32 %s26, 1
      %p567 = scmp.lt.s32.totalorder %s31, 1
      %s568 = scalar_select %p567, %s31, 1
      %s569 = smul.addr %s568, 8
      %s570 = scalar_lea.vmem %s0, %s569
      %p571 = pneg %p52
      %p572 = pneg %p49
      %p573 = pneg %p73
      %p574 = pneg %p70
      %p575 = pneg %p94
      %p576 = pneg %p91
      %p577 = pneg %p115
      %p578 = pneg %p112
      %p579 = pneg %p136
      %p580 = pneg %p133
      %p581 = pneg %p157
      %p582 = pneg %p154
      %p583 = pneg %p178
      %p584 = pneg %p175
      %p585 = pneg %p199
      %p586 = pneg %p196
      %p587 = pneg %p220
      %p588 = pneg %p217
      %p589 = pneg %p241
      %p590 = pneg %p238
      %p591 = pneg %p262
      %p592 = pneg %p259
      %p593 = pneg %p283
      %p594 = pneg %p280
      %p595 = pneg %p304
      %p596 = pneg %p301
      %p597 = pneg %p325
      %p598 = pneg %p322
      %p599 = pneg %p346
      %p600 = pneg %p343
      %p601 = pneg %p367
      %p602 = pneg %p364
      %p603 = pneg %p388
      %p604 = pneg %p385
      %p605 = pneg %p409
      %p606 = pneg %p406
      %p607 = pneg %p430
      %p608 = pneg %p427
      %p609 = pneg %p451
      %p610 = pneg %p448
      %p611 = pneg %p477
      %p612 = pneg %p474
      %p613 = scmp.lt.s32.totalorder %s31, 1
      %s614 = scalar_select %p613, %s31, 1
      %s615 = smul.addr %s614, 8
      %s616 = scalar_lea.vmem %s20, %s615
      %p617 = scmp.lt.s32.totalorder %s31, 1
      %s618 = scalar_select %p617, %s31, 1
      %s619 = smul.addr %s618, 8
      %s620 = scalar_lea.vmem %s0, %s619
      %p621 = scmp.lt.s32.totalorder %s31, 1
      %s622 = scalar_select %p621, %s31, 1
      %s623 = smul.addr %s622, 8
      %s624 = scalar_lea.vmem %s20, %s623
      %v625 = vld [vmem:[%s620] sm:$0xff]
      %v626 = vld [vmem:[%s1] sm:$0xff]
      %v627 = vld [vmem:[%s1 + $0x8] sm:$0xff]
      %v628 = vlaneseq
      %v629 = vand.u32 %v628, 127
      %v630 = vadd.s32 %v629, 128
      %v631 = vadd.s32 %v629, 256
      %v632 = vadd.s32 %v629, 384
      %v633 = vadd.s32 %v629, 512
      %v634 = vadd.s32 %v629, 640
      %v635 = vadd.s32 %v629, 768
      %v636 = vadd.s32 %v629, 896
      %vm637 = vcmp.eq.s32.totalorder %v629, 0
      %vm638 = vcmp.eq.s32.totalorder %v630, 0
      %vm639 = vcmp.eq.s32.totalorder %v631, 0
      %vm640 = vcmp.eq.s32.totalorder %v632, 0
      %vm641 = vcmp.eq.s32.totalorder %v633, 0
      %vm642 = vcmp.eq.s32.totalorder %v634, 0
      %vm643 = vcmp.eq.s32.totalorder %v635, 0
      %vm644 = vcmp.eq.s32.totalorder %v636, 0
      %v646 = vlaneseq
      %v647 = vshrl.u32 %v646, 7
      %v648 = vsub.s32 0, %v647
      %v649 = vrot.slane %v625, %v648
      %v650 = vlaneseq
      %v651 = vshrl.u32 %v650, 7
      %v652 = vsub.s32 1, %v651
      %v653 = vrot.slane %v625, %v652
      %v654 = vlaneseq
      %v655 = vshrl.u32 %v654, 7
      %v656 = vsub.s32 2, %v655
      %v657 = vrot.slane %v625, %v656
      %v658 = vlaneseq
      %v659 = vshrl.u32 %v658, 7
      %v660 = vsub.s32 3, %v659
      %v661 = vrot.slane %v625, %v660
      %v662 = vlaneseq
      %v663 = vshrl.u32 %v662, 7
      %v664 = vsub.s32 4, %v663
      %v665 = vrot.slane %v625, %v664
      %v666 = vlaneseq
      %v667 = vshrl.u32 %v666, 7
      %v668 = vsub.s32 5, %v667
      %v669 = vrot.slane %v625, %v668
      %v670 = vlaneseq
      %v671 = vshrl.u32 %v670, 7
      %v672 = vsub.s32 6, %v671
      %v673 = vrot.slane %v625, %v672
      %v674 = vlaneseq
      %v675 = vshrl.u32 %v674, 7
      %v676 = vsub.s32 7, %v675
      %v677 = vrot.slane %v625, %v676
      %vm686 = vcmask 1048384
      %687 = vrot.lane.b32.xlu0 %v649, 104
      %v688 = vpop.permute.xlu0 %687
      %v689 = vsel %vm686, %v688, %v677
      %690 = vrot.lane.b32.xlu0 %v653, 104
      %v691 = vpop.permute.xlu0 %690
      %692 = vrot.lane.b32.xlu0 %v657, 104
      %v693 = vpop.permute.xlu0 %692
      %694 = vrot.lane.b32.xlu0 %v661, 104
      %v695 = vpop.permute.xlu0 %694
      %696 = vrot.lane.b32.xlu0 %v665, 104
      %v697 = vpop.permute.xlu0 %696
      %698 = vrot.lane.b32.xlu0 %v669, 104
      %v699 = vpop.permute.xlu0 %698
      %700 = vrot.lane.b32.xlu0 %v673, 104
      %v701 = vpop.permute.xlu0 %700
      %702 = vrot.lane.b32.xlu0 %v689, 104
      %v703 = vpop.permute.xlu0 %702
      %v704 = vsel %vm686, %v691, %v688
      %v705 = vsel %vm686, %v693, %v691
      %v706 = vsel %vm686, %v695, %v693
      %v707 = vsel %vm686, %v697, %v695
      %v708 = vsel %vm686, %v699, %v697
      %v709 = vsel %vm686, %v701, %v699
      %v710 = vsel %vm686, %v703, %v701
      %720 = vrot.lane.b32.xlu0 %v689, 25
      %v721 = vpop.permute.xlu0 %720
      %722 = vrot.lane.b32.xlu0 %v704, 25
      %v723 = vpop.permute.xlu0 %722
      %724 = vrot.lane.b32.xlu0 %v705, 25
      %v725 = vpop.permute.xlu0 %724
      %726 = vrot.lane.b32.xlu0 %v706, 25
      %v727 = vpop.permute.xlu0 %726
      %728 = vrot.lane.b32.xlu0 %v707, 25
      %v729 = vpop.permute.xlu0 %728
      %730 = vrot.lane.b32.xlu0 %v708, 25
      %v731 = vpop.permute.xlu0 %730
      %732 = vrot.lane.b32.xlu0 %v709, 25
      %v733 = vpop.permute.xlu0 %732
      %734 = vrot.lane.b32.xlu0 %v710, 25
      %v735 = vpop.permute.xlu0 %734
      %736 = vrot.lane.b32.xlu0 %v703, 25
      %v737 = vpop.permute.xlu0 %736
      %vm738 = vcmask 203776
      %v739 = vsel %vm738, %v721, %v723
      %v740 = vsel %vm738, %v723, %v725
      %v741 = vsel %vm738, %v725, %v727
      %v742 = vsel %vm738, %v727, %v729
      %v743 = vsel %vm738, %v729, %v731
      %v744 = vsel %vm738, %v731, %v733
      %v745 = vsel %vm738, %v733, %v735
      %v746 = vsel %vm738, %v735, %v737
      %v755 = vsel %vm637, 0.0, %v739
      %v756 = vsel %vm638, 0.0, %v740
      %v757 = vsel %vm639, 0.0, %v741
      %v758 = vsel %vm640, 0.0, %v742
      %v759 = vsel %vm641, 0.0, %v743
      %v760 = vsel %vm642, 0.0, %v744
      %v761 = vsel %vm643, 0.0, %v745
      %v762 = vsel %vm644, 0.0, %v746
      %764 = vset.pattern.permute.xlu0 0
      %765 = vperm.xlu0 %764, %v626
      %v766 = vpop.permute.xlu0 %765
      %769 = vset.pattern.permute.xlu0 0
      %770 = vperm.xlu0 %769, %v627
      %v771 = vpop.permute.xlu0 %770
      %v773 = vlaneseq
      %v774 = vshrl.u32 %v773, 7
      %v775 = vsub.s32 0, %v774
      %v776 = vrot.slane %v755, %v775
      %v777 = vlaneseq
      %v778 = vshrl.u32 %v777, 7
      %v779 = vsub.s32 0, %v778
      %v780 = vrot.slane %v756, %v779
      %v781 = vlaneseq
      %v782 = vshrl.u32 %v781, 7
      %v783 = vsub.s32 0, %v782
      %v784 = vrot.slane %v757, %v783
      %v785 = vlaneseq
      %v786 = vshrl.u32 %v785, 7
      %v787 = vsub.s32 0, %v786
      %v788 = vrot.slane %v758, %v787
      %v789 = vlaneseq
      %v790 = vshrl.u32 %v789, 7
      %v791 = vsub.s32 0, %v790
      %v792 = vrot.slane %v759, %v791
      %v793 = vlaneseq
      %v794 = vshrl.u32 %v793, 7
      %v795 = vsub.s32 0, %v794
      %v796 = vrot.slane %v760, %v795
      %v797 = vlaneseq
      %v798 = vshrl.u32 %v797, 7
      %v799 = vsub.s32 0, %v798
      %v800 = vrot.slane %v761, %v799
      %v801 = vlaneseq
      %v802 = vshrl.u32 %v801, 7
      %v803 = vsub.s32 0, %v802
      %v804 = vrot.slane %v762, %v803
      %v805 = vmul.f32 %v766, %v776
      %v806 = vmul.f32 %v766, %v780
      %v807 = vmul.f32 %v766, %v784
      %v808 = vmul.f32 %v766, %v788
      %v809 = vmul.f32 %v766, %v792
      %v810 = vmul.f32 %v766, %v796
      %v811 = vmul.f32 %v766, %v800
      %v812 = vmul.f32 %v766, %v804
      %v813 = vmul.f32 %v771, %v776
      %v814 = vmul.f32 %v771, %v780
      %v815 = vmul.f32 %v771, %v784
      %v816 = vmul.f32 %v771, %v788
      %v817 = vmul.f32 %v771, %v792
      %v818 = vmul.f32 %v771, %v796
      %v819 = vmul.f32 %v771, %v800
      %v820 = vmul.f32 %v771, %v804
      %s821 = scalar_lea.vmem %s1, 16
      %v822 = vld [vmem:[%s821] sm:$0xff]
      %v823 = vld [vmem:[%s821 + $0x8] sm:$0xff]
      %825 = vset.pattern.permute.xlu0 0
      %826 = vperm.xlu0 %825, %v822
      %v827 = vpop.permute.xlu0 %826
      %830 = vset.pattern.permute.xlu0 0
      %831 = vperm.xlu0 %830, %v823
      %v832 = vpop.permute.xlu0 %831
      %v834 = vmul.f32 %v827, %v649
      %v835 = vmul.f32 %v827, %v653
      %v836 = vmul.f32 %v827, %v657
      %v837 = vmul.f32 %v827, %v661
      %v838 = vmul.f32 %v827, %v665
      %v839 = vmul.f32 %v827, %v669
      %v840 = vmul.f32 %v827, %v673
      %v841 = vmul.f32 %v827, %v677
      %v842 = vmul.f32 %v832, %v649
      %v843 = vmul.f32 %v832, %v653
      %v844 = vmul.f32 %v832, %v657
      %v845 = vmul.f32 %v832, %v661
      %v846 = vmul.f32 %v832, %v665
      %v847 = vmul.f32 %v832, %v669
      %v848 = vmul.f32 %v832, %v673
      %v849 = vmul.f32 %v832, %v677
      %v850 = vadd.f32 %v805, %v834
      %v851 = vadd.f32 %v806, %v835
      %v852 = vadd.f32 %v807, %v836
      %v853 = vadd.f32 %v808, %v837
      %v854 = vadd.f32 %v809, %v838
      %v855 = vadd.f32 %v810, %v839
      %v856 = vadd.f32 %v811, %v840
      %v857 = vadd.f32 %v812, %v841
      %v858 = vadd.f32 %v813, %v842
      %v859 = vadd.f32 %v814, %v843
      %v860 = vadd.f32 %v815, %v844
      %v861 = vadd.f32 %v816, %v845
      %v862 = vadd.f32 %v817, %v846
      %v863 = vadd.f32 %v818, %v847
      %v864 = vadd.f32 %v819, %v848
      %v865 = vadd.f32 %v820, %v849
      %s866 = scalar_lea.vmem %s1, 32
      %v867 = vld [vmem:[%s866] sm:$0xff]
      %v868 = vld [vmem:[%s866 + $0x8] sm:$0xff]
      %vm869 = vcmp.eq.s32.totalorder %v629, 999
      %vm870 = vcmp.eq.s32.totalorder %v630, 999
      %vm871 = vcmp.eq.s32.totalorder %v631, 999
      %vm872 = vcmp.eq.s32.totalorder %v632, 999
      %vm873 = vcmp.eq.s32.totalorder %v633, 999
      %vm874 = vcmp.eq.s32.totalorder %v634, 999
      %vm875 = vcmp.eq.s32.totalorder %v635, 999
      %vm876 = vcmp.eq.s32.totalorder %v636, 999
      %877 = vrot.lane.b32.xlu0 %v649, 127
      %v878 = vpop.permute.xlu0 %877
      %879 = vrot.lane.b32.xlu0 %v653, 127
      %v880 = vpop.permute.xlu0 %879
      %881 = vrot.lane.b32.xlu0 %v657, 127
      %v882 = vpop.permute.xlu0 %881
      %883 = vrot.lane.b32.xlu0 %v661, 127
      %v884 = vpop.permute.xlu0 %883
      %885 = vrot.lane.b32.xlu0 %v665, 127
      %v886 = vpop.permute.xlu0 %885
      %887 = vrot.lane.b32.xlu0 %v669, 127
      %v888 = vpop.permute.xlu0 %887
      %889 = vrot.lane.b32.xlu0 %v673, 127
      %v890 = vpop.permute.xlu0 %889
      %891 = vrot.lane.b32.xlu0 %v689, 127
      %v892 = vpop.permute.xlu0 %891
      %vm893 = vcmask 1039360
      %v894 = vsel %vm893, %v878, %v880
      %v895 = vsel %vm893, %v880, %v882
      %v896 = vsel %vm893, %v882, %v884
      %v897 = vsel %vm893, %v884, %v886
      %v898 = vsel %vm893, %v886, %v888
      %v899 = vsel %vm893, %v888, %v890
      %v900 = vsel %vm893, %v890, %v892
      %v909 = vsel %vm869, 0.0, %v894
      %v910 = vsel %vm870, 0.0, %v895
      %v911 = vsel %vm871, 0.0, %v896
      %v912 = vsel %vm872, 0.0, %v897
      %v913 = vsel %vm873, 0.0, %v898
      %v914 = vsel %vm874, 0.0, %v899
      %v915 = vsel %vm875, 0.0, %v900
      %v916 = vsel %vm876, 0.0, %v892
      %918 = vset.pattern.permute.xlu0 0
      %919 = vperm.xlu0 %918, %v867
      %v920 = vpop.permute.xlu0 %919
      %923 = vset.pattern.permute.xlu0 0
      %924 = vperm.xlu0 %923, %v868
      %v925 = vpop.permute.xlu0 %924
      %v927 = vlaneseq
      %v928 = vshrl.u32 %v927, 7
      %v929 = vsub.s32 0, %v928
      %v930 = vrot.slane %v909, %v929
      %v931 = vlaneseq
      %v932 = vshrl.u32 %v931, 7
      %v933 = vsub.s32 0, %v932
      %v934 = vrot.slane %v910, %v933
      %v935 = vlaneseq
      %v936 = vshrl.u32 %v935, 7
      %v937 = vsub.s32 0, %v936
      %v938 = vrot.slane %v911, %v937
      %v939 = vlaneseq
      %v940 = vshrl.u32 %v939, 7
      %v941 = vsub.s32 0, %v940
      %v942 = vrot.slane %v912, %v941
      %v943 = vlaneseq
      %v944 = vshrl.u32 %v943, 7
      %v945 = vsub.s32 0, %v944
      %v946 = vrot.slane %v913, %v945
      %v947 = vlaneseq
      %v948 = vshrl.u32 %v947, 7
      %v949 = vsub.s32 0, %v948
      %v950 = vrot.slane %v914, %v949
      %v951 = vlaneseq
      %v952 = vshrl.u32 %v951, 7
      %v953 = vsub.s32 0, %v952
      %v954 = vrot.slane %v915, %v953
      %v955 = vlaneseq
      %v956 = vshrl.u32 %v955, 7
      %v957 = vsub.s32 0, %v956
      %v958 = vrot.slane %v916, %v957
      %v959 = vmul.f32 %v920, %v930
      %v960 = vmul.f32 %v920, %v934
      %v961 = vmul.f32 %v920, %v938
      %v962 = vmul.f32 %v920, %v942
      %v963 = vmul.f32 %v920, %v946
      %v964 = vmul.f32 %v920, %v950
      %v965 = vmul.f32 %v920, %v954
      %v966 = vmul.f32 %v920, %v958
      %v967 = vmul.f32 %v925, %v930
      %v968 = vmul.f32 %v925, %v934
      %v969 = vmul.f32 %v925, %v938
      %v970 = vmul.f32 %v925, %v942
      %v971 = vmul.f32 %v925, %v946
      %v972 = vmul.f32 %v925, %v950
      %v973 = vmul.f32 %v925, %v954
      %v974 = vmul.f32 %v925, %v958
      %v975 = vadd.f32 %v850, %v959
      %v976 = vadd.f32 %v851, %v960
      %v977 = vadd.f32 %v852, %v961
      %v978 = vadd.f32 %v853, %v962
      %v979 = vadd.f32 %v854, %v963
      %v980 = vadd.f32 %v855, %v964
      %v981 = vadd.f32 %v856, %v965
      %v982 = vadd.f32 %v857, %v966
      %v983 = vadd.f32 %v858, %v967
      %v984 = vadd.f32 %v859, %v968
      %v985 = vadd.f32 %v860, %v969
      %v986 = vadd.f32 %v861, %v970
      %v987 = vadd.f32 %v862, %v971
      %v988 = vadd.f32 %v863, %v972
      %v989 = vadd.f32 %v864, %v973
      %v990 = vadd.f32 %v865, %v974
      %v991 = vld [vmem:[%s2] sm:$0xff]
      %v992 = vld [vmem:[%s2 + $0x8] sm:$0xff]
      %994 = vset.pattern.permute.xlu0 0
      %995 = vperm.xlu0 %994, %v991
      %v996 = vpop.permute.xlu0 %995
      %999 = vset.pattern.permute.xlu0 0
      %1000 = vperm.xlu0 %999, %v992
      %v1001 = vpop.permute.xlu0 %1000
      %v1003 = vadd.f32 %v975, %v996
      %v1004 = vadd.f32 %v976, %v996
      %v1005 = vadd.f32 %v977, %v996
      %v1006 = vadd.f32 %v978, %v996
      %v1007 = vadd.f32 %v979, %v996
      %v1008 = vadd.f32 %v980, %v996
      %v1009 = vadd.f32 %v981, %v996
      %v1010 = vadd.f32 %v982, %v996
      %v1011 = vadd.f32 %v983, %v1001
      %v1012 = vadd.f32 %v984, %v1001
      %v1013 = vadd.f32 %v985, %v1001
      %v1014 = vadd.f32 %v986, %v1001
      %v1015 = vadd.f32 %v987, %v1001
      %v1016 = vadd.f32 %v988, %v1001
      %v1017 = vadd.f32 %v989, %v1001
      %v1018 = vadd.f32 %v990, %v1001
      %vm1019 = vcmp.ge.f32.partialorder %v1003, 0.0
      %vm1020 = vcmp.ge.f32.partialorder %v1004, 0.0
      %vm1021 = vcmp.ge.f32.partialorder %v1005, 0.0
      %vm1022 = vcmp.ge.f32.partialorder %v1006, 0.0
      %vm1023 = vcmp.ge.f32.partialorder %v1007, 0.0
      %vm1024 = vcmp.ge.f32.partialorder %v1008, 0.0
      %vm1025 = vcmp.ge.f32.partialorder %v1009, 0.0
      %vm1026 = vcmp.ge.f32.partialorder %v1010, 0.0
      %vm1027 = vcmp.ge.f32.partialorder %v1011, 0.0
      %vm1028 = vcmp.ge.f32.partialorder %v1012, 0.0
      %vm1029 = vcmp.ge.f32.partialorder %v1013, 0.0
      %vm1030 = vcmp.ge.f32.partialorder %v1014, 0.0
      %vm1031 = vcmp.ge.f32.partialorder %v1015, 0.0
      %vm1032 = vcmp.ge.f32.partialorder %v1016, 0.0
      %vm1033 = vcmp.ge.f32.partialorder %v1017, 0.0
      %vm1034 = vcmp.ge.f32.partialorder %v1018, 0.0
      %v1035 = vmul.f32 %v1003, 0.01
      %v1036 = vmul.f32 %v1004, 0.01
      %v1037 = vmul.f32 %v1005, 0.01
      %v1038 = vmul.f32 %v1006, 0.01
      %v1039 = vmul.f32 %v1007, 0.01
      %v1040 = vmul.f32 %v1008, 0.01
      %v1041 = vmul.f32 %v1009, 0.01
      %v1042 = vmul.f32 %v1010, 0.01
      %v1043 = vmul.f32 %v1011, 0.01
      %v1044 = vmul.f32 %v1012, 0.01
      %v1045 = vmul.f32 %v1013, 0.01
      %v1046 = vmul.f32 %v1014, 0.01
      %v1047 = vmul.f32 %v1015, 0.01
      %v1048 = vmul.f32 %v1016, 0.01
      %v1049 = vmul.f32 %v1017, 0.01
      %v1050 = vmul.f32 %v1018, 0.01
      %v1051 = vsel %vm1019, %v1003, %v1035
      %v1052 = vsel %vm1020, %v1004, %v1036
      %v1053 = vsel %vm1021, %v1005, %v1037
      %v1054 = vsel %vm1022, %v1006, %v1038
      %v1055 = vsel %vm1023, %v1007, %v1039
      %v1056 = vsel %vm1024, %v1008, %v1040
      %v1057 = vsel %vm1025, %v1009, %v1041
      %v1058 = vsel %vm1026, %v1010, %v1042
      %v1059 = vsel %vm1027, %v1011, %v1043
      %v1060 = vsel %vm1028, %v1012, %v1044
      %v1061 = vsel %vm1029, %v1013, %v1045
      %v1062 = vsel %vm1030, %v1014, %v1046
      %v1063 = vsel %vm1031, %v1015, %v1047
      %v1064 = vsel %vm1032, %v1016, %v1048
      %v1065 = vsel %vm1033, %v1017, %v1049
      %v1066 = vsel %vm1034, %v1018, %v1050
      %v1067 = vld [vmem:[%s3] sm:$0xff]
      %v1068 = vld [vmem:[%s3 + $0x8] sm:$0xff]
      %1069 = vrot.lane.b32.xlu0 %v1051, 104
      %v1070 = vpop.permute.xlu0 %1069
      %v1071 = vsel %vm686, %v1070, %v1058
      %1072 = vrot.lane.b32.xlu0 %v1059, 104
      %v1073 = vpop.permute.xlu0 %1072
      %v1074 = vsel %vm686, %v1073, %v1066
      %1075 = vrot.lane.b32.xlu0 %v1052, 104
      %v1076 = vpop.permute.xlu0 %1075
      %1077 = vrot.lane.b32.xlu0 %v1060, 104
      %v1078 = vpop.permute.xlu0 %1077
      %1079 = vrot.lane.b32.xlu0 %v1053, 104
      %v1080 = vpop.permute.xlu0 %1079
      %1081 = vrot.lane.b32.xlu0 %v1061, 104
      %v1082 = vpop.permute.xlu0 %1081
      %1083 = vrot.lane.b32.xlu0 %v1054, 104
      %v1084 = vpop.permute.xlu0 %1083
      %1085 = vrot.lane.b32.xlu0 %v1062, 104
      %v1086 = vpop.permute.xlu0 %1085
      %1087 = vrot.lane.b32.xlu0 %v1055, 104
      %v1088 = vpop.permute.xlu0 %1087
      %1089 = vrot.lane.b32.xlu0 %v1063, 104
      %v1090 = vpop.permute.xlu0 %1089
      %1091 = vrot.lane.b32.xlu0 %v1056, 104
      %v1092 = vpop.permute.xlu0 %1091
      %1093 = vrot.lane.b32.xlu0 %v1064, 104
      %v1094 = vpop.permute.xlu0 %1093
      %1095 = vrot.lane.b32.xlu0 %v1057, 104
      %v1096 = vpop.permute.xlu0 %1095
      %1097 = vrot.lane.b32.xlu0 %v1065, 104
      %v1098 = vpop.permute.xlu0 %1097
      %1099 = vrot.lane.b32.xlu0 %v1071, 104
      %v1100 = vpop.permute.xlu0 %1099
      %1101 = vrot.lane.b32.xlu0 %v1074, 104
      %v1102 = vpop.permute.xlu0 %1101
      %v1103 = vsel %vm686, %v1076, %v1070
      %v1104 = vsel %vm686, %v1078, %v1073
      %v1105 = vsel %vm686, %v1080, %v1076
      %v1106 = vsel %vm686, %v1082, %v1078
      %v1107 = vsel %vm686, %v1084, %v1080
      %v1108 = vsel %vm686, %v1086, %v1082
      %v1109 = vsel %vm686, %v1088, %v1084
      %v1110 = vsel %vm686, %v1090, %v1086
      %v1111 = vsel %vm686, %v1092, %v1088
      %v1112 = vsel %vm686, %v1094, %v1090
      %v1113 = vsel %vm686, %v1096, %v1092
      %v1114 = vsel %vm686, %v1098, %v1094
      %v1115 = vsel %vm686, %v1100, %v1096
      %v1116 = vsel %vm686, %v1102, %v1098
      %1135 = vrot.lane.b32.xlu0 %v1071, 25
      %v1136 = vpop.permute.xlu0 %1135
      %1137 = vrot.lane.b32.xlu0 %v1103, 25
      %v1138 = vpop.permute.xlu0 %1137
      %1139 = vrot.lane.b32.xlu0 %v1105, 25
      %v1140 = vpop.permute.xlu0 %1139
      %1141 = vrot.lane.b32.xlu0 %v1107, 25
      %v1142 = vpop.permute.xlu0 %1141
      %1143 = vrot.lane.b32.xlu0 %v1109, 25
      %v1144 = vpop.permute.xlu0 %1143
      %1145 = vrot.lane.b32.xlu0 %v1111, 25
      %v1146 = vpop.permute.xlu0 %1145
      %1147 = vrot.lane.b32.xlu0 %v1113, 25
      %v1148 = vpop.permute.xlu0 %1147
      %1149 = vrot.lane.b32.xlu0 %v1115, 25
      %v1150 = vpop.permute.xlu0 %1149
      %1151 = vrot.lane.b32.xlu0 %v1100, 25
      %v1152 = vpop.permute.xlu0 %1151
      %1153 = vrot.lane.b32.xlu0 %v1074, 25
      %v1154 = vpop.permute.xlu0 %1153
      %1155 = vrot.lane.b32.xlu0 %v1104, 25
      %v1156 = vpop.permute.xlu0 %1155
      %1157 = vrot.lane.b32.xlu0 %v1106, 25
      %v1158 = vpop.permute.xlu0 %1157
      %1159 = vrot.lane.b32.xlu0 %v1108, 25
      %v1160 = vpop.permute.xlu0 %1159
      %1161 = vrot.lane.b32.xlu0 %v1110, 25
      %v1162 = vpop.permute.xlu0 %1161
      %1163 = vrot.lane.b32.xlu0 %v1112, 25
      %v1164 = vpop.permute.xlu0 %1163
      %1165 = vrot.lane.b32.xlu0 %v1114, 25
      %v1166 = vpop.permute.xlu0 %1165
      %1167 = vrot.lane.b32.xlu0 %v1116, 25
      %v1168 = vpop.permute.xlu0 %1167
      %1169 = vrot.lane.b32.xlu0 %v1102, 25
      %v1170 = vpop.permute.xlu0 %1169
      %v1171 = vsel %vm738, %v1136, %v1138
      %v1172 = vsel %vm738, %v1138, %v1140
      %v1173 = vsel %vm738, %v1140, %v1142
      %v1174 = vsel %vm738, %v1142, %v1144
      %v1175 = vsel %vm738, %v1144, %v1146
      %v1176 = vsel %vm738, %v1146, %v1148
      %v1177 = vsel %vm738, %v1148, %v1150
      %v1178 = vsel %vm738, %v1150, %v1152
      %v1179 = vsel %vm738, %v1154, %v1156
      %v1180 = vsel %vm738, %v1156, %v1158
      %v1181 = vsel %vm738, %v1158, %v1160
      %v1182 = vsel %vm738, %v1160, %v1162
      %v1183 = vsel %vm738, %v1162, %v1164
      %v1184 = vsel %vm738, %v1164, %v1166
      %v1185 = vsel %vm738, %v1166, %v1168
      %v1186 = vsel %vm738, %v1168, %v1170
      %v1203 = vsel %vm637, 0.0, %v1171
      %v1204 = vsel %vm638, 0.0, %v1172
      %v1205 = vsel %vm639, 0.0, %v1173
      %v1206 = vsel %vm640, 0.0, %v1174
      %v1207 = vsel %vm641, 0.0, %v1175
      %v1208 = vsel %vm642, 0.0, %v1176
      %v1209 = vsel %vm643, 0.0, %v1177
      %v1210 = vsel %vm644, 0.0, %v1178
      %v1211 = vsel %vm637, 0.0, %v1179
      %v1212 = vsel %vm638, 0.0, %v1180
      %v1213 = vsel %vm639, 0.0, %v1181
      %v1214 = vsel %vm640, 0.0, %v1182
      %v1215 = vsel %vm641, 0.0, %v1183
      %v1216 = vsel %vm642, 0.0, %v1184
      %v1217 = vsel %vm643, 0.0, %v1185
      %v1218 = vsel %vm644, 0.0, %v1186
      %s1219 = scalar_lea.vmem %s3, 16
      %v1220 = vld [vmem:[%s1219] sm:$0xff]
      %v1221 = vld [vmem:[%s1219 + $0x8] sm:$0xff]
      %vm1222 = vcmask 130048
      %v1224 = vsel %vm1222, %v1220, 0
      %v1227 = vsel %vm1222, %v1221, 0
      %1229 = vmatprep.subr.mxu0 %v1052
      %1230 = vmatpush1.msra.mxu0 %v1051
      %1231 = vmatprep.subr.mxu0 %v1060
      %1232 = vmatpush1.msra.mxu0 %v1059
      %1233 = vmatprep.subr.mxu0 0.0
      %1234 = vmatpush1.msra.mxu0 0.0
      %1235 = vmatprep.subr.mxu0 0.0
      %1236 = vmatpush1.msra.mxu0 0.0
      %1237 = vmatprep.subr.mxu0 0.0
      %1238 = vmatpush1.msra.mxu0 0.0
      %1239 = vmatprep.subr.mxu0 0.0
      %1240 = vmatpush1.msra.mxu0 0.0
      %1241 = vmatprep.subr.mxu0 0.0
      %1242 = vmatpush1.msra.mxu0 0.0
      %1243 = vmatprep.subr.mxu0 0.0
      %1244 = vmatpush1.msra.mxu0 0.0
      %1245 = vmatprep.subr.mxu0 0.0
      %1246 = vmatpush1.msra.mxu0 0.0
      %1247 = vmatprep.subr.mxu0 0.0
      %1248 = vmatpush1.msra.mxu0 0.0
      %1249 = vmatprep.subr.mxu0 0.0
      %1250 = vmatpush1.msra.mxu0 0.0
      %1251 = vmatprep.subr.mxu0 0.0
      %1252 = vmatpush1.msra.mxu0 0.0
      %1253 = vmatprep.subr.mxu0 0.0
      %1254 = vmatpush1.msra.mxu0 0.0
      %1255 = vmatprep.subr.mxu0 0.0
      %1256 = vmatpush1.msra.mxu0 0.0
      %1257 = vmatprep.subr.mxu0 0.0
      %1258 = vmatpush1.msra.mxu0 0.0
      %1259 = vmatprep.subr.mxu0 0.0
      %1260 = vmatpush1.msra.mxu0 0.0
      %1261 = vmatprep.subr.mxu0 0.0
      %1262 = vmatpush1.msra.mxu0 0.0
      %1263 = vmatprep.subr.mxu0 0.0
      %1264 = vmatpush1.msra.mxu0 0.0
      %1265 = vmatprep.subr.mxu0 0.0
      %1266 = vmatpush1.msra.mxu0 0.0
      %1267 = vmatprep.subr.mxu0 0.0
      %1268 = vmatpush1.msra.mxu0 0.0
      %1269 = vmatprep.subr.mxu0 0.0
      %1270 = vmatpush1.msra.mxu0 0.0
      %1271 = vmatprep.subr.mxu0 0.0
      %1272 = vmatpush1.msra.mxu0 0.0
      %1273 = vmatprep.subr.mxu0 0.0
      %1274 = vmatpush1.msra.mxu0 0.0
      %1275 = vmatprep.subr.mxu0 0.0
      %1276 = vmatpush1.msra.mxu0 0.0
      %1277 = vmatprep.subr.mxu0 0.0
      %1278 = vmatpush1.msra.mxu0 0.0
      %1279 = vmatprep.subr.mxu0 0.0
      %1280 = vmatpush1.msra.mxu0 0.0
      %1281 = vmatprep.subr.mxu0 0.0
      %1282 = vmatpush1.msra.mxu0 0.0
      %1283 = vmatprep.subr.mxu0 0.0
      %1284 = vmatpush1.msra.mxu0 0.0
      %1285 = vmatprep.subr.mxu0 0.0
      %1286 = vmatpush1.msra.mxu0 0.0
      %1287 = vmatprep.subr.mxu0 0.0
      %1288 = vmatpush1.msra.mxu0 0.0
      %1289 = vmatprep.subr.mxu0 0.0
      %1290 = vmatpush1.msra.mxu0 0.0
      %1291 = vmatprep.subr.mxu0 0.0
      %1292 = vmatpush1.msra.mxu0 0.0
      %1293 = vmatprep.mubr.f32.mxu0 0.0
      %1294 = vmatmul.mubr.f32.gmra.mrb[0].mxu0 %v1224
      %v1295 = vpop.f32.mrb[0].mxu0
      %v1296 = vadd.f32 0.0, %v1295
      %v1297 = vpop.f32.mrb[0].mxu0
      %v1298 = vadd.f32 0.0, %v1297
      %1299 = vmatprep.mubr.f32.mxu0 0.0
      %1300 = vmatmul.mubr.f32.gmra.mrb[0].mxu0 %v1227
      %v1301 = vpop.f32.mrb[0].mxu0
      %v1302 = vadd.f32 0.0, %v1301
      %v1303 = vpop.f32.mrb[0].mxu0
      %v1304 = vadd.f32 0.0, %v1303
      %1305 = vdwg.mxu0
      %1306 = vmatprep.subr.mxu0 %v1054
      %1307 = vmatpush1.msra.mxu0 %v1053
      %1308 = vmatprep.subr.mxu0 %v1062
      %1309 = vmatpush1.msra.mxu0 %v1061
      %1310 = vmatprep.subr.mxu0 0.0
      %1311 = vmatpush1.msra.mxu0 0.0
      %1312 = vmatprep.subr.mxu0 0.0
      %1313 = vmatpush1.msra.mxu0 0.0
      %1314 = vmatprep.subr.mxu0 0.0
      %1315 = vmatpush1.msra.mxu0 0.0
      %1316 = vmatprep.subr.mxu0 0.0
      %1317 = vmatpush1.msra.mxu0 0.0
      %1318 = vmatprep.subr.mxu0 0.0
      %1319 = vmatpush1.msra.mxu0 0.0
      %1320 = vmatprep.subr.mxu0 0.0
      %1321 = vmatpush1.msra.mxu0 0.0
      %1322 = vmatprep.subr.mxu0 0.0
      %1323 = vmatpush1.msra.mxu0 0.0
      %1324 = vmatprep.subr.mxu0 0.0
      %1325 = vmatpush1.msra.mxu0 0.0
      %1326 = vmatprep.subr.mxu0 0.0
      %1327 = vmatpush1.msra.mxu0 0.0
      %1328 = vmatprep.subr.mxu0 0.0
      %1329 = vmatpush1.msra.mxu0 0.0
      %1330 = vmatprep.subr.mxu0 0.0
      %1331 = vmatpush1.msra.mxu0 0.0
      %1332 = vmatprep.subr.mxu0 0.0
      %1333 = vmatpush1.msra.mxu0 0.0
      %1334 = vmatprep.subr.mxu0 0.0
      %1335 = vmatpush1.msra.mxu0 0.0
      %1336 = vmatprep.subr.mxu0 0.0
      %1337 = vmatpush1.msra.mxu0 0.0
      %1338 = vmatprep.subr.mxu0 0.0
      %1339 = vmatpush1.msra.mxu0 0.0
      %1340 = vmatprep.subr.mxu0 0.0
      %1341 = vmatpush1.msra.mxu0 0.0
      %1342 = vmatprep.subr.mxu0 0.0
      %1343 = vmatpush1.msra.mxu0 0.0
      %1344 = vmatprep.subr.mxu0 0.0
      %1345 = vmatpush1.msra.mxu0 0.0
      %1346 = vmatprep.subr.mxu0 0.0
      %1347 = vmatpush1.msra.mxu0 0.0
      %1348 = vmatprep.subr.mxu0 0.0
      %1349 = vmatpush1.msra.mxu0 0.0
      %1350 = vmatprep.subr.mxu0 0.0
      %1351 = vmatpush1.msra.mxu0 0.0
      %1352 = vmatprep.subr.mxu0 0.0
      %1353 = vmatpush1.msra.mxu0 0.0
      %1354 = vmatprep.subr.mxu0 0.0
      %1355 = vmatpush1.msra.mxu0 0.0
      %1356 = vmatprep.subr.mxu0 0.0
      %1357 = vmatpush1.msra.mxu0 0.0
      %1358 = vmatprep.subr.mxu0 0.0
      %1359 = vmatpush1.msra.mxu0 0.0
      %1360 = vmatprep.subr.mxu0 0.0
      %1361 = vmatpush1.msra.mxu0 0.0
      %1362 = vmatprep.subr.mxu0 0.0
      %1363 = vmatpush1.msra.mxu0 0.0
      %1364 = vmatprep.subr.mxu0 0.0
      %1365 = vmatpush1.msra.mxu0 0.0
      %1366 = vmatprep.subr.mxu0 0.0
      %1367 = vmatpush1.msra.mxu0 0.0
      %1368 = vmatprep.subr.mxu0 0.0
      %1369 = vmatpush1.msra.mxu0 0.0
      %1370 = vmatprep.mubr.f32.mxu0 0.0
      %1371 = vmatmul.mubr.f32.gmra.mrb[0].mxu0 %v1224
      %v1372 = vpop.f32.mrb[0].mxu0
      %v1373 = vadd.f32 0.0, %v1372
      %v1374 = vpop.f32.mrb[0].mxu0
      %v1375 = vadd.f32 0.0, %v1374
      %1376 = vmatprep.mubr.f32.mxu0 0.0
      %1377 = vmatmul.mubr.f32.gmra.mrb[0].mxu0 %v1227
      %v1378 = vpop.f32.mrb[0].mxu0
      %v1379 = vadd.f32 0.0, %v1378
      %v1380 = vpop.f32.mrb[0].mxu0
      %v1381 = vadd.f32 0.0, %v1380
      %1382 = vdwg.mxu0
      %1383 = vmatprep.subr.mxu0 %v1056
      %1384 = vmatpush1.msra.mxu0 %v1055
      %1385 = vmatprep.subr.mxu0 %v1064
      %1386 = vmatpush1.msra.mxu0 %v1063
      %1387 = vmatprep.subr.mxu0 0.0
      %1388 = vmatpush1.msra.mxu0 0.0
      %1389 = vmatprep.subr.mxu0 0.0
      %1390 = vmatpush1.msra.mxu0 0.0
      %1391 = vmatprep.subr.mxu0 0.0
      %1392 = vmatpush1.msra.mxu0 0.0
      %1393 = vmatprep.subr.mxu0 0.0
      %1394 = vmatpush1.msra.mxu0 0.0
      %1395 = vmatprep.subr.mxu0 0.0
      %1396 = vmatpush1.msra.mxu0 0.0
      %1397 = vmatprep.subr.mxu0 0.0
      %1398 = vmatpush1.msra.mxu0 0.0
      %1399 = vmatprep.subr.mxu0 0.0
      %1400 = vmatpush1.msra.mxu0 0.0
      %1401 = vmatprep.subr.mxu0 0.0
      %1402 = vmatpush1.msra.mxu0 0.0
      %1403 = vmatprep.subr.mxu0 0.0
      %1404 = vmatpush1.msra.mxu0 0.0
      %1405 = vmatprep.subr.mxu0 0.0
      %1406 = vmatpush1.msra.mxu0 0.0
      %1407 = vmatprep.subr.mxu0 0.0
      %1408 = vmatpush1.msra.mxu0 0.0
      %1409 = vmatprep.subr.mxu0 0.0
      %1410 = vmatpush1.msra.mxu0 0.0
      %1411 = vmatprep.subr.mxu0 0.0
      %1412 = vmatpush1.msra.mxu0 0.0
      %1413 = vmatprep.subr.mxu0 0.0
      %1414 = vmatpush1.msra.mxu0 0.0
      %1415 = vmatprep.subr.mxu0 0.0
      %1416 = vmatpush1.msra.mxu0 0.0
      %1417 = vmatprep.subr.mxu0 0.0
      %1418 = vmatpush1.msra.mxu0 0.0
      %1419 = vmatprep.subr.mxu0 0.0
      %1420 = vmatpush1.msra.mxu0 0.0
      %1421 = vmatprep.subr.mxu0 0.0
      %1422 = vmatpush1.msra.mxu0 0.0
      %1423 = vmatprep.subr.mxu0 0.0
      %1424 = vmatpush1.msra.mxu0 0.0
      %1425 = vmatprep.subr.mxu0 0.0
      %1426 = vmatpush1.msra.mxu0 0.0
      %1427 = vmatprep.subr.mxu0 0.0
      %1428 = vmatpush1.msra.mxu0 0.0
      %1429 = vmatprep.subr.mxu0 0.0
      %1430 = vmatpush1.msra.mxu0 0.0
      %1431 = vmatprep.subr.mxu0 0.0
      %1432 = vmatpush1.msra.mxu0 0.0
      %1433 = vmatprep.subr.mxu0 0.0
      %1434 = vmatpush1.msra.mxu0 0.0
      %1435 = vmatprep.subr.mxu0 0.0
      %1436 = vmatpush1.msra.mxu0 0.0
      %1437 = vmatprep.subr.mxu0 0.0
      %1438 = vmatpush1.msra.mxu0 0.0
      %1439 = vmatprep.subr.mxu0 0.0
      %1440 = vmatpush1.msra.mxu0 0.0
      %1441 = vmatprep.subr.mxu0 0.0
      %1442 = vmatpush1.msra.mxu0 0.0
      %1443 = vmatprep.subr.mxu0 0.0
      %1444 = vmatpush1.msra.mxu0 0.0
      %1445 = vmatprep.subr.mxu0 0.0
      %1446 = vmatpush1.msra.mxu0 0.0
      %1447 = vmatprep.mubr.f32.mxu0 0.0
      %1448 = vmatmul.mubr.f32.gmra.mrb[0].mxu0 %v1224
      %v1449 = vpop.f32.mrb[0].mxu0
      %v1450 = vadd.f32 0.0, %v1449
      %v1451 = vpop.f32.mrb[0].mxu0
      %v1452 = vadd.f32 0.0, %v1451
      %1453 = vmatprep.mubr.f32.mxu0 0.0
      %1454 = vmatmul.mubr.f32.gmra.mrb[0].mxu0 %v1227
      %v1455 = vpop.f32.mrb[0].mxu0
      %v1456 = vadd.f32 0.0, %v1455
      %v1457 = vpop.f32.mrb[0].mxu0
      %v1458 = vadd.f32 0.0, %v1457
      %1459 = vdwg.mxu0
      %1460 = vmatprep.subr.mxu0 %v1058
      %1461 = vmatpush1.msra.mxu0 %v1057
      %1462 = vmatprep.subr.mxu0 %v1066
      %1463 = vmatpush1.msra.mxu0 %v1065
      %1464 = vmatprep.subr.mxu0 0.0
      %1465 = vmatpush1.msra.mxu0 0.0
      %1466 = vmatprep.subr.mxu0 0.0
      %1467 = vmatpush1.msra.mxu0 0.0
      %1468 = vmatprep.subr.mxu0 0.0
      %1469 = vmatpush1.msra.mxu0 0.0
      %1470 = vmatprep.subr.mxu0 0.0
      %1471 = vmatpush1.msra.mxu0 0.0
      %1472 = vmatprep.subr.mxu0 0.0
      %1473 = vmatpush1.msra.mxu0 0.0
      %1474 = vmatprep.subr.mxu0 0.0
      %1475 = vmatpush1.msra.mxu0 0.0
      %1476 = vmatprep.subr.mxu0 0.0
      %1477 = vmatpush1.msra.mxu0 0.0
      %1478 = vmatprep.subr.mxu0 0.0
      %1479 = vmatpush1.msra.mxu0 0.0
      %1480 = vmatprep.subr.mxu0 0.0
      %1481 = vmatpush1.msra.mxu0 0.0
      %1482 = vmatprep.subr.mxu0 0.0
      %1483 = vmatpush1.msra.mxu0 0.0
      %1484 = vmatprep.subr.mxu0 0.0
      %1485 = vmatpush1.msra.mxu0 0.0
      %1486 = vmatprep.subr.mxu0 0.0
      %1487 = vmatpush1.msra.mxu0 0.0
      %1488 = vmatprep.subr.mxu0 0.0
      %1489 = vmatpush1.msra.mxu0 0.0
      %1490 = vmatprep.subr.mxu0 0.0
      %1491 = vmatpush1.msra.mxu0 0.0
      %1492 = vmatprep.subr.mxu0 0.0
      %1493 = vmatpush1.msra.mxu0 0.0
      %1494 = vmatprep.subr.mxu0 0.0
      %1495 = vmatpush1.msra.mxu0 0.0
      %1496 = vmatprep.subr.mxu0 0.0
      %1497 = vmatpush1.msra.mxu0 0.0
      %1498 = vmatprep.subr.mxu0 0.0
      %1499 = vmatpush1.msra.mxu0 0.0
      %1500 = vmatprep.subr.mxu0 0.0
      %1501 = vmatpush1.msra.mxu0 0.0
      %1502 = vmatprep.subr.mxu0 0.0
      %1503 = vmatpush1.msra.mxu0 0.0
      %1504 = vmatprep.subr.mxu0 0.0
      %1505 = vmatpush1.msra.mxu0 0.0
      %1506 = vmatprep.subr.mxu0 0.0
      %1507 = vmatpush1.msra.mxu0 0.0
      %1508 = vmatprep.subr.mxu0 0.0
      %1509 = vmatpush1.msra.mxu0 0.0
      %1510 = vmatprep.subr.mxu0 0.0
      %1511 = vmatpush1.msra.mxu0 0.0
      %1512 = vmatprep.subr.mxu0 0.0
      %1513 = vmatpush1.msra.mxu0 0.0
      %1514 = vmatprep.subr.mxu0 0.0
      %1515 = vmatpush1.msra.mxu0 0.0
      %1516 = vmatprep.subr.mxu0 0.0
      %1517 = vmatpush1.msra.mxu0 0.0
      %1518 = vmatprep.subr.mxu0 0.0
      %1519 = vmatpush1.msra.mxu0 0.0
      %1520 = vmatprep.subr.mxu0 0.0
      %1521 = vmatpush1.msra.mxu0 0.0
      %1522 = vmatprep.subr.mxu0 0.0
      %1523 = vmatpush1.msra.mxu0 0.0
      %1524 = vmatprep.mubr.f32.mxu0 0.0
      %1525 = vmatmul.mubr.f32.gmra.mrb[0].mxu0 %v1224
      %v1526 = vpop.f32.mrb[0].mxu0
      %v1527 = vadd.f32 0.0, %v1526
      %v1528 = vpop.f32.mrb[0].mxu0
      %v1529 = vadd.f32 0.0, %v1528
      %1530 = vmatprep.mubr.f32.mxu0 0.0
      %1531 = vmatmul.mubr.f32.gmra.mrb[0].mxu0 %v1227
      %v1532 = vpop.f32.mrb[0].mxu0
      %v1533 = vadd.f32 0.0, %v1532
      %v1534 = vpop.f32.mrb[0].mxu0
      %v1535 = vadd.f32 0.0, %v1534
      %1536 = vdwg.mxu0
      %v1538 = vsel %vm1222, %v1067, 0
      %v1541 = vsel %vm1222, %v1068, 0
      %1543 = vmatprep.subr.mxu0 %v1204
      %1544 = vmatpush1.msra.mxu0 %v1203
      %1545 = vmatprep.subr.mxu0 %v1212
      %1546 = vmatpush1.msra.mxu0 %v1211
      %1547 = vmatprep.subr.mxu0 0.0
      %1548 = vmatpush1.msra.mxu0 0.0
      %1549 = vmatprep.subr.mxu0 0.0
      %1550 = vmatpush1.msra.mxu0 0.0
      %1551 = vmatprep.subr.mxu0 0.0
      %1552 = vmatpush1.msra.mxu0 0.0
      %1553 = vmatprep.subr.mxu0 0.0
      %1554 = vmatpush1.msra.mxu0 0.0
      %1555 = vmatprep.subr.mxu0 0.0
      %1556 = vmatpush1.msra.mxu0 0.0
      %1557 = vmatprep.subr.mxu0 0.0
      %1558 = vmatpush1.msra.mxu0 0.0
      %1559 = vmatprep.subr.mxu0 0.0
      %1560 = vmatpush1.msra.mxu0 0.0
      %1561 = vmatprep.subr.mxu0 0.0
      %1562 = vmatpush1.msra.mxu0 0.0
      %1563 = vmatprep.subr.mxu0 0.0
      %1564 = vmatpush1.msra.mxu0 0.0
      %1565 = vmatprep.subr.mxu0 0.0
      %1566 = vmatpush1.msra.mxu0 0.0
      %1567 = vmatprep.subr.mxu0 0.0
      %1568 = vmatpush1.msra.mxu0 0.0
      %1569 = vmatprep.subr.mxu0 0.0
      %1570 = vmatpush1.msra.mxu0 0.0
      %1571 = vmatprep.subr.mxu0 0.0
      %1572 = vmatpush1.msra.mxu0 0.0
      %1573 = vmatprep.subr.mxu0 0.0
      %1574 = vmatpush1.msra.mxu0 0.0
      %1575 = vmatprep.subr.mxu0 0.0
      %1576 = vmatpush1.msra.mxu0 0.0
      %1577 = vmatprep.subr.mxu0 0.0
      %1578 = vmatpush1.msra.mxu0 0.0
      %1579 = vmatprep.subr.mxu0 0.0
      %1580 = vmatpush1.msra.mxu0 0.0
      %1581 = vmatprep.subr.mxu0 0.0
      %1582 = vmatpush1.msra.mxu0 0.0
      %1583 = vmatprep.subr.mxu0 0.0
      %1584 = vmatpush1.msra.mxu0 0.0
      %1585 = vmatprep.subr.mxu0 0.0
      %1586 = vmatpush1.msra.mxu0 0.0
      %1587 = vmatprep.subr.mxu0 0.0
      %1588 = vmatpush1.msra.mxu0 0.0
      %1589 = vmatprep.subr.mxu0 0.0
      %1590 = vmatpush1.msra.mxu0 0.0
      %1591 = vmatprep.subr.mxu0 0.0
      %1592 = vmatpush1.msra.mxu0 0.0
      %1593 = vmatprep.subr.mxu0 0.0
      %1594 = vmatpush1.msra.mxu0 0.0
      %1595 = vmatprep.subr.mxu0 0.0
      %1596 = vmatpush1.msra.mxu0 0.0
      %1597 = vmatprep.subr.mxu0 0.0
      %1598 = vmatpush1.msra.mxu0 0.0
      %1599 = vmatprep.subr.mxu0 0.0
      %1600 = vmatpush1.msra.mxu0 0.0
      %1601 = vmatprep.subr.mxu0 0.0
      %1602 = vmatpush1.msra.mxu0 0.0
      %1603 = vmatprep.subr.mxu0 0.0
      %1604 = vmatpush1.msra.mxu0 0.0
      %1605 = vmatprep.subr.mxu0 0.0
      %1606 = vmatpush1.msra.mxu0 0.0
      %1607 = vmatprep.mubr.f32.mxu0 0.0
      %1608 = vmatmul.mubr.f32.gmra.mrb[0].mxu0 %v1538
      %v1609 = vpop.f32.mrb[0].mxu0
      %v1610 = vadd.f32 %v1296, %v1609
      %v1611 = vpop.f32.mrb[0].mxu0
      %v1612 = vadd.f32 %v1298, %v1611
      %1613 = vmatprep.mubr.f32.mxu0 0.0
      %1614 = vmatmul.mubr.f32.gmra.mrb[0].mxu0 %v1541
      %v1615 = vpop.f32.mrb[0].mxu0
      %v1616 = vadd.f32 %v1302, %v1615
      %v1617 = vpop.f32.mrb[0].mxu0
      %v1618 = vadd.f32 %v1304, %v1617
      %1619 = vdwg.mxu0
      %1620 = vmatprep.subr.mxu0 %v1206
      %1621 = vmatpush1.msra.mxu0 %v1205
      %1622 = vmatprep.subr.mxu0 %v1214
      %1623 = vmatpush1.msra.mxu0 %v1213
      %1624 = vmatprep.subr.mxu0 0.0
      %1625 = vmatpush1.msra.mxu0 0.0
      %1626 = vmatprep.subr.mxu0 0.0
      %1627 = vmatpush1.msra.mxu0 0.0
      %1628 = vmatprep.subr.mxu0 0.0
      %1629 = vmatpush1.msra.mxu0 0.0
      %1630 = vmatprep.subr.mxu0 0.0
      %1631 = vmatpush1.msra.mxu0 0.0
      %1632 = vmatprep.subr.mxu0 0.0
      %1633 = vmatpush1.msra.mxu0 0.0
      %1634 = vmatprep.subr.mxu0 0.0
      %1635 = vmatpush1.msra.mxu0 0.0
      %1636 = vmatprep.subr.mxu0 0.0
      %1637 = vmatpush1.msra.mxu0 0.0
      %1638 = vmatprep.subr.mxu0 0.0
      %1639 = vmatpush1.msra.mxu0 0.0
      %1640 = vmatprep.subr.mxu0 0.0
      %1641 = vmatpush1.msra.mxu0 0.0
      %1642 = vmatprep.subr.mxu0 0.0
      %1643 = vmatpush1.msra.mxu0 0.0
      %1644 = vmatprep.subr.mxu0 0.0
      %1645 = vmatpush1.msra.mxu0 0.0
      %1646 = vmatprep.subr.mxu0 0.0
      %1647 = vmatpush1.msra.mxu0 0.0
      %1648 = vmatprep.subr.mxu0 0.0
      %1649 = vmatpush1.msra.mxu0 0.0
      %1650 = vmatprep.subr.mxu0 0.0
      %1651 = vmatpush1.msra.mxu0 0.0
      %1652 = vmatprep.subr.mxu0 0.0
      %1653 = vmatpush1.msra.mxu0 0.0
      %1654 = vmatprep.subr.mxu0 0.0
      %1655 = vmatpush1.msra.mxu0 0.0
      %1656 = vmatprep.subr.mxu0 0.0
      %1657 = vmatpush1.msra.mxu0 0.0
      %1658 = vmatprep.subr.mxu0 0.0
      %1659 = vmatpush1.msra.mxu0 0.0
      %1660 = vmatprep.subr.mxu0 0.0
      %1661 = vmatpush1.msra.mxu0 0.0
      %1662 = vmatprep.subr.mxu0 0.0
      %1663 = vmatpush1.msra.mxu0 0.0
      %1664 = vmatprep.subr.mxu0 0.0
      %1665 = vmatpush1.msra.mxu0 0.0
      %1666 = vmatprep.subr.mxu0 0.0
      %1667 = vmatpush1.msra.mxu0 0.0
      %1668 = vmatprep.subr.mxu0 0.0
      %1669 = vmatpush1.msra.mxu0 0.0
      %1670 = vmatprep.subr.mxu0 0.0
      %1671 = vmatpush1.msra.mxu0 0.0
      %1672 = vmatprep.subr.mxu0 0.0
      %1673 = vmatpush1.msra.mxu0 0.0
      %1674 = vmatprep.subr.mxu0 0.0
      %1675 = vmatpush1.msra.mxu0 0.0
      %1676 = vmatprep.subr.mxu0 0.0
      %1677 = vmatpush1.msra.mxu0 0.0
      %1678 = vmatprep.subr.mxu0 0.0
      %1679 = vmatpush1.msra.mxu0 0.0
      %1680 = vmatprep.subr.mxu0 0.0
      %1681 = vmatpush1.msra.mxu0 0.0
      %1682 = vmatprep.subr.mxu0 0.0
      %1683 = vmatpush1.msra.mxu0 0.0
      %1684 = vmatprep.mubr.f32.mxu0 0.0
      %1685 = vmatmul.mubr.f32.gmra.mrb[0].mxu0 %v1538
      %v1686 = vpop.f32.mrb[0].mxu0
      %v1687 = vadd.f32 %v1373, %v1686
      %v1688 = vpop.f32.mrb[0].mxu0
      %v1689 = vadd.f32 %v1375, %v1688
      %1690 = vmatprep.mubr.f32.mxu0 0.0
      %1691 = vmatmul.mubr.f32.gmra.mrb[0].mxu0 %v1541
      %v1692 = vpop.f32.mrb[0].mxu0
      %v1693 = vadd.f32 %v1379, %v1692
      %v1694 = vpop.f32.mrb[0].mxu0
      %v1695 = vadd.f32 %v1381, %v1694
      %1696 = vdwg.mxu0
      %1697 = vmatprep.subr.mxu0 %v1208
      %1698 = vmatpush1.msra.mxu0 %v1207
      %1699 = vmatprep.subr.mxu0 %v1216
      %1700 = vmatpush1.msra.mxu0 %v1215
      %1701 = vmatprep.subr.mxu0 0.0
      %1702 = vmatpush1.msra.mxu0 0.0
      %1703 = vmatprep.subr.mxu0 0.0
      %1704 = vmatpush1.msra.mxu0 0.0
      %1705 = vmatprep.subr.mxu0 0.0
      %1706 = vmatpush1.msra.mxu0 0.0
      %1707 = vmatprep.subr.mxu0 0.0
      %1708 = vmatpush1.msra.mxu0 0.0
      %1709 = vmatprep.subr.mxu0 0.0
      %1710 = vmatpush1.msra.mxu0 0.0
      %1711 = vmatprep.subr.mxu0 0.0
      %1712 = vmatpush1.msra.mxu0 0.0
      %1713 = vmatprep.subr.mxu0 0.0
      %1714 = vmatpush1.msra.mxu0 0.0
      %1715 = vmatprep.subr.mxu0 0.0
      %1716 = vmatpush1.msra.mxu0 0.0
      %1717 = vmatprep.subr.mxu0 0.0
      %1718 = vmatpush1.msra.mxu0 0.0
      %1719 = vmatprep.subr.mxu0 0.0
      %1720 = vmatpush1.msra.mxu0 0.0
      %1721 = vmatprep.subr.mxu0 0.0
      %1722 = vmatpush1.msra.mxu0 0.0
      %1723 = vmatprep.subr.mxu0 0.0
      %1724 = vmatpush1.msra.mxu0 0.0
      %1725 = vmatprep.subr.mxu0 0.0
      %1726 = vmatpush1.msra.mxu0 0.0
      %1727 = vmatprep.subr.mxu0 0.0
      %1728 = vmatpush1.msra.mxu0 0.0
      %1729 = vmatprep.subr.mxu0 0.0
      %1730 = vmatpush1.msra.mxu0 0.0
      %1731 = vmatprep.subr.mxu0 0.0
      %1732 = vmatpush1.msra.mxu0 0.0
      %1733 = vmatprep.subr.mxu0 0.0
      %1734 = vmatpush1.msra.mxu0 0.0
      %1735 = vmatprep.subr.mxu0 0.0
      %1736 = vmatpush1.msra.mxu0 0.0
      %1737 = vmatprep.subr.mxu0 0.0
      %1738 = vmatpush1.msra.mxu0 0.0
      %1739 = vmatprep.subr.mxu0 0.0
      %1740 = vmatpush1.msra.mxu0 0.0
      %1741 = vmatprep.subr.mxu0 0.0
      %1742 = vmatpush1.msra.mxu0 0.0
      %1743 = vmatprep.subr.mxu0 0.0
      %1744 = vmatpush1.msra.mxu0 0.0
      %1745 = vmatprep.subr.mxu0 0.0
      %1746 = vmatpush1.msra.mxu0 0.0
      %1747 = vmatprep.subr.mxu0 0.0
      %1748 = vmatpush1.msra.mxu0 0.0
      %1749 = vmatprep.subr.mxu0 0.0
      %1750 = vmatpush1.msra.mxu0 0.0
      %1751 = vmatprep.subr.mxu0 0.0
      %1752 = vmatpush1.msra.mxu0 0.0
      %1753 = vmatprep.subr.mxu0 0.0
      %1754 = vmatpush1.msra.mxu0 0.0
      %1755 = vmatprep.subr.mxu0 0.0
      %1756 = vmatpush1.msra.mxu0 0.0
      %1757 = vmatprep.subr.mxu0 0.0
      %1758 = vmatpush1.msra.mxu0 0.0
      %1759 = vmatprep.subr.mxu0 0.0
      %1760 = vmatpush1.msra.mxu0 0.0
      %1761 = vmatprep.mubr.f32.mxu0 0.0
      %1762 = vmatmul.mubr.f32.gmra.mrb[0].mxu0 %v1538
      %v1763 = vpop.f32.mrb[0].mxu0
      %v1764 = vadd.f32 %v1450, %v1763
      %v1765 = vpop.f32.mrb[0].mxu0
      %v1766 = vadd.f32 %v1452, %v1765
      %1767 = vmatprep.mubr.f32.mxu0 0.0
      %1768 = vmatmul.mubr.f32.gmra.mrb[0].mxu0 %v1541
      %v1769 = vpop.f32.mrb[0].mxu0
      %v1770 = vadd.f32 %v1456, %v1769
      %v1771 = vpop.f32.mrb[0].mxu0
      %v1772 = vadd.f32 %v1458, %v1771
      %1773 = vdwg.mxu0
      %1774 = vmatprep.subr.mxu0 %v1210
      %1775 = vmatpush1.msra.mxu0 %v1209
      %1776 = vmatprep.subr.mxu0 %v1218
      %1777 = vmatpush1.msra.mxu0 %v1217
      %1778 = vmatprep.subr.mxu0 0.0
      %1779 = vmatpush1.msra.mxu0 0.0
      %1780 = vmatprep.subr.mxu0 0.0
      %1781 = vmatpush1.msra.mxu0 0.0
      %1782 = vmatprep.subr.mxu0 0.0
      %1783 = vmatpush1.msra.mxu0 0.0
      %1784 = vmatprep.subr.mxu0 0.0
      %1785 = vmatpush1.msra.mxu0 0.0
      %1786 = vmatprep.subr.mxu0 0.0
      %1787 = vmatpush1.msra.mxu0 0.0
      %1788 = vmatprep.subr.mxu0 0.0
      %1789 = vmatpush1.msra.mxu0 0.0
      %1790 = vmatprep.subr.mxu0 0.0
      %1791 = vmatpush1.msra.mxu0 0.0
      %1792 = vmatprep.subr.mxu0 0.0
      %1793 = vmatpush1.msra.mxu0 0.0
      %1794 = vmatprep.subr.mxu0 0.0
      %1795 = vmatpush1.msra.mxu0 0.0
      %1796 = vmatprep.subr.mxu0 0.0
      %1797 = vmatpush1.msra.mxu0 0.0
      %1798 = vmatprep.subr.mxu0 0.0
      %1799 = vmatpush1.msra.mxu0 0.0
      %1800 = vmatprep.subr.mxu0 0.0
      %1801 = vmatpush1.msra.mxu0 0.0
      %1802 = vmatprep.subr.mxu0 0.0
      %1803 = vmatpush1.msra.mxu0 0.0
      %1804 = vmatprep.subr.mxu0 0.0
      %1805 = vmatpush1.msra.mxu0 0.0
      %1806 = vmatprep.subr.mxu0 0.0
      %1807 = vmatpush1.msra.mxu0 0.0
      %1808 = vmatprep.subr.mxu0 0.0
      %1809 = vmatpush1.msra.mxu0 0.0
      %1810 = vmatprep.subr.mxu0 0.0
      %1811 = vmatpush1.msra.mxu0 0.0
      %1812 = vmatprep.subr.mxu0 0.0
      %1813 = vmatpush1.msra.mxu0 0.0
      %1814 = vmatprep.subr.mxu0 0.0
      %1815 = vmatpush1.msra.mxu0 0.0
      %1816 = vmatprep.subr.mxu0 0.0
      %1817 = vmatpush1.msra.mxu0 0.0
      %1818 = vmatprep.subr.mxu0 0.0
      %1819 = vmatpush1.msra.mxu0 0.0
      %1820 = vmatprep.subr.mxu0 0.0
      %1821 = vmatpush1.msra.mxu0 0.0
      %1822 = vmatprep.subr.mxu0 0.0
      %1823 = vmatpush1.msra.mxu0 0.0
      %1824 = vmatprep.subr.mxu0 0.0
      %1825 = vmatpush1.msra.mxu0 0.0
      %1826 = vmatprep.subr.mxu0 0.0
      %1827 = vmatpush1.msra.mxu0 0.0
      %1828 = vmatprep.subr.mxu0 0.0
      %1829 = vmatpush1.msra.mxu0 0.0
      %1830 = vmatprep.subr.mxu0 0.0
      %1831 = vmatpush1.msra.mxu0 0.0
      %1832 = vmatprep.subr.mxu0 0.0
      %1833 = vmatpush1.msra.mxu0 0.0
      %1834 = vmatprep.subr.mxu0 0.0
      %1835 = vmatpush1.msra.mxu0 0.0
      %1836 = vmatprep.subr.mxu0 0.0
      %1837 = vmatpush1.msra.mxu0 0.0
      %1838 = vmatprep.mubr.f32.mxu0 0.0
      %1839 = vmatmul.mubr.f32.gmra.mrb[0].mxu0 %v1538
      %v1840 = vpop.f32.mrb[0].mxu0
      %v1841 = vadd.f32 %v1527, %v1840
      %v1842 = vpop.f32.mrb[0].mxu0
      %v1843 = vadd.f32 %v1529, %v1842
      %1844 = vmatprep.mubr.f32.mxu0 0.0
      %1845 = vmatmul.mubr.f32.gmra.mrb[0].mxu0 %v1541
      %v1846 = vpop.f32.mrb[0].mxu0
      %v1847 = vadd.f32 %v1533, %v1846
      %v1848 = vpop.f32.mrb[0].mxu0
      %v1849 = vadd.f32 %v1535, %v1848
      %1850 = vdwg.mxu0
      %s1851 = scalar_lea.vmem %s3, 32
      %v1852 = vld [vmem:[%s1851] sm:$0xff]
      %v1853 = vld [vmem:[%s1851 + $0x8] sm:$0xff]
      %1868 = vrot.lane.b32.xlu0 %v1051, 127
      %v1869 = vpop.permute.xlu0 %1868
      %1870 = vrot.lane.b32.xlu0 %v1052, 127
      %v1871 = vpop.permute.xlu0 %1870
      %1872 = vrot.lane.b32.xlu0 %v1053, 127
      %v1873 = vpop.permute.xlu0 %1872
      %1874 = vrot.lane.b32.xlu0 %v1054, 127
      %v1875 = vpop.permute.xlu0 %1874
      %1876 = vrot.lane.b32.xlu0 %v1055, 127
      %v1877 = vpop.permute.xlu0 %1876
      %1878 = vrot.lane.b32.xlu0 %v1056, 127
      %v1879 = vpop.permute.xlu0 %1878
      %1880 = vrot.lane.b32.xlu0 %v1057, 127
      %v1881 = vpop.permute.xlu0 %1880
      %1882 = vrot.lane.b32.xlu0 %v1071, 127
      %v1883 = vpop.permute.xlu0 %1882
      %1884 = vrot.lane.b32.xlu0 %v1059, 127
      %v1885 = vpop.permute.xlu0 %1884
      %1886 = vrot.lane.b32.xlu0 %v1060, 127
      %v1887 = vpop.permute.xlu0 %1886
      %1888 = vrot.lane.b32.xlu0 %v1061, 127
      %v1889 = vpop.permute.xlu0 %1888
      %1890 = vrot.lane.b32.xlu0 %v1062, 127
      %v1891 = vpop.permute.xlu0 %1890
      %1892 = vrot.lane.b32.xlu0 %v1063, 127
      %v1893 = vpop.permute.xlu0 %1892
      %1894 = vrot.lane.b32.xlu0 %v1064, 127
      %v1895 = vpop.permute.xlu0 %1894
      %1896 = vrot.lane.b32.xlu0 %v1065, 127
      %v1897 = vpop.permute.xlu0 %1896
      %1898 = vrot.lane.b32.xlu0 %v1074, 127
      %v1899 = vpop.permute.xlu0 %1898
      %v1900 = vsel %vm893, %v1869, %v1871
      %v1901 = vsel %vm893, %v1871, %v1873
      %v1902 = vsel %vm893, %v1873, %v1875
      %v1903 = vsel %vm893, %v1875, %v1877
      %v1904 = vsel %vm893, %v1877, %v1879
      %v1905 = vsel %vm893, %v1879, %v1881
      %v1906 = vsel %vm893, %v1881, %v1883
      %v1907 = vsel %vm893, %v1885, %v1887
      %v1908 = vsel %vm893, %v1887, %v1889
      %v1909 = vsel %vm893, %v1889, %v1891
      %v1910 = vsel %vm893, %v1891, %v1893
      %v1911 = vsel %vm893, %v1893, %v1895
      %v1912 = vsel %vm893, %v1895, %v1897
      %v1913 = vsel %vm893, %v1897, %v1899
      %v1930 = vsel %vm869, 0.0, %v1900
      %v1931 = vsel %vm870, 0.0, %v1901
      %v1932 = vsel %vm871, 0.0, %v1902
      %v1933 = vsel %vm872, 0.0, %v1903
      %v1934 = vsel %vm873, 0.0, %v1904
      %v1935 = vsel %vm874, 0.0, %v1905
      %v1936 = vsel %vm875, 0.0, %v1906
      %v1937 = vsel %vm876, 0.0, %v1883
      %v1938 = vsel %vm869, 0.0, %v1907
      %v1939 = vsel %vm870, 0.0, %v1908
      %v1940 = vsel %vm871, 0.0, %v1909
      %v1941 = vsel %vm872, 0.0, %v1910
      %v1942 = vsel %vm873, 0.0, %v1911
      %v1943 = vsel %vm874, 0.0, %v1912
      %v1944 = vsel %vm875, 0.0, %v1913
      %v1945 = vsel %vm876, 0.0, %v1899
      %v1947 = vsel %vm1222, %v1852, 0
      %v1950 = vsel %vm1222, %v1853, 0
      %1952 = vmatprep.subr.mxu0 %v1931
      %1953 = vmatpush1.msra.mxu0 %v1930
      %1954 = vmatprep.subr.mxu0 %v1939
      %1955 = vmatpush1.msra.mxu0 %v1938
      %1956 = vmatprep.subr.mxu0 0.0
      %1957 = vmatpush1.msra.mxu0 0.0
      %1958 = vmatprep.subr.mxu0 0.0
      %1959 = vmatpush1.msra.mxu0 0.0
      %1960 = vmatprep.subr.mxu0 0.0
      %1961 = vmatpush1.msra.mxu0 0.0
      %1962 = vmatprep.subr.mxu0 0.0
      %1963 = vmatpush1.msra.mxu0 0.0
      %1964 = vmatprep.subr.mxu0 0.0
      %1965 = vmatpush1.msra.mxu0 0.0
      %1966 = vmatprep.subr.mxu0 0.0
      %1967 = vmatpush1.msra.mxu0 0.0
      %1968 = vmatprep.subr.mxu0 0.0
      %1969 = vmatpush1.msra.mxu0 0.0
      %1970 = vmatprep.subr.mxu0 0.0
      %1971 = vmatpush1.msra.mxu0 0.0
      %1972 = vmatprep.subr.mxu0 0.0
      %1973 = vmatpush1.msra.mxu0 0.0
      %1974 = vmatprep.subr.mxu0 0.0
      %1975 = vmatpush1.msra.mxu0 0.0
      %1976 = vmatprep.subr.mxu0 0.0
      %1977 = vmatpush1.msra.mxu0 0.0
      %1978 = vmatprep.subr.mxu0 0.0
      %1979 = vmatpush1.msra.mxu0 0.0
      %1980 = vmatprep.subr.mxu0 0.0
      %1981 = vmatpush1.msra.mxu0 0.0
      %1982 = vmatprep.subr.mxu0 0.0
      %1983 = vmatpush1.msra.mxu0 0.0
      %1984 = vmatprep.subr.mxu0 0.0
      %1985 = vmatpush1.msra.mxu0 0.0
      %1986 = vmatprep.subr.mxu0 0.0
      %1987 = vmatpush1.msra.mxu0 0.0
      %1988 = vmatprep.subr.mxu0 0.0
      %1989 = vmatpush1.msra.mxu0 0.0
      %1990 = vmatprep.subr.mxu0 0.0
      %1991 = vmatpush1.msra.mxu0 0.0
      %1992 = vmatprep.subr.mxu0 0.0
      %1993 = vmatpush1.msra.mxu0 0.0
      %1994 = vmatprep.subr.mxu0 0.0
      %1995 = vmatpush1.msra.mxu0 0.0
      %1996 = vmatprep.subr.mxu0 0.0
      %1997 = vmatpush1.msra.mxu0 0.0
      %1998 = vmatprep.subr.mxu0 0.0
      %1999 = vmatpush1.msra.mxu0 0.0
      %2000 = vmatprep.subr.mxu0 0.0
      %2001 = vmatpush1.msra.mxu0 0.0
      %2002 = vmatprep.subr.mxu0 0.0
      %2003 = vmatpush1.msra.mxu0 0.0
      %2004 = vmatprep.subr.mxu0 0.0
      %2005 = vmatpush1.msra.mxu0 0.0
      %2006 = vmatprep.subr.mxu0 0.0
      %2007 = vmatpush1.msra.mxu0 0.0
      %2008 = vmatprep.subr.mxu0 0.0
      %2009 = vmatpush1.msra.mxu0 0.0
      %2010 = vmatprep.subr.mxu0 0.0
      %2011 = vmatpush1.msra.mxu0 0.0
      %2012 = vmatprep.subr.mxu0 0.0
      %2013 = vmatpush1.msra.mxu0 0.0
      %2014 = vmatprep.subr.mxu0 0.0
      %2015 = vmatpush1.msra.mxu0 0.0
      %2016 = vmatprep.mubr.f32.mxu0 0.0
      %2017 = vmatmul.mubr.f32.gmra.mrb[0].mxu0 %v1947
      %v2018 = vpop.f32.mrb[0].mxu0
      %v2019 = vadd.f32 0.0, %v2018
      %v2020 = vpop.f32.mrb[0].mxu0
      %v2021 = vadd.f32 0.0, %v2020
      %2022 = vmatprep.mubr.f32.mxu0 0.0
      %2023 = vmatmul.mubr.f32.gmra.mrb[0].mxu0 %v1950
      %v2024 = vpop.f32.mrb[0].mxu0
      %v2025 = vadd.f32 0.0, %v2024
      %v2026 = vpop.f32.mrb[0].mxu0
      %v2027 = vadd.f32 0.0, %v2026
      %2028 = vdwg.mxu0
      %2029 = vmatprep.subr.mxu0 %v1933
      %2030 = vmatpush1.msra.mxu0 %v1932
      %2031 = vmatprep.subr.mxu0 %v1941
      %2032 = vmatpush1.msra.mxu0 %v1940
      %2033 = vmatprep.subr.mxu0 0.0
      %2034 = vmatpush1.msra.mxu0 0.0
      %2035 = vmatprep.subr.mxu0 0.0
      %2036 = vmatpush1.msra.mxu0 0.0
      %2037 = vmatprep.subr.mxu0 0.0
      %2038 = vmatpush1.msra.mxu0 0.0
      %2039 = vmatprep.subr.mxu0 0.0
      %2040 = vmatpush1.msra.mxu0 0.0
      %2041 = vmatprep.subr.mxu0 0.0
      %2042 = vmatpush1.msra.mxu0 0.0
      %2043 = vmatprep.subr.mxu0 0.0
      %2044 = vmatpush1.msra.mxu0 0.0
      %2045 = vmatprep.subr.mxu0 0.0
      %2046 = vmatpush1.msra.mxu0 0.0
      %2047 = vmatprep.subr.mxu0 0.0
      %2048 = vmatpush1.msra.mxu0 0.0
      %2049 = vmatprep.subr.mxu0 0.0
      %2050 = vmatpush1.msra.mxu0 0.0
      %2051 = vmatprep.subr.mxu0 0.0
      %2052 = vmatpush1.msra.mxu0 0.0
      %2053 = vmatprep.subr.mxu0 0.0
      %2054 = vmatpush1.msra.mxu0 0.0
      %2055 = vmatprep.subr.mxu0 0.0
      %2056 = vmatpush1.msra.mxu0 0.0
      %2057 = vmatprep.subr.mxu0 0.0
      %2058 = vmatpush1.msra.mxu0 0.0
      %2059 = vmatprep.subr.mxu0 0.0
      %2060 = vmatpush1.msra.mxu0 0.0
      %2061 = vmatprep.subr.mxu0 0.0
      %2062 = vmatpush1.msra.mxu0 0.0
      %2063 = vmatprep.subr.mxu0 0.0
      %2064 = vmatpush1.msra.mxu0 0.0
      %2065 = vmatprep.subr.mxu0 0.0
      %2066 = vmatpush1.msra.mxu0 0.0
      %2067 = vmatprep.subr.mxu0 0.0
      %2068 = vmatpush1.msra.mxu0 0.0
      %2069 = vmatprep.subr.mxu0 0.0
      %2070 = vmatpush1.msra.mxu0 0.0
      %2071 = vmatprep.subr.mxu0 0.0
      %2072 = vmatpush1.msra.mxu0 0.0
      %2073 = vmatprep.subr.mxu0 0.0
      %2074 = vmatpush1.msra.mxu0 0.0
      %2075 = vmatprep.subr.mxu0 0.0
      %2076 = vmatpush1.msra.mxu0 0.0
      %2077 = vmatprep.subr.mxu0 0.0
      %2078 = vmatpush1.msra.mxu0 0.0
      %2079 = vmatprep.subr.mxu0 0.0
      %2080 = vmatpush1.msra.mxu0 0.0
      %2081 = vmatprep.subr.mxu0 0.0
      %2082 = vmatpush1.msra.mxu0 0.0
      %2083 = vmatprep.subr.mxu0 0.0
      %2084 = vmatpush1.msra.mxu0 0.0
      %2085 = vmatprep.subr.mxu0 0.0
      %2086 = vmatpush1.msra.mxu0 0.0
      %2087 = vmatprep.subr.mxu0 0.0
      %2088 = vmatpush1.msra.mxu0 0.0
      %2089 = vmatprep.subr.mxu0 0.0
      %2090 = vmatpush1.msra.mxu0 0.0
      %2091 = vmatprep.subr.mxu0 0.0
      %2092 = vmatpush1.msra.mxu0 0.0
      %2093 = vmatprep.mubr.f32.mxu0 0.0
      %2094 = vmatmul.mubr.f32.gmra.mrb[0].mxu0 %v1947
      %v2095 = vpop.f32.mrb[0].mxu0
      %v2096 = vadd.f32 0.0, %v2095
      %v2097 = vpop.f32.mrb[0].mxu0
      %v2098 = vadd.f32 0.0, %v2097
      %2099 = vmatprep.mubr.f32.mxu0 0.0
      %2100 = vmatmul.mubr.f32.gmra.mrb[0].mxu0 %v1950
      %v2101 = vpop.f32.mrb[0].mxu0
      %v2102 = vadd.f32 0.0, %v2101
      %v2103 = vpop.f32.mrb[0].mxu0
      %v2104 = vadd.f32 0.0, %v2103
      %2105 = vdwg.mxu0
      %2106 = vmatprep.subr.mxu0 %v1935
      %2107 = vmatpush1.msra.mxu0 %v1934
      %2108 = vmatprep.subr.mxu0 %v1943
      %2109 = vmatpush1.msra.mxu0 %v1942
      %2110 = vmatprep.subr.mxu0 0.0
      %2111 = vmatpush1.msra.mxu0 0.0
      %2112 = vmatprep.subr.mxu0 0.0
      %2113 = vmatpush1.msra.mxu0 0.0
      %2114 = vmatprep.subr.mxu0 0.0
      %2115 = vmatpush1.msra.mxu0 0.0
      %2116 = vmatprep.subr.mxu0 0.0
      %2117 = vmatpush1.msra.mxu0 0.0
      %2118 = vmatprep.subr.mxu0 0.0
      %2119 = vmatpush1.msra.mxu0 0.0
      %2120 = vmatprep.subr.mxu0 0.0
      %2121 = vmatpush1.msra.mxu0 0.0
      %2122 = vmatprep.subr.mxu0 0.0
      %2123 = vmatpush1.msra.mxu0 0.0
      %2124 = vmatprep.subr.mxu0 0.0
      %2125 = vmatpush1.msra.mxu0 0.0
      %2126 = vmatprep.subr.mxu0 0.0
      %2127 = vmatpush1.msra.mxu0 0.0
      %2128 = vmatprep.subr.mxu0 0.0
      %2129 = vmatpush1.msra.mxu0 0.0
      %2130 = vmatprep.subr.mxu0 0.0
      %2131 = vmatpush1.msra.mxu0 0.0
      %2132 = vmatprep.subr.mxu0 0.0
      %2133 = vmatpush1.msra.mxu0 0.0
      %2134 = vmatprep.subr.mxu0 0.0
      %2135 = vmatpush1.msra.mxu0 0.0
      %2136 = vmatprep.subr.mxu0 0.0
      %2137 = vmatpush1.msra.mxu0 0.0
      %2138 = vmatprep.subr.mxu0 0.0
      %2139 = vmatpush1.msra.mxu0 0.0
      %2140 = vmatprep.subr.mxu0 0.0
      %2141 = vmatpush1.msra.mxu0 0.0
      %2142 = vmatprep.subr.mxu0 0.0
      %2143 = vmatpush1.msra.mxu0 0.0
      %2144 = vmatprep.subr.mxu0 0.0
      %2145 = vmatpush1.msra.mxu0 0.0
      %2146 = vmatprep.subr.mxu0 0.0
      %2147 = vmatpush1.msra.mxu0 0.0
      %2148 = vmatprep.subr.mxu0 0.0
      %2149 = vmatpush1.msra.mxu0 0.0
      %2150 = vmatprep.subr.mxu0 0.0
      %2151 = vmatpush1.msra.mxu0 0.0
      %2152 = vmatprep.subr.mxu0 0.0
      %2153 = vmatpush1.msra.mxu0 0.0
      %2154 = vmatprep.subr.mxu0 0.0
      %2155 = vmatpush1.msra.mxu0 0.0
      %2156 = vmatprep.subr.mxu0 0.0
      %2157 = vmatpush1.msra.mxu0 0.0
      %2158 = vmatprep.subr.mxu0 0.0
      %2159 = vmatpush1.msra.mxu0 0.0
      %2160 = vmatprep.subr.mxu0 0.0
      %2161 = vmatpush1.msra.mxu0 0.0
      %2162 = vmatprep.subr.mxu0 0.0
      %2163 = vmatpush1.msra.mxu0 0.0
      %2164 = vmatprep.subr.mxu0 0.0
      %2165 = vmatpush1.msra.mxu0 0.0
      %2166 = vmatprep.subr.mxu0 0.0
      %2167 = vmatpush1.msra.mxu0 0.0
      %2168 = vmatprep.subr.mxu0 0.0
      %2169 = vmatpush1.msra.mxu0 0.0
      %2170 = vmatprep.mubr.f32.mxu0 0.0
      %2171 = vmatmul.mubr.f32.gmra.mrb[0].mxu0 %v1947
      %v2172 = vpop.f32.mrb[0].mxu0
      %v2173 = vadd.f32 0.0, %v2172
      %v2174 = vpop.f32.mrb[0].mxu0
      %v2175 = vadd.f32 0.0, %v2174
      %2176 = vmatprep.mubr.f32.mxu0 0.0
      %2177 = vmatmul.mubr.f32.gmra.mrb[0].mxu0 %v1950
      %v2178 = vpop.f32.mrb[0].mxu0
      %v2179 = vadd.f32 0.0, %v2178
      %v2180 = vpop.f32.mrb[0].mxu0
      %v2181 = vadd.f32 0.0, %v2180
      %2182 = vdwg.mxu0
      %2183 = vmatprep.subr.mxu0 %v1937
      %2184 = vmatpush1.msra.mxu0 %v1936
      %2185 = vmatprep.subr.mxu0 %v1945
      %2186 = vmatpush1.msra.mxu0 %v1944
      %2187 = vmatprep.subr.mxu0 0.0
      %2188 = vmatpush1.msra.mxu0 0.0
      %2189 = vmatprep.subr.mxu0 0.0
      %2190 = vmatpush1.msra.mxu0 0.0
      %2191 = vmatprep.subr.mxu0 0.0
      %2192 = vmatpush1.msra.mxu0 0.0
      %2193 = vmatprep.subr.mxu0 0.0
      %2194 = vmatpush1.msra.mxu0 0.0
      %2195 = vmatprep.subr.mxu0 0.0
      %2196 = vmatpush1.msra.mxu0 0.0
      %2197 = vmatprep.subr.mxu0 0.0
      %2198 = vmatpush1.msra.mxu0 0.0
      %2199 = vmatprep.subr.mxu0 0.0
      %2200 = vmatpush1.msra.mxu0 0.0
      %2201 = vmatprep.subr.mxu0 0.0
      %2202 = vmatpush1.msra.mxu0 0.0
      %2203 = vmatprep.subr.mxu0 0.0
      %2204 = vmatpush1.msra.mxu0 0.0
      %2205 = vmatprep.subr.mxu0 0.0
      %2206 = vmatpush1.msra.mxu0 0.0
      %2207 = vmatprep.subr.mxu0 0.0
      %2208 = vmatpush1.msra.mxu0 0.0
      %2209 = vmatprep.subr.mxu0 0.0
      %2210 = vmatpush1.msra.mxu0 0.0
      %2211 = vmatprep.subr.mxu0 0.0
      %2212 = vmatpush1.msra.mxu0 0.0
      %2213 = vmatprep.subr.mxu0 0.0
      %2214 = vmatpush1.msra.mxu0 0.0
      %2215 = vmatprep.subr.mxu0 0.0
      %2216 = vmatpush1.msra.mxu0 0.0
      %2217 = vmatprep.subr.mxu0 0.0
      %2218 = vmatpush1.msra.mxu0 0.0
      %2219 = vmatprep.subr.mxu0 0.0
      %2220 = vmatpush1.msra.mxu0 0.0
      %2221 = vmatprep.subr.mxu0 0.0
      %2222 = vmatpush1.msra.mxu0 0.0
      %2223 = vmatprep.subr.mxu0 0.0
      %2224 = vmatpush1.msra.mxu0 0.0
      %2225 = vmatprep.subr.mxu0 0.0
      %2226 = vmatpush1.msra.mxu0 0.0
      %2227 = vmatprep.subr.mxu0 0.0
      %2228 = vmatpush1.msra.mxu0 0.0
      %2229 = vmatprep.subr.mxu0 0.0
      %2230 = vmatpush1.msra.mxu0 0.0
      %2231 = vmatprep.subr.mxu0 0.0
      %2232 = vmatpush1.msra.mxu0 0.0
      %2233 = vmatprep.subr.mxu0 0.0
      %2234 = vmatpush1.msra.mxu0 0.0
      %2235 = vmatprep.subr.mxu0 0.0
      %2236 = vmatpush1.msra.mxu0 0.0
      %2237 = vmatprep.subr.mxu0 0.0
      %2238 = vmatpush1.msra.mxu0 0.0
      %2239 = vmatprep.subr.mxu0 0.0
      %2240 = vmatpush1.msra.mxu0 0.0
      %2241 = vmatprep.subr.mxu0 0.0
      %2242 = vmatpush1.msra.mxu0 0.0
      %2243 = vmatprep.subr.mxu0 0.0
      %2244 = vmatpush1.msra.mxu0 0.0
      %2245 = vmatprep.subr.mxu0 0.0
      %2246 = vmatpush1.msra.mxu0 0.0
      %2247 = vmatprep.mubr.f32.mxu0 0.0
      %2248 = vmatmul.mubr.f32.gmra.mrb[0].mxu0 %v1947
      %v2249 = vpop.f32.mrb[0].mxu0
      %v2250 = vadd.f32 0.0, %v2249
      %v2251 = vpop.f32.mrb[0].mxu0
      %v2252 = vadd.f32 0.0, %v2251
      %2253 = vmatprep.mubr.f32.mxu0 0.0
      %2254 = vmatmul.mubr.f32.gmra.mrb[0].mxu0 %v1950
      %v2255 = vpop.f32.mrb[0].mxu0
      %v2256 = vadd.f32 0.0, %v2255
      %v2257 = vpop.f32.mrb[0].mxu0
      %v2258 = vadd.f32 0.0, %v2257
      %2259 = vdwg.mxu0
      %v2260 = vadd.f32 %v1610, %v2019
      %v2261 = vadd.f32 %v1612, %v2021
      %v2262 = vadd.f32 %v1687, %v2096
      %v2263 = vadd.f32 %v1689, %v2098
      %v2264 = vadd.f32 %v1764, %v2173
      %v2265 = vadd.f32 %v1766, %v2175
      %v2266 = vadd.f32 %v1841, %v2250
      %v2267 = vadd.f32 %v1843, %v2252
      %v2268 = vadd.f32 %v1616, %v2025
      %v2269 = vadd.f32 %v1618, %v2027
      %v2270 = vadd.f32 %v1693, %v2102
      %v2271 = vadd.f32 %v1695, %v2104
      %v2272 = vadd.f32 %v1770, %v2179
      %v2273 = vadd.f32 %v1772, %v2181
      %v2274 = vadd.f32 %v1847, %v2256
      %v2275 = vadd.f32 %v1849, %v2258
      %v2276 = vld [vmem:[%s5] sm:$0xff]
      %v2277 = vld [vmem:[%s5 + $0x8] sm:$0xff]
      %v2278 = vld [vmem:[%s5 + $0x10] sm:$0xff]
      %v2279 = vld [vmem:[%s5 + $0x18] sm:$0xff]
      %v2280 = vld [vmem:[%s5 + $0x20] sm:$0xff]
      %v2281 = vld [vmem:[%s5 + $0x28] sm:$0xff]
      %v2282 = vld [vmem:[%s5 + $0x30] sm:$0xff]
      %v2283 = vld [vmem:[%s5 + $0x38] sm:$0xff]
      %v2284 = vld [vmem:[%s5 + $0x40] sm:$0xff]
      %v2285 = vld [vmem:[%s5 + $0x48] sm:$0xff]
      %v2286 = vld [vmem:[%s5 + $0x50] sm:$0xff]
      %v2287 = vld [vmem:[%s5 + $0x58] sm:$0xff]
      %v2288 = vld [vmem:[%s5 + $0x60] sm:$0xff]
      %v2289 = vld [vmem:[%s5 + $0x68] sm:$0xff]
      %v2290 = vld [vmem:[%s5 + $0x70] sm:$0xff]
      %v2291 = vld [vmem:[%s5 + $0x78] sm:$0xff]
      %v2292 = vld [vmem:[%s5 + $0x80] sm:$0xff]
      %v2293 = vld [vmem:[%s5 + $0x88] sm:$0xff]
      %v2294 = vld [vmem:[%s5 + $0x90] sm:$0xff]
      %v2295 = vld [vmem:[%s5 + $0x98] sm:$0xff]
      %v2296 = vld [vmem:[%s5 + $0xa0] sm:$0xff]
      %v2297 = vld [vmem:[%s5 + $0xa8] sm:$0xff]
      %v2298 = vld [vmem:[%s5 + $0xb0] sm:$0xff]
      %v2299 = vld [vmem:[%s5 + $0xb8] sm:$0xff]
      %v2300 = vld [vmem:[%s5 + $0xc0] sm:$0xff]
      %v2301 = vld [vmem:[%s5 + $0xc8] sm:$0xff]
      %v2302 = vld [vmem:[%s5 + $0xd0] sm:$0xff]
      %v2303 = vld [vmem:[%s5 + $0xd8] sm:$0xff]
      %v2304 = vld [vmem:[%s5 + $0xe0] sm:$0xff]
      %v2305 = vld [vmem:[%s5 + $0xe8] sm:$0xff]
      %v2306 = vld [vmem:[%s5 + $0xf0] sm:$0xff]
      %v2307 = vld [vmem:[%s5 + $0xf8] sm:$0xff]
      %v2308 = vld [vmem:[%s5 + $0x100] sm:$0xff]
      %v2309 = vld [vmem:[%s5 + $0x108] sm:$0xff]
      %v2310 = vld [vmem:[%s5 + $0x110] sm:$0xff]
      %v2311 = vld [vmem:[%s5 + $0x118] sm:$0xff]
      %v2312 = vld [vmem:[%s5 + $0x120] sm:$0xff]
      %v2313 = vld [vmem:[%s5 + $0x128] sm:$0xff]
      %v2314 = vld [vmem:[%s5 + $0x130] sm:$0xff]
      %v2315 = vld [vmem:[%s5 + $0x138] sm:$0xff]
      %v2316 = vld [vmem:[%s5 + $0x140] sm:$0xff]
      %v2317 = vld [vmem:[%s5 + $0x148] sm:$0xff]
      %v2318 = vld [vmem:[%s5 + $0x150] sm:$0xff]
      %v2319 = vld [vmem:[%s5 + $0x158] sm:$0xff]
      %v2320 = vld [vmem:[%s5 + $0x160] sm:$0xff]
      %v2321 = vld [vmem:[%s5 + $0x168] sm:$0xff]
      %v2322 = vld [vmem:[%s5 + $0x170] sm:$0xff]
      %v2323 = vld [vmem:[%s5 + $0x178] sm:$0xff]
      %v2324 = vld [vmem:[%s5 + $0x180] sm:$0xff]
      %v2325 = vld [vmem:[%s5 + $0x188] sm:$0xff]
      %v2326 = vld [vmem:[%s5 + $0x190] sm:$0xff]
      %v2327 = vld [vmem:[%s5 + $0x198] sm:$0xff]
      %v2328 = vld [vmem:[%s5 + $0x1a0] sm:$0xff]
      %v2329 = vld [vmem:[%s5 + $0x1a8] sm:$0xff]
      %v2330 = vld [vmem:[%s5 + $0x1b0] sm:$0xff]
      %v2331 = vld [vmem:[%s5 + $0x1b8] sm:$0xff]
      %v2332 = vld [vmem:[%s5 + $0x1c0] sm:$0xff]
      %v2333 = vld [vmem:[%s5 + $0x1c8] sm:$0xff]
      %v2334 = vld [vmem:[%s5 + $0x1d0] sm:$0xff]
      %v2335 = vld [vmem:[%s5 + $0x1d8] sm:$0xff]
      %v2336 = vld [vmem:[%s5 + $0x1e0] sm:$0xff]
      %v2337 = vld [vmem:[%s5 + $0x1e8] sm:$0xff]
      %v2338 = vld [vmem:[%s5 + $0x1f0] sm:$0xff]
      %v2339 = vld [vmem:[%s5 + $0x1f8] sm:$0xff]
      %v2340 = vld [vmem:[%s5 + $0x200] sm:$0xff]
      %v2341 = vld [vmem:[%s5 + $0x208] sm:$0xff]
      %v2342 = vld [vmem:[%s5 + $0x210] sm:$0xff]
      %v2343 = vld [vmem:[%s5 + $0x218] sm:$0xff]
      %v2344 = vld [vmem:[%s5 + $0x220] sm:$0xff]
      %v2345 = vld [vmem:[%s5 + $0x228] sm:$0xff]
      %v2346 = vld [vmem:[%s5 + $0x230] sm:$0xff]
      %v2347 = vld [vmem:[%s5 + $0x238] sm:$0xff]
      %v2348 = vld [vmem:[%s5 + $0x240] sm:$0xff]
      %v2349 = vld [vmem:[%s5 + $0x248] sm:$0xff]
      %v2350 = vld [vmem:[%s5 + $0x250] sm:$0xff]
      %v2351 = vld [vmem:[%s5 + $0x258] sm:$0xff]
      %v2352 = vld [vmem:[%s5 + $0x260] sm:$0xff]
      %v2353 = vld [vmem:[%s5 + $0x268] sm:$0xff]
      %v2354 = vld [vmem:[%s5 + $0x270] sm:$0xff]
      %v2355 = vld [vmem:[%s5 + $0x278] sm:$0xff]
      %v2356 = vld [vmem:[%s5 + $0x280] sm:$0xff]
      %v2357 = vld [vmem:[%s5 + $0x288] sm:$0xff]
      %v2358 = vld [vmem:[%s5 + $0x290] sm:$0xff]
      %v2359 = vld [vmem:[%s5 + $0x298] sm:$0xff]
      %v2360 = vld [vmem:[%s5 + $0x2a0] sm:$0xff]
      %v2361 = vld [vmem:[%s5 + $0x2a8] sm:$0xff]
      %v2362 = vld [vmem:[%s5 + $0x2b0] sm:$0xff]
      %v2363 = vld [vmem:[%s5 + $0x2b8] sm:$0xff]
      %v2364 = vld [vmem:[%s5 + $0x2c0] sm:$0xff]
      %v2365 = vld [vmem:[%s5 + $0x2c8] sm:$0xff]
      %v2366 = vld [vmem:[%s5 + $0x2d0] sm:$0xff]
      %v2367 = vld [vmem:[%s5 + $0x2d8] sm:$0xff]
      %v2368 = vld [vmem:[%s5 + $0x2e0] sm:$0xff]
      %v2369 = vld [vmem:[%s5 + $0x2e8] sm:$0xff]
      %v2370 = vld [vmem:[%s5 + $0x2f0] sm:$0xff]
      %v2371 = vld [vmem:[%s5 + $0x2f8] sm:$0xff]
      %v2372 = vld [vmem:[%s5 + $0x300] sm:$0xff]
      %v2373 = vld [vmem:[%s5 + $0x308] sm:$0xff]
      %v2374 = vld [vmem:[%s5 + $0x310] sm:$0xff]
      %v2375 = vld [vmem:[%s5 + $0x318] sm:$0xff]
      %v2376 = vld [vmem:[%s5 + $0x320] sm:$0xff]
      %v2377 = vld [vmem:[%s5 + $0x328] sm:$0xff]
      %v2378 = vld [vmem:[%s5 + $0x330] sm:$0xff]
      %v2379 = vld [vmem:[%s5 + $0x338] sm:$0xff]
      %v2380 = vld [vmem:[%s5 + $0x340] sm:$0xff]
      %v2381 = vld [vmem:[%s5 + $0x348] sm:$0xff]
      %v2382 = vld [vmem:[%s5 + $0x350] sm:$0xff]
      %v2383 = vld [vmem:[%s5 + $0x358] sm:$0xff]
      %v2384 = vld [vmem:[%s5 + $0x360] sm:$0xff]
      %v2385 = vld [vmem:[%s5 + $0x368] sm:$0xff]
      %v2386 = vld [vmem:[%s5 + $0x370] sm:$0xff]
      %v2387 = vld [vmem:[%s5 + $0x378] sm:$0xff]
      %v2388 = vld [vmem:[%s5 + $0x380] sm:$0xff]
      %v2389 = vld [vmem:[%s5 + $0x388] sm:$0xff]
      %v2390 = vld [vmem:[%s5 + $0x390] sm:$0xff]
      %v2391 = vld [vmem:[%s5 + $0x398] sm:$0xff]
      %v2392 = vld [vmem:[%s5 + $0x3a0] sm:$0xff]
      %v2393 = vld [vmem:[%s5 + $0x3a8] sm:$0xff]
      %v2394 = vld [vmem:[%s5 + $0x3b0] sm:$0xff]
      %v2395 = vld [vmem:[%s5 + $0x3b8] sm:$0xff]
      %v2396 = vld [vmem:[%s5 + $0x3c0] sm:$0xff]
      %v2397 = vld [vmem:[%s5 + $0x3c8] sm:$0xff]
      %v2398 = vld [vmem:[%s5 + $0x3d0] sm:$0xff]
      %v2399 = vld [vmem:[%s5 + $0x3d8] sm:$0xff]
      %v2400 = vld [vmem:[%s5 + $0x3e0] sm:$0xff]
      %v2401 = vld [vmem:[%s5 + $0x3e8] sm:$0xff]
      %v2402 = vld [vmem:[%s5 + $0x3f0] sm:$0xff]
      %v2403 = vld [vmem:[%s5 + $0x3f8] sm:$0xff]
      %v2404 = vld [vmem:[%s5 + $0x400] sm:$0xff]
      %v2405 = vld [vmem:[%s5 + $0x408] sm:$0xff]
      %v2406 = vld [vmem:[%s5 + $0x410] sm:$0xff]
      %v2407 = vld [vmem:[%s5 + $0x418] sm:$0xff]
      %v2408 = vld [vmem:[%s5 + $0x420] sm:$0xff]
      %v2409 = vld [vmem:[%s5 + $0x428] sm:$0xff]
      %v2410 = vld [vmem:[%s5 + $0x430] sm:$0xff]
      %v2411 = vld [vmem:[%s5 + $0x438] sm:$0xff]
      %v2412 = vld [vmem:[%s5 + $0x440] sm:$0xff]
      %v2413 = vld [vmem:[%s5 + $0x448] sm:$0xff]
      %v2414 = vld [vmem:[%s5 + $0x450] sm:$0xff]
      %v2415 = vld [vmem:[%s5 + $0x458] sm:$0xff]
      %v2416 = vld [vmem:[%s5 + $0x460] sm:$0xff]
      %v2417 = vld [vmem:[%s5 + $0x468] sm:$0xff]
      %v2418 = vld [vmem:[%s5 + $0x470] sm:$0xff]
      %v2419 = vld [vmem:[%s5 + $0x478] sm:$0xff]
      %v2420 = vld [vmem:[%s5 + $0x480] sm:$0xff]
      %v2421 = vld [vmem:[%s5 + $0x488] sm:$0xff]
      %v2422 = vld [vmem:[%s5 + $0x490] sm:$0xff]
      %v2423 = vld [vmem:[%s5 + $0x498] sm:$0xff]
      %v2424 = vld [vmem:[%s5 + $0x4a0] sm:$0xff]
      %v2425 = vld [vmem:[%s5 + $0x4a8] sm:$0xff]
      %v2426 = vld [vmem:[%s5 + $0x4b0] sm:$0xff]
      %v2427 = vld [vmem:[%s5 + $0x4b8] sm:$0xff]
      %v2428 = vld [vmem:[%s5 + $0x4c0] sm:$0xff]
      %v2429 = vld [vmem:[%s5 + $0x4c8] sm:$0xff]
      %v2430 = vld [vmem:[%s5 + $0x4d0] sm:$0xff]
      %v2431 = vld [vmem:[%s5 + $0x4d8] sm:$0xff]
      %v2432 = vld [vmem:[%s5 + $0x4e0] sm:$0xff]
      %v2433 = vld [vmem:[%s5 + $0x4e8] sm:$0xff]
      %v2434 = vld [vmem:[%s5 + $0x4f0] sm:$0xff]
      %v2435 = vld [vmem:[%s5 + $0x4f8] sm:$0xff]
      %v2436 = vld [vmem:[%s5 + $0x500] sm:$0xff]
      %v2437 = vld [vmem:[%s5 + $0x508] sm:$0xff]
      %v2438 = vld [vmem:[%s5 + $0x510] sm:$0xff]
      %v2439 = vld [vmem:[%s5 + $0x518] sm:$0xff]
      %v2440 = vld [vmem:[%s5 + $0x520] sm:$0xff]
      %v2441 = vld [vmem:[%s5 + $0x528] sm:$0xff]
      %v2442 = vld [vmem:[%s5 + $0x530] sm:$0xff]
      %v2443 = vld [vmem:[%s5 + $0x538] sm:$0xff]
      %v2444 = vld [vmem:[%s5 + $0x540] sm:$0xff]
      %v2445 = vld [vmem:[%s5 + $0x548] sm:$0xff]
      %v2446 = vld [vmem:[%s5 + $0x550] sm:$0xff]
      %v2447 = vld [vmem:[%s5 + $0x558] sm:$0xff]
      %v2448 = vld [vmem:[%s5 + $0x560] sm:$0xff]
      %v2449 = vld [vmem:[%s5 + $0x568] sm:$0xff]
      %v2450 = vld [vmem:[%s5 + $0x570] sm:$0xff]
      %v2451 = vld [vmem:[%s5 + $0x578] sm:$0xff]
      %v2452 = vld [vmem:[%s5 + $0x580] sm:$0xff]
      %v2453 = vld [vmem:[%s5 + $0x588] sm:$0xff]
      %v2454 = vld [vmem:[%s5 + $0x590] sm:$0xff]
      %v2455 = vld [vmem:[%s5 + $0x598] sm:$0xff]
      %v2456 = vld [vmem:[%s5 + $0x5a0] sm:$0xff]
      %v2457 = vld [vmem:[%s5 + $0x5a8] sm:$0xff]
      %v2458 = vld [vmem:[%s5 + $0x5b0] sm:$0xff]
      %v2459 = vld [vmem:[%s5 + $0x5b8] sm:$0xff]
      %v2460 = vld [vmem:[%s5 + $0x5c0] sm:$0xff]
      %v2461 = vld [vmem:[%s5 + $0x5c8] sm:$0xff]
      %v2462 = vld [vmem:[%s5 + $0x5d0] sm:$0xff]
      %v2463 = vld [vmem:[%s5 + $0x5d8] sm:$0xff]
      %v2464 = vld [vmem:[%s5 + $0x5e0] sm:$0xff]
      %v2465 = vld [vmem:[%s5 + $0x5e8] sm:$0xff]
      %v2466 = vld [vmem:[%s5 + $0x5f0] sm:$0xff]
      %v2467 = vld [vmem:[%s5 + $0x5f8] sm:$0xff]
      %v2468 = vld [vmem:[%s5 + $0x600] sm:$0xff]
      %v2469 = vld [vmem:[%s5 + $0x608] sm:$0xff]
      %v2470 = vld [vmem:[%s5 + $0x610] sm:$0xff]
      %v2471 = vld [vmem:[%s5 + $0x618] sm:$0xff]
      %v2472 = vld [vmem:[%s5 + $0x620] sm:$0xff]
      %v2473 = vld [vmem:[%s5 + $0x628] sm:$0xff]
      %v2474 = vld [vmem:[%s5 + $0x630] sm:$0xff]
      %v2475 = vld [vmem:[%s5 + $0x638] sm:$0xff]
      %v2476 = vld [vmem:[%s5 + $0x640] sm:$0xff]
      %v2477 = vld [vmem:[%s5 + $0x648] sm:$0xff]
      %v2478 = vld [vmem:[%s5 + $0x650] sm:$0xff]
      %v2479 = vld [vmem:[%s5 + $0x658] sm:$0xff]
      %v2480 = vld [vmem:[%s5 + $0x660] sm:$0xff]
      %v2481 = vld [vmem:[%s5 + $0x668] sm:$0xff]
      %v2482 = vld [vmem:[%s5 + $0x670] sm:$0xff]
      %v2483 = vld [vmem:[%s5 + $0x678] sm:$0xff]
      %v2484 = vld [vmem:[%s5 + $0x680] sm:$0xff]
      %v2485 = vld [vmem:[%s5 + $0x688] sm:$0xff]
      %v2486 = vld [vmem:[%s5 + $0x690] sm:$0xff]
      %v2487 = vld [vmem:[%s5 + $0x698] sm:$0xff]
      %v2488 = vld [vmem:[%s5 + $0x6a0] sm:$0xff]
      %v2489 = vld [vmem:[%s5 + $0x6a8] sm:$0xff]
      %v2490 = vld [vmem:[%s5 + $0x6b0] sm:$0xff]
      %v2491 = vld [vmem:[%s5 + $0x6b8] sm:$0xff]
      %v2492 = vld [vmem:[%s5 + $0x6c0] sm:$0xff]
      %v2493 = vld [vmem:[%s5 + $0x6c8] sm:$0xff]
      %v2494 = vld [vmem:[%s5 + $0x6d0] sm:$0xff]
      %v2495 = vld [vmem:[%s5 + $0x6d8] sm:$0xff]
      %v2496 = vld [vmem:[%s5 + $0x6e0] sm:$0xff]
      %v2497 = vld [vmem:[%s5 + $0x6e8] sm:$0xff]
      %v2498 = vld [vmem:[%s5 + $0x6f0] sm:$0xff]
      %v2499 = vld [vmem:[%s5 + $0x6f8] sm:$0xff]
      %v2500 = vld [vmem:[%s5 + $0x700] sm:$0xff]
      %v2501 = vld [vmem:[%s5 + $0x708] sm:$0xff]
      %v2502 = vld [vmem:[%s5 + $0x710] sm:$0xff]
      %v2503 = vld [vmem:[%s5 + $0x718] sm:$0xff]
      %v2504 = vld [vmem:[%s5 + $0x720] sm:$0xff]
      %v2505 = vld [vmem:[%s5 + $0x728] sm:$0xff]
      %v2506 = vld [vmem:[%s5 + $0x730] sm:$0xff]
      %v2507 = vld [vmem:[%s5 + $0x738] sm:$0xff]
      %v2508 = vld [vmem:[%s5 + $0x740] sm:$0xff]
      %v2509 = vld [vmem:[%s5 + $0x748] sm:$0xff]
      %v2510 = vld [vmem:[%s5 + $0x750] sm:$0xff]
      %v2511 = vld [vmem:[%s5 + $0x758] sm:$0xff]
      %v2512 = vld [vmem:[%s5 + $0x760] sm:$0xff]
      %v2513 = vld [vmem:[%s5 + $0x768] sm:$0xff]
      %v2514 = vld [vmem:[%s5 + $0x770] sm:$0xff]
      %v2515 = vld [vmem:[%s5 + $0x778] sm:$0xff]
      %v2516 = vld [vmem:[%s5 + $0x780] sm:$0xff]
      %v2517 = vld [vmem:[%s5 + $0x788] sm:$0xff]
      %v2518 = vld [vmem:[%s5 + $0x790] sm:$0xff]
      %v2519 = vld [vmem:[%s5 + $0x798] sm:$0xff]
      %v2520 = vld [vmem:[%s5 + $0x7a0] sm:$0xff]
      %v2521 = vld [vmem:[%s5 + $0x7a8] sm:$0xff]
      %v2522 = vld [vmem:[%s5 + $0x7b0] sm:$0xff]
      %v2523 = vld [vmem:[%s5 + $0x7b8] sm:$0xff]
      %v2524 = vld [vmem:[%s5 + $0x7c0] sm:$0xff]
      %v2525 = vld [vmem:[%s5 + $0x7c8] sm:$0xff]
      %v2526 = vld [vmem:[%s5 + $0x7d0] sm:$0xff]
      %v2527 = vld [vmem:[%s5 + $0x7d8] sm:$0xff]
      %v2528 = vld [vmem:[%s5 + $0x7e0] sm:$0xff]
      %v2529 = vld [vmem:[%s5 + $0x7e8] sm:$0xff]
      %v2530 = vld [vmem:[%s5 + $0x7f0] sm:$0xff]
      %v2531 = vld [vmem:[%s5 + $0x7f8] sm:$0xff]
      %v2532 = vld [vmem:[%s5 + $0x800] sm:$0xff]
      %v2533 = vld [vmem:[%s5 + $0x808] sm:$0xff]
      %v2534 = vld [vmem:[%s5 + $0x810] sm:$0xff]
      %v2535 = vld [vmem:[%s5 + $0x818] sm:$0xff]
      %v2536 = vld [vmem:[%s5 + $0x820] sm:$0xff]
      %v2537 = vld [vmem:[%s5 + $0x828] sm:$0xff]
      %v2538 = vld [vmem:[%s5 + $0x830] sm:$0xff]
      %v2539 = vld [vmem:[%s5 + $0x838] sm:$0xff]
      %v2540 = vld [vmem:[%s5 + $0x840] sm:$0xff]
      %v2541 = vld [vmem:[%s5 + $0x848] sm:$0xff]
      %v2542 = vld [vmem:[%s5 + $0x850] sm:$0xff]
      %v2543 = vld [vmem:[%s5 + $0x858] sm:$0xff]
      %v2544 = vld [vmem:[%s5 + $0x860] sm:$0xff]
      %v2545 = vld [vmem:[%s5 + $0x868] sm:$0xff]
      %v2546 = vld [vmem:[%s5 + $0x870] sm:$0xff]
      %v2547 = vld [vmem:[%s5 + $0x878] sm:$0xff]
      %v2548 = vld [vmem:[%s5 + $0x880] sm:$0xff]
      %v2549 = vld [vmem:[%s5 + $0x888] sm:$0xff]
      %v2550 = vld [vmem:[%s5 + $0x890] sm:$0xff]
      %v2551 = vld [vmem:[%s5 + $0x898] sm:$0xff]
      %v2552 = vld [vmem:[%s5 + $0x8a0] sm:$0xff]
      %v2553 = vld [vmem:[%s5 + $0x8a8] sm:$0xff]
      %v2554 = vld [vmem:[%s5 + $0x8b0] sm:$0xff]
      %v2555 = vld [vmem:[%s5 + $0x8b8] sm:$0xff]
      %v2556 = vld [vmem:[%s5 + $0x8c0] sm:$0xff]
      %v2557 = vld [vmem:[%s5 + $0x8c8] sm:$0xff]
      %v2558 = vld [vmem:[%s5 + $0x8d0] sm:$0xff]
      %v2559 = vld [vmem:[%s5 + $0x8d8] sm:$0xff]
      %v2560 = vld [vmem:[%s5 + $0x8e0] sm:$0xff]
      %v2561 = vld [vmem:[%s5 + $0x8e8] sm:$0xff]
      %v2562 = vld [vmem:[%s5 + $0x8f0] sm:$0xff]
      %v2563 = vld [vmem:[%s5 + $0x8f8] sm:$0xff]
      %v2564 = vld [vmem:[%s5 + $0x900] sm:$0xff]
      %v2565 = vld [vmem:[%s5 + $0x908] sm:$0xff]
      %v2566 = vld [vmem:[%s5 + $0x910] sm:$0xff]
      %v2567 = vld [vmem:[%s5 + $0x918] sm:$0xff]
      %v2568 = vld [vmem:[%s5 + $0x920] sm:$0xff]
      %v2569 = vld [vmem:[%s5 + $0x928] sm:$0xff]
      %v2570 = vld [vmem:[%s5 + $0x930] sm:$0xff]
      %v2571 = vld [vmem:[%s5 + $0x938] sm:$0xff]
      %v2572 = vld [vmem:[%s5 + $0x940] sm:$0xff]
      %v2573 = vld [vmem:[%s5 + $0x948] sm:$0xff]
      %v2574 = vld [vmem:[%s5 + $0x950] sm:$0xff]
      %v2575 = vld [vmem:[%s5 + $0x958] sm:$0xff]
      %v2576 = vld [vmem:[%s5 + $0x960] sm:$0xff]
      %v2577 = vld [vmem:[%s5 + $0x968] sm:$0xff]
      %v2578 = vld [vmem:[%s5 + $0x970] sm:$0xff]
      %v2579 = vld [vmem:[%s5 + $0x978] sm:$0xff]
      %v2580 = vld [vmem:[%s5 + $0x980] sm:$0xff]
      %v2581 = vld [vmem:[%s5 + $0x988] sm:$0xff]
      %v2582 = vld [vmem:[%s5 + $0x990] sm:$0xff]
      %v2583 = vld [vmem:[%s5 + $0x998] sm:$0xff]
      %v2584 = vld [vmem:[%s5 + $0x9a0] sm:$0xff]
      %v2585 = vld [vmem:[%s5 + $0x9a8] sm:$0xff]
      %v2586 = vld [vmem:[%s5 + $0x9b0] sm:$0xff]
      %v2587 = vld [vmem:[%s5 + $0x9b8] sm:$0xff]
      %v2588 = vld [vmem:[%s5 + $0x9c0] sm:$0xff]
      %v2589 = vld [vmem:[%s5 + $0x9c8] sm:$0xff]
      %v2590 = vld [vmem:[%s5 + $0x9d0] sm:$0xff]
      %v2591 = vld [vmem:[%s5 + $0x9d8] sm:$0xff]
      %v2592 = vld [vmem:[%s5 + $0x9e0] sm:$0xff]
      %v2593 = vld [vmem:[%s5 + $0x9e8] sm:$0xff]
      %v2594 = vld [vmem:[%s5 + $0x9f0] sm:$0xff]
      %v2595 = vld [vmem:[%s5 + $0x9f8] sm:$0xff]
      %v2596 = vld [vmem:[%s5 + $0xa00] sm:$0xff]
      %v2597 = vld [vmem:[%s5 + $0xa08] sm:$0xff]
      %v2598 = vld [vmem:[%s5 + $0xa10] sm:$0xff]
      %v2599 = vld [vmem:[%s5 + $0xa18] sm:$0xff]
      %v2600 = vld [vmem:[%s5 + $0xa20] sm:$0xff]
      %v2601 = vld [vmem:[%s5 + $0xa28] sm:$0xff]
      %v2602 = vld [vmem:[%s5 + $0xa30] sm:$0xff]
      %v2603 = vld [vmem:[%s5 + $0xa38] sm:$0xff]
      %v2604 = vld [vmem:[%s5 + $0xa40] sm:$0xff]
      %v2605 = vld [vmem:[%s5 + $0xa48] sm:$0xff]
      %v2606 = vld [vmem:[%s5 + $0xa50] sm:$0xff]
      %v2607 = vld [vmem:[%s5 + $0xa58] sm:$0xff]
      %v2608 = vld [vmem:[%s5 + $0xa60] sm:$0xff]
      %v2609 = vld [vmem:[%s5 + $0xa68] sm:$0xff]
      %v2610 = vld [vmem:[%s5 + $0xa70] sm:$0xff]
      %v2611 = vld [vmem:[%s5 + $0xa78] sm:$0xff]
      %v2612 = vld [vmem:[%s5 + $0xa80] sm:$0xff]
      %v2613 = vld [vmem:[%s5 + $0xa88] sm:$0xff]
      %v2614 = vld [vmem:[%s5 + $0xa90] sm:$0xff]
      %v2615 = vld [vmem:[%s5 + $0xa98] sm:$0xff]
      %v2616 = vld [vmem:[%s5 + $0xaa0] sm:$0xff]
      %v2617 = vld [vmem:[%s5 + $0xaa8] sm:$0xff]
      %v2618 = vld [vmem:[%s5 + $0xab0] sm:$0xff]
      %v2619 = vld [vmem:[%s5 + $0xab8] sm:$0xff]
      %v2620 = vld [vmem:[%s5 + $0xac0] sm:$0xff]
      %v2621 = vld [vmem:[%s5 + $0xac8] sm:$0xff]
      %v2622 = vld [vmem:[%s5 + $0xad0] sm:$0xff]
      %v2623 = vld [vmem:[%s5 + $0xad8] sm:$0xff]
      %v2624 = vld [vmem:[%s5 + $0xae0] sm:$0xff]
      %v2625 = vld [vmem:[%s5 + $0xae8] sm:$0xff]
      %v2626 = vld [vmem:[%s5 + $0xaf0] sm:$0xff]
      %v2627 = vld [vmem:[%s5 + $0xaf8] sm:$0xff]
      %v2628 = vld [vmem:[%s5 + $0xb00] sm:$0xff]
      %v2629 = vld [vmem:[%s5 + $0xb08] sm:$0xff]
      %v2630 = vld [vmem:[%s5 + $0xb10] sm:$0xff]
      %v2631 = vld [vmem:[%s5 + $0xb18] sm:$0xff]
      %v2632 = vld [vmem:[%s5 + $0xb20] sm:$0xff]
      %v2633 = vld [vmem:[%s5 + $0xb28] sm:$0xff]
      %v2634 = vld [vmem:[%s5 + $0xb30] sm:$0xff]
      %v2635 = vld [vmem:[%s5 + $0xb38] sm:$0xff]
      %v2636 = vld [vmem:[%s5 + $0xb40] sm:$0xff]
      %v2637 = vld [vmem:[%s5 + $0xb48] sm:$0xff]
      %v2638 = vld [vmem:[%s5 + $0xb50] sm:$0xff]
      %v2639 = vld [vmem:[%s5 + $0xb58] sm:$0xff]
      %v2640 = vld [vmem:[%s5 + $0xb60] sm:$0xff]
      %v2641 = vld [vmem:[%s5 + $0xb68] sm:$0xff]
      %v2642 = vld [vmem:[%s5 + $0xb70] sm:$0xff]
      %v2643 = vld [vmem:[%s5 + $0xb78] sm:$0xff]
      %v2644 = vld [vmem:[%s5 + $0xb80] sm:$0xff]
      %v2645 = vld [vmem:[%s5 + $0xb88] sm:$0xff]
      %v2646 = vld [vmem:[%s5 + $0xb90] sm:$0xff]
      %v2647 = vld [vmem:[%s5 + $0xb98] sm:$0xff]
      %v2648 = vld [vmem:[%s5 + $0xba0] sm:$0xff]
      %v2649 = vld [vmem:[%s5 + $0xba8] sm:$0xff]
      %v2650 = vld [vmem:[%s5 + $0xbb0] sm:$0xff]
      %v2651 = vld [vmem:[%s5 + $0xbb8] sm:$0xff]
      %v2652 = vld [vmem:[%s5 + $0xbc0] sm:$0xff]
      %v2653 = vld [vmem:[%s5 + $0xbc8] sm:$0xff]
      %v2654 = vld [vmem:[%s5 + $0xbd0] sm:$0xff]
      %v2655 = vld [vmem:[%s5 + $0xbd8] sm:$0xff]
      %v2656 = vld [vmem:[%s5 + $0xbe0] sm:$0xff]
      %v2657 = vld [vmem:[%s5 + $0xbe8] sm:$0xff]
      %v2658 = vld [vmem:[%s5 + $0xbf0] sm:$0xff]
      %v2659 = vld [vmem:[%s5 + $0xbf8] sm:$0xff]
      %v2660 = vld [vmem:[%s5 + $0xc00] sm:$0xff]
      %v2661 = vld [vmem:[%s5 + $0xc08] sm:$0xff]
      %v2662 = vld [vmem:[%s5 + $0xc10] sm:$0xff]
      %v2663 = vld [vmem:[%s5 + $0xc18] sm:$0xff]
      %v2664 = vld [vmem:[%s5 + $0xc20] sm:$0xff]
      %v2665 = vld [vmem:[%s5 + $0xc28] sm:$0xff]
      %v2666 = vld [vmem:[%s5 + $0xc30] sm:$0xff]
      %v2667 = vld [vmem:[%s5 + $0xc38] sm:$0xff]
      %v2668 = vld [vmem:[%s5 + $0xc40] sm:$0xff]
      %v2669 = vld [vmem:[%s5 + $0xc48] sm:$0xff]
      %v2670 = vld [vmem:[%s5 + $0xc50] sm:$0xff]
      %v2671 = vld [vmem:[%s5 + $0xc58] sm:$0xff]
      %v2672 = vld [vmem:[%s5 + $0xc60] sm:$0xff]
      %v2673 = vld [vmem:[%s5 + $0xc68] sm:$0xff]
      %v2674 = vld [vmem:[%s5 + $0xc70] sm:$0xff]
      %v2675 = vld [vmem:[%s5 + $0xc78] sm:$0xff]
      %v2676 = vld [vmem:[%s5 + $0xc80] sm:$0xff]
      %v2677 = vld [vmem:[%s5 + $0xc88] sm:$0xff]
      %v2678 = vld [vmem:[%s5 + $0xc90] sm:$0xff]
      %v2679 = vld [vmem:[%s5 + $0xc98] sm:$0xff]
      %v2680 = vld [vmem:[%s5 + $0xca0] sm:$0xff]
      %v2681 = vld [vmem:[%s5 + $0xca8] sm:$0xff]
      %v2682 = vld [vmem:[%s5 + $0xcb0] sm:$0xff]
      %v2683 = vld [vmem:[%s5 + $0xcb8] sm:$0xff]
      %v2684 = vld [vmem:[%s5 + $0xcc0] sm:$0xff]
      %v2685 = vld [vmem:[%s5 + $0xcc8] sm:$0xff]
      %v2686 = vld [vmem:[%s5 + $0xcd0] sm:$0xff]
      %v2687 = vld [vmem:[%s5 + $0xcd8] sm:$0xff]
      %v2688 = vld [vmem:[%s5 + $0xce0] sm:$0xff]
      %v2689 = vld [vmem:[%s5 + $0xce8] sm:$0xff]
      %v2690 = vld [vmem:[%s5 + $0xcf0] sm:$0xff]
      %v2691 = vld [vmem:[%s5 + $0xcf8] sm:$0xff]
      %v2692 = vld [vmem:[%s5 + $0xd00] sm:$0xff]
      %v2693 = vld [vmem:[%s5 + $0xd08] sm:$0xff]
      %v2694 = vld [vmem:[%s5 + $0xd10] sm:$0xff]
      %v2695 = vld [vmem:[%s5 + $0xd18] sm:$0xff]
      %v2696 = vld [vmem:[%s5 + $0xd20] sm:$0xff]
      %v2697 = vld [vmem:[%s5 + $0xd28] sm:$0xff]
      %v2698 = vld [vmem:[%s5 + $0xd30] sm:$0xff]
      %v2699 = vld [vmem:[%s5 + $0xd38] sm:$0xff]
      %v2700 = vld [vmem:[%s5 + $0xd40] sm:$0xff]
      %v2701 = vld [vmem:[%s5 + $0xd48] sm:$0xff]
      %v2702 = vld [vmem:[%s5 + $0xd50] sm:$0xff]
      %v2703 = vld [vmem:[%s5 + $0xd58] sm:$0xff]
      %v2704 = vld [vmem:[%s5 + $0xd60] sm:$0xff]
      %v2705 = vld [vmem:[%s5 + $0xd68] sm:$0xff]
      %v2706 = vld [vmem:[%s5 + $0xd70] sm:$0xff]
      %v2707 = vld [vmem:[%s5 + $0xd78] sm:$0xff]
      %v2708 = vld [vmem:[%s5 + $0xd80] sm:$0xff]
      %v2709 = vld [vmem:[%s5 + $0xd88] sm:$0xff]
      %v2710 = vld [vmem:[%s5 + $0xd90] sm:$0xff]
      %v2711 = vld [vmem:[%s5 + $0xd98] sm:$0xff]
      %v2712 = vld [vmem:[%s5 + $0xda0] sm:$0xff]
      %v2713 = vld [vmem:[%s5 + $0xda8] sm:$0xff]
      %v2714 = vld [vmem:[%s5 + $0xdb0] sm:$0xff]
      %v2715 = vld [vmem:[%s5 + $0xdb8] sm:$0xff]
      %v2716 = vld [vmem:[%s5 + $0xdc0] sm:$0xff]
      %v2717 = vld [vmem:[%s5 + $0xdc8] sm:$0xff]
      %v2718 = vld [vmem:[%s5 + $0xdd0] sm:$0xff]
      %v2719 = vld [vmem:[%s5 + $0xdd8] sm:$0xff]
      %v2720 = vld [vmem:[%s5 + $0xde0] sm:$0xff]
      %v2721 = vld [vmem:[%s5 + $0xde8] sm:$0xff]
      %v2722 = vld [vmem:[%s5 + $0xdf0] sm:$0xff]
      %v2723 = vld [vmem:[%s5 + $0xdf8] sm:$0xff]
      %v2724 = vld [vmem:[%s5 + $0xe00] sm:$0xff]
      %v2725 = vld [vmem:[%s5 + $0xe08] sm:$0xff]
      %v2726 = vld [vmem:[%s5 + $0xe10] sm:$0xff]
      %v2727 = vld [vmem:[%s5 + $0xe18] sm:$0xff]
      %v2728 = vld [vmem:[%s5 + $0xe20] sm:$0xff]
      %v2729 = vld [vmem:[%s5 + $0xe28] sm:$0xff]
      %v2730 = vld [vmem:[%s5 + $0xe30] sm:$0xff]
      %v2731 = vld [vmem:[%s5 + $0xe38] sm:$0xff]
      %v2732 = vld [vmem:[%s5 + $0xe40] sm:$0xff]
      %v2733 = vld [vmem:[%s5 + $0xe48] sm:$0xff]
      %v2734 = vld [vmem:[%s5 + $0xe50] sm:$0xff]
      %v2735 = vld [vmem:[%s5 + $0xe58] sm:$0xff]
      %v2736 = vld [vmem:[%s5 + $0xe60] sm:$0xff]
      %v2737 = vld [vmem:[%s5 + $0xe68] sm:$0xff]
      %v2738 = vld [vmem:[%s5 + $0xe70] sm:$0xff]
      %v2739 = vld [vmem:[%s5 + $0xe78] sm:$0xff]
      %v2740 = vld [vmem:[%s5 + $0xe80] sm:$0xff]
      %v2741 = vld [vmem:[%s5 + $0xe88] sm:$0xff]
      %v2742 = vld [vmem:[%s5 + $0xe90] sm:$0xff]
      %v2743 = vld [vmem:[%s5 + $0xe98] sm:$0xff]
      %v2744 = vld [vmem:[%s5 + $0xea0] sm:$0xff]
      %v2745 = vld [vmem:[%s5 + $0xea8] sm:$0xff]
      %v2746 = vld [vmem:[%s5 + $0xeb0] sm:$0xff]
      %v2747 = vld [vmem:[%s5 + $0xeb8] sm:$0xff]
      %v2748 = vld [vmem:[%s5 + $0xec0] sm:$0xff]
      %v2749 = vld [vmem:[%s5 + $0xec8] sm:$0xff]
      %v2750 = vld [vmem:[%s5 + $0xed0] sm:$0xff]
      %v2751 = vld [vmem:[%s5 + $0xed8] sm:$0xff]
      %v2752 = vld [vmem:[%s5 + $0xee0] sm:$0xff]
      %v2753 = vld [vmem:[%s5 + $0xee8] sm:$0xff]
      %v2754 = vld [vmem:[%s5 + $0xef0] sm:$0xff]
      %v2755 = vld [vmem:[%s5 + $0xef8] sm:$0xff]
      %v2756 = vld [vmem:[%s5 + $0xf00] sm:$0xff]
      %v2757 = vld [vmem:[%s5 + $0xf08] sm:$0xff]
      %v2758 = vld [vmem:[%s5 + $0xf10] sm:$0xff]
      %v2759 = vld [vmem:[%s5 + $0xf18] sm:$0xff]
      %v2760 = vld [vmem:[%s5 + $0xf20] sm:$0xff]
      %v2761 = vld [vmem:[%s5 + $0xf28] sm:$0xff]
      %v2762 = vld [vmem:[%s5 + $0xf30] sm:$0xff]
      %v2763 = vld [vmem:[%s5 + $0xf38] sm:$0xff]
      %v2764 = vld [vmem:[%s5 + $0xf40] sm:$0xff]
      %v2765 = vld [vmem:[%s5 + $0xf48] sm:$0xff]
      %v2766 = vld [vmem:[%s5 + $0xf50] sm:$0xff]
      %v2767 = vld [vmem:[%s5 + $0xf58] sm:$0xff]
      %v2768 = vld [vmem:[%s5 + $0xf60] sm:$0xff]
      %v2769 = vld [vmem:[%s5 + $0xf68] sm:$0xff]
      %v2770 = vld [vmem:[%s5 + $0xf70] sm:$0xff]
      %v2771 = vld [vmem:[%s5 + $0xf78] sm:$0xff]
      %v2772 = vld [vmem:[%s5 + $0xf80] sm:$0xff]
      %v2773 = vld [vmem:[%s5 + $0xf88] sm:$0xff]
      %v2774 = vld [vmem:[%s5 + $0xf90] sm:$0xff]
      %v2775 = vld [vmem:[%s5 + $0xf98] sm:$0xff]
      %v2776 = vld [vmem:[%s4] sm:$0xff]
      %v2777 = vld [vmem:[%s4 + $0x8] sm:$0xff]
      %2779 = vset.pattern.permute.xlu0 0
      %2780 = vperm.xlu0 %2779, %v2776
      %v2781 = vpop.permute.xlu0 %2780
      %2784 = vset.pattern.permute.xlu0 0
      %2785 = vperm.xlu0 %2784, %v2777
      %v2786 = vpop.permute.xlu0 %2785
      %vm2788 = vcmask 850944
      %v2790 = vsel %vm2788, %v2267, 0
      %v2793 = vsel %vm2788, %v2275, 0
      %2795 = vmatprep.subr.mxu0 %v2277
      %2796 = vmatpush1.msra.mxu0 %v2276
      %2797 = vmatprep.subr.mxu0 %v2281
      %2798 = vmatpush1.msra.mxu0 %v2280
      %2799 = vmatprep.subr.mxu0 %v2285
      %2800 = vmatpush1.msra.mxu0 %v2284
      %2801 = vmatprep.subr.mxu0 %v2289
      %2802 = vmatpush1.msra.mxu0 %v2288
      %2803 = vmatprep.subr.mxu0 %v2293
      %2804 = vmatpush1.msra.mxu0 %v2292
      %2805 = vmatprep.subr.mxu0 %v2297
      %2806 = vmatpush1.msra.mxu0 %v2296
      %2807 = vmatprep.subr.mxu0 %v2301
      %2808 = vmatpush1.msra.mxu0 %v2300
      %2809 = vmatprep.subr.mxu0 %v2305
      %2810 = vmatpush1.msra.mxu0 %v2304
      %2811 = vmatprep.subr.mxu0 %v2309
      %2812 = vmatpush1.msra.mxu0 %v2308
      %2813 = vmatprep.subr.mxu0 %v2313
      %2814 = vmatpush1.msra.mxu0 %v2312
      %2815 = vmatprep.subr.mxu0 %v2317
      %2816 = vmatpush1.msra.mxu0 %v2316
      %2817 = vmatprep.subr.mxu0 %v2321
      %2818 = vmatpush1.msra.mxu0 %v2320
      %2819 = vmatprep.subr.mxu0 %v2325
      %2820 = vmatpush1.msra.mxu0 %v2324
      %2821 = vmatprep.subr.mxu0 %v2329
      %2822 = vmatpush1.msra.mxu0 %v2328
      %2823 = vmatprep.subr.mxu0 %v2333
      %2824 = vmatpush1.msra.mxu0 %v2332
      %2825 = vmatprep.subr.mxu0 %v2337
      %2826 = vmatpush1.msra.mxu0 %v2336
      %2827 = vmatprep.subr.mxu0 %v2341
      %2828 = vmatpush1.msra.mxu0 %v2340
      %2829 = vmatprep.subr.mxu0 %v2345
      %2830 = vmatpush1.msra.mxu0 %v2344
      %2831 = vmatprep.subr.mxu0 %v2349
      %2832 = vmatpush1.msra.mxu0 %v2348
      %2833 = vmatprep.subr.mxu0 %v2353
      %2834 = vmatpush1.msra.mxu0 %v2352
      %2835 = vmatprep.subr.mxu0 %v2357
      %2836 = vmatpush1.msra.mxu0 %v2356
      %2837 = vmatprep.subr.mxu0 %v2361
      %2838 = vmatpush1.msra.mxu0 %v2360
      %2839 = vmatprep.subr.mxu0 %v2365
      %2840 = vmatpush1.msra.mxu0 %v2364
      %2841 = vmatprep.subr.mxu0 %v2369
      %2842 = vmatpush1.msra.mxu0 %v2368
      %2843 = vmatprep.subr.mxu0 %v2373
      %2844 = vmatpush1.msra.mxu0 %v2372
      %2845 = vmatprep.subr.mxu0 %v2377
      %2846 = vmatpush1.msra.mxu0 %v2376
      %2847 = vmatprep.subr.mxu0 %v2381
      %2848 = vmatpush1.msra.mxu0 %v2380
      %2849 = vmatprep.subr.mxu0 %v2385
      %2850 = vmatpush1.msra.mxu0 %v2384
      %2851 = vmatprep.subr.mxu0 %v2389
      %2852 = vmatpush1.msra.mxu0 %v2388
      %2853 = vmatprep.subr.mxu0 %v2393
      %2854 = vmatpush1.msra.mxu0 %v2392
      %2855 = vmatprep.subr.mxu0 %v2397
      %2856 = vmatpush1.msra.mxu0 %v2396
      %2857 = vmatprep.subr.mxu0 %v2401
      %2858 = vmatpush1.msra.mxu0 %v2400
      %2859 = vmatprep.mubr.f32.mxu0 %v2261
      %2860 = vmatmul.mubr.f32.gmra.mrb[0].mxu0 %v2260
      %v2861 = vpop.f32.mrb[0].mxu0
      %v2862 = vadd.f32 %v2781, %v2861
      %v2863 = vpop.f32.mrb[0].mxu0
      %v2864 = vadd.f32 %v2781, %v2863
      %2865 = vmatprep.mubr.f32.mxu0 %v2269
      %2866 = vmatmul.mubr.f32.gmra.mrb[0].mxu0 %v2268
      %v2867 = vpop.f32.mrb[0].mxu0
      %v2868 = vadd.f32 %v2786, %v2867
      %v2869 = vpop.f32.mrb[0].mxu0
      %v2870 = vadd.f32 %v2786, %v2869
      %2871 = vdwg.mxu0
      %2872 = vmatprep.subr.mxu0 %v2405
      %2873 = vmatpush1.msra.mxu0 %v2404
      %2874 = vmatprep.subr.mxu0 %v2409
      %2875 = vmatpush1.msra.mxu0 %v2408
      %2876 = vmatprep.subr.mxu0 %v2413
      %2877 = vmatpush1.msra.mxu0 %v2412
      %2878 = vmatprep.subr.mxu0 %v2417
      %2879 = vmatpush1.msra.mxu0 %v2416
      %2880 = vmatprep.subr.mxu0 %v2421
      %2881 = vmatpush1.msra.mxu0 %v2420
      %2882 = vmatprep.subr.mxu0 %v2425
      %2883 = vmatpush1.msra.mxu0 %v2424
      %2884 = vmatprep.subr.mxu0 %v2429
      %2885 = vmatpush1.msra.mxu0 %v2428
      %2886 = vmatprep.subr.mxu0 %v2433
      %2887 = vmatpush1.msra.mxu0 %v2432
      %2888 = vmatprep.subr.mxu0 %v2437
      %2889 = vmatpush1.msra.mxu0 %v2436
      %2890 = vmatprep.subr.mxu0 %v2441
      %2891 = vmatpush1.msra.mxu0 %v2440
      %2892 = vmatprep.subr.mxu0 %v2445
      %2893 = vmatpush1.msra.mxu0 %v2444
      %2894 = vmatprep.subr.mxu0 %v2449
      %2895 = vmatpush1.msra.mxu0 %v2448
      %2896 = vmatprep.subr.mxu0 %v2453
      %2897 = vmatpush1.msra.mxu0 %v2452
      %2898 = vmatprep.subr.mxu0 %v2457
      %2899 = vmatpush1.msra.mxu0 %v2456
      %2900 = vmatprep.subr.mxu0 %v2461
      %2901 = vmatpush1.msra.mxu0 %v2460
      %2902 = vmatprep.subr.mxu0 %v2465
      %2903 = vmatpush1.msra.mxu0 %v2464
      %2904 = vmatprep.subr.mxu0 %v2469
      %2905 = vmatpush1.msra.mxu0 %v2468
      %2906 = vmatprep.subr.mxu0 %v2473
      %2907 = vmatpush1.msra.mxu0 %v2472
      %2908 = vmatprep.subr.mxu0 %v2477
      %2909 = vmatpush1.msra.mxu0 %v2476
      %2910 = vmatprep.subr.mxu0 %v2481
      %2911 = vmatpush1.msra.mxu0 %v2480
      %2912 = vmatprep.subr.mxu0 %v2485
      %2913 = vmatpush1.msra.mxu0 %v2484
      %2914 = vmatprep.subr.mxu0 %v2489
      %2915 = vmatpush1.msra.mxu0 %v2488
      %2916 = vmatprep.subr.mxu0 %v2493
      %2917 = vmatpush1.msra.mxu0 %v2492
      %2918 = vmatprep.subr.mxu0 %v2497
      %2919 = vmatpush1.msra.mxu0 %v2496
      %2920 = vmatprep.subr.mxu0 %v2501
      %2921 = vmatpush1.msra.mxu0 %v2500
      %2922 = vmatprep.subr.mxu0 %v2505
      %2923 = vmatpush1.msra.mxu0 %v2504
      %2924 = vmatprep.subr.mxu0 %v2509
      %2925 = vmatpush1.msra.mxu0 %v2508
      %2926 = vmatprep.subr.mxu0 %v2513
      %2927 = vmatpush1.msra.mxu0 %v2512
      %2928 = vmatprep.subr.mxu0 %v2517
      %2929 = vmatpush1.msra.mxu0 %v2516
      %2930 = vmatprep.subr.mxu0 %v2521
      %2931 = vmatpush1.msra.mxu0 %v2520
      %2932 = vmatprep.subr.mxu0 %v2525
      %2933 = vmatpush1.msra.mxu0 %v2524
      %2934 = vmatprep.subr.mxu0 %v2529
      %2935 = vmatpush1.msra.mxu0 %v2528
      %2936 = vmatprep.mubr.f32.mxu0 %v2263
      %2937 = vmatmul.mubr.f32.gmra.mrb[0].mxu0 %v2262
      %v2938 = vpop.f32.mrb[0].mxu0
      %v2939 = vadd.f32 %v2862, %v2938
      %v2940 = vpop.f32.mrb[0].mxu0
      %v2941 = vadd.f32 %v2864, %v2940
      %2942 = vmatprep.mubr.f32.mxu0 %v2271
      %2943 = vmatmul.mubr.f32.gmra.mrb[0].mxu0 %v2270
      %v2944 = vpop.f32.mrb[0].mxu0
      %v2945 = vadd.f32 %v2868, %v2944
      %v2946 = vpop.f32.mrb[0].mxu0
      %v2947 = vadd.f32 %v2870, %v2946
      %2948 = vdwg.mxu0
      %2949 = vmatprep.subr.mxu0 %v2533
      %2950 = vmatpush1.msra.mxu0 %v2532
      %2951 = vmatprep.subr.mxu0 %v2537
      %2952 = vmatpush1.msra.mxu0 %v2536
      %2953 = vmatprep.subr.mxu0 %v2541
      %2954 = vmatpush1.msra.mxu0 %v2540
      %2955 = vmatprep.subr.mxu0 %v2545
      %2956 = vmatpush1.msra.mxu0 %v2544
      %2957 = vmatprep.subr.mxu0 %v2549
      %2958 = vmatpush1.msra.mxu0 %v2548
      %2959 = vmatprep.subr.mxu0 %v2553
      %2960 = vmatpush1.msra.mxu0 %v2552
      %2961 = vmatprep.subr.mxu0 %v2557
      %2962 = vmatpush1.msra.mxu0 %v2556
      %2963 = vmatprep.subr.mxu0 %v2561
      %2964 = vmatpush1.msra.mxu0 %v2560
      %2965 = vmatprep.subr.mxu0 %v2565
      %2966 = vmatpush1.msra.mxu0 %v2564
      %2967 = vmatprep.subr.mxu0 %v2569
      %2968 = vmatpush1.msra.mxu0 %v2568
      %2969 = vmatprep.subr.mxu0 %v2573
      %2970 = vmatpush1.msra.mxu0 %v2572
      %2971 = vmatprep.subr.mxu0 %v2577
      %2972 = vmatpush1.msra.mxu0 %v2576
      %2973 = vmatprep.subr.mxu0 %v2581
      %2974 = vmatpush1.msra.mxu0 %v2580
      %2975 = vmatprep.subr.mxu0 %v2585
      %2976 = vmatpush1.msra.mxu0 %v2584
      %2977 = vmatprep.subr.mxu0 %v2589
      %2978 = vmatpush1.msra.mxu0 %v2588
      %2979 = vmatprep.subr.mxu0 %v2593
      %2980 = vmatpush1.msra.mxu0 %v2592
      %2981 = vmatprep.subr.mxu0 %v2597
      %2982 = vmatpush1.msra.mxu0 %v2596
      %2983 = vmatprep.subr.mxu0 %v2601
      %2984 = vmatpush1.msra.mxu0 %v2600
      %2985 = vmatprep.subr.mxu0 %v2605
      %2986 = vmatpush1.msra.mxu0 %v2604
      %2987 = vmatprep.subr.mxu0 %v2609
      %2988 = vmatpush1.msra.mxu0 %v2608
      %2989 = vmatprep.subr.mxu0 %v2613
      %2990 = vmatpush1.msra.mxu0 %v2612
      %2991 = vmatprep.subr.mxu0 %v2617
      %2992 = vmatpush1.msra.mxu0 %v2616
      %2993 = vmatprep.subr.mxu0 %v2621
      %2994 = vmatpush1.msra.mxu0 %v2620
      %2995 = vmatprep.subr.mxu0 %v2625
      %2996 = vmatpush1.msra.mxu0 %v2624
      %2997 = vmatprep.subr.mxu0 %v2629
      %2998 = vmatpush1.msra.mxu0 %v2628
      %2999 = vmatprep.subr.mxu0 %v2633
      %3000 = vmatpush1.msra.mxu0 %v2632
      %3001 = vmatprep.subr.mxu0 %v2637
      %3002 = vmatpush1.msra.mxu0 %v2636
      %3003 = vmatprep.subr.mxu0 %v2641
      %3004 = vmatpush1.msra.mxu0 %v2640
      %3005 = vmatprep.subr.mxu0 %v2645
      %3006 = vmatpush1.msra.mxu0 %v2644
      %3007 = vmatprep.subr.mxu0 %v2649
      %3008 = vmatpush1.msra.mxu0 %v2648
      %3009 = vmatprep.subr.mxu0 %v2653
      %3010 = vmatpush1.msra.mxu0 %v2652
      %3011 = vmatprep.subr.mxu0 %v2657
      %3012 = vmatpush1.msra.mxu0 %v2656
      %3013 = vmatprep.mubr.f32.mxu0 %v2265
      %3014 = vmatmul.mubr.f32.gmra.mrb[0].mxu0 %v2264
      %v3015 = vpop.f32.mrb[0].mxu0
      %v3016 = vadd.f32 %v2939, %v3015
      %v3017 = vpop.f32.mrb[0].mxu0
      %v3018 = vadd.f32 %v2941, %v3017
      %3019 = vmatprep.mubr.f32.mxu0 %v2273
      %3020 = vmatmul.mubr.f32.gmra.mrb[0].mxu0 %v2272
      %v3021 = vpop.f32.mrb[0].mxu0
      %v3022 = vadd.f32 %v2945, %v3021
      %v3023 = vpop.f32.mrb[0].mxu0
      %v3024 = vadd.f32 %v2947, %v3023
      %3025 = vdwg.mxu0
      %3026 = vmatprep.subr.mxu0 %v2661
      %3027 = vmatpush1.msra.mxu0 %v2660
      %3028 = vmatprep.subr.mxu0 %v2665
      %3029 = vmatpush1.msra.mxu0 %v2664
      %3030 = vmatprep.subr.mxu0 %v2669
      %3031 = vmatpush1.msra.mxu0 %v2668
      %3032 = vmatprep.subr.mxu0 %v2673
      %3033 = vmatpush1.msra.mxu0 %v2672
      %3034 = vmatprep.subr.mxu0 %v2677
      %3035 = vmatpush1.msra.mxu0 %v2676
      %3036 = vmatprep.subr.mxu0 %v2681
      %3037 = vmatpush1.msra.mxu0 %v2680
      %3038 = vmatprep.subr.mxu0 %v2685
      %3039 = vmatpush1.msra.mxu0 %v2684
      %3040 = vmatprep.subr.mxu0 %v2689
      %3041 = vmatpush1.msra.mxu0 %v2688
      %3042 = vmatprep.subr.mxu0 %v2693
      %3043 = vmatpush1.msra.mxu0 %v2692
      %3044 = vmatprep.subr.mxu0 %v2697
      %3045 = vmatpush1.msra.mxu0 %v2696
      %3046 = vmatprep.subr.mxu0 %v2701
      %3047 = vmatpush1.msra.mxu0 %v2700
      %3048 = vmatprep.subr.mxu0 %v2705
      %3049 = vmatpush1.msra.mxu0 %v2704
      %3050 = vmatprep.subr.mxu0 %v2709
      %3051 = vmatpush1.msra.mxu0 %v2708
      %3052 = vmatprep.subr.mxu0 %v2713
      %3053 = vmatpush1.msra.mxu0 %v2712
      %3054 = vmatprep.subr.mxu0 %v2717
      %3055 = vmatpush1.msra.mxu0 %v2716
      %3056 = vmatprep.subr.mxu0 %v2721
      %3057 = vmatpush1.msra.mxu0 %v2720
      %3058 = vmatprep.subr.mxu0 %v2725
      %3059 = vmatpush1.msra.mxu0 %v2724
      %3060 = vmatprep.subr.mxu0 %v2729
      %3061 = vmatpush1.msra.mxu0 %v2728
      %3062 = vmatprep.subr.mxu0 %v2733
      %3063 = vmatpush1.msra.mxu0 %v2732
      %3064 = vmatprep.subr.mxu0 %v2737
      %3065 = vmatpush1.msra.mxu0 %v2736
      %3066 = vmatprep.subr.mxu0 %v2741
      %3067 = vmatpush1.msra.mxu0 %v2740
      %3068 = vmatprep.subr.mxu0 %v2745
      %3069 = vmatpush1.msra.mxu0 %v2744
      %3070 = vmatprep.subr.mxu0 %v2749
      %3071 = vmatpush1.msra.mxu0 %v2748
      %3072 = vmatprep.subr.mxu0 %v2753
      %3073 = vmatpush1.msra.mxu0 %v2752
      %3074 = vmatprep.subr.mxu0 %v2757
      %3075 = vmatpush1.msra.mxu0 %v2756
      %3076 = vmatprep.subr.mxu0 %v2761
      %3077 = vmatpush1.msra.mxu0 %v2760
      %3078 = vmatprep.subr.mxu0 %v2765
      %3079 = vmatpush1.msra.mxu0 %v2764
      %3080 = vmatprep.subr.mxu0 %v2769
      %3081 = vmatpush1.msra.mxu0 %v2768
      %3082 = vmatprep.subr.mxu0 %v2773
      %3083 = vmatpush1.msra.mxu0 %v2772
      %3084 = vmatprep.subr.mxu0 0.0
      %3085 = vmatpush1.msra.mxu0 0.0
      %3086 = vmatprep.subr.mxu0 0.0
      %3087 = vmatpush1.msra.mxu0 0.0
      %3088 = vmatprep.subr.mxu0 0.0
      %3089 = vmatpush1.msra.mxu0 0.0
      %3090 = vmatprep.mubr.f32.mxu0 %v2790
      %3091 = vmatmul.mubr.f32.gmra.mrb[0].mxu0 %v2266
      %v3092 = vpop.f32.mrb[0].mxu0
      %v3093 = vadd.f32 %v3016, %v3092
      %v3094 = vpop.f32.mrb[0].mxu0
      %v3095 = vadd.f32 %v3018, %v3094
      %3096 = vmatprep.mubr.f32.mxu0 %v2793
      %3097 = vmatmul.mubr.f32.gmra.mrb[0].mxu0 %v2274
      %v3098 = vpop.f32.mrb[0].mxu0
      %v3099 = vadd.f32 %v3022, %v3098
      %v3100 = vpop.f32.mrb[0].mxu0
      %v3101 = vadd.f32 %v3024, %v3100
      %3102 = vdwg.mxu0
      %3103 = vmatprep.subr.mxu0 %v2279
      %3104 = vmatpush1.msra.mxu0 %v2278
      %3105 = vmatprep.subr.mxu0 %v2283
      %3106 = vmatpush1.msra.mxu0 %v2282
      %3107 = vmatprep.subr.mxu0 %v2287
      %3108 = vmatpush1.msra.mxu0 %v2286
      %3109 = vmatprep.subr.mxu0 %v2291
      %3110 = vmatpush1.msra.mxu0 %v2290
      %3111 = vmatprep.subr.mxu0 %v2295
      %3112 = vmatpush1.msra.mxu0 %v2294
      %3113 = vmatprep.subr.mxu0 %v2299
      %3114 = vmatpush1.msra.mxu0 %v2298
      %3115 = vmatprep.subr.mxu0 %v2303
      %3116 = vmatpush1.msra.mxu0 %v2302
      %3117 = vmatprep.subr.mxu0 %v2307
      %3118 = vmatpush1.msra.mxu0 %v2306
      %3119 = vmatprep.subr.mxu0 %v2311
      %3120 = vmatpush1.msra.mxu0 %v2310
      %3121 = vmatprep.subr.mxu0 %v2315
      %3122 = vmatpush1.msra.mxu0 %v2314
      %3123 = vmatprep.subr.mxu0 %v2319
      %3124 = vmatpush1.msra.mxu0 %v2318
      %3125 = vmatprep.subr.mxu0 %v2323
      %3126 = vmatpush1.msra.mxu0 %v2322
      %3127 = vmatprep.subr.mxu0 %v2327
      %3128 = vmatpush1.msra.mxu0 %v2326
      %3129 = vmatprep.subr.mxu0 %v2331
      %3130 = vmatpush1.msra.mxu0 %v2330
      %3131 = vmatprep.subr.mxu0 %v2335
      %3132 = vmatpush1.msra.mxu0 %v2334
      %3133 = vmatprep.subr.mxu0 %v2339
      %3134 = vmatpush1.msra.mxu0 %v2338
      %3135 = vmatprep.subr.mxu0 %v2343
      %3136 = vmatpush1.msra.mxu0 %v2342
      %3137 = vmatprep.subr.mxu0 %v2347
      %3138 = vmatpush1.msra.mxu0 %v2346
      %3139 = vmatprep.subr.mxu0 %v2351
      %3140 = vmatpush1.msra.mxu0 %v2350
      %3141 = vmatprep.subr.mxu0 %v2355
      %3142 = vmatpush1.msra.mxu0 %v2354
      %3143 = vmatprep.subr.mxu0 %v2359
      %3144 = vmatpush1.msra.mxu0 %v2358
      %3145 = vmatprep.subr.mxu0 %v2363
      %3146 = vmatpush1.msra.mxu0 %v2362
      %3147 = vmatprep.subr.mxu0 %v2367
      %3148 = vmatpush1.msra.mxu0 %v2366
      %3149 = vmatprep.subr.mxu0 %v2371
      %3150 = vmatpush1.msra.mxu0 %v2370
      %3151 = vmatprep.subr.mxu0 %v2375
      %3152 = vmatpush1.msra.mxu0 %v2374
      %3153 = vmatprep.subr.mxu0 %v2379
      %3154 = vmatpush1.msra.mxu0 %v2378
      %3155 = vmatprep.subr.mxu0 %v2383
      %3156 = vmatpush1.msra.mxu0 %v2382
      %3157 = vmatprep.subr.mxu0 %v2387
      %3158 = vmatpush1.msra.mxu0 %v2386
      %3159 = vmatprep.subr.mxu0 %v2391
      %3160 = vmatpush1.msra.mxu0 %v2390
      %3161 = vmatprep.subr.mxu0 %v2395
      %3162 = vmatpush1.msra.mxu0 %v2394
      %3163 = vmatprep.subr.mxu0 %v2399
      %3164 = vmatpush1.msra.mxu0 %v2398
      %3165 = vmatprep.subr.mxu0 %v2403
      %3166 = vmatpush1.msra.mxu0 %v2402
      %3167 = vmatprep.mubr.f32.mxu0 %v2261
      %3168 = vmatmul.mubr.f32.gmra.mrb[0].mxu0 %v2260
      %v3169 = vpop.f32.mrb[0].mxu0
      %v3170 = vadd.f32 %v2781, %v3169
      %v3171 = vpop.f32.mrb[0].mxu0
      %v3172 = vadd.f32 %v2781, %v3171
      %3173 = vmatprep.mubr.f32.mxu0 %v2269
      %3174 = vmatmul.mubr.f32.gmra.mrb[0].mxu0 %v2268
      %v3175 = vpop.f32.mrb[0].mxu0
      %v3176 = vadd.f32 %v2786, %v3175
      %v3177 = vpop.f32.mrb[0].mxu0
      %v3178 = vadd.f32 %v2786, %v3177
      %3179 = vdwg.mxu0
      %3180 = vmatprep.subr.mxu0 %v2407
      %3181 = vmatpush1.msra.mxu0 %v2406
      %3182 = vmatprep.subr.mxu0 %v2411
      %3183 = vmatpush1.msra.mxu0 %v2410
      %3184 = vmatprep.subr.mxu0 %v2415
      %3185 = vmatpush1.msra.mxu0 %v2414
      %3186 = vmatprep.subr.mxu0 %v2419
      %3187 = vmatpush1.msra.mxu0 %v2418
      %3188 = vmatprep.subr.mxu0 %v2423
      %3189 = vmatpush1.msra.mxu0 %v2422
      %3190 = vmatprep.subr.mxu0 %v2427
      %3191 = vmatpush1.msra.mxu0 %v2426
      %3192 = vmatprep.subr.mxu0 %v2431
      %3193 = vmatpush1.msra.mxu0 %v2430
      %3194 = vmatprep.subr.mxu0 %v2435
      %3195 = vmatpush1.msra.mxu0 %v2434
      %3196 = vmatprep.subr.mxu0 %v2439
      %3197 = vmatpush1.msra.mxu0 %v2438
      %3198 = vmatprep.subr.mxu0 %v2443
      %3199 = vmatpush1.msra.mxu0 %v2442
      %3200 = vmatprep.subr.mxu0 %v2447
      %3201 = vmatpush1.msra.mxu0 %v2446
      %3202 = vmatprep.subr.mxu0 %v2451
      %3203 = vmatpush1.msra.mxu0 %v2450
      %3204 = vmatprep.subr.mxu0 %v2455
      %3205 = vmatpush1.msra.mxu0 %v2454
      %3206 = vmatprep.subr.mxu0 %v2459
      %3207 = vmatpush1.msra.mxu0 %v2458
      %3208 = vmatprep.subr.mxu0 %v2463
      %3209 = vmatpush1.msra.mxu0 %v2462
      %3210 = vmatprep.subr.mxu0 %v2467
      %3211 = vmatpush1.msra.mxu0 %v2466
      %3212 = vmatprep.subr.mxu0 %v2471
      %3213 = vmatpush1.msra.mxu0 %v2470
      %3214 = vmatprep.subr.mxu0 %v2475
      %3215 = vmatpush1.msra.mxu0 %v2474
      %3216 = vmatprep.subr.mxu0 %v2479
      %3217 = vmatpush1.msra.mxu0 %v2478
      %3218 = vmatprep.subr.mxu0 %v2483
      %3219 = vmatpush1.msra.mxu0 %v2482
      %3220 = vmatprep.subr.mxu0 %v2487
      %3221 = vmatpush1.msra.mxu0 %v2486
      %3222 = vmatprep.subr.mxu0 %v2491
      %3223 = vmatpush1.msra.mxu0 %v2490
      %3224 = vmatprep.subr.mxu0 %v2495
      %3225 = vmatpush1.msra.mxu0 %v2494
      %3226 = vmatprep.subr.mxu0 %v2499
      %3227 = vmatpush1.msra.mxu0 %v2498
      %3228 = vmatprep.subr.mxu0 %v2503
      %3229 = vmatpush1.msra.mxu0 %v2502
      %3230 = vmatprep.subr.mxu0 %v2507
      %3231 = vmatpush1.msra.mxu0 %v2506
      %3232 = vmatprep.subr.mxu0 %v2511
      %3233 = vmatpush1.msra.mxu0 %v2510
      %3234 = vmatprep.subr.mxu0 %v2515
      %3235 = vmatpush1.msra.mxu0 %v2514
      %3236 = vmatprep.subr.mxu0 %v2519
      %3237 = vmatpush1.msra.mxu0 %v2518
      %3238 = vmatprep.subr.mxu0 %v2523
      %3239 = vmatpush1.msra.mxu0 %v2522
      %3240 = vmatprep.subr.mxu0 %v2527
      %3241 = vmatpush1.msra.mxu0 %v2526
      %3242 = vmatprep.subr.mxu0 %v2531
      %3243 = vmatpush1.msra.mxu0 %v2530
      %3244 = vmatprep.mubr.f32.mxu0 %v2263
      %3245 = vmatmul.mubr.f32.gmra.mrb[0].mxu0 %v2262
      %v3246 = vpop.f32.mrb[0].mxu0
      %v3247 = vadd.f32 %v3170, %v3246
      %v3248 = vpop.f32.mrb[0].mxu0
      %v3249 = vadd.f32 %v3172, %v3248
      %3250 = vmatprep.mubr.f32.mxu0 %v2271
      %3251 = vmatmul.mubr.f32.gmra.mrb[0].mxu0 %v2270
      %v3252 = vpop.f32.mrb[0].mxu0
      %v3253 = vadd.f32 %v3176, %v3252
      %v3254 = vpop.f32.mrb[0].mxu0
      %v3255 = vadd.f32 %v3178, %v3254
      %3256 = vdwg.mxu0
      %3257 = vmatprep.subr.mxu0 %v2535
      %3258 = vmatpush1.msra.mxu0 %v2534
      %3259 = vmatprep.subr.mxu0 %v2539
      %3260 = vmatpush1.msra.mxu0 %v2538
      %3261 = vmatprep.subr.mxu0 %v2543
      %3262 = vmatpush1.msra.mxu0 %v2542
      %3263 = vmatprep.subr.mxu0 %v2547
      %3264 = vmatpush1.msra.mxu0 %v2546
      %3265 = vmatprep.subr.mxu0 %v2551
      %3266 = vmatpush1.msra.mxu0 %v2550
      %3267 = vmatprep.subr.mxu0 %v2555
      %3268 = vmatpush1.msra.mxu0 %v2554
      %3269 = vmatprep.subr.mxu0 %v2559
      %3270 = vmatpush1.msra.mxu0 %v2558
      %3271 = vmatprep.subr.mxu0 %v2563
      %3272 = vmatpush1.msra.mxu0 %v2562
      %3273 = vmatprep.subr.mxu0 %v2567
      %3274 = vmatpush1.msra.mxu0 %v2566
      %3275 = vmatprep.subr.mxu0 %v2571
      %3276 = vmatpush1.msra.mxu0 %v2570
      %3277 = vmatprep.subr.mxu0 %v2575
      %3278 = vmatpush1.msra.mxu0 %v2574
      %3279 = vmatprep.subr.mxu0 %v2579
      %3280 = vmatpush1.msra.mxu0 %v2578
      %3281 = vmatprep.subr.mxu0 %v2583
      %3282 = vmatpush1.msra.mxu0 %v2582
      %3283 = vmatprep.subr.mxu0 %v2587
      %3284 = vmatpush1.msra.mxu0 %v2586
      %3285 = vmatprep.subr.mxu0 %v2591
      %3286 = vmatpush1.msra.mxu0 %v2590
      %3287 = vmatprep.subr.mxu0 %v2595
      %3288 = vmatpush1.msra.mxu0 %v2594
      %3289 = vmatprep.subr.mxu0 %v2599
      %3290 = vmatpush1.msra.mxu0 %v2598
      %3291 = vmatprep.subr.mxu0 %v2603
      %3292 = vmatpush1.msra.mxu0 %v2602
      %3293 = vmatprep.subr.mxu0 %v2607
      %3294 = vmatpush1.msra.mxu0 %v2606
      %3295 = vmatprep.subr.mxu0 %v2611
      %3296 = vmatpush1.msra.mxu0 %v2610
      %3297 = vmatprep.subr.mxu0 %v2615
      %3298 = vmatpush1.msra.mxu0 %v2614
      %3299 = vmatprep.subr.mxu0 %v2619
      %3300 = vmatpush1.msra.mxu0 %v2618
      %3301 = vmatprep.subr.mxu0 %v2623
      %3302 = vmatpush1.msra.mxu0 %v2622
      %3303 = vmatprep.subr.mxu0 %v2627
      %3304 = vmatpush1.msra.mxu0 %v2626
      %3305 = vmatprep.subr.mxu0 %v2631
      %3306 = vmatpush1.msra.mxu0 %v2630
      %3307 = vmatprep.subr.mxu0 %v2635
      %3308 = vmatpush1.msra.mxu0 %v2634
      %3309 = vmatprep.subr.mxu0 %v2639
      %3310 = vmatpush1.msra.mxu0 %v2638
      %3311 = vmatprep.subr.mxu0 %v2643
      %3312 = vmatpush1.msra.mxu0 %v2642
      %3313 = vmatprep.subr.mxu0 %v2647
      %3314 = vmatpush1.msra.mxu0 %v2646
      %3315 = vmatprep.subr.mxu0 %v2651
      %3316 = vmatpush1.msra.mxu0 %v2650
      %3317 = vmatprep.subr.mxu0 %v2655
      %3318 = vmatpush1.msra.mxu0 %v2654
      %3319 = vmatprep.subr.mxu0 %v2659
      %3320 = vmatpush1.msra.mxu0 %v2658
      %3321 = vmatprep.mubr.f32.mxu0 %v2265
      %3322 = vmatmul.mubr.f32.gmra.mrb[0].mxu0 %v2264
      %v3323 = vpop.f32.mrb[0].mxu0
      %v3324 = vadd.f32 %v3247, %v3323
      %v3325 = vpop.f32.mrb[0].mxu0
      %v3326 = vadd.f32 %v3249, %v3325
      %3327 = vmatprep.mubr.f32.mxu0 %v2273
      %3328 = vmatmul.mubr.f32.gmra.mrb[0].mxu0 %v2272
      %v3329 = vpop.f32.mrb[0].mxu0
      %v3330 = vadd.f32 %v3253, %v3329
      %v3331 = vpop.f32.mrb[0].mxu0
      %v3332 = vadd.f32 %v3255, %v3331
      %3333 = vdwg.mxu0
      %3334 = vmatprep.subr.mxu0 %v2663
      %3335 = vmatpush1.msra.mxu0 %v2662
      %3336 = vmatprep.subr.mxu0 %v2667
      %3337 = vmatpush1.msra.mxu0 %v2666
      %3338 = vmatprep.subr.mxu0 %v2671
      %3339 = vmatpush1.msra.mxu0 %v2670
      %3340 = vmatprep.subr.mxu0 %v2675
      %3341 = vmatpush1.msra.mxu0 %v2674
      %3342 = vmatprep.subr.mxu0 %v2679
      %3343 = vmatpush1.msra.mxu0 %v2678
      %3344 = vmatprep.subr.mxu0 %v2683
      %3345 = vmatpush1.msra.mxu0 %v2682
      %3346 = vmatprep.subr.mxu0 %v2687
      %3347 = vmatpush1.msra.mxu0 %v2686
      %3348 = vmatprep.subr.mxu0 %v2691
      %3349 = vmatpush1.msra.mxu0 %v2690
      %3350 = vmatprep.subr.mxu0 %v2695
      %3351 = vmatpush1.msra.mxu0 %v2694
      %3352 = vmatprep.subr.mxu0 %v2699
      %3353 = vmatpush1.msra.mxu0 %v2698
      %3354 = vmatprep.subr.mxu0 %v2703
      %3355 = vmatpush1.msra.mxu0 %v2702
      %3356 = vmatprep.subr.mxu0 %v2707
      %3357 = vmatpush1.msra.mxu0 %v2706
      %3358 = vmatprep.subr.mxu0 %v2711
      %3359 = vmatpush1.msra.mxu0 %v2710
      %3360 = vmatprep.subr.mxu0 %v2715
      %3361 = vmatpush1.msra.mxu0 %v2714
      %3362 = vmatprep.subr.mxu0 %v2719
      %3363 = vmatpush1.msra.mxu0 %v2718
      %3364 = vmatprep.subr.mxu0 %v2723
      %3365 = vmatpush1.msra.mxu0 %v2722
      %3366 = vmatprep.subr.mxu0 %v2727
      %3367 = vmatpush1.msra.mxu0 %v2726
      %3368 = vmatprep.subr.mxu0 %v2731
      %3369 = vmatpush1.msra.mxu0 %v2730
      %3370 = vmatprep.subr.mxu0 %v2735
      %3371 = vmatpush1.msra.mxu0 %v2734
      %3372 = vmatprep.subr.mxu0 %v2739
      %3373 = vmatpush1.msra.mxu0 %v2738
      %3374 = vmatprep.subr.mxu0 %v2743
      %3375 = vmatpush1.msra.mxu0 %v2742
      %3376 = vmatprep.subr.mxu0 %v2747
      %3377 = vmatpush1.msra.mxu0 %v2746
      %3378 = vmatprep.subr.mxu0 %v2751
      %3379 = vmatpush1.msra.mxu0 %v2750
      %3380 = vmatprep.subr.mxu0 %v2755
      %3381 = vmatpush1.msra.mxu0 %v2754
      %3382 = vmatprep.subr.mxu0 %v2759
      %3383 = vmatpush1.msra.mxu0 %v2758
      %3384 = vmatprep.subr.mxu0 %v2763
      %3385 = vmatpush1.msra.mxu0 %v2762
      %3386 = vmatprep.subr.mxu0 %v2767
      %3387 = vmatpush1.msra.mxu0 %v2766
      %3388 = vmatprep.subr.mxu0 %v2771
      %3389 = vmatpush1.msra.mxu0 %v2770
      %3390 = vmatprep.subr.mxu0 %v2775
      %3391 = vmatpush1.msra.mxu0 %v2774
      %3392 = vmatprep.subr.mxu0 0.0
      %3393 = vmatpush1.msra.mxu0 0.0
      %3394 = vmatprep.subr.mxu0 0.0
      %3395 = vmatpush1.msra.mxu0 0.0
      %3396 = vmatprep.subr.mxu0 0.0
      %3397 = vmatpush1.msra.mxu0 0.0
      %3398 = vmatprep.mubr.f32.mxu0 %v2790
      %3399 = vmatmul.mubr.f32.gmra.mrb[0].mxu0 %v2266
      %v3400 = vpop.f32.mrb[0].mxu0
      %v3401 = vadd.f32 %v3324, %v3400
      %v3402 = vpop.f32.mrb[0].mxu0
      %v3403 = vadd.f32 %v3326, %v3402
      %3404 = vmatprep.mubr.f32.mxu0 %v2793
      %3405 = vmatmul.mubr.f32.gmra.mrb[0].mxu0 %v2274
      %v3406 = vpop.f32.mrb[0].mxu0
      %v3407 = vadd.f32 %v3330, %v3406
      %v3408 = vpop.f32.mrb[0].mxu0
      %v3409 = vadd.f32 %v3332, %v3408
      %3410 = vdwg.mxu0
      %vm3411 = vcmp.ge.f32.partialorder %v3093, 0.0
      %vm3412 = vcmp.ge.f32.partialorder %v3095, 0.0
      %vm3413 = vcmp.ge.f32.partialorder %v3401, 0.0
      %vm3414 = vcmp.ge.f32.partialorder %v3403, 0.0
      %vm3415 = vcmp.ge.f32.partialorder %v3099, 0.0
      %vm3416 = vcmp.ge.f32.partialorder %v3101, 0.0
      %vm3417 = vcmp.ge.f32.partialorder %v3407, 0.0
      %vm3418 = vcmp.ge.f32.partialorder %v3409, 0.0
      %v3419 = vmul.f32 %v3093, 0.01
      %v3420 = vmul.f32 %v3095, 0.01
      %v3421 = vmul.f32 %v3401, 0.01
      %v3422 = vmul.f32 %v3403, 0.01
      %v3423 = vmul.f32 %v3099, 0.01
      %v3424 = vmul.f32 %v3101, 0.01
      %v3425 = vmul.f32 %v3407, 0.01
      %v3426 = vmul.f32 %v3409, 0.01
      %v3427 = vsel %vm3411, %v3093, %v3419
      %v3428 = vsel %vm3412, %v3095, %v3420
      %v3429 = vsel %vm3413, %v3401, %v3421
      %v3430 = vsel %vm3414, %v3403, %v3422
      %v3431 = vsel %vm3415, %v3099, %v3423
      %v3432 = vsel %vm3416, %v3101, %v3424
      %v3433 = vsel %vm3417, %v3407, %v3425
      %v3434 = vsel %vm3418, %v3409, %v3426
      %v3435 = vld [vmem:[%s6] sm:$0xff]
      %v3436 = vld [vmem:[%s6 + $0x8] sm:$0xff]
      %v3437 = vld [vmem:[%s6 + $0x10] sm:$0xff]
      %v3438 = vld [vmem:[%s6 + $0x18] sm:$0xff]
      %vm3439 = vcmask 1048480
      %3440 = vrot.lane.b32.xlu0 %v3427, 116
      %v3441 = vpop.permute.xlu0 %3440
      %v3442 = vsel %vm3439, %v3441, %v3430
      %3443 = vrot.lane.b32.xlu0 %v3431, 116
      %v3444 = vpop.permute.xlu0 %3443
      %v3445 = vsel %vm3439, %v3444, %v3434
      %3446 = vrot.lane.b32.xlu0 %v3428, 116
      %v3447 = vpop.permute.xlu0 %3446
      %3448 = vrot.lane.b32.xlu0 %v3432, 116
      %v3449 = vpop.permute.xlu0 %3448
      %3450 = vrot.lane.b32.xlu0 %v3429, 116
      %v3451 = vpop.permute.xlu0 %3450
      %3452 = vrot.lane.b32.xlu0 %v3433, 116
      %v3453 = vpop.permute.xlu0 %3452
      %3454 = vrot.lane.b32.xlu0 %v3442, 116
      %v3455 = vpop.permute.xlu0 %3454
      %3456 = vrot.lane.b32.xlu0 %v3445, 116
      %v3457 = vpop.permute.xlu0 %3456
      %v3458 = vsel %vm3439, %v3447, %v3441
      %v3459 = vsel %vm3439, %v3449, %v3444
      %v3460 = vsel %vm3439, %v3451, %v3447
      %v3461 = vsel %vm3439, %v3453, %v3449
      %v3462 = vsel %vm3439, %v3455, %v3451
      %v3463 = vsel %vm3439, %v3457, %v3453
      %3474 = vrot.lane.b32.xlu0 %v3442, 13
      %v3475 = vpop.permute.xlu0 %3474
      %3476 = vrot.lane.b32.xlu0 %v3458, 13
      %v3477 = vpop.permute.xlu0 %3476
      %3478 = vrot.lane.b32.xlu0 %v3460, 13
      %v3479 = vpop.permute.xlu0 %3478
      %3480 = vrot.lane.b32.xlu0 %v3462, 13
      %v3481 = vpop.permute.xlu0 %3480
      %3482 = vrot.lane.b32.xlu0 %v3455, 13
      %v3483 = vpop.permute.xlu0 %3482
      %3484 = vrot.lane.b32.xlu0 %v3445, 13
      %v3485 = vpop.permute.xlu0 %3484
      %3486 = vrot.lane.b32.xlu0 %v3459, 13
      %v3487 = vpop.permute.xlu0 %3486
      %3488 = vrot.lane.b32.xlu0 %v3461, 13
      %v3489 = vpop.permute.xlu0 %3488
      %3490 = vrot.lane.b32.xlu0 %v3463, 13
      %v3491 = vpop.permute.xlu0 %3490
      %3492 = vrot.lane.b32.xlu0 %v3457, 13
      %v3493 = vpop.permute.xlu0 %3492
      %vm3494 = vcmask 105472
      %v3495 = vsel %vm3494, %v3475, %v3477
      %v3496 = vsel %vm3494, %v3477, %v3479
      %v3497 = vsel %vm3494, %v3479, %v3481
      %v3498 = vsel %vm3494, %v3481, %v3483
      %v3499 = vsel %vm3494, %v3485, %v3487
      %v3500 = vsel %vm3494, %v3487, %v3489
      %v3501 = vsel %vm3494, %v3489, %v3491
      %v3502 = vsel %vm3494, %v3491, %v3493
      %v3511 = vsel %vm637, 0.0, %v3495
      %v3512 = vsel %vm638, 0.0, %v3496
      %v3513 = vsel %vm639, 0.0, %v3497
      %v3514 = vsel %vm640, 0.0, %v3498
      %v3515 = vsel %vm637, 0.0, %v3499
      %v3516 = vsel %vm638, 0.0, %v3500
      %v3517 = vsel %vm639, 0.0, %v3501
      %v3518 = vsel %vm640, 0.0, %v3502
      %s3519 = scalar_lea.vmem %s6, 32
      %v3520 = vld [vmem:[%s3519] sm:$0xff]
      %v3521 = vld [vmem:[%s3519 + $0x8] sm:$0xff]
      %v3522 = vld [vmem:[%s3519 + $0x10] sm:$0xff]
      %v3523 = vld [vmem:[%s3519 + $0x18] sm:$0xff]
      %v3525 = vsel %vm1222, %v3520, 0
      %v3528 = vsel %vm1222, %v3521, 0
      %v3531 = vsel %vm1222, %v3522, 0
      %v3534 = vsel %vm1222, %v3523, 0
      %3536 = vmatprep.subr.mxu0 %v3428
      %3537 = vmatpush1.msra.mxu0 %v3427
      %3538 = vmatprep.subr.mxu0 %v3432
      %3539 = vmatpush1.msra.mxu0 %v3431
      %3540 = vmatprep.subr.mxu0 0.0
      %3541 = vmatpush1.msra.mxu0 0.0
      %3542 = vmatprep.subr.mxu0 0.0
      %3543 = vmatpush1.msra.mxu0 0.0
      %3544 = vmatprep.subr.mxu0 0.0
      %3545 = vmatpush1.msra.mxu0 0.0
      %3546 = vmatprep.subr.mxu0 0.0
      %3547 = vmatpush1.msra.mxu0 0.0
      %3548 = vmatprep.subr.mxu0 0.0
      %3549 = vmatpush1.msra.mxu0 0.0
      %3550 = vmatprep.subr.mxu0 0.0
      %3551 = vmatpush1.msra.mxu0 0.0
      %3552 = vmatprep.subr.mxu0 0.0
      %3553 = vmatpush1.msra.mxu0 0.0
      %3554 = vmatprep.subr.mxu0 0.0
      %3555 = vmatpush1.msra.mxu0 0.0
      %3556 = vmatprep.subr.mxu0 0.0
      %3557 = vmatpush1.msra.mxu0 0.0
      %3558 = vmatprep.subr.mxu0 0.0
      %3559 = vmatpush1.msra.mxu0 0.0
      %3560 = vmatprep.subr.mxu0 0.0
      %3561 = vmatpush1.msra.mxu0 0.0
      %3562 = vmatprep.subr.mxu0 0.0
      %3563 = vmatpush1.msra.mxu0 0.0
      %3564 = vmatprep.subr.mxu0 0.0
      %3565 = vmatpush1.msra.mxu0 0.0
      %3566 = vmatprep.subr.mxu0 0.0
      %3567 = vmatpush1.msra.mxu0 0.0
      %3568 = vmatprep.subr.mxu0 0.0
      %3569 = vmatpush1.msra.mxu0 0.0
      %3570 = vmatprep.subr.mxu0 0.0
      %3571 = vmatpush1.msra.mxu0 0.0
      %3572 = vmatprep.subr.mxu0 0.0
      %3573 = vmatpush1.msra.mxu0 0.0
      %3574 = vmatprep.subr.mxu0 0.0
      %3575 = vmatpush1.msra.mxu0 0.0
      %3576 = vmatprep.subr.mxu0 0.0
      %3577 = vmatpush1.msra.mxu0 0.0
      %3578 = vmatprep.subr.mxu0 0.0
      %3579 = vmatpush1.msra.mxu0 0.0
      %3580 = vmatprep.subr.mxu0 0.0
      %3581 = vmatpush1.msra.mxu0 0.0
      %3582 = vmatprep.subr.mxu0 0.0
      %3583 = vmatpush1.msra.mxu0 0.0
      %3584 = vmatprep.subr.mxu0 0.0
      %3585 = vmatpush1.msra.mxu0 0.0
      %3586 = vmatprep.subr.mxu0 0.0
      %3587 = vmatpush1.msra.mxu0 0.0
      %3588 = vmatprep.subr.mxu0 0.0
      %3589 = vmatpush1.msra.mxu0 0.0
      %3590 = vmatprep.subr.mxu0 0.0
      %3591 = vmatpush1.msra.mxu0 0.0
      %3592 = vmatprep.subr.mxu0 0.0
      %3593 = vmatpush1.msra.mxu0 0.0
      %3594 = vmatprep.subr.mxu0 0.0
      %3595 = vmatpush1.msra.mxu0 0.0
      %3596 = vmatprep.subr.mxu0 0.0
      %3597 = vmatpush1.msra.mxu0 0.0
      %3598 = vmatprep.subr.mxu0 0.0
      %3599 = vmatpush1.msra.mxu0 0.0
      %3600 = vmatprep.mubr.f32.mxu0 0.0
      %3601 = vmatmul.mubr.f32.gmra.mrb[0].mxu0 %v3525
      %v3602 = vpop.f32.mrb[0].mxu0
      %v3603 = vadd.f32 0.0, %v3602
      %v3604 = vpop.f32.mrb[0].mxu0
      %v3605 = vadd.f32 0.0, %v3604
      %3606 = vmatprep.mubr.f32.mxu0 0.0
      %3607 = vmatmul.mubr.f32.gmra.mrb[0].mxu0 %v3528
      %v3608 = vpop.f32.mrb[0].mxu0
      %v3609 = vadd.f32 0.0, %v3608
      %v3610 = vpop.f32.mrb[0].mxu0
      %v3611 = vadd.f32 0.0, %v3610
      %3612 = vmatprep.mubr.f32.mxu0 0.0
      %3613 = vmatmul.mubr.f32.gmra.mrb[0].mxu0 %v3531
      %v3614 = vpop.f32.mrb[0].mxu0
      %v3615 = vadd.f32 0.0, %v3614
      %v3616 = vpop.f32.mrb[0].mxu0
      %v3617 = vadd.f32 0.0, %v3616
      %3618 = vmatprep.mubr.f32.mxu0 0.0
      %3619 = vmatmul.mubr.f32.gmra.mrb[0].mxu0 %v3534
      %v3620 = vpop.f32.mrb[0].mxu0
      %v3621 = vadd.f32 0.0, %v3620
      %v3622 = vpop.f32.mrb[0].mxu0
      %v3623 = vadd.f32 0.0, %v3622
      %3624 = vdwg.mxu0
      %3625 = vmatprep.subr.mxu0 %v3430
      %3626 = vmatpush1.msra.mxu0 %v3429
      %3627 = vmatprep.subr.mxu0 %v3434
      %3628 = vmatpush1.msra.mxu0 %v3433
      %3629 = vmatprep.subr.mxu0 0.0
      %3630 = vmatpush1.msra.mxu0 0.0
      %3631 = vmatprep.subr.mxu0 0.0
      %3632 = vmatpush1.msra.mxu0 0.0
      %3633 = vmatprep.subr.mxu0 0.0
      %3634 = vmatpush1.msra.mxu0 0.0
      %3635 = vmatprep.subr.mxu0 0.0
      %3636 = vmatpush1.msra.mxu0 0.0
      %3637 = vmatprep.subr.mxu0 0.0
      %3638 = vmatpush1.msra.mxu0 0.0
      %3639 = vmatprep.subr.mxu0 0.0
      %3640 = vmatpush1.msra.mxu0 0.0
      %3641 = vmatprep.subr.mxu0 0.0
      %3642 = vmatpush1.msra.mxu0 0.0
      %3643 = vmatprep.subr.mxu0 0.0
      %3644 = vmatpush1.msra.mxu0 0.0
      %3645 = vmatprep.subr.mxu0 0.0
      %3646 = vmatpush1.msra.mxu0 0.0
      %3647 = vmatprep.subr.mxu0 0.0
      %3648 = vmatpush1.msra.mxu0 0.0
      %3649 = vmatprep.subr.mxu0 0.0
      %3650 = vmatpush1.msra.mxu0 0.0
      %3651 = vmatprep.subr.mxu0 0.0
      %3652 = vmatpush1.msra.mxu0 0.0
      %3653 = vmatprep.subr.mxu0 0.0
      %3654 = vmatpush1.msra.mxu0 0.0
      %3655 = vmatprep.subr.mxu0 0.0
      %3656 = vmatpush1.msra.mxu0 0.0
      %3657 = vmatprep.subr.mxu0 0.0
      %3658 = vmatpush1.msra.mxu0 0.0
      %3659 = vmatprep.subr.mxu0 0.0
      %3660 = vmatpush1.msra.mxu0 0.0
      %3661 = vmatprep.subr.mxu0 0.0
      %3662 = vmatpush1.msra.mxu0 0.0
      %3663 = vmatprep.subr.mxu0 0.0
      %3664 = vmatpush1.msra.mxu0 0.0
      %3665 = vmatprep.subr.mxu0 0.0
      %3666 = vmatpush1.msra.mxu0 0.0
      %3667 = vmatprep.subr.mxu0 0.0
      %3668 = vmatpush1.msra.mxu0 0.0
      %3669 = vmatprep.subr.mxu0 0.0
      %3670 = vmatpush1.msra.mxu0 0.0
      %3671 = vmatprep.subr.mxu0 0.0
      %3672 = vmatpush1.msra.mxu0 0.0
      %3673 = vmatprep.subr.mxu0 0.0
      %3674 = vmatpush1.msra.mxu0 0.0
      %3675 = vmatprep.subr.mxu0 0.0
      %3676 = vmatpush1.msra.mxu0 0.0
      %3677 = vmatprep.subr.mxu0 0.0
      %3678 = vmatpush1.msra.mxu0 0.0
      %3679 = vmatprep.subr.mxu0 0.0
      %3680 = vmatpush1.msra.mxu0 0.0
      %3681 = vmatprep.subr.mxu0 0.0
      %3682 = vmatpush1.msra.mxu0 0.0
      %3683 = vmatprep.subr.mxu0 0.0
      %3684 = vmatpush1.msra.mxu0 0.0
      %3685 = vmatprep.subr.mxu0 0.0
      %3686 = vmatpush1.msra.mxu0 0.0
      %3687 = vmatprep.subr.mxu0 0.0
      %3688 = vmatpush1.msra.mxu0 0.0
      %3689 = vmatprep.mubr.f32.mxu0 0.0
      %3690 = vmatmul.mubr.f32.gmra.mrb[0].mxu0 %v3525
      %v3691 = vpop.f32.mrb[0].mxu0
      %v3692 = vadd.f32 0.0, %v3691
      %v3693 = vpop.f32.mrb[0].mxu0
      %v3694 = vadd.f32 0.0, %v3693
      %3695 = vmatprep.mubr.f32.mxu0 0.0
      %3696 = vmatmul.mubr.f32.gmra.mrb[0].mxu0 %v3528
      %v3697 = vpop.f32.mrb[0].mxu0
      %v3698 = vadd.f32 0.0, %v3697
      %v3699 = vpop.f32.mrb[0].mxu0
      %v3700 = vadd.f32 0.0, %v3699
      %3701 = vmatprep.mubr.f32.mxu0 0.0
      %3702 = vmatmul.mubr.f32.gmra.mrb[0].mxu0 %v3531
      %v3703 = vpop.f32.mrb[0].mxu0
      %v3704 = vadd.f32 0.0, %v3703
      %v3705 = vpop.f32.mrb[0].mxu0
      %v3706 = vadd.f32 0.0, %v3705
      %3707 = vmatprep.mubr.f32.mxu0 0.0
      %3708 = vmatmul.mubr.f32.gmra.mrb[0].mxu0 %v3534
      %v3709 = vpop.f32.mrb[0].mxu0
      %v3710 = vadd.f32 0.0, %v3709
      %v3711 = vpop.f32.mrb[0].mxu0
      %v3712 = vadd.f32 0.0, %v3711
      %3713 = vdwg.mxu0
      %v3715 = vsel %vm1222, %v3435, 0
      %v3718 = vsel %vm1222, %v3436, 0
      %v3721 = vsel %vm1222, %v3437, 0
      %v3724 = vsel %vm1222, %v3438, 0
      %3726 = vmatprep.subr.mxu0 %v3512
      %3727 = vmatpush1.msra.mxu0 %v3511
      %3728 = vmatprep.subr.mxu0 %v3516
      %3729 = vmatpush1.msra.mxu0 %v3515
      %3730 = vmatprep.subr.mxu0 0.0
      %3731 = vmatpush1.msra.mxu0 0.0
      %3732 = vmatprep.subr.mxu0 0.0
      %3733 = vmatpush1.msra.mxu0 0.0
      %3734 = vmatprep.subr.mxu0 0.0
      %3735 = vmatpush1.msra.mxu0 0.0
      %3736 = vmatprep.subr.mxu0 0.0
      %3737 = vmatpush1.msra.mxu0 0.0
      %3738 = vmatprep.subr.mxu0 0.0
      %3739 = vmatpush1.msra.mxu0 0.0
      %3740 = vmatprep.subr.mxu0 0.0
      %3741 = vmatpush1.msra.mxu0 0.0
      %3742 = vmatprep.subr.mxu0 0.0
      %3743 = vmatpush1.msra.mxu0 0.0
      %3744 = vmatprep.subr.mxu0 0.0
      %3745 = vmatpush1.msra.mxu0 0.0
      %3746 = vmatprep.subr.mxu0 0.0
      %3747 = vmatpush1.msra.mxu0 0.0
      %3748 = vmatprep.subr.mxu0 0.0
      %3749 = vmatpush1.msra.mxu0 0.0
      %3750 = vmatprep.subr.mxu0 0.0
      %3751 = vmatpush1.msra.mxu0 0.0
      %3752 = vmatprep.subr.mxu0 0.0
      %3753 = vmatpush1.msra.mxu0 0.0
      %3754 = vmatprep.subr.mxu0 0.0
      %3755 = vmatpush1.msra.mxu0 0.0
      %3756 = vmatprep.subr.mxu0 0.0
      %3757 = vmatpush1.msra.mxu0 0.0
      %3758 = vmatprep.subr.mxu0 0.0
      %3759 = vmatpush1.msra.mxu0 0.0
      %3760 = vmatprep.subr.mxu0 0.0
      %3761 = vmatpush1.msra.mxu0 0.0
      %3762 = vmatprep.subr.mxu0 0.0
      %3763 = vmatpush1.msra.mxu0 0.0
      %3764 = vmatprep.subr.mxu0 0.0
      %3765 = vmatpush1.msra.mxu0 0.0
      %3766 = vmatprep.subr.mxu0 0.0
      %3767 = vmatpush1.msra.mxu0 0.0
      %3768 = vmatprep.subr.mxu0 0.0
      %3769 = vmatpush1.msra.mxu0 0.0
      %3770 = vmatprep.subr.mxu0 0.0
      %3771 = vmatpush1.msra.mxu0 0.0
      %3772 = vmatprep.subr.mxu0 0.0
      %3773 = vmatpush1.msra.mxu0 0.0
      %3774 = vmatprep.subr.mxu0 0.0
      %3775 = vmatpush1.msra.mxu0 0.0
      %3776 = vmatprep.subr.mxu0 0.0
      %3777 = vmatpush1.msra.mxu0 0.0
      %3778 = vmatprep.subr.mxu0 0.0
      %3779 = vmatpush1.msra.mxu0 0.0
      %3780 = vmatprep.subr.mxu0 0.0
      %3781 = vmatpush1.msra.mxu0 0.0
      %3782 = vmatprep.subr.mxu0 0.0
      %3783 = vmatpush1.msra.mxu0 0.0
      %3784 = vmatprep.subr.mxu0 0.0
      %3785 = vmatpush1.msra.mxu0 0.0
      %3786 = vmatprep.subr.mxu0 0.0
      %3787 = vmatpush1.msra.mxu0 0.0
      %3788 = vmatprep.subr.mxu0 0.0
      %3789 = vmatpush1.msra.mxu0 0.0
      %3790 = vmatprep.mubr.f32.mxu0 0.0
      %3791 = vmatmul.mubr.f32.gmra.mrb[0].mxu0 %v3715
      %v3792 = vpop.f32.mrb[0].mxu0
      %v3793 = vadd.f32 %v3603, %v3792
      %v3794 = vpop.f32.mrb[0].mxu0
      %v3795 = vadd.f32 %v3605, %v3794
      %3796 = vmatprep.mubr.f32.mxu0 0.0
      %3797 = vmatmul.mubr.f32.gmra.mrb[0].mxu0 %v3718
      %v3798 = vpop.f32.mrb[0].mxu0
      %v3799 = vadd.f32 %v3609, %v3798
      %v3800 = vpop.f32.mrb[0].mxu0
      %v3801 = vadd.f32 %v3611, %v3800
      %3802 = vmatprep.mubr.f32.mxu0 0.0
      %3803 = vmatmul.mubr.f32.gmra.mrb[0].mxu0 %v3721
      %v3804 = vpop.f32.mrb[0].mxu0
      %v3805 = vadd.f32 %v3615, %v3804
      %v3806 = vpop.f32.mrb[0].mxu0
      %v3807 = vadd.f32 %v3617, %v3806
      %3808 = vmatprep.mubr.f32.mxu0 0.0
      %3809 = vmatmul.mubr.f32.gmra.mrb[0].mxu0 %v3724
      %v3810 = vpop.f32.mrb[0].mxu0
      %v3811 = vadd.f32 %v3621, %v3810
      %v3812 = vpop.f32.mrb[0].mxu0
      %v3813 = vadd.f32 %v3623, %v3812
      %3814 = vdwg.mxu0
      %3815 = vmatprep.subr.mxu0 %v3514
      %3816 = vmatpush1.msra.mxu0 %v3513
      %3817 = vmatprep.subr.mxu0 %v3518
      %3818 = vmatpush1.msra.mxu0 %v3517
      %3819 = vmatprep.subr.mxu0 0.0
      %3820 = vmatpush1.msra.mxu0 0.0
      %3821 = vmatprep.subr.mxu0 0.0
      %3822 = vmatpush1.msra.mxu0 0.0
      %3823 = vmatprep.subr.mxu0 0.0
      %3824 = vmatpush1.msra.mxu0 0.0
      %3825 = vmatprep.subr.mxu0 0.0
      %3826 = vmatpush1.msra.mxu0 0.0
      %3827 = vmatprep.subr.mxu0 0.0
      %3828 = vmatpush1.msra.mxu0 0.0
      %3829 = vmatprep.subr.mxu0 0.0
      %3830 = vmatpush1.msra.mxu0 0.0
      %3831 = vmatprep.subr.mxu0 0.0
      %3832 = vmatpush1.msra.mxu0 0.0
      %3833 = vmatprep.subr.mxu0 0.0
      %3834 = vmatpush1.msra.mxu0 0.0
      %3835 = vmatprep.subr.mxu0 0.0
      %3836 = vmatpush1.msra.mxu0 0.0
      %3837 = vmatprep.subr.mxu0 0.0
      %3838 = vmatpush1.msra.mxu0 0.0
      %3839 = vmatprep.subr.mxu0 0.0
      %3840 = vmatpush1.msra.mxu0 0.0
      %3841 = vmatprep.subr.mxu0 0.0
      %3842 = vmatpush1.msra.mxu0 0.0
      %3843 = vmatprep.subr.mxu0 0.0
      %3844 = vmatpush1.msra.mxu0 0.0
      %3845 = vmatprep.subr.mxu0 0.0
      %3846 = vmatpush1.msra.mxu0 0.0
      %3847 = vmatprep.subr.mxu0 0.0
      %3848 = vmatpush1.msra.mxu0 0.0
      %3849 = vmatprep.subr.mxu0 0.0
      %3850 = vmatpush1.msra.mxu0 0.0
      %3851 = vmatprep.subr.mxu0 0.0
      %3852 = vmatpush1.msra.mxu0 0.0
      %3853 = vmatprep.subr.mxu0 0.0
      %3854 = vmatpush1.msra.mxu0 0.0
      %3855 = vmatprep.subr.mxu0 0.0
      %3856 = vmatpush1.msra.mxu0 0.0
      %3857 = vmatprep.subr.mxu0 0.0
      %3858 = vmatpush1.msra.mxu0 0.0
      %3859 = vmatprep.subr.mxu0 0.0
      %3860 = vmatpush1.msra.mxu0 0.0
      %3861 = vmatprep.subr.mxu0 0.0
      %3862 = vmatpush1.msra.mxu0 0.0
      %3863 = vmatprep.subr.mxu0 0.0
      %3864 = vmatpush1.msra.mxu0 0.0
      %3865 = vmatprep.subr.mxu0 0.0
      %3866 = vmatpush1.msra.mxu0 0.0
      %3867 = vmatprep.subr.mxu0 0.0
      %3868 = vmatpush1.msra.mxu0 0.0
      %3869 = vmatprep.subr.mxu0 0.0
      %3870 = vmatpush1.msra.mxu0 0.0
      %3871 = vmatprep.subr.mxu0 0.0
      %3872 = vmatpush1.msra.mxu0 0.0
      %3873 = vmatprep.subr.mxu0 0.0
      %3874 = vmatpush1.msra.mxu0 0.0
      %3875 = vmatprep.subr.mxu0 0.0
      %3876 = vmatpush1.msra.mxu0 0.0
      %3877 = vmatprep.subr.mxu0 0.0
      %3878 = vmatpush1.msra.mxu0 0.0
      %3879 = vmatprep.mubr.f32.mxu0 0.0
      %3880 = vmatmul.mubr.f32.gmra.mrb[0].mxu0 %v3715
      %v3881 = vpop.f32.mrb[0].mxu0
      %v3882 = vadd.f32 %v3692, %v3881
      %v3883 = vpop.f32.mrb[0].mxu0
      %v3884 = vadd.f32 %v3694, %v3883
      %3885 = vmatprep.mubr.f32.mxu0 0.0
      %3886 = vmatmul.mubr.f32.gmra.mrb[0].mxu0 %v3718
      %v3887 = vpop.f32.mrb[0].mxu0
      %v3888 = vadd.f32 %v3698, %v3887
      %v3889 = vpop.f32.mrb[0].mxu0
      %v3890 = vadd.f32 %v3700, %v3889
      %3891 = vmatprep.mubr.f32.mxu0 0.0
      %3892 = vmatmul.mubr.f32.gmra.mrb[0].mxu0 %v3721
      %v3893 = vpop.f32.mrb[0].mxu0
      %v3894 = vadd.f32 %v3704, %v3893
      %v3895 = vpop.f32.mrb[0].mxu0
      %v3896 = vadd.f32 %v3706, %v3895
      %3897 = vmatprep.mubr.f32.mxu0 0.0
      %3898 = vmatmul.mubr.f32.gmra.mrb[0].mxu0 %v3724
      %v3899 = vpop.f32.mrb[0].mxu0
      %v3900 = vadd.f32 %v3710, %v3899
      %v3901 = vpop.f32.mrb[0].mxu0
      %v3902 = vadd.f32 %v3712, %v3901
      %3903 = vdwg.mxu0
      %s3904 = scalar_lea.vmem %s6, 64
      %v3905 = vld [vmem:[%s3904] sm:$0xff]
      %v3906 = vld [vmem:[%s3904 + $0x8] sm:$0xff]
      %v3907 = vld [vmem:[%s3904 + $0x10] sm:$0xff]
      %v3908 = vld [vmem:[%s3904 + $0x18] sm:$0xff]
      %vm3909 = vcmp.eq.s32.totalorder %v629, 499
      %vm3910 = vcmp.eq.s32.totalorder %v630, 499
      %vm3911 = vcmp.eq.s32.totalorder %v631, 499
      %vm3912 = vcmp.eq.s32.totalorder %v632, 499
      %3919 = vrot.lane.b32.xlu0 %v3427, 127
      %v3920 = vpop.permute.xlu0 %3919
      %3921 = vrot.lane.b32.xlu0 %v3428, 127
      %v3922 = vpop.permute.xlu0 %3921
      %3923 = vrot.lane.b32.xlu0 %v3429, 127
      %v3924 = vpop.permute.xlu0 %3923
      %3925 = vrot.lane.b32.xlu0 %v3442, 127
      %v3926 = vpop.permute.xlu0 %3925
      %3927 = vrot.lane.b32.xlu0 %v3431, 127
      %v3928 = vpop.permute.xlu0 %3927
      %3929 = vrot.lane.b32.xlu0 %v3432, 127
      %v3930 = vpop.permute.xlu0 %3929
      %3931 = vrot.lane.b32.xlu0 %v3433, 127
      %v3932 = vpop.permute.xlu0 %3931
      %3933 = vrot.lane.b32.xlu0 %v3445, 127
      %v3934 = vpop.permute.xlu0 %3933
      %v3935 = vsel %vm893, %v3920, %v3922
      %v3936 = vsel %vm893, %v3922, %v3924
      %v3937 = vsel %vm893, %v3924, %v3926
      %v3938 = vsel %vm893, %v3928, %v3930
      %v3939 = vsel %vm893, %v3930, %v3932
      %v3940 = vsel %vm893, %v3932, %v3934
      %v3949 = vsel %vm3909, 0.0, %v3935
      %v3950 = vsel %vm3910, 0.0, %v3936
      %v3951 = vsel %vm3911, 0.0, %v3937
      %v3952 = vsel %vm3912, 0.0, %v3926
      %v3953 = vsel %vm3909, 0.0, %v3938
      %v3954 = vsel %vm3910, 0.0, %v3939
      %v3955 = vsel %vm3911, 0.0, %v3940
      %v3956 = vsel %vm3912, 0.0, %v3934
      %v3958 = vsel %vm1222, %v3905, 0
      %v3961 = vsel %vm1222, %v3906, 0
      %v3964 = vsel %vm1222, %v3907, 0
      %v3967 = vsel %vm1222, %v3908, 0
      %3969 = vmatprep.subr.mxu0 %v3950
      %3970 = vmatpush1.msra.mxu0 %v3949
      %3971 = vmatprep.subr.mxu0 %v3954
      %3972 = vmatpush1.msra.mxu0 %v3953
      %3973 = vmatprep.subr.mxu0 0.0
      %3974 = vmatpush1.msra.mxu0 0.0
      %3975 = vmatprep.subr.mxu0 0.0
      %3976 = vmatpush1.msra.mxu0 0.0
      %3977 = vmatprep.subr.mxu0 0.0
      %3978 = vmatpush1.msra.mxu0 0.0
      %3979 = vmatprep.subr.mxu0 0.0
      %3980 = vmatpush1.msra.mxu0 0.0
      %3981 = vmatprep.subr.mxu0 0.0
      %3982 = vmatpush1.msra.mxu0 0.0
      %3983 = vmatprep.subr.mxu0 0.0
      %3984 = vmatpush1.msra.mxu0 0.0
      %3985 = vmatprep.subr.mxu0 0.0
      %3986 = vmatpush1.msra.mxu0 0.0
      %3987 = vmatprep.subr.mxu0 0.0
      %3988 = vmatpush1.msra.mxu0 0.0
      %3989 = vmatprep.subr.mxu0 0.0
      %3990 = vmatpush1.msra.mxu0 0.0
      %3991 = vmatprep.subr.mxu0 0.0
      %3992 = vmatpush1.msra.mxu0 0.0
      %3993 = vmatprep.subr.mxu0 0.0
      %3994 = vmatpush1.msra.mxu0 0.0
      %3995 = vmatprep.subr.mxu0 0.0
      %3996 = vmatpush1.msra.mxu0 0.0
      %3997 = vmatprep.subr.mxu0 0.0
      %3998 = vmatpush1.msra.mxu0 0.0
      %3999 = vmatprep.subr.mxu0 0.0
      %4000 = vmatpush1.msra.mxu0 0.0
      %4001 = vmatprep.subr.mxu0 0.0
      %4002 = vmatpush1.msra.mxu0 0.0
      %4003 = vmatprep.subr.mxu0 0.0
      %4004 = vmatpush1.msra.mxu0 0.0
      %4005 = vmatprep.subr.mxu0 0.0
      %4006 = vmatpush1.msra.mxu0 0.0
      %4007 = vmatprep.subr.mxu0 0.0
      %4008 = vmatpush1.msra.mxu0 0.0
      %4009 = vmatprep.subr.mxu0 0.0
      %4010 = vmatpush1.msra.mxu0 0.0
      %4011 = vmatprep.subr.mxu0 0.0
      %4012 = vmatpush1.msra.mxu0 0.0
      %4013 = vmatprep.subr.mxu0 0.0
      %4014 = vmatpush1.msra.mxu0 0.0
      %4015 = vmatprep.subr.mxu0 0.0
      %4016 = vmatpush1.msra.mxu0 0.0
      %4017 = vmatprep.subr.mxu0 0.0
      %4018 = vmatpush1.msra.mxu0 0.0
      %4019 = vmatprep.subr.mxu0 0.0
      %4020 = vmatpush1.msra.mxu0 0.0
      %4021 = vmatprep.subr.mxu0 0.0
      %4022 = vmatpush1.msra.mxu0 0.0
      %4023 = vmatprep.subr.mxu0 0.0
      %4024 = vmatpush1.msra.mxu0 0.0
      %4025 = vmatprep.subr.mxu0 0.0
      %4026 = vmatpush1.msra.mxu0 0.0
      %4027 = vmatprep.subr.mxu0 0.0
      %4028 = vmatpush1.msra.mxu0 0.0
      %4029 = vmatprep.subr.mxu0 0.0
      %4030 = vmatpush1.msra.mxu0 0.0
      %4031 = vmatprep.subr.mxu0 0.0
      %4032 = vmatpush1.msra.mxu0 0.0
      %4033 = vmatprep.mubr.f32.mxu0 0.0
      %4034 = vmatmul.mubr.f32.gmra.mrb[0].mxu0 %v3958
      %v4035 = vpop.f32.mrb[0].mxu0
      %v4036 = vadd.f32 0.0, %v4035
      %v4037 = vpop.f32.mrb[0].mxu0
      %v4038 = vadd.f32 0.0, %v4037
      %4039 = vmatprep.mubr.f32.mxu0 0.0
      %4040 = vmatmul.mubr.f32.gmra.mrb[0].mxu0 %v3961
      %v4041 = vpop.f32.mrb[0].mxu0
      %v4042 = vadd.f32 0.0, %v4041
      %v4043 = vpop.f32.mrb[0].mxu0
      %v4044 = vadd.f32 0.0, %v4043
      %4045 = vmatprep.mubr.f32.mxu0 0.0
      %4046 = vmatmul.mubr.f32.gmra.mrb[0].mxu0 %v3964
      %v4047 = vpop.f32.mrb[0].mxu0
      %v4048 = vadd.f32 0.0, %v4047
      %v4049 = vpop.f32.mrb[0].mxu0
      %v4050 = vadd.f32 0.0, %v4049
      %4051 = vmatprep.mubr.f32.mxu0 0.0
      %4052 = vmatmul.mubr.f32.gmra.mrb[0].mxu0 %v3967
      %v4053 = vpop.f32.mrb[0].mxu0
      %v4054 = vadd.f32 0.0, %v4053
      %v4055 = vpop.f32.mrb[0].mxu0
      %v4056 = vadd.f32 0.0, %v4055
      %4057 = vdwg.mxu0
      %4058 = vmatprep.subr.mxu0 %v3952
      %4059 = vmatpush1.msra.mxu0 %v3951
      %4060 = vmatprep.subr.mxu0 %v3956
      %4061 = vmatpush1.msra.mxu0 %v3955
      %4062 = vmatprep.subr.mxu0 0.0
      %4063 = vmatpush1.msra.mxu0 0.0
      %4064 = vmatprep.subr.mxu0 0.0
      %4065 = vmatpush1.msra.mxu0 0.0
      %4066 = vmatprep.subr.mxu0 0.0
      %4067 = vmatpush1.msra.mxu0 0.0
      %4068 = vmatprep.subr.mxu0 0.0
      %4069 = vmatpush1.msra.mxu0 0.0
      %4070 = vmatprep.subr.mxu0 0.0
      %4071 = vmatpush1.msra.mxu0 0.0
      %4072 = vmatprep.subr.mxu0 0.0
      %4073 = vmatpush1.msra.mxu0 0.0
      %4074 = vmatprep.subr.mxu0 0.0
      %4075 = vmatpush1.msra.mxu0 0.0
      %4076 = vmatprep.subr.mxu0 0.0
      %4077 = vmatpush1.msra.mxu0 0.0
      %4078 = vmatprep.subr.mxu0 0.0
      %4079 = vmatpush1.msra.mxu0 0.0
      %4080 = vmatprep.subr.mxu0 0.0
      %4081 = vmatpush1.msra.mxu0 0.0
      %4082 = vmatprep.subr.mxu0 0.0
      %4083 = vmatpush1.msra.mxu0 0.0
      %4084 = vmatprep.subr.mxu0 0.0
      %4085 = vmatpush1.msra.mxu0 0.0
      %4086 = vmatprep.subr.mxu0 0.0
      %4087 = vmatpush1.msra.mxu0 0.0
      %4088 = vmatprep.subr.mxu0 0.0
      %4089 = vmatpush1.msra.mxu0 0.0
      %4090 = vmatprep.subr.mxu0 0.0
      %4091 = vmatpush1.msra.mxu0 0.0
      %4092 = vmatprep.subr.mxu0 0.0
      %4093 = vmatpush1.msra.mxu0 0.0
      %4094 = vmatprep.subr.mxu0 0.0
      %4095 = vmatpush1.msra.mxu0 0.0
      %4096 = vmatprep.subr.mxu0 0.0
      %4097 = vmatpush1.msra.mxu0 0.0
      %4098 = vmatprep.subr.mxu0 0.0
      %4099 = vmatpush1.msra.mxu0 0.0
      %4100 = vmatprep.subr.mxu0 0.0
      %4101 = vmatpush1.msra.mxu0 0.0
      %4102 = vmatprep.subr.mxu0 0.0
      %4103 = vmatpush1.msra.mxu0 0.0
      %4104 = vmatprep.subr.mxu0 0.0
      %4105 = vmatpush1.msra.mxu0 0.0
      %4106 = vmatprep.subr.mxu0 0.0
      %4107 = vmatpush1.msra.mxu0 0.0
      %4108 = vmatprep.subr.mxu0 0.0
      %4109 = vmatpush1.msra.mxu0 0.0
      %4110 = vmatprep.subr.mxu0 0.0
      %4111 = vmatpush1.msra.mxu0 0.0
      %4112 = vmatprep.subr.mxu0 0.0
      %4113 = vmatpush1.msra.mxu0 0.0
      %4114 = vmatprep.subr.mxu0 0.0
      %4115 = vmatpush1.msra.mxu0 0.0
      %4116 = vmatprep.subr.mxu0 0.0
      %4117 = vmatpush1.msra.mxu0 0.0
      %4118 = vmatprep.subr.mxu0 0.0
      %4119 = vmatpush1.msra.mxu0 0.0
      %4120 = vmatprep.subr.mxu0 0.0
      %4121 = vmatpush1.msra.mxu0 0.0
      %4122 = vmatprep.mubr.f32.mxu0 0.0
      %4123 = vmatmul.mubr.f32.gmra.mrb[0].mxu0 %v3958
      %v4124 = vpop.f32.mrb[0].mxu0
      %v4125 = vadd.f32 0.0, %v4124
      %v4126 = vpop.f32.mrb[0].mxu0
      %v4127 = vadd.f32 0.0, %v4126
      %4128 = vmatprep.mubr.f32.mxu0 0.0
      %4129 = vmatmul.mubr.f32.gmra.mrb[0].mxu0 %v3961
      %v4130 = vpop.f32.mrb[0].mxu0
      %v4131 = vadd.f32 0.0, %v4130
      %v4132 = vpop.f32.mrb[0].mxu0
      %v4133 = vadd.f32 0.0, %v4132
      %4134 = vmatprep.mubr.f32.mxu0 0.0
      %4135 = vmatmul.mubr.f32.gmra.mrb[0].mxu0 %v3964
      %v4136 = vpop.f32.mrb[0].mxu0
      %v4137 = vadd.f32 0.0, %v4136
      %v4138 = vpop.f32.mrb[0].mxu0
      %v4139 = vadd.f32 0.0, %v4138
      %4140 = vmatprep.mubr.f32.mxu0 0.0
      %4141 = vmatmul.mubr.f32.gmra.mrb[0].mxu0 %v3967
      %v4142 = vpop.f32.mrb[0].mxu0
      %v4143 = vadd.f32 0.0, %v4142
      %v4144 = vpop.f32.mrb[0].mxu0
      %v4145 = vadd.f32 0.0, %v4144
      %4146 = vdwg.mxu0
      %v4147 = vadd.f32 %v3793, %v4036
      %v4148 = vadd.f32 %v3795, %v4038
      %v4149 = vadd.f32 %v3882, %v4125
      %v4150 = vadd.f32 %v3884, %v4127
      %v4151 = vadd.f32 %v3799, %v4042
      %v4152 = vadd.f32 %v3801, %v4044
      %v4153 = vadd.f32 %v3888, %v4131
      %v4154 = vadd.f32 %v3890, %v4133
      %v4155 = vadd.f32 %v3805, %v4048
      %v4156 = vadd.f32 %v3807, %v4050
      %v4157 = vadd.f32 %v3894, %v4137
      %v4158 = vadd.f32 %v3896, %v4139
      %v4159 = vadd.f32 %v3811, %v4054
      %v4160 = vadd.f32 %v3813, %v4056
      %v4161 = vadd.f32 %v3900, %v4143
      %v4162 = vadd.f32 %v3902, %v4145
      %v4163 = vld [vmem:[%s7] sm:$0xff]
      %v4164 = vld [vmem:[%s7 + $0x8] sm:$0xff]
      %v4165 = vld [vmem:[%s7 + $0x10] sm:$0xff]
      %v4166 = vld [vmem:[%s7 + $0x18] sm:$0xff]
      %4168 = vset.pattern.permute.xlu0 0
      %4169 = vperm.xlu0 %4168, %v4163
      %v4170 = vpop.permute.xlu0 %4169
      %4173 = vset.pattern.permute.xlu0 0
      %4174 = vperm.xlu0 %4173, %v4164
      %v4175 = vpop.permute.xlu0 %4174
      %4178 = vset.pattern.permute.xlu0 0
      %4179 = vperm.xlu0 %4178, %v4165
      %v4180 = vpop.permute.xlu0 %4179
      %4183 = vset.pattern.permute.xlu0 0
      %4184 = vperm.xlu0 %4183, %v4166
      %v4185 = vpop.permute.xlu0 %4184
      %v4187 = vadd.f32 %v4147, %v4170
      %v4188 = vadd.f32 %v4148, %v4170
      %v4189 = vadd.f32 %v4149, %v4170
      %v4190 = vadd.f32 %v4150, %v4170
      %v4191 = vadd.f32 %v4151, %v4175
      %v4192 = vadd.f32 %v4152, %v4175
      %v4193 = vadd.f32 %v4153, %v4175
      %v4194 = vadd.f32 %v4154, %v4175
      %v4195 = vadd.f32 %v4155, %v4180
      %v4196 = vadd.f32 %v4156, %v4180
      %v4197 = vadd.f32 %v4157, %v4180
      %v4198 = vadd.f32 %v4158, %v4180
      %v4199 = vadd.f32 %v4159, %v4185
      %v4200 = vadd.f32 %v4160, %v4185
      %v4201 = vadd.f32 %v4161, %v4185
      %v4202 = vadd.f32 %v4162, %v4185
      %vm4203 = vcmp.ge.f32.partialorder %v4187, 0.0
      %vm4204 = vcmp.ge.f32.partialorder %v4188, 0.0
      %vm4205 = vcmp.ge.f32.partialorder %v4189, 0.0
      %vm4206 = vcmp.ge.f32.partialorder %v4190, 0.0
      %vm4207 = vcmp.ge.f32.partialorder %v4191, 0.0
      %vm4208 = vcmp.ge.f32.partialorder %v4192, 0.0
      %vm4209 = vcmp.ge.f32.partialorder %v4193, 0.0
      %vm4210 = vcmp.ge.f32.partialorder %v4194, 0.0
      %vm4211 = vcmp.ge.f32.partialorder %v4195, 0.0
      %vm4212 = vcmp.ge.f32.partialorder %v4196, 0.0
      %vm4213 = vcmp.ge.f32.partialorder %v4197, 0.0
      %vm4214 = vcmp.ge.f32.partialorder %v4198, 0.0
      %vm4215 = vcmp.ge.f32.partialorder %v4199, 0.0
      %vm4216 = vcmp.ge.f32.partialorder %v4200, 0.0
      %vm4217 = vcmp.ge.f32.partialorder %v4201, 0.0
      %vm4218 = vcmp.ge.f32.partialorder %v4202, 0.0
      %v4219 = vmul.f32 %v4187, 0.01
      %v4220 = vmul.f32 %v4188, 0.01
      %v4221 = vmul.f32 %v4189, 0.01
      %v4222 = vmul.f32 %v4190, 0.01
      %v4223 = vmul.f32 %v4191, 0.01
      %v4224 = vmul.f32 %v4192, 0.01
      %v4225 = vmul.f32 %v4193, 0.01
      %v4226 = vmul.f32 %v4194, 0.01
      %v4227 = vmul.f32 %v4195, 0.01
      %v4228 = vmul.f32 %v4196, 0.01
      %v4229 = vmul.f32 %v4197, 0.01
      %v4230 = vmul.f32 %v4198, 0.01
      %v4231 = vmul.f32 %v4199, 0.01
      %v4232 = vmul.f32 %v4200, 0.01
      %v4233 = vmul.f32 %v4201, 0.01
      %v4234 = vmul.f32 %v4202, 0.01
      %v4235 = vsel %vm4203, %v4187, %v4219
      %v4236 = vsel %vm4204, %v4188, %v4220
      %v4237 = vsel %vm4205, %v4189, %v4221
      %v4238 = vsel %vm4206, %v4190, %v4222
      %v4239 = vsel %vm4207, %v4191, %v4223
      %v4240 = vsel %vm4208, %v4192, %v4224
      %v4241 = vsel %vm4209, %v4193, %v4225
      %v4242 = vsel %vm4210, %v4194, %v4226
      %v4243 = vsel %vm4211, %v4195, %v4227
      %v4244 = vsel %vm4212, %v4196, %v4228
      %v4245 = vsel %vm4213, %v4197, %v4229
      %v4246 = vsel %vm4214, %v4198, %v4230
      %v4247 = vsel %vm4215, %v4199, %v4231
      %v4248 = vsel %vm4216, %v4200, %v4232
      %v4249 = vsel %vm4217, %v4201, %v4233
      %v4250 = vsel %vm4218, %v4202, %v4234
      %v4251 = vld [vmem:[%s8] sm:$0xff]
      %v4252 = vld [vmem:[%s8 + $0x8] sm:$0xff]
      %v4253 = vld [vmem:[%s8 + $0x10] sm:$0xff]
      %v4254 = vld [vmem:[%s8 + $0x18] sm:$0xff]
      %4255 = vrot.lane.b32.xlu0 %v4235, 116
      %v4256 = vpop.permute.xlu0 %4255
      %v4257 = vsel %vm3439, %v4256, %v4238
      %4258 = vrot.lane.b32.xlu0 %v4239, 116
      %v4259 = vpop.permute.xlu0 %4258
      %v4260 = vsel %vm3439, %v4259, %v4242
      %4261 = vrot.lane.b32.xlu0 %v4243, 116
      %v4262 = vpop.permute.xlu0 %4261
      %v4263 = vsel %vm3439, %v4262, %v4246
      %4264 = vrot.lane.b32.xlu0 %v4247, 116
      %v4265 = vpop.permute.xlu0 %4264
      %v4266 = vsel %vm3439, %v4265, %v4250
      %4267 = vrot.lane.b32.xlu0 %v4236, 116
      %v4268 = vpop.permute.xlu0 %4267
      %4269 = vrot.lane.b32.xlu0 %v4240, 116
      %v4270 = vpop.permute.xlu0 %4269
      %4271 = vrot.lane.b32.xlu0 %v4244, 116
      %v4272 = vpop.permute.xlu0 %4271
      %4273 = vrot.lane.b32.xlu0 %v4248, 116
      %v4274 = vpop.permute.xlu0 %4273
      %4275 = vrot.lane.b32.xlu0 %v4237, 116
      %v4276 = vpop.permute.xlu0 %4275
      %4277 = vrot.lane.b32.xlu0 %v4241, 116
      %v4278 = vpop.permute.xlu0 %4277
      %4279 = vrot.lane.b32.xlu0 %v4245, 116
      %v4280 = vpop.permute.xlu0 %4279
      %4281 = vrot.lane.b32.xlu0 %v4249, 116
      %v4282 = vpop.permute.xlu0 %4281
      %4283 = vrot.lane.b32.xlu0 %v4257, 116
      %v4284 = vpop.permute.xlu0 %4283
      %4285 = vrot.lane.b32.xlu0 %v4260, 116
      %v4286 = vpop.permute.xlu0 %4285
      %4287 = vrot.lane.b32.xlu0 %v4263, 116
      %v4288 = vpop.permute.xlu0 %4287
      %4289 = vrot.lane.b32.xlu0 %v4266, 116
      %v4290 = vpop.permute.xlu0 %4289
      %v4291 = vsel %vm3439, %v4268, %v4256
      %v4292 = vsel %vm3439, %v4270, %v4259
      %v4293 = vsel %vm3439, %v4272, %v4262
      %v4294 = vsel %vm3439, %v4274, %v4265
      %v4295 = vsel %vm3439, %v4276, %v4268
      %v4296 = vsel %vm3439, %v4278, %v4270
      %v4297 = vsel %vm3439, %v4280, %v4272
      %v4298 = vsel %vm3439, %v4282, %v4274
      %v4299 = vsel %vm3439, %v4284, %v4276
      %v4300 = vsel %vm3439, %v4286, %v4278
      %v4301 = vsel %vm3439, %v4288, %v4280
      %v4302 = vsel %vm3439, %v4290, %v4282
      %4323 = vrot.lane.b32.xlu0 %v4257, 13
      %v4324 = vpop.permute.xlu0 %4323
      %4325 = vrot.lane.b32.xlu0 %v4291, 13
      %v4326 = vpop.permute.xlu0 %4325
      %4327 = vrot.lane.b32.xlu0 %v4295, 13
      %v4328 = vpop.permute.xlu0 %4327
      %4329 = vrot.lane.b32.xlu0 %v4299, 13
      %v4330 = vpop.permute.xlu0 %4329
      %4331 = vrot.lane.b32.xlu0 %v4284, 13
      %v4332 = vpop.permute.xlu0 %4331
      %4333 = vrot.lane.b32.xlu0 %v4260, 13
      %v4334 = vpop.permute.xlu0 %4333
      %4335 = vrot.lane.b32.xlu0 %v4292, 13
      %v4336 = vpop.permute.xlu0 %4335
      %4337 = vrot.lane.b32.xlu0 %v4296, 13
      %v4338 = vpop.permute.xlu0 %4337
      %4339 = vrot.lane.b32.xlu0 %v4300, 13
      %v4340 = vpop.permute.xlu0 %4339
      %4341 = vrot.lane.b32.xlu0 %v4286, 13
      %v4342 = vpop.permute.xlu0 %4341
      %4343 = vrot.lane.b32.xlu0 %v4263, 13
      %v4344 = vpop.permute.xlu0 %4343
      %4345 = vrot.lane.b32.xlu0 %v4293, 13
      %v4346 = vpop.permute.xlu0 %4345
      %4347 = vrot.lane.b32.xlu0 %v4297, 13
      %v4348 = vpop.permute.xlu0 %4347
      %4349 = vrot.lane.b32.xlu0 %v4301, 13
      %v4350 = vpop.permute.xlu0 %4349
      %4351 = vrot.lane.b32.xlu0 %v4288, 13
      %v4352 = vpop.permute.xlu0 %4351
      %4353 = vrot.lane.b32.xlu0 %v4266, 13
      %v4354 = vpop.permute.xlu0 %4353
      %4355 = vrot.lane.b32.xlu0 %v4294, 13
      %v4356 = vpop.permute.xlu0 %4355
      %4357 = vrot.lane.b32.xlu0 %v4298, 13
      %v4358 = vpop.permute.xlu0 %4357
      %4359 = vrot.lane.b32.xlu0 %v4302, 13
      %v4360 = vpop.permute.xlu0 %4359
      %4361 = vrot.lane.b32.xlu0 %v4290, 13
      %v4362 = vpop.permute.xlu0 %4361
      %v4363 = vsel %vm3494, %v4324, %v4326
      %v4364 = vsel %vm3494, %v4326, %v4328
      %v4365 = vsel %vm3494, %v4328, %v4330
      %v4366 = vsel %vm3494, %v4330, %v4332
      %v4367 = vsel %vm3494, %v4334, %v4336
      %v4368 = vsel %vm3494, %v4336, %v4338
      %v4369 = vsel %vm3494, %v4338, %v4340
      %v4370 = vsel %vm3494, %v4340, %v4342
      %v4371 = vsel %vm3494, %v4344, %v4346
      %v4372 = vsel %vm3494, %v4346, %v4348
      %v4373 = vsel %vm3494, %v4348, %v4350
      %v4374 = vsel %vm3494, %v4350, %v4352
      %v4375 = vsel %vm3494, %v4354, %v4356
      %v4376 = vsel %vm3494, %v4356, %v4358
      %v4377 = vsel %vm3494, %v4358, %v4360
      %v4378 = vsel %vm3494, %v4360, %v4362
      %v4395 = vsel %vm637, 0.0, %v4363
      %v4396 = vsel %vm638, 0.0, %v4364
      %v4397 = vsel %vm639, 0.0, %v4365
      %v4398 = vsel %vm640, 0.0, %v4366
      %v4399 = vsel %vm637, 0.0, %v4367
      %v4400 = vsel %vm638, 0.0, %v4368
      %v4401 = vsel %vm639, 0.0, %v4369
      %v4402 = vsel %vm640, 0.0, %v4370
      %v4403 = vsel %vm637, 0.0, %v4371
      %v4404 = vsel %vm638, 0.0, %v4372
      %v4405 = vsel %vm639, 0.0, %v4373
      %v4406 = vsel %vm640, 0.0, %v4374
      %v4407 = vsel %vm637, 0.0, %v4375
      %v4408 = vsel %vm638, 0.0, %v4376
      %v4409 = vsel %vm639, 0.0, %v4377
      %v4410 = vsel %vm640, 0.0, %v4378
      %s4411 = scalar_lea.vmem %s8, 32
      %v4412 = vld [vmem:[%s4411] sm:$0xff]
      %v4413 = vld [vmem:[%s4411 + $0x8] sm:$0xff]
      %v4414 = vld [vmem:[%s4411 + $0x10] sm:$0xff]
      %v4415 = vld [vmem:[%s4411 + $0x18] sm:$0xff]
      %vm4416 = vcmask 261120
      %v4418 = vsel %vm4416, %v4412, 0
      %v4421 = vsel %vm4416, %v4413, 0
      %v4424 = vsel %vm4416, %v4414, 0
      %v4427 = vsel %vm4416, %v4415, 0
      %4429 = vmatprep.subr.mxu0 %v4236
      %4430 = vmatpush1.msra.mxu0 %v4235
      %4431 = vmatprep.subr.mxu0 %v4240
      %4432 = vmatpush1.msra.mxu0 %v4239
      %4433 = vmatprep.subr.mxu0 %v4244
      %4434 = vmatpush1.msra.mxu0 %v4243
      %4435 = vmatprep.subr.mxu0 %v4248
      %4436 = vmatpush1.msra.mxu0 %v4247
      %4437 = vmatprep.subr.mxu0 0.0
      %4438 = vmatpush1.msra.mxu0 0.0
      %4439 = vmatprep.subr.mxu0 0.0
      %4440 = vmatpush1.msra.mxu0 0.0
      %4441 = vmatprep.subr.mxu0 0.0
      %4442 = vmatpush1.msra.mxu0 0.0
      %4443 = vmatprep.subr.mxu0 0.0
      %4444 = vmatpush1.msra.mxu0 0.0
      %4445 = vmatprep.subr.mxu0 0.0
      %4446 = vmatpush1.msra.mxu0 0.0
      %4447 = vmatprep.subr.mxu0 0.0
      %4448 = vmatpush1.msra.mxu0 0.0
      %4449 = vmatprep.subr.mxu0 0.0
      %4450 = vmatpush1.msra.mxu0 0.0
      %4451 = vmatprep.subr.mxu0 0.0
      %4452 = vmatpush1.msra.mxu0 0.0
      %4453 = vmatprep.subr.mxu0 0.0
      %4454 = vmatpush1.msra.mxu0 0.0
      %4455 = vmatprep.subr.mxu0 0.0
      %4456 = vmatpush1.msra.mxu0 0.0
      %4457 = vmatprep.subr.mxu0 0.0
      %4458 = vmatpush1.msra.mxu0 0.0
      %4459 = vmatprep.subr.mxu0 0.0
      %4460 = vmatpush1.msra.mxu0 0.0
      %4461 = vmatprep.subr.mxu0 0.0
      %4462 = vmatpush1.msra.mxu0 0.0
      %4463 = vmatprep.subr.mxu0 0.0
      %4464 = vmatpush1.msra.mxu0 0.0
      %4465 = vmatprep.subr.mxu0 0.0
      %4466 = vmatpush1.msra.mxu0 0.0
      %4467 = vmatprep.subr.mxu0 0.0
      %4468 = vmatpush1.msra.mxu0 0.0
      %4469 = vmatprep.subr.mxu0 0.0
      %4470 = vmatpush1.msra.mxu0 0.0
      %4471 = vmatprep.subr.mxu0 0.0
      %4472 = vmatpush1.msra.mxu0 0.0
      %4473 = vmatprep.subr.mxu0 0.0
      %4474 = vmatpush1.msra.mxu0 0.0
      %4475 = vmatprep.subr.mxu0 0.0
      %4476 = vmatpush1.msra.mxu0 0.0
      %4477 = vmatprep.subr.mxu0 0.0
      %4478 = vmatpush1.msra.mxu0 0.0
      %4479 = vmatprep.subr.mxu0 0.0
      %4480 = vmatpush1.msra.mxu0 0.0
      %4481 = vmatprep.subr.mxu0 0.0
      %4482 = vmatpush1.msra.mxu0 0.0
      %4483 = vmatprep.subr.mxu0 0.0
      %4484 = vmatpush1.msra.mxu0 0.0
      %4485 = vmatprep.subr.mxu0 0.0
      %4486 = vmatpush1.msra.mxu0 0.0
      %4487 = vmatprep.subr.mxu0 0.0
      %4488 = vmatpush1.msra.mxu0 0.0
      %4489 = vmatprep.subr.mxu0 0.0
      %4490 = vmatpush1.msra.mxu0 0.0
      %4491 = vmatprep.subr.mxu0 0.0
      %4492 = vmatpush1.msra.mxu0 0.0
      %4493 = vmatprep.mubr.f32.mxu0 0.0
      %4494 = vmatmul.mubr.f32.gmra.mrb[0].mxu0 %v4418
      %v4495 = vpop.f32.mrb[0].mxu0
      %v4496 = vadd.f32 0.0, %v4495
      %v4497 = vpop.f32.mrb[0].mxu0
      %v4498 = vadd.f32 0.0, %v4497
      %4499 = vmatprep.mubr.f32.mxu0 0.0
      %4500 = vmatmul.mubr.f32.gmra.mrb[0].mxu0 %v4421
      %v4501 = vpop.f32.mrb[0].mxu0
      %v4502 = vadd.f32 0.0, %v4501
      %v4503 = vpop.f32.mrb[0].mxu0
      %v4504 = vadd.f32 0.0, %v4503
      %4505 = vmatprep.mubr.f32.mxu0 0.0
      %4506 = vmatmul.mubr.f32.gmra.mrb[0].mxu0 %v4424
      %v4507 = vpop.f32.mrb[0].mxu0
      %v4508 = vadd.f32 0.0, %v4507
      %v4509 = vpop.f32.mrb[0].mxu0
      %v4510 = vadd.f32 0.0, %v4509
      %4511 = vmatprep.mubr.f32.mxu0 0.0
      %4512 = vmatmul.mubr.f32.gmra.mrb[0].mxu0 %v4427
      %v4513 = vpop.f32.mrb[0].mxu0
      %v4514 = vadd.f32 0.0, %v4513
      %v4515 = vpop.f32.mrb[0].mxu0
      %v4516 = vadd.f32 0.0, %v4515
      %4517 = vdwg.mxu0
      %4518 = vmatprep.subr.mxu0 %v4238
      %4519 = vmatpush1.msra.mxu0 %v4237
      %4520 = vmatprep.subr.mxu0 %v4242
      %4521 = vmatpush1.msra.mxu0 %v4241
      %4522 = vmatprep.subr.mxu0 %v4246
      %4523 = vmatpush1.msra.mxu0 %v4245
      %4524 = vmatprep.subr.mxu0 %v4250
      %4525 = vmatpush1.msra.mxu0 %v4249
      %4526 = vmatprep.subr.mxu0 0.0
      %4527 = vmatpush1.msra.mxu0 0.0
      %4528 = vmatprep.subr.mxu0 0.0
      %4529 = vmatpush1.msra.mxu0 0.0
      %4530 = vmatprep.subr.mxu0 0.0
      %4531 = vmatpush1.msra.mxu0 0.0
      %4532 = vmatprep.subr.mxu0 0.0
      %4533 = vmatpush1.msra.mxu0 0.0
      %4534 = vmatprep.subr.mxu0 0.0
      %4535 = vmatpush1.msra.mxu0 0.0
      %4536 = vmatprep.subr.mxu0 0.0
      %4537 = vmatpush1.msra.mxu0 0.0
      %4538 = vmatprep.subr.mxu0 0.0
      %4539 = vmatpush1.msra.mxu0 0.0
      %4540 = vmatprep.subr.mxu0 0.0
      %4541 = vmatpush1.msra.mxu0 0.0
      %4542 = vmatprep.subr.mxu0 0.0
      %4543 = vmatpush1.msra.mxu0 0.0
      %4544 = vmatprep.subr.mxu0 0.0
      %4545 = vmatpush1.msra.mxu0 0.0
      %4546 = vmatprep.subr.mxu0 0.0
      %4547 = vmatpush1.msra.mxu0 0.0
      %4548 = vmatprep.subr.mxu0 0.0
      %4549 = vmatpush1.msra.mxu0 0.0
      %4550 = vmatprep.subr.mxu0 0.0
      %4551 = vmatpush1.msra.mxu0 0.0
      %4552 = vmatprep.subr.mxu0 0.0
      %4553 = vmatpush1.msra.mxu0 0.0
      %4554 = vmatprep.subr.mxu0 0.0
      %4555 = vmatpush1.msra.mxu0 0.0
      %4556 = vmatprep.subr.mxu0 0.0
      %4557 = vmatpush1.msra.mxu0 0.0
      %4558 = vmatprep.subr.mxu0 0.0
      %4559 = vmatpush1.msra.mxu0 0.0
      %4560 = vmatprep.subr.mxu0 0.0
      %4561 = vmatpush1.msra.mxu0 0.0
      %4562 = vmatprep.subr.mxu0 0.0
      %4563 = vmatpush1.msra.mxu0 0.0
      %4564 = vmatprep.subr.mxu0 0.0
      %4565 = vmatpush1.msra.mxu0 0.0
      %4566 = vmatprep.subr.mxu0 0.0
      %4567 = vmatpush1.msra.mxu0 0.0
      %4568 = vmatprep.subr.mxu0 0.0
      %4569 = vmatpush1.msra.mxu0 0.0
      %4570 = vmatprep.subr.mxu0 0.0
      %4571 = vmatpush1.msra.mxu0 0.0
      %4572 = vmatprep.subr.mxu0 0.0
      %4573 = vmatpush1.msra.mxu0 0.0
      %4574 = vmatprep.subr.mxu0 0.0
      %4575 = vmatpush1.msra.mxu0 0.0
      %4576 = vmatprep.subr.mxu0 0.0
      %4577 = vmatpush1.msra.mxu0 0.0
      %4578 = vmatprep.subr.mxu0 0.0
      %4579 = vmatpush1.msra.mxu0 0.0
      %4580 = vmatprep.subr.mxu0 0.0
      %4581 = vmatpush1.msra.mxu0 0.0
      %4582 = vmatprep.mubr.f32.mxu0 0.0
      %4583 = vmatmul.mubr.f32.gmra.mrb[0].mxu0 %v4418
      %v4584 = vpop.f32.mrb[0].mxu0
      %v4585 = vadd.f32 0.0, %v4584
      %v4586 = vpop.f32.mrb[0].mxu0
      %v4587 = vadd.f32 0.0, %v4586
      %4588 = vmatprep.mubr.f32.mxu0 0.0
      %4589 = vmatmul.mubr.f32.gmra.mrb[0].mxu0 %v4421
      %v4590 = vpop.f32.mrb[0].mxu0
      %v4591 = vadd.f32 0.0, %v4590
      %v4592 = vpop.f32.mrb[0].mxu0
      %v4593 = vadd.f32 0.0, %v4592
      %4594 = vmatprep.mubr.f32.mxu0 0.0
      %4595 = vmatmul.mubr.f32.gmra.mrb[0].mxu0 %v4424
      %v4596 = vpop.f32.mrb[0].mxu0
      %v4597 = vadd.f32 0.0, %v4596
      %v4598 = vpop.f32.mrb[0].mxu0
      %v4599 = vadd.f32 0.0, %v4598
      %4600 = vmatprep.mubr.f32.mxu0 0.0
      %4601 = vmatmul.mubr.f32.gmra.mrb[0].mxu0 %v4427
      %v4602 = vpop.f32.mrb[0].mxu0
      %v4603 = vadd.f32 0.0, %v4602
      %v4604 = vpop.f32.mrb[0].mxu0
      %v4605 = vadd.f32 0.0, %v4604
      %4606 = vdwg.mxu0
      %v4608 = vsel %vm4416, %v4251, 0
      %v4611 = vsel %vm4416, %v4252, 0
      %v4614 = vsel %vm4416, %v4253, 0
      %v4617 = vsel %vm4416, %v4254, 0
      %4619 = vmatprep.subr.mxu0 %v4396
      %4620 = vmatpush1.msra.mxu0 %v4395
      %4621 = vmatprep.subr.mxu0 %v4400
      %4622 = vmatpush1.msra.mxu0 %v4399
      %4623 = vmatprep.subr.mxu0 %v4404
      %4624 = vmatpush1.msra.mxu0 %v4403
      %4625 = vmatprep.subr.mxu0 %v4408
      %4626 = vmatpush1.msra.mxu0 %v4407
      %4627 = vmatprep.subr.mxu0 0.0
      %4628 = vmatpush1.msra.mxu0 0.0
      %4629 = vmatprep.subr.mxu0 0.0
      %4630 = vmatpush1.msra.mxu0 0.0
      %4631 = vmatprep.subr.mxu0 0.0
      %4632 = vmatpush1.msra.mxu0 0.0
      %4633 = vmatprep.subr.mxu0 0.0
      %4634 = vmatpush1.msra.mxu0 0.0
      %4635 = vmatprep.subr.mxu0 0.0
      %4636 = vmatpush1.msra.mxu0 0.0
      %4637 = vmatprep.subr.mxu0 0.0
      %4638 = vmatpush1.msra.mxu0 0.0
      %4639 = vmatprep.subr.mxu0 0.0
      %4640 = vmatpush1.msra.mxu0 0.0
      %4641 = vmatprep.subr.mxu0 0.0
      %4642 = vmatpush1.msra.mxu0 0.0
      %4643 = vmatprep.subr.mxu0 0.0
      %4644 = vmatpush1.msra.mxu0 0.0
      %4645 = vmatprep.subr.mxu0 0.0
      %4646 = vmatpush1.msra.mxu0 0.0
      %4647 = vmatprep.subr.mxu0 0.0
      %4648 = vmatpush1.msra.mxu0 0.0
      %4649 = vmatprep.subr.mxu0 0.0
      %4650 = vmatpush1.msra.mxu0 0.0
      %4651 = vmatprep.subr.mxu0 0.0
      %4652 = vmatpush1.msra.mxu0 0.0
      %4653 = vmatprep.subr.mxu0 0.0
      %4654 = vmatpush1.msra.mxu0 0.0
      %4655 = vmatprep.subr.mxu0 0.0
      %4656 = vmatpush1.msra.mxu0 0.0
      %4657 = vmatprep.subr.mxu0 0.0
      %4658 = vmatpush1.msra.mxu0 0.0
      %4659 = vmatprep.subr.mxu0 0.0
      %4660 = vmatpush1.msra.mxu0 0.0
      %4661 = vmatprep.subr.mxu0 0.0
      %4662 = vmatpush1.msra.mxu0 0.0
      %4663 = vmatprep.subr.mxu0 0.0
      %4664 = vmatpush1.msra.mxu0 0.0
      %4665 = vmatprep.subr.mxu0 0.0
      %4666 = vmatpush1.msra.mxu0 0.0
      %4667 = vmatprep.subr.mxu0 0.0
      %4668 = vmatpush1.msra.mxu0 0.0
      %4669 = vmatprep.subr.mxu0 0.0
      %4670 = vmatpush1.msra.mxu0 0.0
      %4671 = vmatprep.subr.mxu0 0.0
      %4672 = vmatpush1.msra.mxu0 0.0
      %4673 = vmatprep.subr.mxu0 0.0
      %4674 = vmatpush1.msra.mxu0 0.0
      %4675 = vmatprep.subr.mxu0 0.0
      %4676 = vmatpush1.msra.mxu0 0.0
      %4677 = vmatprep.subr.mxu0 0.0
      %4678 = vmatpush1.msra.mxu0 0.0
      %4679 = vmatprep.subr.mxu0 0.0
      %4680 = vmatpush1.msra.mxu0 0.0
      %4681 = vmatprep.subr.mxu0 0.0
      %4682 = vmatpush1.msra.mxu0 0.0
      %4683 = vmatprep.mubr.f32.mxu0 0.0
      %4684 = vmatmul.mubr.f32.gmra.mrb[0].mxu0 %v4608
      %v4685 = vpop.f32.mrb[0].mxu0
      %v4686 = vadd.f32 %v4496, %v4685
      %v4687 = vpop.f32.mrb[0].mxu0
      %v4688 = vadd.f32 %v4498, %v4687
      %4689 = vmatprep.mubr.f32.mxu0 0.0
      %4690 = vmatmul.mubr.f32.gmra.mrb[0].mxu0 %v4611
      %v4691 = vpop.f32.mrb[0].mxu0
      %v4692 = vadd.f32 %v4502, %v4691
      %v4693 = vpop.f32.mrb[0].mxu0
      %v4694 = vadd.f32 %v4504, %v4693
      %4695 = vmatprep.mubr.f32.mxu0 0.0
      %4696 = vmatmul.mubr.f32.gmra.mrb[0].mxu0 %v4614
      %v4697 = vpop.f32.mrb[0].mxu0
      %v4698 = vadd.f32 %v4508, %v4697
      %v4699 = vpop.f32.mrb[0].mxu0
      %v4700 = vadd.f32 %v4510, %v4699
      %4701 = vmatprep.mubr.f32.mxu0 0.0
      %4702 = vmatmul.mubr.f32.gmra.mrb[0].mxu0 %v4617
      %v4703 = vpop.f32.mrb[0].mxu0
      %v4704 = vadd.f32 %v4514, %v4703
      %v4705 = vpop.f32.mrb[0].mxu0
      %v4706 = vadd.f32 %v4516, %v4705
      %4707 = vdwg.mxu0
      %4708 = vmatprep.subr.mxu0 %v4398
      %4709 = vmatpush1.msra.mxu0 %v4397
      %4710 = vmatprep.subr.mxu0 %v4402
      %4711 = vmatpush1.msra.mxu0 %v4401
      %4712 = vmatprep.subr.mxu0 %v4406
      %4713 = vmatpush1.msra.mxu0 %v4405
      %4714 = vmatprep.subr.mxu0 %v4410
      %4715 = vmatpush1.msra.mxu0 %v4409
      %4716 = vmatprep.subr.mxu0 0.0
      %4717 = vmatpush1.msra.mxu0 0.0
      %4718 = vmatprep.subr.mxu0 0.0
      %4719 = vmatpush1.msra.mxu0 0.0
      %4720 = vmatprep.subr.mxu0 0.0
      %4721 = vmatpush1.msra.mxu0 0.0
      %4722 = vmatprep.subr.mxu0 0.0
      %4723 = vmatpush1.msra.mxu0 0.0
      %4724 = vmatprep.subr.mxu0 0.0
      %4725 = vmatpush1.msra.mxu0 0.0
      %4726 = vmatprep.subr.mxu0 0.0
      %4727 = vmatpush1.msra.mxu0 0.0
      %4728 = vmatprep.subr.mxu0 0.0
      %4729 = vmatpush1.msra.mxu0 0.0
      %4730 = vmatprep.subr.mxu0 0.0
      %4731 = vmatpush1.msra.mxu0 0.0
      %4732 = vmatprep.subr.mxu0 0.0
      %4733 = vmatpush1.msra.mxu0 0.0
      %4734 = vmatprep.subr.mxu0 0.0
      %4735 = vmatpush1.msra.mxu0 0.0
      %4736 = vmatprep.subr.mxu0 0.0
      %4737 = vmatpush1.msra.mxu0 0.0
      %4738 = vmatprep.subr.mxu0 0.0
      %4739 = vmatpush1.msra.mxu0 0.0
      %4740 = vmatprep.subr.mxu0 0.0
      %4741 = vmatpush1.msra.mxu0 0.0
      %4742 = vmatprep.subr.mxu0 0.0
      %4743 = vmatpush1.msra.mxu0 0.0
      %4744 = vmatprep.subr.mxu0 0.0
      %4745 = vmatpush1.msra.mxu0 0.0
      %4746 = vmatprep.subr.mxu0 0.0
      %4747 = vmatpush1.msra.mxu0 0.0
      %4748 = vmatprep.subr.mxu0 0.0
      %4749 = vmatpush1.msra.mxu0 0.0
      %4750 = vmatprep.subr.mxu0 0.0
      %4751 = vmatpush1.msra.mxu0 0.0
      %4752 = vmatprep.subr.mxu0 0.0
      %4753 = vmatpush1.msra.mxu0 0.0
      %4754 = vmatprep.subr.mxu0 0.0
      %4755 = vmatpush1.msra.mxu0 0.0
      %4756 = vmatprep.subr.mxu0 0.0
      %4757 = vmatpush1.msra.mxu0 0.0
      %4758 = vmatprep.subr.mxu0 0.0
      %4759 = vmatpush1.msra.mxu0 0.0
      %4760 = vmatprep.subr.mxu0 0.0
      %4761 = vmatpush1.msra.mxu0 0.0
      %4762 = vmatprep.subr.mxu0 0.0
      %4763 = vmatpush1.msra.mxu0 0.0
      %4764 = vmatprep.subr.mxu0 0.0
      %4765 = vmatpush1.msra.mxu0 0.0
      %4766 = vmatprep.subr.mxu0 0.0
      %4767 = vmatpush1.msra.mxu0 0.0
      %4768 = vmatprep.subr.mxu0 0.0
      %4769 = vmatpush1.msra.mxu0 0.0
      %4770 = vmatprep.subr.mxu0 0.0
      %4771 = vmatpush1.msra.mxu0 0.0
      %4772 = vmatprep.mubr.f32.mxu0 0.0
      %4773 = vmatmul.mubr.f32.gmra.mrb[0].mxu0 %v4608
      %v4774 = vpop.f32.mrb[0].mxu0
      %v4775 = vadd.f32 %v4585, %v4774
      %v4776 = vpop.f32.mrb[0].mxu0
      %v4777 = vadd.f32 %v4587, %v4776
      %4778 = vmatprep.mubr.f32.mxu0 0.0
      %4779 = vmatmul.mubr.f32.gmra.mrb[0].mxu0 %v4611
      %v4780 = vpop.f32.mrb[0].mxu0
      %v4781 = vadd.f32 %v4591, %v4780
      %v4782 = vpop.f32.mrb[0].mxu0
      %v4783 = vadd.f32 %v4593, %v4782
      %4784 = vmatprep.mubr.f32.mxu0 0.0
      %4785 = vmatmul.mubr.f32.gmra.mrb[0].mxu0 %v4614
      %v4786 = vpop.f32.mrb[0].mxu0
      %v4787 = vadd.f32 %v4597, %v4786
      %v4788 = vpop.f32.mrb[0].mxu0
      %v4789 = vadd.f32 %v4599, %v4788
      %4790 = vmatprep.mubr.f32.mxu0 0.0
      %4791 = vmatmul.mubr.f32.gmra.mrb[0].mxu0 %v4617
      %v4792 = vpop.f32.mrb[0].mxu0
      %v4793 = vadd.f32 %v4603, %v4792
      %v4794 = vpop.f32.mrb[0].mxu0
      %v4795 = vadd.f32 %v4605, %v4794
      %4796 = vdwg.mxu0
      %s4797 = scalar_lea.vmem %s8, 64
      %v4798 = vld [vmem:[%s4797] sm:$0xff]
      %v4799 = vld [vmem:[%s4797 + $0x8] sm:$0xff]
      %v4800 = vld [vmem:[%s4797 + $0x10] sm:$0xff]
      %v4801 = vld [vmem:[%s4797 + $0x18] sm:$0xff]
      %4814 = vrot.lane.b32.xlu0 %v4235, 127
      %v4815 = vpop.permute.xlu0 %4814
      %4816 = vrot.lane.b32.xlu0 %v4236, 127
      %v4817 = vpop.permute.xlu0 %4816
      %4818 = vrot.lane.b32.xlu0 %v4237, 127
      %v4819 = vpop.permute.xlu0 %4818
      %4820 = vrot.lane.b32.xlu0 %v4257, 127
      %v4821 = vpop.permute.xlu0 %4820
      %4822 = vrot.lane.b32.xlu0 %v4239, 127
      %v4823 = vpop.permute.xlu0 %4822
      %4824 = vrot.lane.b32.xlu0 %v4240, 127
      %v4825 = vpop.permute.xlu0 %4824
      %4826 = vrot.lane.b32.xlu0 %v4241, 127
      %v4827 = vpop.permute.xlu0 %4826
      %4828 = vrot.lane.b32.xlu0 %v4260, 127
      %v4829 = vpop.permute.xlu0 %4828
      %4830 = vrot.lane.b32.xlu0 %v4243, 127
      %v4831 = vpop.permute.xlu0 %4830
      %4832 = vrot.lane.b32.xlu0 %v4244, 127
      %v4833 = vpop.permute.xlu0 %4832
      %4834 = vrot.lane.b32.xlu0 %v4245, 127
      %v4835 = vpop.permute.xlu0 %4834
      %4836 = vrot.lane.b32.xlu0 %v4263, 127
      %v4837 = vpop.permute.xlu0 %4836
      %4838 = vrot.lane.b32.xlu0 %v4247, 127
      %v4839 = vpop.permute.xlu0 %4838
      %4840 = vrot.lane.b32.xlu0 %v4248, 127
      %v4841 = vpop.permute.xlu0 %4840
      %4842 = vrot.lane.b32.xlu0 %v4249, 127
      %v4843 = vpop.permute.xlu0 %4842
      %4844 = vrot.lane.b32.xlu0 %v4266, 127
      %v4845 = vpop.permute.xlu0 %4844
      %v4846 = vsel %vm893, %v4815, %v4817
      %v4847 = vsel %vm893, %v4817, %v4819
      %v4848 = vsel %vm893, %v4819, %v4821
      %v4849 = vsel %vm893, %v4823, %v4825
      %v4850 = vsel %vm893, %v4825, %v4827
      %v4851 = vsel %vm893, %v4827, %v4829
      %v4852 = vsel %vm893, %v4831, %v4833
      %v4853 = vsel %vm893, %v4833, %v4835
      %v4854 = vsel %vm893, %v4835, %v4837
      %v4855 = vsel %vm893, %v4839, %v4841
      %v4856 = vsel %vm893, %v4841, %v4843
      %v4857 = vsel %vm893, %v4843, %v4845
      %v4874 = vsel %vm3909, 0.0, %v4846
      %v4875 = vsel %vm3910, 0.0, %v4847
      %v4876 = vsel %vm3911, 0.0, %v4848
      %v4877 = vsel %vm3912, 0.0, %v4821
      %v4878 = vsel %vm3909, 0.0, %v4849
      %v4879 = vsel %vm3910, 0.0, %v4850
      %v4880 = vsel %vm3911, 0.0, %v4851
      %v4881 = vsel %vm3912, 0.0, %v4829
      %v4882 = vsel %vm3909, 0.0, %v4852
      %v4883 = vsel %vm3910, 0.0, %v4853
      %v4884 = vsel %vm3911, 0.0, %v4854
      %v4885 = vsel %vm3912, 0.0, %v4837
      %v4886 = vsel %vm3909, 0.0, %v4855
      %v4887 = vsel %vm3910, 0.0, %v4856
      %v4888 = vsel %vm3911, 0.0, %v4857
      %v4889 = vsel %vm3912, 0.0, %v4845
      %v4891 = vsel %vm4416, %v4798, 0
      %v4894 = vsel %vm4416, %v4799, 0
      %v4897 = vsel %vm4416, %v4800, 0
      %v4900 = vsel %vm4416, %v4801, 0
      %4902 = vmatprep.subr.mxu0 %v4875
      %4903 = vmatpush1.msra.mxu0 %v4874
      %4904 = vmatprep.subr.mxu0 %v4879
      %4905 = vmatpush1.msra.mxu0 %v4878
      %4906 = vmatprep.subr.mxu0 %v4883
      %4907 = vmatpush1.msra.mxu0 %v4882
      %4908 = vmatprep.subr.mxu0 %v4887
      %4909 = vmatpush1.msra.mxu0 %v4886
      %4910 = vmatprep.subr.mxu0 0.0
      %4911 = vmatpush1.msra.mxu0 0.0
      %4912 = vmatprep.subr.mxu0 0.0
      %4913 = vmatpush1.msra.mxu0 0.0
      %4914 = vmatprep.subr.mxu0 0.0
      %4915 = vmatpush1.msra.mxu0 0.0
      %4916 = vmatprep.subr.mxu0 0.0
      %4917 = vmatpush1.msra.mxu0 0.0
      %4918 = vmatprep.subr.mxu0 0.0
      %4919 = vmatpush1.msra.mxu0 0.0
      %4920 = vmatprep.subr.mxu0 0.0
      %4921 = vmatpush1.msra.mxu0 0.0
      %4922 = vmatprep.subr.mxu0 0.0
      %4923 = vmatpush1.msra.mxu0 0.0
      %4924 = vmatprep.subr.mxu0 0.0
      %4925 = vmatpush1.msra.mxu0 0.0
      %4926 = vmatprep.subr.mxu0 0.0
      %4927 = vmatpush1.msra.mxu0 0.0
      %4928 = vmatprep.subr.mxu0 0.0
      %4929 = vmatpush1.msra.mxu0 0.0
      %4930 = vmatprep.subr.mxu0 0.0
      %4931 = vmatpush1.msra.mxu0 0.0
      %4932 = vmatprep.subr.mxu0 0.0
      %4933 = vmatpush1.msra.mxu0 0.0
      %4934 = vmatprep.subr.mxu0 0.0
      %4935 = vmatpush1.msra.mxu0 0.0
      %4936 = vmatprep.subr.mxu0 0.0
      %4937 = vmatpush1.msra.mxu0 0.0
      %4938 = vmatprep.subr.mxu0 0.0
      %4939 = vmatpush1.msra.mxu0 0.0
      %4940 = vmatprep.subr.mxu0 0.0
      %4941 = vmatpush1.msra.mxu0 0.0
      %4942 = vmatprep.subr.mxu0 0.0
      %4943 = vmatpush1.msra.mxu0 0.0
      %4944 = vmatprep.subr.mxu0 0.0
      %4945 = vmatpush1.msra.mxu0 0.0
      %4946 = vmatprep.subr.mxu0 0.0
      %4947 = vmatpush1.msra.mxu0 0.0
      %4948 = vmatprep.subr.mxu0 0.0
      %4949 = vmatpush1.msra.mxu0 0.0
      %4950 = vmatprep.subr.mxu0 0.0
      %4951 = vmatpush1.msra.mxu0 0.0
      %4952 = vmatprep.subr.mxu0 0.0
      %4953 = vmatpush1.msra.mxu0 0.0
      %4954 = vmatprep.subr.mxu0 0.0
      %4955 = vmatpush1.msra.mxu0 0.0
      %4956 = vmatprep.subr.mxu0 0.0
      %4957 = vmatpush1.msra.mxu0 0.0
      %4958 = vmatprep.subr.mxu0 0.0
      %4959 = vmatpush1.msra.mxu0 0.0
      %4960 = vmatprep.subr.mxu0 0.0
      %4961 = vmatpush1.msra.mxu0 0.0
      %4962 = vmatprep.subr.mxu0 0.0
      %4963 = vmatpush1.msra.mxu0 0.0
      %4964 = vmatprep.subr.mxu0 0.0
      %4965 = vmatpush1.msra.mxu0 0.0
      %4966 = vmatprep.mubr.f32.mxu0 0.0
      %4967 = vmatmul.mubr.f32.gmra.mrb[0].mxu0 %v4891
      %v4968 = vpop.f32.mrb[0].mxu0
      %v4969 = vadd.f32 0.0, %v4968
      %v4970 = vpop.f32.mrb[0].mxu0
      %v4971 = vadd.f32 0.0, %v4970
      %4972 = vmatprep.mubr.f32.mxu0 0.0
      %4973 = vmatmul.mubr.f32.gmra.mrb[0].mxu0 %v4894
      %v4974 = vpop.f32.mrb[0].mxu0
      %v4975 = vadd.f32 0.0, %v4974
      %v4976 = vpop.f32.mrb[0].mxu0
      %v4977 = vadd.f32 0.0, %v4976
      %4978 = vmatprep.mubr.f32.mxu0 0.0
      %4979 = vmatmul.mubr.f32.gmra.mrb[0].mxu0 %v4897
      %v4980 = vpop.f32.mrb[0].mxu0
      %v4981 = vadd.f32 0.0, %v4980
      %v4982 = vpop.f32.mrb[0].mxu0
      %v4983 = vadd.f32 0.0, %v4982
      %4984 = vmatprep.mubr.f32.mxu0 0.0
      %4985 = vmatmul.mubr.f32.gmra.mrb[0].mxu0 %v4900
      %v4986 = vpop.f32.mrb[0].mxu0
      %v4987 = vadd.f32 0.0, %v4986
      %v4988 = vpop.f32.mrb[0].mxu0
      %v4989 = vadd.f32 0.0, %v4988
      %4990 = vdwg.mxu0
      %4991 = vmatprep.subr.mxu0 %v4877
      %4992 = vmatpush1.msra.mxu0 %v4876
      %4993 = vmatprep.subr.mxu0 %v4881
      %4994 = vmatpush1.msra.mxu0 %v4880
      %4995 = vmatprep.subr.mxu0 %v4885
      %4996 = vmatpush1.msra.mxu0 %v4884
      %4997 = vmatprep.subr.mxu0 %v4889
      %4998 = vmatpush1.msra.mxu0 %v4888
      %4999 = vmatprep.subr.mxu0 0.0
      %5000 = vmatpush1.msra.mxu0 0.0
      %5001 = vmatprep.subr.mxu0 0.0
      %5002 = vmatpush1.msra.mxu0 0.0
      %5003 = vmatprep.subr.mxu0 0.0
      %5004 = vmatpush1.msra.mxu0 0.0
      %5005 = vmatprep.subr.mxu0 0.0
      %5006 = vmatpush1.msra.mxu0 0.0
      %5007 = vmatprep.subr.mxu0 0.0
      %5008 = vmatpush1.msra.mxu0 0.0
      %5009 = vmatprep.subr.mxu0 0.0
      %5010 = vmatpush1.msra.mxu0 0.0
      %5011 = vmatprep.subr.mxu0 0.0
      %5012 = vmatpush1.msra.mxu0 0.0
      %5013 = vmatprep.subr.mxu0 0.0
      %5014 = vmatpush1.msra.mxu0 0.0
      %5015 = vmatprep.subr.mxu0 0.0
      %5016 = vmatpush1.msra.mxu0 0.0
      %5017 = vmatprep.subr.mxu0 0.0
      %5018 = vmatpush1.msra.mxu0 0.0
      %5019 = vmatprep.subr.mxu0 0.0
      %5020 = vmatpush1.msra.mxu0 0.0
      %5021 = vmatprep.subr.mxu0 0.0
      %5022 = vmatpush1.msra.mxu0 0.0
      %5023 = vmatprep.subr.mxu0 0.0
      %5024 = vmatpush1.msra.mxu0 0.0
      %5025 = vmatprep.subr.mxu0 0.0
      %5026 = vmatpush1.msra.mxu0 0.0
      %5027 = vmatprep.subr.mxu0 0.0
      %5028 = vmatpush1.msra.mxu0 0.0
      %5029 = vmatprep.subr.mxu0 0.0
      %5030 = vmatpush1.msra.mxu0 0.0
      %5031 = vmatprep.subr.mxu0 0.0
      %5032 = vmatpush1.msra.mxu0 0.0
      %5033 = vmatprep.subr.mxu0 0.0
      %5034 = vmatpush1.msra.mxu0 0.0
      %5035 = vmatprep.subr.mxu0 0.0
      %5036 = vmatpush1.msra.mxu0 0.0
      %5037 = vmatprep.subr.mxu0 0.0
      %5038 = vmatpush1.msra.mxu0 0.0
      %5039 = vmatprep.subr.mxu0 0.0
      %5040 = vmatpush1.msra.mxu0 0.0
      %5041 = vmatprep.subr.mxu0 0.0
      %5042 = vmatpush1.msra.mxu0 0.0
      %5043 = vmatprep.subr.mxu0 0.0
      %5044 = vmatpush1.msra.mxu0 0.0
      %5045 = vmatprep.subr.mxu0 0.0
      %5046 = vmatpush1.msra.mxu0 0.0
      %5047 = vmatprep.subr.mxu0 0.0
      %5048 = vmatpush1.msra.mxu0 0.0
      %5049 = vmatprep.subr.mxu0 0.0
      %5050 = vmatpush1.msra.mxu0 0.0
      %5051 = vmatprep.subr.mxu0 0.0
      %5052 = vmatpush1.msra.mxu0 0.0
      %5053 = vmatprep.subr.mxu0 0.0
      %5054 = vmatpush1.msra.mxu0 0.0
      %5055 = vmatprep.mubr.f32.mxu0 0.0
      %5056 = vmatmul.mubr.f32.gmra.mrb[0].mxu0 %v4891
      %v5057 = vpop.f32.mrb[0].mxu0
      %v5058 = vadd.f32 0.0, %v5057
      %v5059 = vpop.f32.mrb[0].mxu0
      %v5060 = vadd.f32 0.0, %v5059
      %5061 = vmatprep.mubr.f32.mxu0 0.0
      %5062 = vmatmul.mubr.f32.gmra.mrb[0].mxu0 %v4894
      %v5063 = vpop.f32.mrb[0].mxu0
      %v5064 = vadd.f32 0.0, %v5063
      %v5065 = vpop.f32.mrb[0].mxu0
      %v5066 = vadd.f32 0.0, %v5065
      %5067 = vmatprep.mubr.f32.mxu0 0.0
      %5068 = vmatmul.mubr.f32.gmra.mrb[0].mxu0 %v4897
      %v5069 = vpop.f32.mrb[0].mxu0
      %v5070 = vadd.f32 0.0, %v5069
      %v5071 = vpop.f32.mrb[0].mxu0
      %v5072 = vadd.f32 0.0, %v5071
      %5073 = vmatprep.mubr.f32.mxu0 0.0
      %5074 = vmatmul.mubr.f32.gmra.mrb[0].mxu0 %v4900
      %v5075 = vpop.f32.mrb[0].mxu0
      %v5076 = vadd.f32 0.0, %v5075
      %v5077 = vpop.f32.mrb[0].mxu0
      %v5078 = vadd.f32 0.0, %v5077
      %5079 = vdwg.mxu0
      %v5080 = vadd.f32 %v4686, %v4969
      %v5081 = vadd.f32 %v4688, %v4971
      %v5082 = vadd.f32 %v4775, %v5058
      %v5083 = vadd.f32 %v4777, %v5060
      %v5084 = vadd.f32 %v4692, %v4975
      %v5085 = vadd.f32 %v4694, %v4977
      %v5086 = vadd.f32 %v4781, %v5064
      %v5087 = vadd.f32 %v4783, %v5066
      %v5088 = vadd.f32 %v4698, %v4981
      %v5089 = vadd.f32 %v4700, %v4983
      %v5090 = vadd.f32 %v4787, %v5070
      %v5091 = vadd.f32 %v4789, %v5072
      %v5092 = vadd.f32 %v4704, %v4987
      %v5093 = vadd.f32 %v4706, %v4989
      %v5094 = vadd.f32 %v4793, %v5076
      %v5095 = vadd.f32 %v4795, %v5078
      %v5096 = vld [vmem:[%s10] sm:$0xff]
      %v5097 = vld [vmem:[%s10 + $0x8] sm:$0xff]
      %v5098 = vld [vmem:[%s10 + $0x10] sm:$0xff]
      %v5099 = vld [vmem:[%s10 + $0x18] sm:$0xff]
      %v5100 = vld [vmem:[%s10 + $0x20] sm:$0xff]
      %v5101 = vld [vmem:[%s10 + $0x28] sm:$0xff]
      %v5102 = vld [vmem:[%s10 + $0x30] sm:$0xff]
      %v5103 = vld [vmem:[%s10 + $0x38] sm:$0xff]
      %v5104 = vld [vmem:[%s10 + $0x40] sm:$0xff]
      %v5105 = vld [vmem:[%s10 + $0x48] sm:$0xff]
      %v5106 = vld [vmem:[%s10 + $0x50] sm:$0xff]
      %v5107 = vld [vmem:[%s10 + $0x58] sm:$0xff]
      %v5108 = vld [vmem:[%s10 + $0x60] sm:$0xff]
      %v5109 = vld [vmem:[%s10 + $0x68] sm:$0xff]
      %v5110 = vld [vmem:[%s10 + $0x70] sm:$0xff]
      %v5111 = vld [vmem:[%s10 + $0x78] sm:$0xff]
      %v5112 = vld [vmem:[%s10 + $0x80] sm:$0xff]
      %v5113 = vld [vmem:[%s10 + $0x88] sm:$0xff]
      %v5114 = vld [vmem:[%s10 + $0x90] sm:$0xff]
      %v5115 = vld [vmem:[%s10 + $0x98] sm:$0xff]
      %v5116 = vld [vmem:[%s10 + $0xa0] sm:$0xff]
      %v5117 = vld [vmem:[%s10 + $0xa8] sm:$0xff]
      %v5118 = vld [vmem:[%s10 + $0xb0] sm:$0xff]
      %v5119 = vld [vmem:[%s10 + $0xb8] sm:$0xff]
      %v5120 = vld [vmem:[%s10 + $0xc0] sm:$0xff]
      %v5121 = vld [vmem:[%s10 + $0xc8] sm:$0xff]
      %v5122 = vld [vmem:[%s10 + $0xd0] sm:$0xff]
      %v5123 = vld [vmem:[%s10 + $0xd8] sm:$0xff]
      %v5124 = vld [vmem:[%s10 + $0xe0] sm:$0xff]
      %v5125 = vld [vmem:[%s10 + $0xe8] sm:$0xff]
      %v5126 = vld [vmem:[%s10 + $0xf0] sm:$0xff]
      %v5127 = vld [vmem:[%s10 + $0xf8] sm:$0xff]
      %v5128 = vld [vmem:[%s10 + $0x100] sm:$0xff]
      %v5129 = vld [vmem:[%s10 + $0x108] sm:$0xff]
      %v5130 = vld [vmem:[%s10 + $0x110] sm:$0xff]
      %v5131 = vld [vmem:[%s10 + $0x118] sm:$0xff]
      %v5132 = vld [vmem:[%s10 + $0x120] sm:$0xff]
      %v5133 = vld [vmem:[%s10 + $0x128] sm:$0xff]
      %v5134 = vld [vmem:[%s10 + $0x130] sm:$0xff]
      %v5135 = vld [vmem:[%s10 + $0x138] sm:$0xff]
      %v5136 = vld [vmem:[%s10 + $0x140] sm:$0xff]
      %v5137 = vld [vmem:[%s10 + $0x148] sm:$0xff]
      %v5138 = vld [vmem:[%s10 + $0x150] sm:$0xff]
      %v5139 = vld [vmem:[%s10 + $0x158] sm:$0xff]
      %v5140 = vld [vmem:[%s10 + $0x160] sm:$0xff]
      %v5141 = vld [vmem:[%s10 + $0x168] sm:$0xff]
      %v5142 = vld [vmem:[%s10 + $0x170] sm:$0xff]
      %v5143 = vld [vmem:[%s10 + $0x178] sm:$0xff]
      %v5144 = vld [vmem:[%s10 + $0x180] sm:$0xff]
      %v5145 = vld [vmem:[%s10 + $0x188] sm:$0xff]
      %v5146 = vld [vmem:[%s10 + $0x190] sm:$0xff]
      %v5147 = vld [vmem:[%s10 + $0x198] sm:$0xff]
      %v5148 = vld [vmem:[%s10 + $0x1a0] sm:$0xff]
      %v5149 = vld [vmem:[%s10 + $0x1a8] sm:$0xff]
      %v5150 = vld [vmem:[%s10 + $0x1b0] sm:$0xff]
      %v5151 = vld [vmem:[%s10 + $0x1b8] sm:$0xff]
      %v5152 = vld [vmem:[%s10 + $0x1c0] sm:$0xff]
      %v5153 = vld [vmem:[%s10 + $0x1c8] sm:$0xff]
      %v5154 = vld [vmem:[%s10 + $0x1d0] sm:$0xff]
      %v5155 = vld [vmem:[%s10 + $0x1d8] sm:$0xff]
      %v5156 = vld [vmem:[%s10 + $0x1e0] sm:$0xff]
      %v5157 = vld [vmem:[%s10 + $0x1e8] sm:$0xff]
      %v5158 = vld [vmem:[%s10 + $0x1f0] sm:$0xff]
      %v5159 = vld [vmem:[%s10 + $0x1f8] sm:$0xff]
      %v5160 = vld [vmem:[%s10 + $0x200] sm:$0xff]
      %v5161 = vld [vmem:[%s10 + $0x208] sm:$0xff]
      %v5162 = vld [vmem:[%s10 + $0x210] sm:$0xff]
      %v5163 = vld [vmem:[%s10 + $0x218] sm:$0xff]
      %v5164 = vld [vmem:[%s10 + $0x220] sm:$0xff]
      %v5165 = vld [vmem:[%s10 + $0x228] sm:$0xff]
      %v5166 = vld [vmem:[%s10 + $0x230] sm:$0xff]
      %v5167 = vld [vmem:[%s10 + $0x238] sm:$0xff]
      %v5168 = vld [vmem:[%s10 + $0x240] sm:$0xff]
      %v5169 = vld [vmem:[%s10 + $0x248] sm:$0xff]
      %v5170 = vld [vmem:[%s10 + $0x250] sm:$0xff]
      %v5171 = vld [vmem:[%s10 + $0x258] sm:$0xff]
      %v5172 = vld [vmem:[%s10 + $0x260] sm:$0xff]
      %v5173 = vld [vmem:[%s10 + $0x268] sm:$0xff]
      %v5174 = vld [vmem:[%s10 + $0x270] sm:$0xff]
      %v5175 = vld [vmem:[%s10 + $0x278] sm:$0xff]
      %v5176 = vld [vmem:[%s10 + $0x280] sm:$0xff]
      %v5177 = vld [vmem:[%s10 + $0x288] sm:$0xff]
      %v5178 = vld [vmem:[%s10 + $0x290] sm:$0xff]
      %v5179 = vld [vmem:[%s10 + $0x298] sm:$0xff]
      %v5180 = vld [vmem:[%s10 + $0x2a0] sm:$0xff]
      %v5181 = vld [vmem:[%s10 + $0x2a8] sm:$0xff]
      %v5182 = vld [vmem:[%s10 + $0x2b0] sm:$0xff]
      %v5183 = vld [vmem:[%s10 + $0x2b8] sm:$0xff]
      %v5184 = vld [vmem:[%s10 + $0x2c0] sm:$0xff]
      %v5185 = vld [vmem:[%s10 + $0x2c8] sm:$0xff]
      %v5186 = vld [vmem:[%s10 + $0x2d0] sm:$0xff]
      %v5187 = vld [vmem:[%s10 + $0x2d8] sm:$0xff]
      %v5188 = vld [vmem:[%s10 + $0x2e0] sm:$0xff]
      %v5189 = vld [vmem:[%s10 + $0x2e8] sm:$0xff]
      %v5190 = vld [vmem:[%s10 + $0x2f0] sm:$0xff]
      %v5191 = vld [vmem:[%s10 + $0x2f8] sm:$0xff]
      %v5192 = vld [vmem:[%s10 + $0x300] sm:$0xff]
      %v5193 = vld [vmem:[%s10 + $0x308] sm:$0xff]
      %v5194 = vld [vmem:[%s10 + $0x310] sm:$0xff]
      %v5195 = vld [vmem:[%s10 + $0x318] sm:$0xff]
      %v5196 = vld [vmem:[%s10 + $0x320] sm:$0xff]
      %v5197 = vld [vmem:[%s10 + $0x328] sm:$0xff]
      %v5198 = vld [vmem:[%s10 + $0x330] sm:$0xff]
      %v5199 = vld [vmem:[%s10 + $0x338] sm:$0xff]
      %v5200 = vld [vmem:[%s10 + $0x340] sm:$0xff]
      %v5201 = vld [vmem:[%s10 + $0x348] sm:$0xff]
      %v5202 = vld [vmem:[%s10 + $0x350] sm:$0xff]
      %v5203 = vld [vmem:[%s10 + $0x358] sm:$0xff]
      %v5204 = vld [vmem:[%s10 + $0x360] sm:$0xff]
      %v5205 = vld [vmem:[%s10 + $0x368] sm:$0xff]
      %v5206 = vld [vmem:[%s10 + $0x370] sm:$0xff]
      %v5207 = vld [vmem:[%s10 + $0x378] sm:$0xff]
      %v5208 = vld [vmem:[%s10 + $0x380] sm:$0xff]
      %v5209 = vld [vmem:[%s10 + $0x388] sm:$0xff]
      %v5210 = vld [vmem:[%s10 + $0x390] sm:$0xff]
      %v5211 = vld [vmem:[%s10 + $0x398] sm:$0xff]
      %v5212 = vld [vmem:[%s10 + $0x3a0] sm:$0xff]
      %v5213 = vld [vmem:[%s10 + $0x3a8] sm:$0xff]
      %v5214 = vld [vmem:[%s10 + $0x3b0] sm:$0xff]
      %v5215 = vld [vmem:[%s10 + $0x3b8] sm:$0xff]
      %v5216 = vld [vmem:[%s10 + $0x3c0] sm:$0xff]
      %v5217 = vld [vmem:[%s10 + $0x3c8] sm:$0xff]
      %v5218 = vld [vmem:[%s10 + $0x3d0] sm:$0xff]
      %v5219 = vld [vmem:[%s10 + $0x3d8] sm:$0xff]
      %v5220 = vld [vmem:[%s10 + $0x3e0] sm:$0xf]
      %v5221 = vld [vmem:[%s10 + $0x3e8] sm:$0xf]
      %v5222 = vld [vmem:[%s9] sm:$0xff]
      %v5223 = vld [vmem:[%s9 + $0x8] sm:$0xff]
      %v5224 = vld [vmem:[%s9 + $0x10] sm:$0xff]
      %v5225 = vld [vmem:[%s9 + $0x18] sm:$0xff]
      %5227 = vset.pattern.permute.xlu0 0
      %5228 = vperm.xlu0 %5227, %v5222
      %v5229 = vpop.permute.xlu0 %5228
      %5232 = vset.pattern.permute.xlu0 0
      %5233 = vperm.xlu0 %5232, %v5223
      %v5234 = vpop.permute.xlu0 %5233
      %5237 = vset.pattern.permute.xlu0 0
      %5238 = vperm.xlu0 %5237, %v5224
      %v5239 = vpop.permute.xlu0 %5238
      %5242 = vset.pattern.permute.xlu0 0
      %5243 = vperm.xlu0 %5242, %v5225
      %v5244 = vpop.permute.xlu0 %5243
      %vm5246 = vcmask 949248
      %v5248 = vsel %vm5246, %v5083, 0
      %v5251 = vsel %vm5246, %v5087, 0
      %v5254 = vsel %vm5246, %v5091, 0
      %v5257 = vsel %vm5246, %v5095, 0
      %vm5259 = vcmask 1043456
      %v5261 = vsel %vm5259, %v5220, 0
      %v5264 = vsel %vm5259, %v5221, 0
      %5266 = vmatprep.subr.mxu0 %v5097
      %5267 = vmatpush1.msra.mxu0 %v5096
      %5268 = vmatprep.subr.mxu0 %v5099
      %5269 = vmatpush1.msra.mxu0 %v5098
      %5270 = vmatprep.subr.mxu0 %v5101
      %5271 = vmatpush1.msra.mxu0 %v5100
      %5272 = vmatprep.subr.mxu0 %v5103
      %5273 = vmatpush1.msra.mxu0 %v5102
      %5274 = vmatprep.subr.mxu0 %v5105
      %5275 = vmatpush1.msra.mxu0 %v5104
      %5276 = vmatprep.subr.mxu0 %v5107
      %5277 = vmatpush1.msra.mxu0 %v5106
      %5278 = vmatprep.subr.mxu0 %v5109
      %5279 = vmatpush1.msra.mxu0 %v5108
      %5280 = vmatprep.subr.mxu0 %v5111
      %5281 = vmatpush1.msra.mxu0 %v5110
      %5282 = vmatprep.subr.mxu0 %v5113
      %5283 = vmatpush1.msra.mxu0 %v5112
      %5284 = vmatprep.subr.mxu0 %v5115
      %5285 = vmatpush1.msra.mxu0 %v5114
      %5286 = vmatprep.subr.mxu0 %v5117
      %5287 = vmatpush1.msra.mxu0 %v5116
      %5288 = vmatprep.subr.mxu0 %v5119
      %5289 = vmatpush1.msra.mxu0 %v5118
      %5290 = vmatprep.subr.mxu0 %v5121
      %5291 = vmatpush1.msra.mxu0 %v5120
      %5292 = vmatprep.subr.mxu0 %v5123
      %5293 = vmatpush1.msra.mxu0 %v5122
      %5294 = vmatprep.subr.mxu0 %v5125
      %5295 = vmatpush1.msra.mxu0 %v5124
      %5296 = vmatprep.subr.mxu0 %v5127
      %5297 = vmatpush1.msra.mxu0 %v5126
      %5298 = vmatprep.subr.mxu0 %v5129
      %5299 = vmatpush1.msra.mxu0 %v5128
      %5300 = vmatprep.subr.mxu0 %v5131
      %5301 = vmatpush1.msra.mxu0 %v5130
      %5302 = vmatprep.subr.mxu0 %v5133
      %5303 = vmatpush1.msra.mxu0 %v5132
      %5304 = vmatprep.subr.mxu0 %v5135
      %5305 = vmatpush1.msra.mxu0 %v5134
      %5306 = vmatprep.subr.mxu0 %v5137
      %5307 = vmatpush1.msra.mxu0 %v5136
      %5308 = vmatprep.subr.mxu0 %v5139
      %5309 = vmatpush1.msra.mxu0 %v5138
      %5310 = vmatprep.subr.mxu0 %v5141
      %5311 = vmatpush1.msra.mxu0 %v5140
      %5312 = vmatprep.subr.mxu0 %v5143
      %5313 = vmatpush1.msra.mxu0 %v5142
      %5314 = vmatprep.subr.mxu0 %v5145
      %5315 = vmatpush1.msra.mxu0 %v5144
      %5316 = vmatprep.subr.mxu0 %v5147
      %5317 = vmatpush1.msra.mxu0 %v5146
      %5318 = vmatprep.subr.mxu0 %v5149
      %5319 = vmatpush1.msra.mxu0 %v5148
      %5320 = vmatprep.subr.mxu0 %v5151
      %5321 = vmatpush1.msra.mxu0 %v5150
      %5322 = vmatprep.subr.mxu0 %v5153
      %5323 = vmatpush1.msra.mxu0 %v5152
      %5324 = vmatprep.subr.mxu0 %v5155
      %5325 = vmatpush1.msra.mxu0 %v5154
      %5326 = vmatprep.subr.mxu0 %v5157
      %5327 = vmatpush1.msra.mxu0 %v5156
      %5328 = vmatprep.subr.mxu0 %v5159
      %5329 = vmatpush1.msra.mxu0 %v5158
      %5330 = vmatprep.mubr.f32.mxu0 %v5081
      %5331 = vmatmul.mubr.f32.gmra.mrb[0].mxu0 %v5080
      %v5332 = vpop.f32.mrb[0].mxu0
      %v5333 = vadd.f32 %v5229, %v5332
      %v5334 = vpop.f32.mrb[0].mxu0
      %v5335 = vadd.f32 %v5229, %v5334
      %5336 = vmatprep.mubr.f32.mxu0 %v5085
      %5337 = vmatmul.mubr.f32.gmra.mrb[0].mxu0 %v5084
      %v5338 = vpop.f32.mrb[0].mxu0
      %v5339 = vadd.f32 %v5234, %v5338
      %v5340 = vpop.f32.mrb[0].mxu0
      %v5341 = vadd.f32 %v5234, %v5340
      %5342 = vmatprep.mubr.f32.mxu0 %v5089
      %5343 = vmatmul.mubr.f32.gmra.mrb[0].mxu0 %v5088
      %v5344 = vpop.f32.mrb[0].mxu0
      %v5345 = vadd.f32 %v5239, %v5344
      %v5346 = vpop.f32.mrb[0].mxu0
      %v5347 = vadd.f32 %v5239, %v5346
      %5348 = vmatprep.mubr.f32.mxu0 %v5093
      %5349 = vmatmul.mubr.f32.gmra.mrb[0].mxu0 %v5092
      %v5350 = vpop.f32.mrb[0].mxu0
      %v5351 = vadd.f32 %v5244, %v5350
      %v5352 = vpop.f32.mrb[0].mxu0
      %v5353 = vadd.f32 %v5244, %v5352
      %5354 = vdwg.mxu0
      %5355 = vmatprep.subr.mxu0 %v5161
      %5356 = vmatpush1.msra.mxu0 %v5160
      %5357 = vmatprep.subr.mxu0 %v5163
      %5358 = vmatpush1.msra.mxu0 %v5162
      %5359 = vmatprep.subr.mxu0 %v5165
      %5360 = vmatpush1.msra.mxu0 %v5164
      %5361 = vmatprep.subr.mxu0 %v5167
      %5362 = vmatpush1.msra.mxu0 %v5166
      %5363 = vmatprep.subr.mxu0 %v5169
      %5364 = vmatpush1.msra.mxu0 %v5168
      %5365 = vmatprep.subr.mxu0 %v5171
      %5366 = vmatpush1.msra.mxu0 %v5170
      %5367 = vmatprep.subr.mxu0 %v5173
      %5368 = vmatpush1.msra.mxu0 %v5172
      %5369 = vmatprep.subr.mxu0 %v5175
      %5370 = vmatpush1.msra.mxu0 %v5174
      %5371 = vmatprep.subr.mxu0 %v5177
      %5372 = vmatpush1.msra.mxu0 %v5176
      %5373 = vmatprep.subr.mxu0 %v5179
      %5374 = vmatpush1.msra.mxu0 %v5178
      %5375 = vmatprep.subr.mxu0 %v5181
      %5376 = vmatpush1.msra.mxu0 %v5180
      %5377 = vmatprep.subr.mxu0 %v5183
      %5378 = vmatpush1.msra.mxu0 %v5182
      %5379 = vmatprep.subr.mxu0 %v5185
      %5380 = vmatpush1.msra.mxu0 %v5184
      %5381 = vmatprep.subr.mxu0 %v5187
      %5382 = vmatpush1.msra.mxu0 %v5186
      %5383 = vmatprep.subr.mxu0 %v5189
      %5384 = vmatpush1.msra.mxu0 %v5188
      %5385 = vmatprep.subr.mxu0 %v5191
      %5386 = vmatpush1.msra.mxu0 %v5190
      %5387 = vmatprep.subr.mxu0 %v5193
      %5388 = vmatpush1.msra.mxu0 %v5192
      %5389 = vmatprep.subr.mxu0 %v5195
      %5390 = vmatpush1.msra.mxu0 %v5194
      %5391 = vmatprep.subr.mxu0 %v5197
      %5392 = vmatpush1.msra.mxu0 %v5196
      %5393 = vmatprep.subr.mxu0 %v5199
      %5394 = vmatpush1.msra.mxu0 %v5198
      %5395 = vmatprep.subr.mxu0 %v5201
      %5396 = vmatpush1.msra.mxu0 %v5200
      %5397 = vmatprep.subr.mxu0 %v5203
      %5398 = vmatpush1.msra.mxu0 %v5202
      %5399 = vmatprep.subr.mxu0 %v5205
      %5400 = vmatpush1.msra.mxu0 %v5204
      %5401 = vmatprep.subr.mxu0 %v5207
      %5402 = vmatpush1.msra.mxu0 %v5206
      %5403 = vmatprep.subr.mxu0 %v5209
      %5404 = vmatpush1.msra.mxu0 %v5208
      %5405 = vmatprep.subr.mxu0 %v5211
      %5406 = vmatpush1.msra.mxu0 %v5210
      %5407 = vmatprep.subr.mxu0 %v5213
      %5408 = vmatpush1.msra.mxu0 %v5212
      %5409 = vmatprep.subr.mxu0 %v5215
      %5410 = vmatpush1.msra.mxu0 %v5214
      %5411 = vmatprep.subr.mxu0 %v5217
      %5412 = vmatpush1.msra.mxu0 %v5216
      %5413 = vmatprep.subr.mxu0 %v5219
      %5414 = vmatpush1.msra.mxu0 %v5218
      %5415 = vmatprep.subr.mxu0 %v5264
      %5416 = vmatpush1.msra.mxu0 %v5261
      %5417 = vmatprep.subr.mxu0 0.0
      %5418 = vmatpush1.msra.mxu0 0.0
      %5419 = vmatprep.mubr.f32.mxu0 %v5248
      %5420 = vmatmul.mubr.f32.gmra.mrb[0].mxu0 %v5082
      %v5421 = vpop.f32.mrb[0].mxu0
      %v5422 = vadd.f32 %v5333, %v5421
      %v5423 = vpop.f32.mrb[0].mxu0
      %v5424 = vadd.f32 %v5335, %v5423
      %5425 = vmatprep.mubr.f32.mxu0 %v5251
      %5426 = vmatmul.mubr.f32.gmra.mrb[0].mxu0 %v5086
      %v5427 = vpop.f32.mrb[0].mxu0
      %v5428 = vadd.f32 %v5339, %v5427
      %v5429 = vpop.f32.mrb[0].mxu0
      %v5430 = vadd.f32 %v5341, %v5429
      %5431 = vmatprep.mubr.f32.mxu0 %v5254
      %5432 = vmatmul.mubr.f32.gmra.mrb[0].mxu0 %v5090
      %v5433 = vpop.f32.mrb[0].mxu0
      %v5434 = vadd.f32 %v5345, %v5433
      %v5435 = vpop.f32.mrb[0].mxu0
      %v5436 = vadd.f32 %v5347, %v5435
      %5437 = vmatprep.mubr.f32.mxu0 %v5257
      %5438 = vmatmul.mubr.f32.gmra.mrb[0].mxu0 %v5094
      %v5439 = vpop.f32.mrb[0].mxu0
      %v5440 = vadd.f32 %v5351, %v5439
      %v5441 = vpop.f32.mrb[0].mxu0
      %v5442 = vadd.f32 %v5353, %v5441
      %5443 = vdwg.mxu0
      %vm5444 = vcmp.ge.f32.partialorder %v5422, 0.0
      %vm5445 = vcmp.ge.f32.partialorder %v5424, 0.0
      %vm5446 = vcmp.ge.f32.partialorder %v5428, 0.0
      %vm5447 = vcmp.ge.f32.partialorder %v5430, 0.0
      %vm5448 = vcmp.ge.f32.partialorder %v5434, 0.0
      %vm5449 = vcmp.ge.f32.partialorder %v5436, 0.0
      %vm5450 = vcmp.ge.f32.partialorder %v5440, 0.0
      %vm5451 = vcmp.ge.f32.partialorder %v5442, 0.0
      %v5452 = vmul.f32 %v5422, 0.01
      %v5453 = vmul.f32 %v5424, 0.01
      %v5454 = vmul.f32 %v5428, 0.01
      %v5455 = vmul.f32 %v5430, 0.01
      %v5456 = vmul.f32 %v5434, 0.01
      %v5457 = vmul.f32 %v5436, 0.01
      %v5458 = vmul.f32 %v5440, 0.01
      %v5459 = vmul.f32 %v5442, 0.01
      %v5460 = vsel %vm5444, %v5422, %v5452
      %v5461 = vsel %vm5445, %v5424, %v5453
      %v5462 = vsel %vm5446, %v5428, %v5454
      %v5463 = vsel %vm5447, %v5430, %v5455
      %v5464 = vsel %vm5448, %v5434, %v5456
      %v5465 = vsel %vm5449, %v5436, %v5457
      %v5466 = vsel %vm5450, %v5440, %v5458
      %v5467 = vsel %vm5451, %v5442, %v5459
      %v5468 = vld [vmem:[%s11] sm:$0xff]
      %v5469 = vld [vmem:[%s11 + $0x8] sm:$0xff]
      %v5470 = vld [vmem:[%s11 + $0x10] sm:$0xff]
      %v5471 = vld [vmem:[%s11 + $0x18] sm:$0xff]
      %v5472 = vld [vmem:[%s11 + $0x20] sm:$0xff]
      %v5473 = vld [vmem:[%s11 + $0x28] sm:$0xff]
      %v5474 = vld [vmem:[%s11 + $0x30] sm:$0xff]
      %v5475 = vld [vmem:[%s11 + $0x38] sm:$0xff]
      %vm5476 = vcmask 1048528
      %5477 = vrot.lane.b32.xlu0 %v5460, 122
      %v5478 = vpop.permute.xlu0 %5477
      %v5479 = vsel %vm5476, %v5478, %v5461
      %5480 = vrot.lane.b32.xlu0 %v5462, 122
      %v5481 = vpop.permute.xlu0 %5480
      %v5482 = vsel %vm5476, %v5481, %v5463
      %5483 = vrot.lane.b32.xlu0 %v5464, 122
      %v5484 = vpop.permute.xlu0 %5483
      %v5485 = vsel %vm5476, %v5484, %v5465
      %5486 = vrot.lane.b32.xlu0 %v5466, 122
      %v5487 = vpop.permute.xlu0 %5486
      %v5488 = vsel %vm5476, %v5487, %v5467
      %5489 = vrot.lane.b32.xlu0 %v5479, 122
      %v5490 = vpop.permute.xlu0 %5489
      %5491 = vrot.lane.b32.xlu0 %v5482, 122
      %v5492 = vpop.permute.xlu0 %5491
      %5493 = vrot.lane.b32.xlu0 %v5485, 122
      %v5494 = vpop.permute.xlu0 %5493
      %5495 = vrot.lane.b32.xlu0 %v5488, 122
      %v5496 = vpop.permute.xlu0 %5495
      %v5497 = vsel %vm5476, %v5490, %v5478
      %v5498 = vsel %vm5476, %v5492, %v5481
      %v5499 = vsel %vm5476, %v5494, %v5484
      %v5500 = vsel %vm5476, %v5496, %v5487
      %5513 = vrot.lane.b32.xlu0 %v5479, 7
      %v5514 = vpop.permute.xlu0 %5513
      %5515 = vrot.lane.b32.xlu0 %v5497, 7
      %v5516 = vpop.permute.xlu0 %5515
      %5517 = vrot.lane.b32.xlu0 %v5490, 7
      %v5518 = vpop.permute.xlu0 %5517
      %5519 = vrot.lane.b32.xlu0 %v5482, 7
      %v5520 = vpop.permute.xlu0 %5519
      %5521 = vrot.lane.b32.xlu0 %v5498, 7
      %v5522 = vpop.permute.xlu0 %5521
      %5523 = vrot.lane.b32.xlu0 %v5492, 7
      %v5524 = vpop.permute.xlu0 %5523
      %5525 = vrot.lane.b32.xlu0 %v5485, 7
      %v5526 = vpop.permute.xlu0 %5525
      %5527 = vrot.lane.b32.xlu0 %v5499, 7
      %v5528 = vpop.permute.xlu0 %5527
      %5529 = vrot.lane.b32.xlu0 %v5494, 7
      %v5530 = vpop.permute.xlu0 %5529
      %5531 = vrot.lane.b32.xlu0 %v5488, 7
      %v5532 = vpop.permute.xlu0 %5531
      %5533 = vrot.lane.b32.xlu0 %v5500, 7
      %v5534 = vpop.permute.xlu0 %5533
      %5535 = vrot.lane.b32.xlu0 %v5496, 7
      %v5536 = vpop.permute.xlu0 %5535
      %vm5537 = vcmask 56320
      %v5538 = vsel %vm5537, %v5514, %v5516
      %v5539 = vsel %vm5537, %v5516, %v5518
      %v5540 = vsel %vm5537, %v5520, %v5522
      %v5541 = vsel %vm5537, %v5522, %v5524
      %v5542 = vsel %vm5537, %v5526, %v5528
      %v5543 = vsel %vm5537, %v5528, %v5530
      %v5544 = vsel %vm5537, %v5532, %v5534
      %v5545 = vsel %vm5537, %v5534, %v5536
      %v5554 = vsel %vm637, 0.0, %v5538
      %v5555 = vsel %vm638, 0.0, %v5539
      %v5556 = vsel %vm637, 0.0, %v5540
      %v5557 = vsel %vm638, 0.0, %v5541
      %v5558 = vsel %vm637, 0.0, %v5542
      %v5559 = vsel %vm638, 0.0, %v5543
      %v5560 = vsel %vm637, 0.0, %v5544
      %v5561 = vsel %vm638, 0.0, %v5545
      %s5562 = scalar_lea.vmem %s11, 64
      %v5563 = vld [vmem:[%s5562] sm:$0xff]
      %v5564 = vld [vmem:[%s5562 + $0x8] sm:$0xff]
      %v5565 = vld [vmem:[%s5562 + $0x10] sm:$0xff]
      %v5566 = vld [vmem:[%s5562 + $0x18] sm:$0xff]
      %v5567 = vld [vmem:[%s5562 + $0x20] sm:$0xff]
      %v5568 = vld [vmem:[%s5562 + $0x28] sm:$0xff]
      %v5569 = vld [vmem:[%s5562 + $0x30] sm:$0xff]
      %v5570 = vld [vmem:[%s5562 + $0x38] sm:$0xff]
      %v5572 = vsel %vm4416, %v5563, 0
      %v5575 = vsel %vm4416, %v5564, 0
      %v5578 = vsel %vm4416, %v5565, 0
      %v5581 = vsel %vm4416, %v5566, 0
      %v5584 = vsel %vm4416, %v5567, 0
      %v5587 = vsel %vm4416, %v5568, 0
      %v5590 = vsel %vm4416, %v5569, 0
      %v5593 = vsel %vm4416, %v5570, 0
      %5595 = vmatprep.subr.mxu0 %v5461
      %5596 = vmatpush1.msra.mxu0 %v5460
      %5597 = vmatprep.subr.mxu0 %v5463
      %5598 = vmatpush1.msra.mxu0 %v5462
      %5599 = vmatprep.subr.mxu0 %v5465
      %5600 = vmatpush1.msra.mxu0 %v5464
      %5601 = vmatprep.subr.mxu0 %v5467
      %5602 = vmatpush1.msra.mxu0 %v5466
      %5603 = vmatprep.subr.mxu0 0.0
      %5604 = vmatpush1.msra.mxu0 0.0
      %5605 = vmatprep.subr.mxu0 0.0
      %5606 = vmatpush1.msra.mxu0 0.0
      %5607 = vmatprep.subr.mxu0 0.0
      %5608 = vmatpush1.msra.mxu0 0.0
      %5609 = vmatprep.subr.mxu0 0.0
      %5610 = vmatpush1.msra.mxu0 0.0
      %5611 = vmatprep.subr.mxu0 0.0
      %5612 = vmatpush1.msra.mxu0 0.0
      %5613 = vmatprep.subr.mxu0 0.0
      %5614 = vmatpush1.msra.mxu0 0.0
      %5615 = vmatprep.subr.mxu0 0.0
      %5616 = vmatpush1.msra.mxu0 0.0
      %5617 = vmatprep.subr.mxu0 0.0
      %5618 = vmatpush1.msra.mxu0 0.0
      %5619 = vmatprep.subr.mxu0 0.0
      %5620 = vmatpush1.msra.mxu0 0.0
      %5621 = vmatprep.subr.mxu0 0.0
      %5622 = vmatpush1.msra.mxu0 0.0
      %5623 = vmatprep.subr.mxu0 0.0
      %5624 = vmatpush1.msra.mxu0 0.0
      %5625 = vmatprep.subr.mxu0 0.0
      %5626 = vmatpush1.msra.mxu0 0.0
      %5627 = vmatprep.subr.mxu0 0.0
      %5628 = vmatpush1.msra.mxu0 0.0
      %5629 = vmatprep.subr.mxu0 0.0
      %5630 = vmatpush1.msra.mxu0 0.0
      %5631 = vmatprep.subr.mxu0 0.0
      %5632 = vmatpush1.msra.mxu0 0.0
      %5633 = vmatprep.subr.mxu0 0.0
      %5634 = vmatpush1.msra.mxu0 0.0
      %5635 = vmatprep.subr.mxu0 0.0
      %5636 = vmatpush1.msra.mxu0 0.0
      %5637 = vmatprep.subr.mxu0 0.0
      %5638 = vmatpush1.msra.mxu0 0.0
      %5639 = vmatprep.subr.mxu0 0.0
      %5640 = vmatpush1.msra.mxu0 0.0
      %5641 = vmatprep.subr.mxu0 0.0
      %5642 = vmatpush1.msra.mxu0 0.0
      %5643 = vmatprep.subr.mxu0 0.0
      %5644 = vmatpush1.msra.mxu0 0.0
      %5645 = vmatprep.subr.mxu0 0.0
      %5646 = vmatpush1.msra.mxu0 0.0
      %5647 = vmatprep.subr.mxu0 0.0
      %5648 = vmatpush1.msra.mxu0 0.0
      %5649 = vmatprep.subr.mxu0 0.0
      %5650 = vmatpush1.msra.mxu0 0.0
      %5651 = vmatprep.subr.mxu0 0.0
      %5652 = vmatpush1.msra.mxu0 0.0
      %5653 = vmatprep.subr.mxu0 0.0
      %5654 = vmatpush1.msra.mxu0 0.0
      %5655 = vmatprep.subr.mxu0 0.0
      %5656 = vmatpush1.msra.mxu0 0.0
      %5657 = vmatprep.subr.mxu0 0.0
      %5658 = vmatpush1.msra.mxu0 0.0
      %5659 = vmatprep.mubr.f32.mxu0 0.0
      %5660 = vmatmul.mubr.f32.gmra.mrb[0].mxu0 %v5572
      %v5661 = vpop.f32.mrb[0].mxu0
      %v5662 = vadd.f32 0.0, %v5661
      %v5663 = vpop.f32.mrb[0].mxu0
      %v5664 = vadd.f32 0.0, %v5663
      %5665 = vmatprep.mubr.f32.mxu0 0.0
      %5666 = vmatmul.mubr.f32.gmra.mrb[0].mxu0 %v5575
      %v5667 = vpop.f32.mrb[0].mxu0
      %v5668 = vadd.f32 0.0, %v5667
      %v5669 = vpop.f32.mrb[0].mxu0
      %v5670 = vadd.f32 0.0, %v5669
      %5671 = vmatprep.mubr.f32.mxu0 0.0
      %5672 = vmatmul.mubr.f32.gmra.mrb[0].mxu0 %v5578
      %v5673 = vpop.f32.mrb[0].mxu0
      %v5674 = vadd.f32 0.0, %v5673
      %v5675 = vpop.f32.mrb[0].mxu0
      %v5676 = vadd.f32 0.0, %v5675
      %5677 = vmatprep.mubr.f32.mxu0 0.0
      %5678 = vmatmul.mubr.f32.gmra.mrb[0].mxu0 %v5581
      %v5679 = vpop.f32.mrb[0].mxu0
      %v5680 = vadd.f32 0.0, %v5679
      %v5681 = vpop.f32.mrb[0].mxu0
      %v5682 = vadd.f32 0.0, %v5681
      %5683 = vmatprep.mubr.f32.mxu0 0.0
      %5684 = vmatmul.mubr.f32.gmra.mrb[0].mxu0 %v5584
      %v5685 = vpop.f32.mrb[0].mxu0
      %v5686 = vadd.f32 0.0, %v5685
      %v5687 = vpop.f32.mrb[0].mxu0
      %v5688 = vadd.f32 0.0, %v5687
      %5689 = vmatprep.mubr.f32.mxu0 0.0
      %5690 = vmatmul.mubr.f32.gmra.mrb[0].mxu0 %v5587
      %v5691 = vpop.f32.mrb[0].mxu0
      %v5692 = vadd.f32 0.0, %v5691
      %v5693 = vpop.f32.mrb[0].mxu0
      %v5694 = vadd.f32 0.0, %v5693
      %5695 = vmatprep.mubr.f32.mxu0 0.0
      %5696 = vmatmul.mubr.f32.gmra.mrb[0].mxu0 %v5590
      %v5697 = vpop.f32.mrb[0].mxu0
      %v5698 = vadd.f32 0.0, %v5697
      %v5699 = vpop.f32.mrb[0].mxu0
      %v5700 = vadd.f32 0.0, %v5699
      %5701 = vmatprep.mubr.f32.mxu0 0.0
      %5702 = vmatmul.mubr.f32.gmra.mrb[0].mxu0 %v5593
      %v5703 = vpop.f32.mrb[0].mxu0
      %v5704 = vadd.f32 0.0, %v5703
      %v5705 = vpop.f32.mrb[0].mxu0
      %v5706 = vadd.f32 0.0, %v5705
      %5707 = vdwg.mxu0
      %v5709 = vsel %vm4416, %v5468, 0
      %v5712 = vsel %vm4416, %v5469, 0
      %v5715 = vsel %vm4416, %v5470, 0
      %v5718 = vsel %vm4416, %v5471, 0
      %v5721 = vsel %vm4416, %v5472, 0
      %v5724 = vsel %vm4416, %v5473, 0
      %v5727 = vsel %vm4416, %v5474, 0
      %v5730 = vsel %vm4416, %v5475, 0
      %5732 = vmatprep.subr.mxu0 %v5555
      %5733 = vmatpush1.msra.mxu0 %v5554
      %5734 = vmatprep.subr.mxu0 %v5557
      %5735 = vmatpush1.msra.mxu0 %v5556
      %5736 = vmatprep.subr.mxu0 %v5559
      %5737 = vmatpush1.msra.mxu0 %v5558
      %5738 = vmatprep.subr.mxu0 %v5561
      %5739 = vmatpush1.msra.mxu0 %v5560
      %5740 = vmatprep.subr.mxu0 0.0
      %5741 = vmatpush1.msra.mxu0 0.0
      %5742 = vmatprep.subr.mxu0 0.0
      %5743 = vmatpush1.msra.mxu0 0.0
      %5744 = vmatprep.subr.mxu0 0.0
      %5745 = vmatpush1.msra.mxu0 0.0
      %5746 = vmatprep.subr.mxu0 0.0
      %5747 = vmatpush1.msra.mxu0 0.0
      %5748 = vmatprep.subr.mxu0 0.0
      %5749 = vmatpush1.msra.mxu0 0.0
      %5750 = vmatprep.subr.mxu0 0.0
      %5751 = vmatpush1.msra.mxu0 0.0
      %5752 = vmatprep.subr.mxu0 0.0
      %5753 = vmatpush1.msra.mxu0 0.0
      %5754 = vmatprep.subr.mxu0 0.0
      %5755 = vmatpush1.msra.mxu0 0.0
      %5756 = vmatprep.subr.mxu0 0.0
      %5757 = vmatpush1.msra.mxu0 0.0
      %5758 = vmatprep.subr.mxu0 0.0
      %5759 = vmatpush1.msra.mxu0 0.0
      %5760 = vmatprep.subr.mxu0 0.0
      %5761 = vmatpush1.msra.mxu0 0.0
      %5762 = vmatprep.subr.mxu0 0.0
      %5763 = vmatpush1.msra.mxu0 0.0
      %5764 = vmatprep.subr.mxu0 0.0
      %5765 = vmatpush1.msra.mxu0 0.0
      %5766 = vmatprep.subr.mxu0 0.0
      %5767 = vmatpush1.msra.mxu0 0.0
      %5768 = vmatprep.subr.mxu0 0.0
      %5769 = vmatpush1.msra.mxu0 0.0
      %5770 = vmatprep.subr.mxu0 0.0
      %5771 = vmatpush1.msra.mxu0 0.0
      %5772 = vmatprep.subr.mxu0 0.0
      %5773 = vmatpush1.msra.mxu0 0.0
      %5774 = vmatprep.subr.mxu0 0.0
      %5775 = vmatpush1.msra.mxu0 0.0
      %5776 = vmatprep.subr.mxu0 0.0
      %5777 = vmatpush1.msra.mxu0 0.0
      %5778 = vmatprep.subr.mxu0 0.0
      %5779 = vmatpush1.msra.mxu0 0.0
      %5780 = vmatprep.subr.mxu0 0.0
      %5781 = vmatpush1.msra.mxu0 0.0
      %5782 = vmatprep.subr.mxu0 0.0
      %5783 = vmatpush1.msra.mxu0 0.0
      %5784 = vmatprep.subr.mxu0 0.0
      %5785 = vmatpush1.msra.mxu0 0.0
      %5786 = vmatprep.subr.mxu0 0.0
      %5787 = vmatpush1.msra.mxu0 0.0
      %5788 = vmatprep.subr.mxu0 0.0
      %5789 = vmatpush1.msra.mxu0 0.0
      %5790 = vmatprep.subr.mxu0 0.0
      %5791 = vmatpush1.msra.mxu0 0.0
      %5792 = vmatprep.subr.mxu0 0.0
      %5793 = vmatpush1.msra.mxu0 0.0
      %5794 = vmatprep.subr.mxu0 0.0
      %5795 = vmatpush1.msra.mxu0 0.0
      %5796 = vmatprep.mubr.f32.mxu0 0.0
      %5797 = vmatmul.mubr.f32.gmra.mrb[0].mxu0 %v5709
      %v5798 = vpop.f32.mrb[0].mxu0
      %v5799 = vadd.f32 %v5662, %v5798
      %v5800 = vpop.f32.mrb[0].mxu0
      %v5801 = vadd.f32 %v5664, %v5800
      %5802 = vmatprep.mubr.f32.mxu0 0.0
      %5803 = vmatmul.mubr.f32.gmra.mrb[0].mxu0 %v5712
      %v5804 = vpop.f32.mrb[0].mxu0
      %v5805 = vadd.f32 %v5668, %v5804
      %v5806 = vpop.f32.mrb[0].mxu0
      %v5807 = vadd.f32 %v5670, %v5806
      %5808 = vmatprep.mubr.f32.mxu0 0.0
      %5809 = vmatmul.mubr.f32.gmra.mrb[0].mxu0 %v5715
      %v5810 = vpop.f32.mrb[0].mxu0
      %v5811 = vadd.f32 %v5674, %v5810
      %v5812 = vpop.f32.mrb[0].mxu0
      %v5813 = vadd.f32 %v5676, %v5812
      %5814 = vmatprep.mubr.f32.mxu0 0.0
      %5815 = vmatmul.mubr.f32.gmra.mrb[0].mxu0 %v5718
      %v5816 = vpop.f32.mrb[0].mxu0
      %v5817 = vadd.f32 %v5680, %v5816
      %v5818 = vpop.f32.mrb[0].mxu0
      %v5819 = vadd.f32 %v5682, %v5818
      %5820 = vmatprep.mubr.f32.mxu0 0.0
      %5821 = vmatmul.mubr.f32.gmra.mrb[0].mxu0 %v5721
      %v5822 = vpop.f32.mrb[0].mxu0
      %v5823 = vadd.f32 %v5686, %v5822
      %v5824 = vpop.f32.mrb[0].mxu0
      %v5825 = vadd.f32 %v5688, %v5824
      %5826 = vmatprep.mubr.f32.mxu0 0.0
      %5827 = vmatmul.mubr.f32.gmra.mrb[0].mxu0 %v5724
      %v5828 = vpop.f32.mrb[0].mxu0
      %v5829 = vadd.f32 %v5692, %v5828
      %v5830 = vpop.f32.mrb[0].mxu0
      %v5831 = vadd.f32 %v5694, %v5830
      %5832 = vmatprep.mubr.f32.mxu0 0.0
      %5833 = vmatmul.mubr.f32.gmra.mrb[0].mxu0 %v5727
      %v5834 = vpop.f32.mrb[0].mxu0
      %v5835 = vadd.f32 %v5698, %v5834
      %v5836 = vpop.f32.mrb[0].mxu0
      %v5837 = vadd.f32 %v5700, %v5836
      %5838 = vmatprep.mubr.f32.mxu0 0.0
      %5839 = vmatmul.mubr.f32.gmra.mrb[0].mxu0 %v5730
      %v5840 = vpop.f32.mrb[0].mxu0
      %v5841 = vadd.f32 %v5704, %v5840
      %v5842 = vpop.f32.mrb[0].mxu0
      %v5843 = vadd.f32 %v5706, %v5842
      %5844 = vdwg.mxu0
      %s5845 = scalar_lea.vmem %s11, 128
      %v5846 = vld [vmem:[%s5845] sm:$0xff]
      %v5847 = vld [vmem:[%s5845 + $0x8] sm:$0xff]
      %v5848 = vld [vmem:[%s5845 + $0x10] sm:$0xff]
      %v5849 = vld [vmem:[%s5845 + $0x18] sm:$0xff]
      %v5850 = vld [vmem:[%s5845 + $0x20] sm:$0xff]
      %v5851 = vld [vmem:[%s5845 + $0x28] sm:$0xff]
      %v5852 = vld [vmem:[%s5845 + $0x30] sm:$0xff]
      %v5853 = vld [vmem:[%s5845 + $0x38] sm:$0xff]
      %vm5854 = vcmp.eq.s32.totalorder %v629, 249
      %vm5855 = vcmp.eq.s32.totalorder %v630, 249
      %5860 = vrot.lane.b32.xlu0 %v5460, 127
      %v5861 = vpop.permute.xlu0 %5860
      %5862 = vrot.lane.b32.xlu0 %v5479, 127
      %v5863 = vpop.permute.xlu0 %5862
      %5864 = vrot.lane.b32.xlu0 %v5462, 127
      %v5865 = vpop.permute.xlu0 %5864
      %5866 = vrot.lane.b32.xlu0 %v5482, 127
      %v5867 = vpop.permute.xlu0 %5866
      %5868 = vrot.lane.b32.xlu0 %v5464, 127
      %v5869 = vpop.permute.xlu0 %5868
      %5870 = vrot.lane.b32.xlu0 %v5485, 127
      %v5871 = vpop.permute.xlu0 %5870
      %5872 = vrot.lane.b32.xlu0 %v5466, 127
      %v5873 = vpop.permute.xlu0 %5872
      %5874 = vrot.lane.b32.xlu0 %v5488, 127
      %v5875 = vpop.permute.xlu0 %5874
      %v5876 = vsel %vm893, %v5861, %v5863
      %v5877 = vsel %vm893, %v5865, %v5867
      %v5878 = vsel %vm893, %v5869, %v5871
      %v5879 = vsel %vm893, %v5873, %v5875
      %v5888 = vsel %vm5854, 0.0, %v5876
      %v5889 = vsel %vm5855, 0.0, %v5863
      %v5890 = vsel %vm5854, 0.0, %v5877
      %v5891 = vsel %vm5855, 0.0, %v5867
      %v5892 = vsel %vm5854, 0.0, %v5878
      %v5893 = vsel %vm5855, 0.0, %v5871
      %v5894 = vsel %vm5854, 0.0, %v5879
      %v5895 = vsel %vm5855, 0.0, %v5875
      %v5897 = vsel %vm4416, %v5846, 0
      %v5900 = vsel %vm4416, %v5847, 0
      %v5903 = vsel %vm4416, %v5848, 0
      %v5906 = vsel %vm4416, %v5849, 0
      %v5909 = vsel %vm4416, %v5850, 0
      %v5912 = vsel %vm4416, %v5851, 0
      %v5915 = vsel %vm4416, %v5852, 0
      %v5918 = vsel %vm4416, %v5853, 0
      %5920 = vmatprep.subr.mxu0 %v5889
      %5921 = vmatpush1.msra.mxu0 %v5888
      %5922 = vmatprep.subr.mxu0 %v5891
      %5923 = vmatpush1.msra.mxu0 %v5890
      %5924 = vmatprep.subr.mxu0 %v5893
      %5925 = vmatpush1.msra.mxu0 %v5892
      %5926 = vmatprep.subr.mxu0 %v5895
      %5927 = vmatpush1.msra.mxu0 %v5894
      %5928 = vmatprep.subr.mxu0 0.0
      %5929 = vmatpush1.msra.mxu0 0.0
      %5930 = vmatprep.subr.mxu0 0.0
      %5931 = vmatpush1.msra.mxu0 0.0
      %5932 = vmatprep.subr.mxu0 0.0
      %5933 = vmatpush1.msra.mxu0 0.0
      %5934 = vmatprep.subr.mxu0 0.0
      %5935 = vmatpush1.msra.mxu0 0.0
      %5936 = vmatprep.subr.mxu0 0.0
      %5937 = vmatpush1.msra.mxu0 0.0
      %5938 = vmatprep.subr.mxu0 0.0
      %5939 = vmatpush1.msra.mxu0 0.0
      %5940 = vmatprep.subr.mxu0 0.0
      %5941 = vmatpush1.msra.mxu0 0.0
      %5942 = vmatprep.subr.mxu0 0.0
      %5943 = vmatpush1.msra.mxu0 0.0
      %5944 = vmatprep.subr.mxu0 0.0
      %5945 = vmatpush1.msra.mxu0 0.0
      %5946 = vmatprep.subr.mxu0 0.0
      %5947 = vmatpush1.msra.mxu0 0.0
      %5948 = vmatprep.subr.mxu0 0.0
      %5949 = vmatpush1.msra.mxu0 0.0
      %5950 = vmatprep.subr.mxu0 0.0
      %5951 = vmatpush1.msra.mxu0 0.0
      %5952 = vmatprep.subr.mxu0 0.0
      %5953 = vmatpush1.msra.mxu0 0.0
      %5954 = vmatprep.subr.mxu0 0.0
      %5955 = vmatpush1.msra.mxu0 0.0
      %5956 = vmatprep.subr.mxu0 0.0
      %5957 = vmatpush1.msra.mxu0 0.0
      %5958 = vmatprep.subr.mxu0 0.0
      %5959 = vmatpush1.msra.mxu0 0.0
      %5960 = vmatprep.subr.mxu0 0.0
      %5961 = vmatpush1.msra.mxu0 0.0
      %5962 = vmatprep.subr.mxu0 0.0
      %5963 = vmatpush1.msra.mxu0 0.0
      %5964 = vmatprep.subr.mxu0 0.0
      %5965 = vmatpush1.msra.mxu0 0.0
      %5966 = vmatprep.subr.mxu0 0.0
      %5967 = vmatpush1.msra.mxu0 0.0
      %5968 = vmatprep.subr.mxu0 0.0
      %5969 = vmatpush1.msra.mxu0 0.0
      %5970 = vmatprep.subr.mxu0 0.0
      %5971 = vmatpush1.msra.mxu0 0.0
      %5972 = vmatprep.subr.mxu0 0.0
      %5973 = vmatpush1.msra.mxu0 0.0
      %5974 = vmatprep.subr.mxu0 0.0
      %5975 = vmatpush1.msra.mxu0 0.0
      %5976 = vmatprep.subr.mxu0 0.0
      %5977 = vmatpush1.msra.mxu0 0.0
      %5978 = vmatprep.subr.mxu0 0.0
      %5979 = vmatpush1.msra.mxu0 0.0
      %5980 = vmatprep.subr.mxu0 0.0
      %5981 = vmatpush1.msra.mxu0 0.0
      %5982 = vmatprep.subr.mxu0 0.0
      %5983 = vmatpush1.msra.mxu0 0.0
      %5984 = vmatprep.mubr.f32.mxu0 0.0
      %5985 = vmatmul.mubr.f32.gmra.mrb[0].mxu0 %v5897
      %v5986 = vpop.f32.mrb[0].mxu0
      %v5987 = vadd.f32 0.0, %v5986
      %v5988 = vpop.f32.mrb[0].mxu0
      %v5989 = vadd.f32 0.0, %v5988
      %5990 = vmatprep.mubr.f32.mxu0 0.0
      %5991 = vmatmul.mubr.f32.gmra.mrb[0].mxu0 %v5900
      %v5992 = vpop.f32.mrb[0].mxu0
      %v5993 = vadd.f32 0.0, %v5992
      %v5994 = vpop.f32.mrb[0].mxu0
      %v5995 = vadd.f32 0.0, %v5994
      %5996 = vmatprep.mubr.f32.mxu0 0.0
      %5997 = vmatmul.mubr.f32.gmra.mrb[0].mxu0 %v5903
      %v5998 = vpop.f32.mrb[0].mxu0
      %v5999 = vadd.f32 0.0, %v5998
      %v6000 = vpop.f32.mrb[0].mxu0
      %v6001 = vadd.f32 0.0, %v6000
      %6002 = vmatprep.mubr.f32.mxu0 0.0
      %6003 = vmatmul.mubr.f32.gmra.mrb[0].mxu0 %v5906
      %v6004 = vpop.f32.mrb[0].mxu0
      %v6005 = vadd.f32 0.0, %v6004
      %v6006 = vpop.f32.mrb[0].mxu0
      %v6007 = vadd.f32 0.0, %v6006
      %6008 = vmatprep.mubr.f32.mxu0 0.0
      %6009 = vmatmul.mubr.f32.gmra.mrb[0].mxu0 %v5909
      %v6010 = vpop.f32.mrb[0].mxu0
      %v6011 = vadd.f32 0.0, %v6010
      %v6012 = vpop.f32.mrb[0].mxu0
      %v6013 = vadd.f32 0.0, %v6012
      %6014 = vmatprep.mubr.f32.mxu0 0.0
      %6015 = vmatmul.mubr.f32.gmra.mrb[0].mxu0 %v5912
      %v6016 = vpop.f32.mrb[0].mxu0
      %v6017 = vadd.f32 0.0, %v6016
      %v6018 = vpop.f32.mrb[0].mxu0
      %v6019 = vadd.f32 0.0, %v6018
      %6020 = vmatprep.mubr.f32.mxu0 0.0
      %6021 = vmatmul.mubr.f32.gmra.mrb[0].mxu0 %v5915
      %v6022 = vpop.f32.mrb[0].mxu0
      %v6023 = vadd.f32 0.0, %v6022
      %v6024 = vpop.f32.mrb[0].mxu0
      %v6025 = vadd.f32 0.0, %v6024
      %6026 = vmatprep.mubr.f32.mxu0 0.0
      %6027 = vmatmul.mubr.f32.gmra.mrb[0].mxu0 %v5918
      %v6028 = vpop.f32.mrb[0].mxu0
      %v6029 = vadd.f32 0.0, %v6028
      %v6030 = vpop.f32.mrb[0].mxu0
      %v6031 = vadd.f32 0.0, %v6030
      %6032 = vdwg.mxu0
      %v6033 = vadd.f32 %v5799, %v5987
      %v6034 = vadd.f32 %v5801, %v5989
      %v6035 = vadd.f32 %v5805, %v5993
      %v6036 = vadd.f32 %v5807, %v5995
      %v6037 = vadd.f32 %v5811, %v5999
      %v6038 = vadd.f32 %v5813, %v6001
      %v6039 = vadd.f32 %v5817, %v6005
      %v6040 = vadd.f32 %v5819, %v6007
      %v6041 = vadd.f32 %v5823, %v6011
      %v6042 = vadd.f32 %v5825, %v6013
      %v6043 = vadd.f32 %v5829, %v6017
      %v6044 = vadd.f32 %v5831, %v6019
      %v6045 = vadd.f32 %v5835, %v6023
      %v6046 = vadd.f32 %v5837, %v6025
      %v6047 = vadd.f32 %v5841, %v6029
      %v6048 = vadd.f32 %v5843, %v6031
      %v6049 = vld [vmem:[%s12] sm:$0xff]
      %v6050 = vld [vmem:[%s12 + $0x8] sm:$0xff]
      %v6051 = vld [vmem:[%s12 + $0x10] sm:$0xff]
      %v6052 = vld [vmem:[%s12 + $0x18] sm:$0xff]
      %v6053 = vld [vmem:[%s12 + $0x20] sm:$0xff]
      %v6054 = vld [vmem:[%s12 + $0x28] sm:$0xff]
      %v6055 = vld [vmem:[%s12 + $0x30] sm:$0xff]
      %v6056 = vld [vmem:[%s12 + $0x38] sm:$0xff]
      %6058 = vset.pattern.permute.xlu0 0
      %6059 = vperm.xlu0 %6058, %v6049
      %v6060 = vpop.permute.xlu0 %6059
      %6063 = vset.pattern.permute.xlu0 0
      %6064 = vperm.xlu0 %6063, %v6050
      %v6065 = vpop.permute.xlu0 %6064
      %6068 = vset.pattern.permute.xlu0 0
      %6069 = vperm.xlu0 %6068, %v6051
      %v6070 = vpop.permute.xlu0 %6069
      %6073 = vset.pattern.permute.xlu0 0
      %6074 = vperm.xlu0 %6073, %v6052
      %v6075 = vpop.permute.xlu0 %6074
      %6078 = vset.pattern.permute.xlu0 0
      %6079 = vperm.xlu0 %6078, %v6053
      %v6080 = vpop.permute.xlu0 %6079
      %6083 = vset.pattern.permute.xlu0 0
      %6084 = vperm.xlu0 %6083, %v6054
      %v6085 = vpop.permute.xlu0 %6084
      %6088 = vset.pattern.permute.xlu0 0
      %6089 = vperm.xlu0 %6088, %v6055
      %v6090 = vpop.permute.xlu0 %6089
      %6093 = vset.pattern.permute.xlu0 0
      %6094 = vperm.xlu0 %6093, %v6056
      %v6095 = vpop.permute.xlu0 %6094
      %v6097 = vadd.f32 %v6033, %v6060
      %v6098 = vadd.f32 %v6034, %v6060
      %v6099 = vadd.f32 %v6035, %v6065
      %v6100 = vadd.f32 %v6036, %v6065
      %v6101 = vadd.f32 %v6037, %v6070
      %v6102 = vadd.f32 %v6038, %v6070
      %v6103 = vadd.f32 %v6039, %v6075
      %v6104 = vadd.f32 %v6040, %v6075
      %v6105 = vadd.f32 %v6041, %v6080
      %v6106 = vadd.f32 %v6042, %v6080
      %v6107 = vadd.f32 %v6043, %v6085
      %v6108 = vadd.f32 %v6044, %v6085
      %v6109 = vadd.f32 %v6045, %v6090
      %v6110 = vadd.f32 %v6046, %v6090
      %v6111 = vadd.f32 %v6047, %v6095
      %v6112 = vadd.f32 %v6048, %v6095
      %vm6113 = vcmp.ge.f32.partialorder %v6097, 0.0
      %vm6114 = vcmp.ge.f32.partialorder %v6098, 0.0
      %vm6115 = vcmp.ge.f32.partialorder %v6099, 0.0
      %vm6116 = vcmp.ge.f32.partialorder %v6100, 0.0
      %vm6117 = vcmp.ge.f32.partialorder %v6101, 0.0
      %vm6118 = vcmp.ge.f32.partialorder %v6102, 0.0
      %vm6119 = vcmp.ge.f32.partialorder %v6103, 0.0
      %vm6120 = vcmp.ge.f32.partialorder %v6104, 0.0
      %vm6121 = vcmp.ge.f32.partialorder %v6105, 0.0
      %vm6122 = vcmp.ge.f32.partialorder %v6106, 0.0
      %vm6123 = vcmp.ge.f32.partialorder %v6107, 0.0
      %vm6124 = vcmp.ge.f32.partialorder %v6108, 0.0
      %vm6125 = vcmp.ge.f32.partialorder %v6109, 0.0
      %vm6126 = vcmp.ge.f32.partialorder %v6110, 0.0
      %vm6127 = vcmp.ge.f32.partialorder %v6111, 0.0
      %vm6128 = vcmp.ge.f32.partialorder %v6112, 0.0
      %v6129 = vmul.f32 %v6097, 0.01
      %v6130 = vmul.f32 %v6098, 0.01
      %v6131 = vmul.f32 %v6099, 0.01
      %v6132 = vmul.f32 %v6100, 0.01
      %v6133 = vmul.f32 %v6101, 0.01
      %v6134 = vmul.f32 %v6102, 0.01
      %v6135 = vmul.f32 %v6103, 0.01
      %v6136 = vmul.f32 %v6104, 0.01
      %v6137 = vmul.f32 %v6105, 0.01
      %v6138 = vmul.f32 %v6106, 0.01
      %v6139 = vmul.f32 %v6107, 0.01
      %v6140 = vmul.f32 %v6108, 0.01
      %v6141 = vmul.f32 %v6109, 0.01
      %v6142 = vmul.f32 %v6110, 0.01
      %v6143 = vmul.f32 %v6111, 0.01
      %v6144 = vmul.f32 %v6112, 0.01
      %v6145 = vsel %vm6113, %v6097, %v6129
      %v6146 = vsel %vm6114, %v6098, %v6130
      %v6147 = vsel %vm6115, %v6099, %v6131
      %v6148 = vsel %vm6116, %v6100, %v6132
      %v6149 = vsel %vm6117, %v6101, %v6133
      %v6150 = vsel %vm6118, %v6102, %v6134
      %v6151 = vsel %vm6119, %v6103, %v6135
      %v6152 = vsel %vm6120, %v6104, %v6136
      %v6153 = vsel %vm6121, %v6105, %v6137
      %v6154 = vsel %vm6122, %v6106, %v6138
      %v6155 = vsel %vm6123, %v6107, %v6139
      %v6156 = vsel %vm6124, %v6108, %v6140
      %v6157 = vsel %vm6125, %v6109, %v6141
      %v6158 = vsel %vm6126, %v6110, %v6142
      %v6159 = vsel %vm6127, %v6111, %v6143
      %v6160 = vsel %vm6128, %v6112, %v6144
      %v6161 = vld [vmem:[%s13] sm:$0xff]
      %v6162 = vld [vmem:[%s13 + $0x8] sm:$0xff]
      %v6163 = vld [vmem:[%s13 + $0x10] sm:$0xff]
      %v6164 = vld [vmem:[%s13 + $0x18] sm:$0xff]
      %v6165 = vld [vmem:[%s13 + $0x20] sm:$0xff]
      %v6166 = vld [vmem:[%s13 + $0x28] sm:$0xff]
      %v6167 = vld [vmem:[%s13 + $0x30] sm:$0xff]
      %v6168 = vld [vmem:[%s13 + $0x38] sm:$0xff]
      %6169 = vrot.lane.b32.xlu0 %v6145, 122
      %v6170 = vpop.permute.xlu0 %6169
      %v6171 = vsel %vm5476, %v6170, %v6146
      %6172 = vrot.lane.b32.xlu0 %v6147, 122
      %v6173 = vpop.permute.xlu0 %6172
      %v6174 = vsel %vm5476, %v6173, %v6148
      %6175 = vrot.lane.b32.xlu0 %v6149, 122
      %v6176 = vpop.permute.xlu0 %6175
      %v6177 = vsel %vm5476, %v6176, %v6150
      %6178 = vrot.lane.b32.xlu0 %v6151, 122
      %v6179 = vpop.permute.xlu0 %6178
      %v6180 = vsel %vm5476, %v6179, %v6152
      %6181 = vrot.lane.b32.xlu0 %v6153, 122
      %v6182 = vpop.permute.xlu0 %6181
      %v6183 = vsel %vm5476, %v6182, %v6154
      %6184 = vrot.lane.b32.xlu0 %v6155, 122
      %v6185 = vpop.permute.xlu0 %6184
      %v6186 = vsel %vm5476, %v6185, %v6156
      %6187 = vrot.lane.b32.xlu0 %v6157, 122
      %v6188 = vpop.permute.xlu0 %6187
      %v6189 = vsel %vm5476, %v6188, %v6158
      %6190 = vrot.lane.b32.xlu0 %v6159, 122
      %v6191 = vpop.permute.xlu0 %6190
      %v6192 = vsel %vm5476, %v6191, %v6160
      %6193 = vrot.lane.b32.xlu0 %v6171, 122
      %v6194 = vpop.permute.xlu0 %6193
      %6195 = vrot.lane.b32.xlu0 %v6174, 122
      %v6196 = vpop.permute.xlu0 %6195
      %6197 = vrot.lane.b32.xlu0 %v6177, 122
      %v6198 = vpop.permute.xlu0 %6197
      %6199 = vrot.lane.b32.xlu0 %v6180, 122
      %v6200 = vpop.permute.xlu0 %6199
      %6201 = vrot.lane.b32.xlu0 %v6183, 122
      %v6202 = vpop.permute.xlu0 %6201
      %6203 = vrot.lane.b32.xlu0 %v6186, 122
      %v6204 = vpop.permute.xlu0 %6203
      %6205 = vrot.lane.b32.xlu0 %v6189, 122
      %v6206 = vpop.permute.xlu0 %6205
      %6207 = vrot.lane.b32.xlu0 %v6192, 122
      %v6208 = vpop.permute.xlu0 %6207
      %v6209 = vsel %vm5476, %v6194, %v6170
      %v6210 = vsel %vm5476, %v6196, %v6173
      %v6211 = vsel %vm5476, %v6198, %v6176
      %v6212 = vsel %vm5476, %v6200, %v6179
      %v6213 = vsel %vm5476, %v6202, %v6182
      %v6214 = vsel %vm5476, %v6204, %v6185
      %v6215 = vsel %vm5476, %v6206, %v6188
      %v6216 = vsel %vm5476, %v6208, %v6191
      %6241 = vrot.lane.b32.xlu0 %v6171, 7
      %v6242 = vpop.permute.xlu0 %6241
      %6243 = vrot.lane.b32.xlu0 %v6209, 7
      %v6244 = vpop.permute.xlu0 %6243
      %6245 = vrot.lane.b32.xlu0 %v6194, 7
      %v6246 = vpop.permute.xlu0 %6245
      %6247 = vrot.lane.b32.xlu0 %v6174, 7
      %v6248 = vpop.permute.xlu0 %6247
      %6249 = vrot.lane.b32.xlu0 %v6210, 7
      %v6250 = vpop.permute.xlu0 %6249
      %6251 = vrot.lane.b32.xlu0 %v6196, 7
      %v6252 = vpop.permute.xlu0 %6251
      %6253 = vrot.lane.b32.xlu0 %v6177, 7
      %v6254 = vpop.permute.xlu0 %6253
      %6255 = vrot.lane.b32.xlu0 %v6211, 7
      %v6256 = vpop.permute.xlu0 %6255
      %6257 = vrot.lane.b32.xlu0 %v6198, 7
      %v6258 = vpop.permute.xlu0 %6257
      %6259 = vrot.lane.b32.xlu0 %v6180, 7
      %v6260 = vpop.permute.xlu0 %6259
      %6261 = vrot.lane.b32.xlu0 %v6212, 7
      %v6262 = vpop.permute.xlu0 %6261
      %6263 = vrot.lane.b32.xlu0 %v6200, 7
      %v6264 = vpop.permute.xlu0 %6263
      %6265 = vrot.lane.b32.xlu0 %v6183, 7
      %v6266 = vpop.permute.xlu0 %6265
      %6267 = vrot.lane.b32.xlu0 %v6213, 7
      %v6268 = vpop.permute.xlu0 %6267
      %6269 = vrot.lane.b32.xlu0 %v6202, 7
      %v6270 = vpop.permute.xlu0 %6269
      %6271 = vrot.lane.b32.xlu0 %v6186, 7
      %v6272 = vpop.permute.xlu0 %6271
      %6273 = vrot.lane.b32.xlu0 %v6214, 7
      %v6274 = vpop.permute.xlu0 %6273
      %6275 = vrot.lane.b32.xlu0 %v6204, 7
      %v6276 = vpop.permute.xlu0 %6275
      %6277 = vrot.lane.b32.xlu0 %v6189, 7
      %v6278 = vpop.permute.xlu0 %6277
      %6279 = vrot.lane.b32.xlu0 %v6215, 7
      %v6280 = vpop.permute.xlu0 %6279
      %6281 = vrot.lane.b32.xlu0 %v6206, 7
      %v6282 = vpop.permute.xlu0 %6281
      %6283 = vrot.lane.b32.xlu0 %v6192, 7
      %v6284 = vpop.permute.xlu0 %6283
      %6285 = vrot.lane.b32.xlu0 %v6216, 7
      %v6286 = vpop.permute.xlu0 %6285
      %6287 = vrot.lane.b32.xlu0 %v6208, 7
      %v6288 = vpop.permute.xlu0 %6287
      %v6289 = vsel %vm5537, %v6242, %v6244
      %v6290 = vsel %vm5537, %v6244, %v6246
      %v6291 = vsel %vm5537, %v6248, %v6250
      %v6292 = vsel %vm5537, %v6250, %v6252
      %v6293 = vsel %vm5537, %v6254, %v6256
      %v6294 = vsel %vm5537, %v6256, %v6258
      %v6295 = vsel %vm5537, %v6260, %v6262
      %v6296 = vsel %vm5537, %v6262, %v6264
      %v6297 = vsel %vm5537, %v6266, %v6268
      %v6298 = vsel %vm5537, %v6268, %v6270
      %v6299 = vsel %vm5537, %v6272, %v6274
      %v6300 = vsel %vm5537, %v6274, %v6276
      %v6301 = vsel %vm5537, %v6278, %v6280
      %v6302 = vsel %vm5537, %v6280, %v6282
      %v6303 = vsel %vm5537, %v6284, %v6286
      %v6304 = vsel %vm5537, %v6286, %v6288
      %v6321 = vsel %vm637, 0.0, %v6289
      %v6322 = vsel %vm638, 0.0, %v6290
      %v6323 = vsel %vm637, 0.0, %v6291
      %v6324 = vsel %vm638, 0.0, %v6292
      %v6325 = vsel %vm637, 0.0, %v6293
      %v6326 = vsel %vm638, 0.0, %v6294
      %v6327 = vsel %vm637, 0.0, %v6295
      %v6328 = vsel %vm638, 0.0, %v6296
      %v6329 = vsel %vm637, 0.0, %v6297
      %v6330 = vsel %vm638, 0.0, %v6298
      %v6331 = vsel %vm637, 0.0, %v6299
      %v6332 = vsel %vm638, 0.0, %v6300
      %v6333 = vsel %vm637, 0.0, %v6301
      %v6334 = vsel %vm638, 0.0, %v6302
      %v6335 = vsel %vm637, 0.0, %v6303
      %v6336 = vsel %vm638, 0.0, %v6304
      %s6337 = scalar_lea.vmem %s13, 64
      %v6338 = vld [vmem:[%s6337] sm:$0xff]
      %v6339 = vld [vmem:[%s6337 + $0x8] sm:$0xff]
      %v6340 = vld [vmem:[%s6337 + $0x10] sm:$0xff]
      %v6341 = vld [vmem:[%s6337 + $0x18] sm:$0xff]
      %v6342 = vld [vmem:[%s6337 + $0x20] sm:$0xff]
      %v6343 = vld [vmem:[%s6337 + $0x28] sm:$0xff]
      %v6344 = vld [vmem:[%s6337 + $0x30] sm:$0xff]
      %v6345 = vld [vmem:[%s6337 + $0x38] sm:$0xff]
      %vm6346 = vcmask 523264
      %v6348 = vsel %vm6346, %v6338, 0
      %v6351 = vsel %vm6346, %v6339, 0
      %v6354 = vsel %vm6346, %v6340, 0
      %v6357 = vsel %vm6346, %v6341, 0
      %v6360 = vsel %vm6346, %v6342, 0
      %v6363 = vsel %vm6346, %v6343, 0
      %v6366 = vsel %vm6346, %v6344, 0
      %v6369 = vsel %vm6346, %v6345, 0
      %6371 = vmatprep.subr.mxu0 %v6146
      %6372 = vmatpush1.msra.mxu0 %v6145
      %6373 = vmatprep.subr.mxu0 %v6148
      %6374 = vmatpush1.msra.mxu0 %v6147
      %6375 = vmatprep.subr.mxu0 %v6150
      %6376 = vmatpush1.msra.mxu0 %v6149
      %6377 = vmatprep.subr.mxu0 %v6152
      %6378 = vmatpush1.msra.mxu0 %v6151
      %6379 = vmatprep.subr.mxu0 %v6154
      %6380 = vmatpush1.msra.mxu0 %v6153
      %6381 = vmatprep.subr.mxu0 %v6156
      %6382 = vmatpush1.msra.mxu0 %v6155
      %6383 = vmatprep.subr.mxu0 %v6158
      %6384 = vmatpush1.msra.mxu0 %v6157
      %6385 = vmatprep.subr.mxu0 %v6160
      %6386 = vmatpush1.msra.mxu0 %v6159
      %6387 = vmatprep.subr.mxu0 0.0
      %6388 = vmatpush1.msra.mxu0 0.0
      %6389 = vmatprep.subr.mxu0 0.0
      %6390 = vmatpush1.msra.mxu0 0.0
      %6391 = vmatprep.subr.mxu0 0.0
      %6392 = vmatpush1.msra.mxu0 0.0
      %6393 = vmatprep.subr.mxu0 0.0
      %6394 = vmatpush1.msra.mxu0 0.0
      %6395 = vmatprep.subr.mxu0 0.0
      %6396 = vmatpush1.msra.mxu0 0.0
      %6397 = vmatprep.subr.mxu0 0.0
      %6398 = vmatpush1.msra.mxu0 0.0
      %6399 = vmatprep.subr.mxu0 0.0
      %6400 = vmatpush1.msra.mxu0 0.0
      %6401 = vmatprep.subr.mxu0 0.0
      %6402 = vmatpush1.msra.mxu0 0.0
      %6403 = vmatprep.subr.mxu0 0.0
      %6404 = vmatpush1.msra.mxu0 0.0
      %6405 = vmatprep.subr.mxu0 0.0
      %6406 = vmatpush1.msra.mxu0 0.0
      %6407 = vmatprep.subr.mxu0 0.0
      %6408 = vmatpush1.msra.mxu0 0.0
      %6409 = vmatprep.subr.mxu0 0.0
      %6410 = vmatpush1.msra.mxu0 0.0
      %6411 = vmatprep.subr.mxu0 0.0
      %6412 = vmatpush1.msra.mxu0 0.0
      %6413 = vmatprep.subr.mxu0 0.0
      %6414 = vmatpush1.msra.mxu0 0.0
      %6415 = vmatprep.subr.mxu0 0.0
      %6416 = vmatpush1.msra.mxu0 0.0
      %6417 = vmatprep.subr.mxu0 0.0
      %6418 = vmatpush1.msra.mxu0 0.0
      %6419 = vmatprep.subr.mxu0 0.0
      %6420 = vmatpush1.msra.mxu0 0.0
      %6421 = vmatprep.subr.mxu0 0.0
      %6422 = vmatpush1.msra.mxu0 0.0
      %6423 = vmatprep.subr.mxu0 0.0
      %6424 = vmatpush1.msra.mxu0 0.0
      %6425 = vmatprep.subr.mxu0 0.0
      %6426 = vmatpush1.msra.mxu0 0.0
      %6427 = vmatprep.subr.mxu0 0.0
      %6428 = vmatpush1.msra.mxu0 0.0
      %6429 = vmatprep.subr.mxu0 0.0
      %6430 = vmatpush1.msra.mxu0 0.0
      %6431 = vmatprep.subr.mxu0 0.0
      %6432 = vmatpush1.msra.mxu0 0.0
      %6433 = vmatprep.subr.mxu0 0.0
      %6434 = vmatpush1.msra.mxu0 0.0
      %6435 = vmatprep.mubr.f32.mxu0 0.0
      %6436 = vmatmul.mubr.f32.gmra.mrb[0].mxu0 %v6348
      %v6437 = vpop.f32.mrb[0].mxu0
      %v6438 = vadd.f32 0.0, %v6437
      %v6439 = vpop.f32.mrb[0].mxu0
      %v6440 = vadd.f32 0.0, %v6439
      %6441 = vmatprep.mubr.f32.mxu0 0.0
      %6442 = vmatmul.mubr.f32.gmra.mrb[0].mxu0 %v6351
      %v6443 = vpop.f32.mrb[0].mxu0
      %v6444 = vadd.f32 0.0, %v6443
      %v6445 = vpop.f32.mrb[0].mxu0
      %v6446 = vadd.f32 0.0, %v6445
      %6447 = vmatprep.mubr.f32.mxu0 0.0
      %6448 = vmatmul.mubr.f32.gmra.mrb[0].mxu0 %v6354
      %v6449 = vpop.f32.mrb[0].mxu0
      %v6450 = vadd.f32 0.0, %v6449
      %v6451 = vpop.f32.mrb[0].mxu0
      %v6452 = vadd.f32 0.0, %v6451
      %6453 = vmatprep.mubr.f32.mxu0 0.0
      %6454 = vmatmul.mubr.f32.gmra.mrb[0].mxu0 %v6357
      %v6455 = vpop.f32.mrb[0].mxu0
      %v6456 = vadd.f32 0.0, %v6455
      %v6457 = vpop.f32.mrb[0].mxu0
      %v6458 = vadd.f32 0.0, %v6457
      %6459 = vmatprep.mubr.f32.mxu0 0.0
      %6460 = vmatmul.mubr.f32.gmra.mrb[0].mxu0 %v6360
      %v6461 = vpop.f32.mrb[0].mxu0
      %v6462 = vadd.f32 0.0, %v6461
      %v6463 = vpop.f32.mrb[0].mxu0
      %v6464 = vadd.f32 0.0, %v6463
      %6465 = vmatprep.mubr.f32.mxu0 0.0
      %6466 = vmatmul.mubr.f32.gmra.mrb[0].mxu0 %v6363
      %v6467 = vpop.f32.mrb[0].mxu0
      %v6468 = vadd.f32 0.0, %v6467
      %v6469 = vpop.f32.mrb[0].mxu0
      %v6470 = vadd.f32 0.0, %v6469
      %6471 = vmatprep.mubr.f32.mxu0 0.0
      %6472 = vmatmul.mubr.f32.gmra.mrb[0].mxu0 %v6366
      %v6473 = vpop.f32.mrb[0].mxu0
      %v6474 = vadd.f32 0.0, %v6473
      %v6475 = vpop.f32.mrb[0].mxu0
      %v6476 = vadd.f32 0.0, %v6475
      %6477 = vmatprep.mubr.f32.mxu0 0.0
      %6478 = vmatmul.mubr.f32.gmra.mrb[0].mxu0 %v6369
      %v6479 = vpop.f32.mrb[0].mxu0
      %v6480 = vadd.f32 0.0, %v6479
      %v6481 = vpop.f32.mrb[0].mxu0
      %v6482 = vadd.f32 0.0, %v6481
      %6483 = vdwg.mxu0
      %v6485 = vsel %vm6346, %v6161, 0
      %v6488 = vsel %vm6346, %v6162, 0
      %v6491 = vsel %vm6346, %v6163, 0
      %v6494 = vsel %vm6346, %v6164, 0
      %v6497 = vsel %vm6346, %v6165, 0
      %v6500 = vsel %vm6346, %v6166, 0
      %v6503 = vsel %vm6346, %v6167, 0
      %v6506 = vsel %vm6346, %v6168, 0
      %6508 = vmatprep.subr.mxu0 %v6322
      %6509 = vmatpush1.msra.mxu0 %v6321
      %6510 = vmatprep.subr.mxu0 %v6324
      %6511 = vmatpush1.msra.mxu0 %v6323
      %6512 = vmatprep.subr.mxu0 %v6326
      %6513 = vmatpush1.msra.mxu0 %v6325
      %6514 = vmatprep.subr.mxu0 %v6328
      %6515 = vmatpush1.msra.mxu0 %v6327
      %6516 = vmatprep.subr.mxu0 %v6330
      %6517 = vmatpush1.msra.mxu0 %v6329
      %6518 = vmatprep.subr.mxu0 %v6332
      %6519 = vmatpush1.msra.mxu0 %v6331
      %6520 = vmatprep.subr.mxu0 %v6334
      %6521 = vmatpush1.msra.mxu0 %v6333
      %6522 = vmatprep.subr.mxu0 %v6336
      %6523 = vmatpush1.msra.mxu0 %v6335
      %6524 = vmatprep.subr.mxu0 0.0
      %6525 = vmatpush1.msra.mxu0 0.0
      %6526 = vmatprep.subr.mxu0 0.0
      %6527 = vmatpush1.msra.mxu0 0.0
      %6528 = vmatprep.subr.mxu0 0.0
      %6529 = vmatpush1.msra.mxu0 0.0
      %6530 = vmatprep.subr.mxu0 0.0
      %6531 = vmatpush1.msra.mxu0 0.0
      %6532 = vmatprep.subr.mxu0 0.0
      %6533 = vmatpush1.msra.mxu0 0.0
      %6534 = vmatprep.subr.mxu0 0.0
      %6535 = vmatpush1.msra.mxu0 0.0
      %6536 = vmatprep.subr.mxu0 0.0
      %6537 = vmatpush1.msra.mxu0 0.0
      %6538 = vmatprep.subr.mxu0 0.0
      %6539 = vmatpush1.msra.mxu0 0.0
      %6540 = vmatprep.subr.mxu0 0.0
      %6541 = vmatpush1.msra.mxu0 0.0
      %6542 = vmatprep.subr.mxu0 0.0
      %6543 = vmatpush1.msra.mxu0 0.0
      %6544 = vmatprep.subr.mxu0 0.0
      %6545 = vmatpush1.msra.mxu0 0.0
      %6546 = vmatprep.subr.mxu0 0.0
      %6547 = vmatpush1.msra.mxu0 0.0
      %6548 = vmatprep.subr.mxu0 0.0
      %6549 = vmatpush1.msra.mxu0 0.0
      %6550 = vmatprep.subr.mxu0 0.0
      %6551 = vmatpush1.msra.mxu0 0.0
      %6552 = vmatprep.subr.mxu0 0.0
      %6553 = vmatpush1.msra.mxu0 0.0
      %6554 = vmatprep.subr.mxu0 0.0
      %6555 = vmatpush1.msra.mxu0 0.0
      %6556 = vmatprep.subr.mxu0 0.0
      %6557 = vmatpush1.msra.mxu0 0.0
      %6558 = vmatprep.subr.mxu0 0.0
      %6559 = vmatpush1.msra.mxu0 0.0
      %6560 = vmatprep.subr.mxu0 0.0
      %6561 = vmatpush1.msra.mxu0 0.0
      %6562 = vmatprep.subr.mxu0 0.0
      %6563 = vmatpush1.msra.mxu0 0.0
      %6564 = vmatprep.subr.mxu0 0.0
      %6565 = vmatpush1.msra.mxu0 0.0
      %6566 = vmatprep.subr.mxu0 0.0
      %6567 = vmatpush1.msra.mxu0 0.0
      %6568 = vmatprep.subr.mxu0 0.0
      %6569 = vmatpush1.msra.mxu0 0.0
      %6570 = vmatprep.subr.mxu0 0.0
      %6571 = vmatpush1.msra.mxu0 0.0
      %6572 = vmatprep.mubr.f32.mxu0 0.0
      %6573 = vmatmul.mubr.f32.gmra.mrb[0].mxu0 %v6485
      %v6574 = vpop.f32.mrb[0].mxu0
      %v6575 = vadd.f32 %v6438, %v6574
      %v6576 = vpop.f32.mrb[0].mxu0
      %v6577 = vadd.f32 %v6440, %v6576
      %6578 = vmatprep.mubr.f32.mxu0 0.0
      %6579 = vmatmul.mubr.f32.gmra.mrb[0].mxu0 %v6488
      %v6580 = vpop.f32.mrb[0].mxu0
      %v6581 = vadd.f32 %v6444, %v6580
      %v6582 = vpop.f32.mrb[0].mxu0
      %v6583 = vadd.f32 %v6446, %v6582
      %6584 = vmatprep.mubr.f32.mxu0 0.0
      %6585 = vmatmul.mubr.f32.gmra.mrb[0].mxu0 %v6491
      %v6586 = vpop.f32.mrb[0].mxu0
      %v6587 = vadd.f32 %v6450, %v6586
      %v6588 = vpop.f32.mrb[0].mxu0
      %v6589 = vadd.f32 %v6452, %v6588
      %6590 = vmatprep.mubr.f32.mxu0 0.0
      %6591 = vmatmul.mubr.f32.gmra.mrb[0].mxu0 %v6494
      %v6592 = vpop.f32.mrb[0].mxu0
      %v6593 = vadd.f32 %v6456, %v6592
      %v6594 = vpop.f32.mrb[0].mxu0
      %v6595 = vadd.f32 %v6458, %v6594
      %6596 = vmatprep.mubr.f32.mxu0 0.0
      %6597 = vmatmul.mubr.f32.gmra.mrb[0].mxu0 %v6497
      %v6598 = vpop.f32.mrb[0].mxu0
      %v6599 = vadd.f32 %v6462, %v6598
      %v6600 = vpop.f32.mrb[0].mxu0
      %v6601 = vadd.f32 %v6464, %v6600
      %6602 = vmatprep.mubr.f32.mxu0 0.0
      %6603 = vmatmul.mubr.f32.gmra.mrb[0].mxu0 %v6500
      %v6604 = vpop.f32.mrb[0].mxu0
      %v6605 = vadd.f32 %v6468, %v6604
      %v6606 = vpop.f32.mrb[0].mxu0
      %v6607 = vadd.f32 %v6470, %v6606
      %6608 = vmatprep.mubr.f32.mxu0 0.0
      %6609 = vmatmul.mubr.f32.gmra.mrb[0].mxu0 %v6503
      %v6610 = vpop.f32.mrb[0].mxu0
      %v6611 = vadd.f32 %v6474, %v6610
      %v6612 = vpop.f32.mrb[0].mxu0
      %v6613 = vadd.f32 %v6476, %v6612
      %6614 = vmatprep.mubr.f32.mxu0 0.0
      %6615 = vmatmul.mubr.f32.gmra.mrb[0].mxu0 %v6506
      %v6616 = vpop.f32.mrb[0].mxu0
      %v6617 = vadd.f32 %v6480, %v6616
      %v6618 = vpop.f32.mrb[0].mxu0
      %v6619 = vadd.f32 %v6482, %v6618
      %6620 = vdwg.mxu0
      %s6621 = scalar_lea.vmem %s13, 128
      %v6622 = vld [vmem:[%s6621] sm:$0xff]
      %v6623 = vld [vmem:[%s6621 + $0x8] sm:$0xff]
      %v6624 = vld [vmem:[%s6621 + $0x10] sm:$0xff]
      %v6625 = vld [vmem:[%s6621 + $0x18] sm:$0xff]
      %v6626 = vld [vmem:[%s6621 + $0x20] sm:$0xff]
      %v6627 = vld [vmem:[%s6621 + $0x28] sm:$0xff]
      %v6628 = vld [vmem:[%s6621 + $0x30] sm:$0xff]
      %v6629 = vld [vmem:[%s6621 + $0x38] sm:$0xff]
      %6638 = vrot.lane.b32.xlu0 %v6145, 127
      %v6639 = vpop.permute.xlu0 %6638
      %6640 = vrot.lane.b32.xlu0 %v6171, 127
      %v6641 = vpop.permute.xlu0 %6640
      %6642 = vrot.lane.b32.xlu0 %v6147, 127
      %v6643 = vpop.permute.xlu0 %6642
      %6644 = vrot.lane.b32.xlu0 %v6174, 127
      %v6645 = vpop.permute.xlu0 %6644
      %6646 = vrot.lane.b32.xlu0 %v6149, 127
      %v6647 = vpop.permute.xlu0 %6646
      %6648 = vrot.lane.b32.xlu0 %v6177, 127
      %v6649 = vpop.permute.xlu0 %6648
      %6650 = vrot.lane.b32.xlu0 %v6151, 127
      %v6651 = vpop.permute.xlu0 %6650
      %6652 = vrot.lane.b32.xlu0 %v6180, 127
      %v6653 = vpop.permute.xlu0 %6652
      %6654 = vrot.lane.b32.xlu0 %v6153, 127
      %v6655 = vpop.permute.xlu0 %6654
      %6656 = vrot.lane.b32.xlu0 %v6183, 127
      %v6657 = vpop.permute.xlu0 %6656
      %6658 = vrot.lane.b32.xlu0 %v6155, 127
      %v6659 = vpop.permute.xlu0 %6658
      %6660 = vrot.lane.b32.xlu0 %v6186, 127
      %v6661 = vpop.permute.xlu0 %6660
      %6662 = vrot.lane.b32.xlu0 %v6157, 127
      %v6663 = vpop.permute.xlu0 %6662
      %6664 = vrot.lane.b32.xlu0 %v6189, 127
      %v6665 = vpop.permute.xlu0 %6664
      %6666 = vrot.lane.b32.xlu0 %v6159, 127
      %v6667 = vpop.permute.xlu0 %6666
      %6668 = vrot.lane.b32.xlu0 %v6192, 127
      %v6669 = vpop.permute.xlu0 %6668
      %v6670 = vsel %vm893, %v6639, %v6641
      %v6671 = vsel %vm893, %v6643, %v6645
      %v6672 = vsel %vm893, %v6647, %v6649
      %v6673 = vsel %vm893, %v6651, %v6653
      %v6674 = vsel %vm893, %v6655, %v6657
      %v6675 = vsel %vm893, %v6659, %v6661
      %v6676 = vsel %vm893, %v6663, %v6665
      %v6677 = vsel %vm893, %v6667, %v6669
      %v6694 = vsel %vm5854, 0.0, %v6670
      %v6695 = vsel %vm5855, 0.0, %v6641
      %v6696 = vsel %vm5854, 0.0, %v6671
      %v6697 = vsel %vm5855, 0.0, %v6645
      %v6698 = vsel %vm5854, 0.0, %v6672
      %v6699 = vsel %vm5855, 0.0, %v6649
      %v6700 = vsel %vm5854, 0.0, %v6673
      %v6701 = vsel %vm5855, 0.0, %v6653
      %v6702 = vsel %vm5854, 0.0, %v6674
      %v6703 = vsel %vm5855, 0.0, %v6657
      %v6704 = vsel %vm5854, 0.0, %v6675
      %v6705 = vsel %vm5855, 0.0, %v6661
      %v6706 = vsel %vm5854, 0.0, %v6676
      %v6707 = vsel %vm5855, 0.0, %v6665
      %v6708 = vsel %vm5854, 0.0, %v6677
      %v6709 = vsel %vm5855, 0.0, %v6669
      %v6711 = vsel %vm6346, %v6622, 0
      %v6714 = vsel %vm6346, %v6623, 0
      %v6717 = vsel %vm6346, %v6624, 0
      %v6720 = vsel %vm6346, %v6625, 0
      %v6723 = vsel %vm6346, %v6626, 0
      %v6726 = vsel %vm6346, %v6627, 0
      %v6729 = vsel %vm6346, %v6628, 0
      %v6732 = vsel %vm6346, %v6629, 0
      %6734 = vmatprep.subr.mxu0 %v6695
      %6735 = vmatpush1.msra.mxu0 %v6694
      %6736 = vmatprep.subr.mxu0 %v6697
      %6737 = vmatpush1.msra.mxu0 %v6696
      %6738 = vmatprep.subr.mxu0 %v6699
      %6739 = vmatpush1.msra.mxu0 %v6698
      %6740 = vmatprep.subr.mxu0 %v6701
      %6741 = vmatpush1.msra.mxu0 %v6700
      %6742 = vmatprep.subr.mxu0 %v6703
      %6743 = vmatpush1.msra.mxu0 %v6702
      %6744 = vmatprep.subr.mxu0 %v6705
      %6745 = vmatpush1.msra.mxu0 %v6704
      %6746 = vmatprep.subr.mxu0 %v6707
      %6747 = vmatpush1.msra.mxu0 %v6706
      %6748 = vmatprep.subr.mxu0 %v6709
      %6749 = vmatpush1.msra.mxu0 %v6708
      %6750 = vmatprep.subr.mxu0 0.0
      %6751 = vmatpush1.msra.mxu0 0.0
      %6752 = vmatprep.subr.mxu0 0.0
      %6753 = vmatpush1.msra.mxu0 0.0
      %6754 = vmatprep.subr.mxu0 0.0
      %6755 = vmatpush1.msra.mxu0 0.0
      %6756 = vmatprep.subr.mxu0 0.0
      %6757 = vmatpush1.msra.mxu0 0.0
      %6758 = vmatprep.subr.mxu0 0.0
      %6759 = vmatpush1.msra.mxu0 0.0
      %6760 = vmatprep.subr.mxu0 0.0
      %6761 = vmatpush1.msra.mxu0 0.0
      %6762 = vmatprep.subr.mxu0 0.0
      %6763 = vmatpush1.msra.mxu0 0.0
      %6764 = vmatprep.subr.mxu0 0.0
      %6765 = vmatpush1.msra.mxu0 0.0
      %6766 = vmatprep.subr.mxu0 0.0
      %6767 = vmatpush1.msra.mxu0 0.0
      %6768 = vmatprep.subr.mxu0 0.0
      %6769 = vmatpush1.msra.mxu0 0.0
      %6770 = vmatprep.subr.mxu0 0.0
      %6771 = vmatpush1.msra.mxu0 0.0
      %6772 = vmatprep.subr.mxu0 0.0
      %6773 = vmatpush1.msra.mxu0 0.0
      %6774 = vmatprep.subr.mxu0 0.0
      %6775 = vmatpush1.msra.mxu0 0.0
      %6776 = vmatprep.subr.mxu0 0.0
      %6777 = vmatpush1.msra.mxu0 0.0
      %6778 = vmatprep.subr.mxu0 0.0
      %6779 = vmatpush1.msra.mxu0 0.0
      %6780 = vmatprep.subr.mxu0 0.0
      %6781 = vmatpush1.msra.mxu0 0.0
      %6782 = vmatprep.subr.mxu0 0.0
      %6783 = vmatpush1.msra.mxu0 0.0
      %6784 = vmatprep.subr.mxu0 0.0
      %6785 = vmatpush1.msra.mxu0 0.0
      %6786 = vmatprep.subr.mxu0 0.0
      %6787 = vmatpush1.msra.mxu0 0.0
      %6788 = vmatprep.subr.mxu0 0.0
      %6789 = vmatpush1.msra.mxu0 0.0
      %6790 = vmatprep.subr.mxu0 0.0
      %6791 = vmatpush1.msra.mxu0 0.0
      %6792 = vmatprep.subr.mxu0 0.0
      %6793 = vmatpush1.msra.mxu0 0.0
      %6794 = vmatprep.subr.mxu0 0.0
      %6795 = vmatpush1.msra.mxu0 0.0
      %6796 = vmatprep.subr.mxu0 0.0
      %6797 = vmatpush1.msra.mxu0 0.0
      %6798 = vmatprep.mubr.f32.mxu0 0.0
      %6799 = vmatmul.mubr.f32.gmra.mrb[0].mxu0 %v6711
      %v6800 = vpop.f32.mrb[0].mxu0
      %v6801 = vadd.f32 0.0, %v6800
      %v6802 = vpop.f32.mrb[0].mxu0
      %v6803 = vadd.f32 0.0, %v6802
      %6804 = vmatprep.mubr.f32.mxu0 0.0
      %6805 = vmatmul.mubr.f32.gmra.mrb[0].mxu0 %v6714
      %v6806 = vpop.f32.mrb[0].mxu0
      %v6807 = vadd.f32 0.0, %v6806
      %v6808 = vpop.f32.mrb[0].mxu0
      %v6809 = vadd.f32 0.0, %v6808
      %6810 = vmatprep.mubr.f32.mxu0 0.0
      %6811 = vmatmul.mubr.f32.gmra.mrb[0].mxu0 %v6717
      %v6812 = vpop.f32.mrb[0].mxu0
      %v6813 = vadd.f32 0.0, %v6812
      %v6814 = vpop.f32.mrb[0].mxu0
      %v6815 = vadd.f32 0.0, %v6814
      %6816 = vmatprep.mubr.f32.mxu0 0.0
      %6817 = vmatmul.mubr.f32.gmra.mrb[0].mxu0 %v6720
      %v6818 = vpop.f32.mrb[0].mxu0
      %v6819 = vadd.f32 0.0, %v6818
      %v6820 = vpop.f32.mrb[0].mxu0
      %v6821 = vadd.f32 0.0, %v6820
      %6822 = vmatprep.mubr.f32.mxu0 0.0
      %6823 = vmatmul.mubr.f32.gmra.mrb[0].mxu0 %v6723
      %v6824 = vpop.f32.mrb[0].mxu0
      %v6825 = vadd.f32 0.0, %v6824
      %v6826 = vpop.f32.mrb[0].mxu0
      %v6827 = vadd.f32 0.0, %v6826
      %6828 = vmatprep.mubr.f32.mxu0 0.0
      %6829 = vmatmul.mubr.f32.gmra.mrb[0].mxu0 %v6726
      %v6830 = vpop.f32.mrb[0].mxu0
      %v6831 = vadd.f32 0.0, %v6830
      %v6832 = vpop.f32.mrb[0].mxu0
      %v6833 = vadd.f32 0.0, %v6832
      %6834 = vmatprep.mubr.f32.mxu0 0.0
      %6835 = vmatmul.mubr.f32.gmra.mrb[0].mxu0 %v6729
      %v6836 = vpop.f32.mrb[0].mxu0
      %v6837 = vadd.f32 0.0, %v6836
      %v6838 = vpop.f32.mrb[0].mxu0
      %v6839 = vadd.f32 0.0, %v6838
      %6840 = vmatprep.mubr.f32.mxu0 0.0
      %6841 = vmatmul.mubr.f32.gmra.mrb[0].mxu0 %v6732
      %v6842 = vpop.f32.mrb[0].mxu0
      %v6843 = vadd.f32 0.0, %v6842
      %v6844 = vpop.f32.mrb[0].mxu0
      %v6845 = vadd.f32 0.0, %v6844
      %6846 = vdwg.mxu0
      %v6847 = vadd.f32 %v6575, %v6801
      %v6848 = vadd.f32 %v6577, %v6803
      %v6849 = vadd.f32 %v6581, %v6807
      %v6850 = vadd.f32 %v6583, %v6809
      %v6851 = vadd.f32 %v6587, %v6813
      %v6852 = vadd.f32 %v6589, %v6815
      %v6853 = vadd.f32 %v6593, %v6819
      %v6854 = vadd.f32 %v6595, %v6821
      %v6855 = vadd.f32 %v6599, %v6825
      %v6856 = vadd.f32 %v6601, %v6827
      %v6857 = vadd.f32 %v6605, %v6831
      %v6858 = vadd.f32 %v6607, %v6833
      %v6859 = vadd.f32 %v6611, %v6837
      %v6860 = vadd.f32 %v6613, %v6839
      %v6861 = vadd.f32 %v6617, %v6843
      %v6862 = vadd.f32 %v6619, %v6845
      %v6863 = vld [vmem:[%s15] sm:$0xff]
      %v6864 = vld [vmem:[%s15 + $0x8] sm:$0xff]
      %v6865 = vld [vmem:[%s15 + $0x10] sm:$0xff]
      %v6866 = vld [vmem:[%s15 + $0x18] sm:$0xff]
      %v6867 = vld [vmem:[%s15 + $0x20] sm:$0xff]
      %v6868 = vld [vmem:[%s15 + $0x28] sm:$0xff]
      %v6869 = vld [vmem:[%s15 + $0x30] sm:$0xff]
      %v6870 = vld [vmem:[%s15 + $0x38] sm:$0xff]
      %v6871 = vld [vmem:[%s15 + $0x40] sm:$0xff]
      %v6872 = vld [vmem:[%s15 + $0x48] sm:$0xff]
      %v6873 = vld [vmem:[%s15 + $0x50] sm:$0xff]
      %v6874 = vld [vmem:[%s15 + $0x58] sm:$0xff]
      %v6875 = vld [vmem:[%s15 + $0x60] sm:$0xff]
      %v6876 = vld [vmem:[%s15 + $0x68] sm:$0xff]
      %v6877 = vld [vmem:[%s15 + $0x70] sm:$0xff]
      %v6878 = vld [vmem:[%s15 + $0x78] sm:$0xff]
      %v6879 = vld [vmem:[%s15 + $0x80] sm:$0xff]
      %v6880 = vld [vmem:[%s15 + $0x88] sm:$0xff]
      %v6881 = vld [vmem:[%s15 + $0x90] sm:$0xff]
      %v6882 = vld [vmem:[%s15 + $0x98] sm:$0xff]
      %v6883 = vld [vmem:[%s15 + $0xa0] sm:$0xff]
      %v6884 = vld [vmem:[%s15 + $0xa8] sm:$0xff]
      %v6885 = vld [vmem:[%s15 + $0xb0] sm:$0xff]
      %v6886 = vld [vmem:[%s15 + $0xb8] sm:$0xff]
      %v6887 = vld [vmem:[%s15 + $0xc0] sm:$0xff]
      %v6888 = vld [vmem:[%s15 + $0xc8] sm:$0xff]
      %v6889 = vld [vmem:[%s15 + $0xd0] sm:$0xff]
      %v6890 = vld [vmem:[%s15 + $0xd8] sm:$0xff]
      %v6891 = vld [vmem:[%s15 + $0xe0] sm:$0xff]
      %v6892 = vld [vmem:[%s15 + $0xe8] sm:$0xff]
      %v6893 = vld [vmem:[%s15 + $0xf0] sm:$0xff]
      %v6894 = vld [vmem:[%s15 + $0xf8] sm:$0x3]
      %v6895 = vld [vmem:[%s14] sm:$0xff]
      %v6896 = vld [vmem:[%s14 + $0x8] sm:$0xff]
      %v6897 = vld [vmem:[%s14 + $0x10] sm:$0xff]
      %v6898 = vld [vmem:[%s14 + $0x18] sm:$0xff]
      %v6899 = vld [vmem:[%s14 + $0x20] sm:$0xff]
      %v6900 = vld [vmem:[%s14 + $0x28] sm:$0xff]
      %v6901 = vld [vmem:[%s14 + $0x30] sm:$0xff]
      %v6902 = vld [vmem:[%s14 + $0x38] sm:$0xff]
      %6904 = vset.pattern.permute.xlu0 0
      %6905 = vperm.xlu0 %6904, %v6895
      %v6906 = vpop.permute.xlu0 %6905
      %6909 = vset.pattern.permute.xlu0 0
      %6910 = vperm.xlu0 %6909, %v6896
      %v6911 = vpop.permute.xlu0 %6910
      %6914 = vset.pattern.permute.xlu0 0
      %6915 = vperm.xlu0 %6914, %v6897
      %v6916 = vpop.permute.xlu0 %6915
      %6919 = vset.pattern.permute.xlu0 0
      %6920 = vperm.xlu0 %6919, %v6898
      %v6921 = vpop.permute.xlu0 %6920
      %6924 = vset.pattern.permute.xlu0 0
      %6925 = vperm.xlu0 %6924, %v6899
      %v6926 = vpop.permute.xlu0 %6925
      %6929 = vset.pattern.permute.xlu0 0
      %6930 = vperm.xlu0 %6929, %v6900
      %v6931 = vpop.permute.xlu0 %6930
      %6934 = vset.pattern.permute.xlu0 0
      %6935 = vperm.xlu0 %6934, %v6901
      %v6936 = vpop.permute.xlu0 %6935
      %6939 = vset.pattern.permute.xlu0 0
      %6940 = vperm.xlu0 %6939, %v6902
      %v6941 = vpop.permute.xlu0 %6940
      %vm6943 = vcmask 998400
      %v6945 = vsel %vm6943, %v6848, 0
      %v6948 = vsel %vm6943, %v6850, 0
      %v6951 = vsel %vm6943, %v6852, 0
      %v6954 = vsel %vm6943, %v6854, 0
      %v6957 = vsel %vm6943, %v6856, 0
      %v6960 = vsel %vm6943, %v6858, 0
      %v6963 = vsel %vm6943, %v6860, 0
      %v6966 = vsel %vm6943, %v6862, 0
      %vm6968 = vcmask 1041408
      %v6970 = vsel %vm6968, %v6894, 0
      %6972 = vmatprep.subr.mxu0 0.0
      %6973 = vmatpush1.msra.mxu0 %v6863
      %6974 = vmatprep.subr.mxu0 0.0
      %6975 = vmatpush1.msra.mxu0 %v6864
      %6976 = vmatprep.subr.mxu0 0.0
      %6977 = vmatpush1.msra.mxu0 %v6865
      %6978 = vmatprep.subr.mxu0 0.0
      %6979 = vmatpush1.msra.mxu0 %v6866
      %6980 = vmatprep.subr.mxu0 0.0
      %6981 = vmatpush1.msra.mxu0 %v6867
      %6982 = vmatprep.subr.mxu0 0.0
      %6983 = vmatpush1.msra.mxu0 %v6868
      %6984 = vmatprep.subr.mxu0 0.0
      %6985 = vmatpush1.msra.mxu0 %v6869
      %6986 = vmatprep.subr.mxu0 0.0
      %6987 = vmatpush1.msra.mxu0 %v6870
      %6988 = vmatprep.subr.mxu0 0.0
      %6989 = vmatpush1.msra.mxu0 %v6871
      %6990 = vmatprep.subr.mxu0 0.0
      %6991 = vmatpush1.msra.mxu0 %v6872
      %6992 = vmatprep.subr.mxu0 0.0
      %6993 = vmatpush1.msra.mxu0 %v6873
      %6994 = vmatprep.subr.mxu0 0.0
      %6995 = vmatpush1.msra.mxu0 %v6874
      %6996 = vmatprep.subr.mxu0 0.0
      %6997 = vmatpush1.msra.mxu0 %v6875
      %6998 = vmatprep.subr.mxu0 0.0
      %6999 = vmatpush1.msra.mxu0 %v6876
      %7000 = vmatprep.subr.mxu0 0.0
      %7001 = vmatpush1.msra.mxu0 %v6877
      %7002 = vmatprep.subr.mxu0 0.0
      %7003 = vmatpush1.msra.mxu0 %v6878
      %7004 = vmatprep.subr.mxu0 0.0
      %7005 = vmatpush1.msra.mxu0 %v6879
      %7006 = vmatprep.subr.mxu0 0.0
      %7007 = vmatpush1.msra.mxu0 %v6880
      %7008 = vmatprep.subr.mxu0 0.0
      %7009 = vmatpush1.msra.mxu0 %v6881
      %7010 = vmatprep.subr.mxu0 0.0
      %7011 = vmatpush1.msra.mxu0 %v6882
      %7012 = vmatprep.subr.mxu0 0.0
      %7013 = vmatpush1.msra.mxu0 %v6883
      %7014 = vmatprep.subr.mxu0 0.0
      %7015 = vmatpush1.msra.mxu0 %v6884
      %7016 = vmatprep.subr.mxu0 0.0
      %7017 = vmatpush1.msra.mxu0 %v6885
      %7018 = vmatprep.subr.mxu0 0.0
      %7019 = vmatpush1.msra.mxu0 %v6886
      %7020 = vmatprep.subr.mxu0 0.0
      %7021 = vmatpush1.msra.mxu0 %v6887
      %7022 = vmatprep.subr.mxu0 0.0
      %7023 = vmatpush1.msra.mxu0 %v6888
      %7024 = vmatprep.subr.mxu0 0.0
      %7025 = vmatpush1.msra.mxu0 %v6889
      %7026 = vmatprep.subr.mxu0 0.0
      %7027 = vmatpush1.msra.mxu0 %v6890
      %7028 = vmatprep.subr.mxu0 0.0
      %7029 = vmatpush1.msra.mxu0 %v6891
      %7030 = vmatprep.subr.mxu0 0.0
      %7031 = vmatpush1.msra.mxu0 %v6892
      %7032 = vmatprep.subr.mxu0 0.0
      %7033 = vmatpush1.msra.mxu0 %v6893
      %7034 = vmatprep.subr.mxu0 0.0
      %7035 = vmatpush1.msra.mxu0 %v6970
      %7036 = vmatprep.mubr.f32.mxu0 %v6945
      %7037 = vmatmul.mubr.f32.gmra.mrb[0].mxu0 %v6847
      %v7038 = vpop.f32.mrb[0].mxu0
      %v7039 = vadd.f32 %v6906, %v7038
      %v7040 = vpop.f32.mrb[0].mxu0
      %7041 = vmatprep.mubr.f32.mxu0 %v6948
      %7042 = vmatmul.mubr.f32.gmra.mrb[0].mxu0 %v6849
      %v7043 = vpop.f32.mrb[0].mxu0
      %v7044 = vadd.f32 %v6911, %v7043
      %v7045 = vpop.f32.mrb[0].mxu0
      %7046 = vmatprep.mubr.f32.mxu0 %v6951
      %7047 = vmatmul.mubr.f32.gmra.mrb[0].mxu0 %v6851
      %v7048 = vpop.f32.mrb[0].mxu0
      %v7049 = vadd.f32 %v6916, %v7048
      %v7050 = vpop.f32.mrb[0].mxu0
      %7051 = vmatprep.mubr.f32.mxu0 %v6954
      %7052 = vmatmul.mubr.f32.gmra.mrb[0].mxu0 %v6853
      %v7053 = vpop.f32.mrb[0].mxu0
      %v7054 = vadd.f32 %v6921, %v7053
      %v7055 = vpop.f32.mrb[0].mxu0
      %7056 = vmatprep.mubr.f32.mxu0 %v6957
      %7057 = vmatmul.mubr.f32.gmra.mrb[0].mxu0 %v6855
      %v7058 = vpop.f32.mrb[0].mxu0
      %v7059 = vadd.f32 %v6926, %v7058
      %v7060 = vpop.f32.mrb[0].mxu0
      %7061 = vmatprep.mubr.f32.mxu0 %v6960
      %7062 = vmatmul.mubr.f32.gmra.mrb[0].mxu0 %v6857
      %v7063 = vpop.f32.mrb[0].mxu0
      %v7064 = vadd.f32 %v6931, %v7063
      %v7065 = vpop.f32.mrb[0].mxu0
      %7066 = vmatprep.mubr.f32.mxu0 %v6963
      %7067 = vmatmul.mubr.f32.gmra.mrb[0].mxu0 %v6859
      %v7068 = vpop.f32.mrb[0].mxu0
      %v7069 = vadd.f32 %v6936, %v7068
      %v7070 = vpop.f32.mrb[0].mxu0
      %7071 = vmatprep.mubr.f32.mxu0 %v6966
      %7072 = vmatmul.mubr.f32.gmra.mrb[0].mxu0 %v6861
      %v7073 = vpop.f32.mrb[0].mxu0
      %v7074 = vadd.f32 %v6941, %v7073
      %v7075 = vpop.f32.mrb[0].mxu0
      %7076 = vdwg.mxu0
      %vm7077 = vcmp.ge.f32.partialorder %v7039, 0.0
      %vm7078 = vcmp.ge.f32.partialorder %v7044, 0.0
      %vm7079 = vcmp.ge.f32.partialorder %v7049, 0.0
      %vm7080 = vcmp.ge.f32.partialorder %v7054, 0.0
      %vm7081 = vcmp.ge.f32.partialorder %v7059, 0.0
      %vm7082 = vcmp.ge.f32.partialorder %v7064, 0.0
      %vm7083 = vcmp.ge.f32.partialorder %v7069, 0.0
      %vm7084 = vcmp.ge.f32.partialorder %v7074, 0.0
      %v7085 = vmul.f32 %v7039, 0.01
      %v7086 = vmul.f32 %v7044, 0.01
      %v7087 = vmul.f32 %v7049, 0.01
      %v7088 = vmul.f32 %v7054, 0.01
      %v7089 = vmul.f32 %v7059, 0.01
      %v7090 = vmul.f32 %v7064, 0.01
      %v7091 = vmul.f32 %v7069, 0.01
      %v7092 = vmul.f32 %v7074, 0.01
      %v7093 = vsel %vm7077, %v7039, %v7085
      %v7094 = vsel %vm7078, %v7044, %v7086
      %v7095 = vsel %vm7079, %v7049, %v7087
      %v7096 = vsel %vm7080, %v7054, %v7088
      %v7097 = vsel %vm7081, %v7059, %v7089
      %v7098 = vsel %vm7082, %v7064, %v7090
      %v7099 = vsel %vm7083, %v7069, %v7091
      %v7100 = vsel %vm7084, %v7074, %v7092
      %v7101 = vld [vmem:[%s16] sm:$0xff]
      %v7102 = vld [vmem:[%s17] sm:$0xff]
      %7104 = vset.pattern.permute.xlu0 0
      %7105 = vperm.xlu0 %7104, %v7102
      %v7106 = vpop.permute.xlu0 %7105
      %v7109 = vsel %vm6346, %v7101, 0
      %7111 = vmatprep.subr.mxu0 0.0
      %7112 = vmatpush1.msra.mxu0 %v7093
      %7113 = vmatprep.subr.mxu0 0.0
      %7114 = vmatpush1.msra.mxu0 %v7094
      %7115 = vmatprep.subr.mxu0 0.0
      %7116 = vmatpush1.msra.mxu0 %v7095
      %7117 = vmatprep.subr.mxu0 0.0
      %7118 = vmatpush1.msra.mxu0 %v7096
      %7119 = vmatprep.subr.mxu0 0.0
      %7120 = vmatpush1.msra.mxu0 %v7097
      %7121 = vmatprep.subr.mxu0 0.0
      %7122 = vmatpush1.msra.mxu0 %v7098
      %7123 = vmatprep.subr.mxu0 0.0
      %7124 = vmatpush1.msra.mxu0 %v7099
      %7125 = vmatprep.subr.mxu0 0.0
      %7126 = vmatpush1.msra.mxu0 %v7100
      %7127 = vmatprep.subr.mxu0 0.0
      %7128 = vmatpush1.msra.mxu0 0.0
      %7129 = vmatprep.subr.mxu0 0.0
      %7130 = vmatpush1.msra.mxu0 0.0
      %7131 = vmatprep.subr.mxu0 0.0
      %7132 = vmatpush1.msra.mxu0 0.0
      %7133 = vmatprep.subr.mxu0 0.0
      %7134 = vmatpush1.msra.mxu0 0.0
      %7135 = vmatprep.subr.mxu0 0.0
      %7136 = vmatpush1.msra.mxu0 0.0
      %7137 = vmatprep.subr.mxu0 0.0
      %7138 = vmatpush1.msra.mxu0 0.0
      %7139 = vmatprep.subr.mxu0 0.0
      %7140 = vmatpush1.msra.mxu0 0.0
      %7141 = vmatprep.subr.mxu0 0.0
      %7142 = vmatpush1.msra.mxu0 0.0
      %7143 = vmatprep.subr.mxu0 0.0
      %7144 = vmatpush1.msra.mxu0 0.0
      %7145 = vmatprep.subr.mxu0 0.0
      %7146 = vmatpush1.msra.mxu0 0.0
      %7147 = vmatprep.subr.mxu0 0.0
      %7148 = vmatpush1.msra.mxu0 0.0
      %7149 = vmatprep.subr.mxu0 0.0
      %7150 = vmatpush1.msra.mxu0 0.0
      %7151 = vmatprep.subr.mxu0 0.0
      %7152 = vmatpush1.msra.mxu0 0.0
      %7153 = vmatprep.subr.mxu0 0.0
      %7154 = vmatpush1.msra.mxu0 0.0
      %7155 = vmatprep.subr.mxu0 0.0
      %7156 = vmatpush1.msra.mxu0 0.0
      %7157 = vmatprep.subr.mxu0 0.0
      %7158 = vmatpush1.msra.mxu0 0.0
      %7159 = vmatprep.subr.mxu0 0.0
      %7160 = vmatpush1.msra.mxu0 0.0
      %7161 = vmatprep.subr.mxu0 0.0
      %7162 = vmatpush1.msra.mxu0 0.0
      %7163 = vmatprep.subr.mxu0 0.0
      %7164 = vmatpush1.msra.mxu0 0.0
      %7165 = vmatprep.subr.mxu0 0.0
      %7166 = vmatpush1.msra.mxu0 0.0
      %7167 = vmatprep.subr.mxu0 0.0
      %7168 = vmatpush1.msra.mxu0 0.0
      %7169 = vmatprep.subr.mxu0 0.0
      %7170 = vmatpush1.msra.mxu0 0.0
      %7171 = vmatprep.subr.mxu0 0.0
      %7172 = vmatpush1.msra.mxu0 0.0
      %7173 = vmatprep.subr.mxu0 0.0
      %7174 = vmatpush1.msra.mxu0 0.0
      %7175 = vmatprep.mubr.f32.mxu0 0.0
      %7176 = vmatmul.mubr.f32.gmra.mrb[0].mxu0 %v7109
      %v7177 = vpop.f32.mrb[0].mxu0
      %v7178 = vadd.f32 %v7106, %v7177
      %v7179 = vpop.f32.mrb[0].mxu0
      %7180 = vdwg.mxu0
      %vm7181 = vcmp.ge.f32.partialorder %v7178, 0.0
      %v7182 = vmul.f32 %v7178, 0.01
      %v7183 = vsel %vm7181, %v7178, %v7182
      %v7184 = vld [vmem:[%s19] sm:$0xff]
      %v7185 = vld [vmem:[%s18] sm:$0xff]
      %v7186 = vld [vmem:[%s18 + $0x8] sm:$0xff]
      %v7187 = vld [vmem:[%s18 + $0x10] sm:$0xff]
      %v7188 = vld [vmem:[%s18 + $0x18] sm:$0xff]
      %v7189 = vld [vmem:[%s18 + $0x20] sm:$0xff]
      %v7190 = vld [vmem:[%s18 + $0x28] sm:$0xff]
      %v7191 = vld [vmem:[%s18 + $0x30] sm:$0xff]
      %v7192 = vld [vmem:[%s18 + $0x38] sm:$0xff]
      %v7193 = vld [vmem:[%s18 + $0x40] sm:$0xff]
      %v7194 = vld [vmem:[%s18 + $0x48] sm:$0xff]
      %v7195 = vld [vmem:[%s18 + $0x50] sm:$0xff]
      %v7196 = vld [vmem:[%s18 + $0x58] sm:$0xff]
      %v7197 = vld [vmem:[%s18 + $0x60] sm:$0xff]
      %v7198 = vld [vmem:[%s18 + $0x68] sm:$0xff]
      %v7199 = vld [vmem:[%s18 + $0x70] sm:$0xff]
      %v7200 = vld [vmem:[%s18 + $0x78] sm:$0xff]
      %v7201 = vld [vmem:[%s18 + $0x80] sm:$0xff]
      %v7202 = vld [vmem:[%s18 + $0x88] sm:$0xff]
      %v7203 = vld [vmem:[%s18 + $0x90] sm:$0xff]
      %v7204 = vld [vmem:[%s18 + $0x98] sm:$0xff]
      %v7205 = vld [vmem:[%s18 + $0xa0] sm:$0xff]
      %v7206 = vld [vmem:[%s18 + $0xa8] sm:$0xff]
      %v7207 = vld [vmem:[%s18 + $0xb0] sm:$0xff]
      %v7208 = vld [vmem:[%s18 + $0xb8] sm:$0xff]
      %v7209 = vld [vmem:[%s18 + $0xc0] sm:$0xff]
      %v7210 = vld [vmem:[%s18 + $0xc8] sm:$0xff]
      %v7211 = vld [vmem:[%s18 + $0xd0] sm:$0xff]
      %v7212 = vld [vmem:[%s18 + $0xd8] sm:$0xff]
      %v7213 = vld [vmem:[%s18 + $0xe0] sm:$0xff]
      %v7214 = vld [vmem:[%s18 + $0xe8] sm:$0xff]
      %v7215 = vld [vmem:[%s18 + $0xf0] sm:$0xff]
      %v7216 = vld [vmem:[%s18 + $0xf8] sm:$0xff]
      %v7217 = vld [vmem:[%s18 + $0x100] sm:$0xff]
      %v7218 = vld [vmem:[%s18 + $0x108] sm:$0xff]
      %v7219 = vld [vmem:[%s18 + $0x110] sm:$0xff]
      %v7220 = vld [vmem:[%s18 + $0x118] sm:$0xff]
      %v7221 = vld [vmem:[%s18 + $0x120] sm:$0xff]
      %v7222 = vld [vmem:[%s18 + $0x128] sm:$0xff]
      %v7223 = vld [vmem:[%s18 + $0x130] sm:$0xff]
      %v7224 = vld [vmem:[%s18 + $0x138] sm:$0xff]
      %v7225 = vld [vmem:[%s18 + $0x140] sm:$0xff]
      %v7226 = vld [vmem:[%s18 + $0x148] sm:$0xff]
      %v7227 = vld [vmem:[%s18 + $0x150] sm:$0xff]
      %v7228 = vld [vmem:[%s18 + $0x158] sm:$0xff]
      %v7229 = vld [vmem:[%s18 + $0x160] sm:$0xff]
      %v7230 = vld [vmem:[%s18 + $0x168] sm:$0xff]
      %v7231 = vld [vmem:[%s18 + $0x170] sm:$0xff]
      %v7232 = vld [vmem:[%s18 + $0x178] sm:$0xff]
      %v7233 = vld [vmem:[%s18 + $0x180] sm:$0xff]
      %v7234 = vld [vmem:[%s18 + $0x188] sm:$0xff]
      %v7235 = vld [vmem:[%s18 + $0x190] sm:$0xff]
      %v7236 = vld [vmem:[%s18 + $0x198] sm:$0xff]
      %v7237 = vld [vmem:[%s18 + $0x1a0] sm:$0xff]
      %v7238 = vld [vmem:[%s18 + $0x1a8] sm:$0xff]
      %v7239 = vld [vmem:[%s18 + $0x1b0] sm:$0xff]
      %v7240 = vld [vmem:[%s18 + $0x1b8] sm:$0xff]
      %v7241 = vld [vmem:[%s18 + $0x1c0] sm:$0xff]
      %v7242 = vld [vmem:[%s18 + $0x1c8] sm:$0xff]
      %v7243 = vld [vmem:[%s18 + $0x1d0] sm:$0xff]
      %v7244 = vld [vmem:[%s18 + $0x1d8] sm:$0xff]
      %v7245 = vld [vmem:[%s18 + $0x1e0] sm:$0xff]
      %v7246 = vld [vmem:[%s18 + $0x1e8] sm:$0xff]
      %v7247 = vld [vmem:[%s18 + $0x1f0] sm:$0xff]
      %v7248 = vld [vmem:[%s18 + $0x1f8] sm:$0xff]
      %v7249 = vld [vmem:[%s18 + $0x200] sm:$0xff]
      %v7250 = vld [vmem:[%s18 + $0x208] sm:$0xff]
      %v7251 = vld [vmem:[%s18 + $0x210] sm:$0xff]
      %v7252 = vld [vmem:[%s18 + $0x218] sm:$0xff]
      %v7253 = vld [vmem:[%s18 + $0x220] sm:$0xff]
      %v7254 = vld [vmem:[%s18 + $0x228] sm:$0xff]
      %v7255 = vld [vmem:[%s18 + $0x230] sm:$0xff]
      %v7256 = vld [vmem:[%s18 + $0x238] sm:$0xff]
      %v7257 = vld [vmem:[%s18 + $0x240] sm:$0xff]
      %v7258 = vld [vmem:[%s18 + $0x248] sm:$0xff]
      %v7259 = vld [vmem:[%s18 + $0x250] sm:$0xff]
      %v7260 = vld [vmem:[%s18 + $0x258] sm:$0xff]
      %v7261 = vld [vmem:[%s18 + $0x260] sm:$0xff]
      %v7262 = vld [vmem:[%s18 + $0x268] sm:$0xff]
      %v7263 = vld [vmem:[%s18 + $0x270] sm:$0xff]
      %v7264 = vld [vmem:[%s18 + $0x278] sm:$0xff]
      %v7265 = vld [vmem:[%s18 + $0x280] sm:$0xff]
      %v7266 = vld [vmem:[%s18 + $0x288] sm:$0xff]
      %v7267 = vld [vmem:[%s18 + $0x290] sm:$0xff]
      %v7268 = vld [vmem:[%s18 + $0x298] sm:$0xff]
      %v7269 = vld [vmem:[%s18 + $0x2a0] sm:$0xff]
      %v7270 = vld [vmem:[%s18 + $0x2a8] sm:$0xff]
      %v7271 = vld [vmem:[%s18 + $0x2b0] sm:$0xff]
      %v7272 = vld [vmem:[%s18 + $0x2b8] sm:$0xff]
      %v7273 = vld [vmem:[%s18 + $0x2c0] sm:$0xff]
      %v7274 = vld [vmem:[%s18 + $0x2c8] sm:$0xff]
      %v7275 = vld [vmem:[%s18 + $0x2d0] sm:$0xff]
      %v7276 = vld [vmem:[%s18 + $0x2d8] sm:$0xff]
      %v7277 = vld [vmem:[%s18 + $0x2e0] sm:$0xff]
      %v7278 = vld [vmem:[%s18 + $0x2e8] sm:$0xff]
      %v7279 = vld [vmem:[%s18 + $0x2f0] sm:$0xff]
      %v7280 = vld [vmem:[%s18 + $0x2f8] sm:$0xff]
      %v7281 = vld [vmem:[%s18 + $0x300] sm:$0xff]
      %v7282 = vld [vmem:[%s18 + $0x308] sm:$0xff]
      %v7283 = vld [vmem:[%s18 + $0x310] sm:$0xff]
      %v7284 = vld [vmem:[%s18 + $0x318] sm:$0xff]
      %v7285 = vld [vmem:[%s18 + $0x320] sm:$0xff]
      %v7286 = vld [vmem:[%s18 + $0x328] sm:$0xff]
      %v7287 = vld [vmem:[%s18 + $0x330] sm:$0xff]
      %v7288 = vld [vmem:[%s18 + $0x338] sm:$0xff]
      %v7289 = vld [vmem:[%s18 + $0x340] sm:$0xff]
      %v7290 = vld [vmem:[%s18 + $0x348] sm:$0xff]
      %v7291 = vld [vmem:[%s18 + $0x350] sm:$0xff]
      %v7292 = vld [vmem:[%s18 + $0x358] sm:$0xff]
      %v7293 = vld [vmem:[%s18 + $0x360] sm:$0xff]
      %v7294 = vld [vmem:[%s18 + $0x368] sm:$0xff]
      %v7295 = vld [vmem:[%s18 + $0x370] sm:$0xff]
      %v7296 = vld [vmem:[%s18 + $0x378] sm:$0xff]
      %v7297 = vld [vmem:[%s18 + $0x380] sm:$0xff]
      %v7298 = vld [vmem:[%s18 + $0x388] sm:$0xff]
      %v7299 = vld [vmem:[%s18 + $0x390] sm:$0xff]
      %v7300 = vld [vmem:[%s18 + $0x398] sm:$0xff]
      %v7301 = vld [vmem:[%s18 + $0x3a0] sm:$0xff]
      %v7302 = vld [vmem:[%s18 + $0x3a8] sm:$0xff]
      %v7303 = vld [vmem:[%s18 + $0x3b0] sm:$0xff]
      %v7304 = vld [vmem:[%s18 + $0x3b8] sm:$0xff]
      %v7305 = vld [vmem:[%s18 + $0x3c0] sm:$0x1f]
      %v7306 = vld [vmem:[%s18 + $0x3c8] sm:$0x1f]
      %v7307 = vld [vmem:[%s18 + $0x3d0] sm:$0x1f]
      %v7308 = vld [vmem:[%s18 + $0x3d8] sm:$0x1f]
      %v7309 = vld [vmem:[%s18 + $0x3e0] sm:$0x1f]
      %v7310 = vld [vmem:[%s18 + $0x3e8] sm:$0x1f]
      %v7311 = vld [vmem:[%s18 + $0x3f0] sm:$0x1f]
      %v7312 = vld [vmem:[%s18 + $0x3f8] sm:$0x1f]
      %vm7313 = vcmask 1022976
      %v7315 = vsel %vm7313, %v7183, 0
      %vm7317 = vcmask 1044480
      %v7319 = vsel %vm7317, %v7305, 0
      %v7322 = vsel %vm7317, %v7306, 0
      %v7325 = vsel %vm7317, %v7307, 0
      %v7328 = vsel %vm7317, %v7308, 0
      %v7331 = vsel %vm7317, %v7309, 0
      %v7334 = vsel %vm7317, %v7310, 0
      %v7337 = vsel %vm7317, %v7311, 0
      %v7340 = vsel %vm7317, %v7312, 0
      %7342 = vmatprep.subr.mxu0 %v7186
      %7343 = vmatpush1.msra.mxu0 %v7185
      %7344 = vmatprep.subr.mxu0 %v7194
      %7345 = vmatpush1.msra.mxu0 %v7193
      %7346 = vmatprep.subr.mxu0 %v7202
      %7347 = vmatpush1.msra.mxu0 %v7201
      %7348 = vmatprep.subr.mxu0 %v7210
      %7349 = vmatpush1.msra.mxu0 %v7209
      %7350 = vmatprep.subr.mxu0 %v7218
      %7351 = vmatpush1.msra.mxu0 %v7217
      %7352 = vmatprep.subr.mxu0 %v7226
      %7353 = vmatpush1.msra.mxu0 %v7225
      %7354 = vmatprep.subr.mxu0 %v7234
      %7355 = vmatpush1.msra.mxu0 %v7233
      %7356 = vmatprep.subr.mxu0 %v7242
      %7357 = vmatpush1.msra.mxu0 %v7241
      %7358 = vmatprep.subr.mxu0 %v7250
      %7359 = vmatpush1.msra.mxu0 %v7249
      %7360 = vmatprep.subr.mxu0 %v7258
      %7361 = vmatpush1.msra.mxu0 %v7257
      %7362 = vmatprep.subr.mxu0 %v7266
      %7363 = vmatpush1.msra.mxu0 %v7265
      %7364 = vmatprep.subr.mxu0 %v7274
      %7365 = vmatpush1.msra.mxu0 %v7273
      %7366 = vmatprep.subr.mxu0 %v7282
      %7367 = vmatpush1.msra.mxu0 %v7281
      %7368 = vmatprep.subr.mxu0 %v7290
      %7369 = vmatpush1.msra.mxu0 %v7289
      %7370 = vmatprep.subr.mxu0 %v7298
      %7371 = vmatpush1.msra.mxu0 %v7297
      %7372 = vmatprep.subr.mxu0 %v7322
      %7373 = vmatpush1.msra.mxu0 %v7319
      %7374 = vmatprep.subr.mxu0 0.0
      %7375 = vmatpush1.msra.mxu0 0.0
      %7376 = vmatprep.subr.mxu0 0.0
      %7377 = vmatpush1.msra.mxu0 0.0
      %7378 = vmatprep.subr.mxu0 0.0
      %7379 = vmatpush1.msra.mxu0 0.0
      %7380 = vmatprep.subr.mxu0 0.0
      %7381 = vmatpush1.msra.mxu0 0.0
      %7382 = vmatprep.subr.mxu0 0.0
      %7383 = vmatpush1.msra.mxu0 0.0
      %7384 = vmatprep.subr.mxu0 0.0
      %7385 = vmatpush1.msra.mxu0 0.0
      %7386 = vmatprep.subr.mxu0 0.0
      %7387 = vmatpush1.msra.mxu0 0.0
      %7388 = vmatprep.subr.mxu0 0.0
      %7389 = vmatpush1.msra.mxu0 0.0
      %7390 = vmatprep.subr.mxu0 0.0
      %7391 = vmatpush1.msra.mxu0 0.0
      %7392 = vmatprep.subr.mxu0 0.0
      %7393 = vmatpush1.msra.mxu0 0.0
      %7394 = vmatprep.subr.mxu0 0.0
      %7395 = vmatpush1.msra.mxu0 0.0
      %7396 = vmatprep.subr.mxu0 0.0
      %7397 = vmatpush1.msra.mxu0 0.0
      %7398 = vmatprep.subr.mxu0 0.0
      %7399 = vmatpush1.msra.mxu0 0.0
      %7400 = vmatprep.subr.mxu0 0.0
      %7401 = vmatpush1.msra.mxu0 0.0
      %7402 = vmatprep.subr.mxu0 0.0
      %7403 = vmatpush1.msra.mxu0 0.0
      %7404 = vmatprep.subr.mxu0 0.0
      %7405 = vmatpush1.msra.mxu0 0.0
      %7406 = vmatprep.mubr.f32.mxu0 0.0
      %7407 = vmatmul.mubr.f32.gmra.mrb[0].mxu0 %v7315
      %v7408 = vpop.f32.mrb[0].mxu0
      %v7409 = vadd.f32 0.0, %v7408
      %v7410 = vpop.f32.mrb[0].mxu0
      %v7411 = vadd.f32 0.0, %v7410
      %7412 = vdwg.mxu0
      %7413 = vmatprep.subr.mxu0 %v7188
      %7414 = vmatpush1.msra.mxu0 %v7187
      %7415 = vmatprep.subr.mxu0 %v7196
      %7416 = vmatpush1.msra.mxu0 %v7195
      %7417 = vmatprep.subr.mxu0 %v7204
      %7418 = vmatpush1.msra.mxu0 %v7203
      %7419 = vmatprep.subr.mxu0 %v7212
      %7420 = vmatpush1.msra.mxu0 %v7211
      %7421 = vmatprep.subr.mxu0 %v7220
      %7422 = vmatpush1.msra.mxu0 %v7219
      %7423 = vmatprep.subr.mxu0 %v7228
      %7424 = vmatpush1.msra.mxu0 %v7227
      %7425 = vmatprep.subr.mxu0 %v7236
      %7426 = vmatpush1.msra.mxu0 %v7235
      %7427 = vmatprep.subr.mxu0 %v7244
      %7428 = vmatpush1.msra.mxu0 %v7243
      %7429 = vmatprep.subr.mxu0 %v7252
      %7430 = vmatpush1.msra.mxu0 %v7251
      %7431 = vmatprep.subr.mxu0 %v7260
      %7432 = vmatpush1.msra.mxu0 %v7259
      %7433 = vmatprep.subr.mxu0 %v7268
      %7434 = vmatpush1.msra.mxu0 %v7267
      %7435 = vmatprep.subr.mxu0 %v7276
      %7436 = vmatpush1.msra.mxu0 %v7275
      %7437 = vmatprep.subr.mxu0 %v7284
      %7438 = vmatpush1.msra.mxu0 %v7283
      %7439 = vmatprep.subr.mxu0 %v7292
      %7440 = vmatpush1.msra.mxu0 %v7291
      %7441 = vmatprep.subr.mxu0 %v7300
      %7442 = vmatpush1.msra.mxu0 %v7299
      %7443 = vmatprep.subr.mxu0 %v7328
      %7444 = vmatpush1.msra.mxu0 %v7325
      %7445 = vmatprep.subr.mxu0 0.0
      %7446 = vmatpush1.msra.mxu0 0.0
      %7447 = vmatprep.subr.mxu0 0.0
      %7448 = vmatpush1.msra.mxu0 0.0
      %7449 = vmatprep.subr.mxu0 0.0
      %7450 = vmatpush1.msra.mxu0 0.0
      %7451 = vmatprep.subr.mxu0 0.0
      %7452 = vmatpush1.msra.mxu0 0.0
      %7453 = vmatprep.subr.mxu0 0.0
      %7454 = vmatpush1.msra.mxu0 0.0
      %7455 = vmatprep.subr.mxu0 0.0
      %7456 = vmatpush1.msra.mxu0 0.0
      %7457 = vmatprep.subr.mxu0 0.0
      %7458 = vmatpush1.msra.mxu0 0.0
      %7459 = vmatprep.subr.mxu0 0.0
      %7460 = vmatpush1.msra.mxu0 0.0
      %7461 = vmatprep.subr.mxu0 0.0
      %7462 = vmatpush1.msra.mxu0 0.0
      %7463 = vmatprep.subr.mxu0 0.0
      %7464 = vmatpush1.msra.mxu0 0.0
      %7465 = vmatprep.subr.mxu0 0.0
      %7466 = vmatpush1.msra.mxu0 0.0
      %7467 = vmatprep.subr.mxu0 0.0
      %7468 = vmatpush1.msra.mxu0 0.0
      %7469 = vmatprep.subr.mxu0 0.0
      %7470 = vmatpush1.msra.mxu0 0.0
      %7471 = vmatprep.subr.mxu0 0.0
      %7472 = vmatpush1.msra.mxu0 0.0
      %7473 = vmatprep.subr.mxu0 0.0
      %7474 = vmatpush1.msra.mxu0 0.0
      %7475 = vmatprep.subr.mxu0 0.0
      %7476 = vmatpush1.msra.mxu0 0.0
      %7477 = vmatprep.mubr.f32.mxu0 0.0
      %7478 = vmatmul.mubr.f32.gmra.mrb[0].mxu0 %v7315
      %v7479 = vpop.f32.mrb[0].mxu0
      %v7480 = vadd.f32 0.0, %v7479
      %v7481 = vpop.f32.mrb[0].mxu0
      %v7482 = vadd.f32 0.0, %v7481
      %7483 = vdwg.mxu0
      %7484 = vmatprep.subr.mxu0 %v7190
      %7485 = vmatpush1.msra.mxu0 %v7189
      %7486 = vmatprep.subr.mxu0 %v7198
      %7487 = vmatpush1.msra.mxu0 %v7197
      %7488 = vmatprep.subr.mxu0 %v7206
      %7489 = vmatpush1.msra.mxu0 %v7205
      %7490 = vmatprep.subr.mxu0 %v7214
      %7491 = vmatpush1.msra.mxu0 %v7213
      %7492 = vmatprep.subr.mxu0 %v7222
      %7493 = vmatpush1.msra.mxu0 %v7221
      %7494 = vmatprep.subr.mxu0 %v7230
      %7495 = vmatpush1.msra.mxu0 %v7229
      %7496 = vmatprep.subr.mxu0 %v7238
      %7497 = vmatpush1.msra.mxu0 %v7237
      %7498 = vmatprep.subr.mxu0 %v7246
      %7499 = vmatpush1.msra.mxu0 %v7245
      %7500 = vmatprep.subr.mxu0 %v7254
      %7501 = vmatpush1.msra.mxu0 %v7253
      %7502 = vmatprep.subr.mxu0 %v7262
      %7503 = vmatpush1.msra.mxu0 %v7261
      %7504 = vmatprep.subr.mxu0 %v7270
      %7505 = vmatpush1.msra.mxu0 %v7269
      %7506 = vmatprep.subr.mxu0 %v7278
      %7507 = vmatpush1.msra.mxu0 %v7277
      %7508 = vmatprep.subr.mxu0 %v7286
      %7509 = vmatpush1.msra.mxu0 %v7285
      %7510 = vmatprep.subr.mxu0 %v7294
      %7511 = vmatpush1.msra.mxu0 %v7293
      %7512 = vmatprep.subr.mxu0 %v7302
      %7513 = vmatpush1.msra.mxu0 %v7301
      %7514 = vmatprep.subr.mxu0 %v7334
      %7515 = vmatpush1.msra.mxu0 %v7331
      %7516 = vmatprep.subr.mxu0 0.0
      %7517 = vmatpush1.msra.mxu0 0.0
      %7518 = vmatprep.subr.mxu0 0.0
      %7519 = vmatpush1.msra.mxu0 0.0
      %7520 = vmatprep.subr.mxu0 0.0
      %7521 = vmatpush1.msra.mxu0 0.0
      %7522 = vmatprep.subr.mxu0 0.0
      %7523 = vmatpush1.msra.mxu0 0.0
      %7524 = vmatprep.subr.mxu0 0.0
      %7525 = vmatpush1.msra.mxu0 0.0
      %7526 = vmatprep.subr.mxu0 0.0
      %7527 = vmatpush1.msra.mxu0 0.0
      %7528 = vmatprep.subr.mxu0 0.0
      %7529 = vmatpush1.msra.mxu0 0.0
      %7530 = vmatprep.subr.mxu0 0.0
      %7531 = vmatpush1.msra.mxu0 0.0
      %7532 = vmatprep.subr.mxu0 0.0
      %7533 = vmatpush1.msra.mxu0 0.0
      %7534 = vmatprep.subr.mxu0 0.0
      %7535 = vmatpush1.msra.mxu0 0.0
      %7536 = vmatprep.subr.mxu0 0.0
      %7537 = vmatpush1.msra.mxu0 0.0
      %7538 = vmatprep.subr.mxu0 0.0
      %7539 = vmatpush1.msra.mxu0 0.0
      %7540 = vmatprep.subr.mxu0 0.0
      %7541 = vmatpush1.msra.mxu0 0.0
      %7542 = vmatprep.subr.mxu0 0.0
      %7543 = vmatpush1.msra.mxu0 0.0
      %7544 = vmatprep.subr.mxu0 0.0
      %7545 = vmatpush1.msra.mxu0 0.0
      %7546 = vmatprep.subr.mxu0 0.0
      %7547 = vmatpush1.msra.mxu0 0.0
      %7548 = vmatprep.mubr.f32.mxu0 0.0
      %7549 = vmatmul.mubr.f32.gmra.mrb[0].mxu0 %v7315
      %v7550 = vpop.f32.mrb[0].mxu0
      %v7551 = vadd.f32 0.0, %v7550
      %v7552 = vpop.f32.mrb[0].mxu0
      %v7553 = vadd.f32 0.0, %v7552
      %7554 = vdwg.mxu0
      %7555 = vmatprep.subr.mxu0 %v7192
      %7556 = vmatpush1.msra.mxu0 %v7191
      %7557 = vmatprep.subr.mxu0 %v7200
      %7558 = vmatpush1.msra.mxu0 %v7199
      %7559 = vmatprep.subr.mxu0 %v7208
      %7560 = vmatpush1.msra.mxu0 %v7207
      %7561 = vmatprep.subr.mxu0 %v7216
      %7562 = vmatpush1.msra.mxu0 %v7215
      %7563 = vmatprep.subr.mxu0 %v7224
      %7564 = vmatpush1.msra.mxu0 %v7223
      %7565 = vmatprep.subr.mxu0 %v7232
      %7566 = vmatpush1.msra.mxu0 %v7231
      %7567 = vmatprep.subr.mxu0 %v7240
      %7568 = vmatpush1.msra.mxu0 %v7239
      %7569 = vmatprep.subr.mxu0 %v7248
      %7570 = vmatpush1.msra.mxu0 %v7247
      %7571 = vmatprep.subr.mxu0 %v7256
      %7572 = vmatpush1.msra.mxu0 %v7255
      %7573 = vmatprep.subr.mxu0 %v7264
      %7574 = vmatpush1.msra.mxu0 %v7263
      %7575 = vmatprep.subr.mxu0 %v7272
      %7576 = vmatpush1.msra.mxu0 %v7271
      %7577 = vmatprep.subr.mxu0 %v7280
      %7578 = vmatpush1.msra.mxu0 %v7279
      %7579 = vmatprep.subr.mxu0 %v7288
      %7580 = vmatpush1.msra.mxu0 %v7287
      %7581 = vmatprep.subr.mxu0 %v7296
      %7582 = vmatpush1.msra.mxu0 %v7295
      %7583 = vmatprep.subr.mxu0 %v7304
      %7584 = vmatpush1.msra.mxu0 %v7303
      %7585 = vmatprep.subr.mxu0 %v7340
      %7586 = vmatpush1.msra.mxu0 %v7337
      %7587 = vmatprep.subr.mxu0 0.0
      %7588 = vmatpush1.msra.mxu0 0.0
      %7589 = vmatprep.subr.mxu0 0.0
      %7590 = vmatpush1.msra.mxu0 0.0
      %7591 = vmatprep.subr.mxu0 0.0
      %7592 = vmatpush1.msra.mxu0 0.0
      %7593 = vmatprep.subr.mxu0 0.0
      %7594 = vmatpush1.msra.mxu0 0.0
      %7595 = vmatprep.subr.mxu0 0.0
      %7596 = vmatpush1.msra.mxu0 0.0
      %7597 = vmatprep.subr.mxu0 0.0
      %7598 = vmatpush1.msra.mxu0 0.0
      %7599 = vmatprep.subr.mxu0 0.0
      %7600 = vmatpush1.msra.mxu0 0.0
      %7601 = vmatprep.subr.mxu0 0.0
      %7602 = vmatpush1.msra.mxu0 0.0
      %7603 = vmatprep.subr.mxu0 0.0
      %7604 = vmatpush1.msra.mxu0 0.0
      %7605 = vmatprep.subr.mxu0 0.0
      %7606 = vmatpush1.msra.mxu0 0.0
      %7607 = vmatprep.subr.mxu0 0.0
      %7608 = vmatpush1.msra.mxu0 0.0
      %7609 = vmatprep.subr.mxu0 0.0
      %7610 = vmatpush1.msra.mxu0 0.0
      %7611 = vmatprep.subr.mxu0 0.0
      %7612 = vmatpush1.msra.mxu0 0.0
      %7613 = vmatprep.subr.mxu0 0.0
      %7614 = vmatpush1.msra.mxu0 0.0
      %7615 = vmatprep.subr.mxu0 0.0
      %7616 = vmatpush1.msra.mxu0 0.0
      %7617 = vmatprep.subr.mxu0 0.0
      %7618 = vmatpush1.msra.mxu0 0.0
      %7619 = vmatprep.mubr.f32.mxu0 0.0
      %7620 = vmatmul.mubr.f32.gmra.mrb[0].mxu0 %v7315
      %v7621 = vpop.f32.mrb[0].mxu0
      %v7622 = vadd.f32 0.0, %v7621
      %v7623 = vpop.f32.mrb[0].mxu0
      %v7624 = vadd.f32 0.0, %v7623
      %7625 = vdwg.mxu0
      %v7634 = vcombine.low %v7409, %v7411
      %v7635 = vcombine.low %v7480, %v7482
      %v7636 = vcombine.low %v7551, %v7553
      %v7637 = vcombine.low %v7622, %v7624
      %v7639 = vunpack.c.l.s4 1966171168
      %v7640 = vunpack.c.0.s8 %v7639
      %v7641 = vlaneseq
      %v7642 = vshrl.u32 %v7641, 7
      %v7643 = vsub.s32 %v7640, %v7642
      %v7644 = vrot.slane %v7634, %v7643
      %v7646 = vunpack.c.l.s4 1966171168
      %v7647 = vunpack.c.0.s8 %v7646
      %v7648 = vlaneseq
      %v7649 = vshrl.u32 %v7648, 7
      %v7650 = vsub.s32 %v7647, %v7649
      %v7651 = vrot.slane %v7635, %v7650
      %v7653 = vunpack.c.l.s4 1966171168
      %v7654 = vunpack.c.0.s8 %v7653
      %v7655 = vlaneseq
      %v7656 = vshrl.u32 %v7655, 7
      %v7657 = vsub.s32 %v7654, %v7656
      %v7658 = vrot.slane %v7636, %v7657
      %v7660 = vunpack.c.l.s4 1966171168
      %v7661 = vunpack.c.0.s8 %v7660
      %v7662 = vlaneseq
      %v7663 = vshrl.u32 %v7662, 7
      %v7664 = vsub.s32 %v7661, %v7663
      %v7665 = vrot.slane %v7637, %v7664
      %v7666 = vcombine.low %v7644, %v7651
      %v7667 = vcombine.low %v7658, %v7665
      %v7669 = vunpack.c.l.s4 1966171168
      %v7670 = vunpack.c.0.s8 %v7669
      %v7671 = vlaneseq
      %v7672 = vshrl.u32 %v7671, 7
      %v7673 = vsub.s32 %v7670, %v7672
      %v7674 = vrot.slane %v7666, %v7673
      %v7676 = vunpack.c.l.s4 1966171168
      %v7677 = vunpack.c.0.s8 %v7676
      %v7678 = vlaneseq
      %v7679 = vshrl.u32 %v7678, 7
      %v7680 = vsub.s32 %v7677, %v7679
      %v7681 = vrot.slane %v7667, %v7680
      %v7682 = vcombine.low %v7674, %v7681
      %v7684 = vadd.f32 %v7184, %v7682
      %s7685 = scalar_lea.vmem %s18, 1024
      %v7686 = vld [vmem:[%s7685] sm:$0xff]
      %v7687 = vld [vmem:[%s7685 + $0x8] sm:$0xff]
      %v7688 = vld [vmem:[%s7685 + $0x10] sm:$0xff]
      %v7689 = vld [vmem:[%s7685 + $0x18] sm:$0xff]
      %v7690 = vld [vmem:[%s7685 + $0x20] sm:$0xff]
      %v7691 = vld [vmem:[%s7685 + $0x28] sm:$0xff]
      %v7692 = vld [vmem:[%s7685 + $0x30] sm:$0xff]
      %v7693 = vld [vmem:[%s7685 + $0x38] sm:$0xff]
      %v7694 = vld [vmem:[%s7685 + $0x40] sm:$0xff]
      %v7695 = vld [vmem:[%s7685 + $0x48] sm:$0xff]
      %v7696 = vld [vmem:[%s7685 + $0x50] sm:$0xff]
      %v7697 = vld [vmem:[%s7685 + $0x58] sm:$0xff]
      %v7698 = vld [vmem:[%s7685 + $0x60] sm:$0xff]
      %v7699 = vld [vmem:[%s7685 + $0x68] sm:$0xff]
      %v7700 = vld [vmem:[%s7685 + $0x70] sm:$0xff]
      %v7701 = vld [vmem:[%s7685 + $0x78] sm:$0xff]
      %v7702 = vld [vmem:[%s7685 + $0x80] sm:$0xff]
      %v7703 = vld [vmem:[%s7685 + $0x88] sm:$0xff]
      %v7704 = vld [vmem:[%s7685 + $0x90] sm:$0xff]
      %v7705 = vld [vmem:[%s7685 + $0x98] sm:$0xff]
      %v7706 = vld [vmem:[%s7685 + $0xa0] sm:$0xff]
      %v7707 = vld [vmem:[%s7685 + $0xa8] sm:$0xff]
      %v7708 = vld [vmem:[%s7685 + $0xb0] sm:$0xff]
      %v7709 = vld [vmem:[%s7685 + $0xb8] sm:$0xff]
      %v7710 = vld [vmem:[%s7685 + $0xc0] sm:$0xff]
      %v7711 = vld [vmem:[%s7685 + $0xc8] sm:$0xff]
      %v7712 = vld [vmem:[%s7685 + $0xd0] sm:$0xff]
      %v7713 = vld [vmem:[%s7685 + $0xd8] sm:$0xff]
      %v7714 = vld [vmem:[%s7685 + $0xe0] sm:$0xff]
      %v7715 = vld [vmem:[%s7685 + $0xe8] sm:$0xff]
      %v7716 = vld [vmem:[%s7685 + $0xf0] sm:$0xff]
      %v7717 = vld [vmem:[%s7685 + $0xf8] sm:$0xff]
      %v7718 = vld [vmem:[%s7685 + $0x100] sm:$0xff]
      %v7719 = vld [vmem:[%s7685 + $0x108] sm:$0xff]
      %v7720 = vld [vmem:[%s7685 + $0x110] sm:$0xff]
      %v7721 = vld [vmem:[%s7685 + $0x118] sm:$0xff]
      %v7722 = vld [vmem:[%s7685 + $0x120] sm:$0xff]
      %v7723 = vld [vmem:[%s7685 + $0x128] sm:$0xff]
      %v7724 = vld [vmem:[%s7685 + $0x130] sm:$0xff]
      %v7725 = vld [vmem:[%s7685 + $0x138] sm:$0xff]
      %v7726 = vld [vmem:[%s7685 + $0x140] sm:$0xff]
      %v7727 = vld [vmem:[%s7685 + $0x148] sm:$0xff]
      %v7728 = vld [vmem:[%s7685 + $0x150] sm:$0xff]
      %v7729 = vld [vmem:[%s7685 + $0x158] sm:$0xff]
      %v7730 = vld [vmem:[%s7685 + $0x160] sm:$0xff]
      %v7731 = vld [vmem:[%s7685 + $0x168] sm:$0xff]
      %v7732 = vld [vmem:[%s7685 + $0x170] sm:$0xff]
      %v7733 = vld [vmem:[%s7685 + $0x178] sm:$0xff]
      %v7734 = vld [vmem:[%s7685 + $0x180] sm:$0xff]
      %v7735 = vld [vmem:[%s7685 + $0x188] sm:$0xff]
      %v7736 = vld [vmem:[%s7685 + $0x190] sm:$0xff]
      %v7737 = vld [vmem:[%s7685 + $0x198] sm:$0xff]
      %v7738 = vld [vmem:[%s7685 + $0x1a0] sm:$0xff]
      %v7739 = vld [vmem:[%s7685 + $0x1a8] sm:$0xff]
      %v7740 = vld [vmem:[%s7685 + $0x1b0] sm:$0xff]
      %v7741 = vld [vmem:[%s7685 + $0x1b8] sm:$0xff]
      %v7742 = vld [vmem:[%s7685 + $0x1c0] sm:$0xff]
      %v7743 = vld [vmem:[%s7685 + $0x1c8] sm:$0xff]
      %v7744 = vld [vmem:[%s7685 + $0x1d0] sm:$0xff]
      %v7745 = vld [vmem:[%s7685 + $0x1d8] sm:$0xff]
      %v7746 = vld [vmem:[%s7685 + $0x1e0] sm:$0xff]
      %v7747 = vld [vmem:[%s7685 + $0x1e8] sm:$0xff]
      %v7748 = vld [vmem:[%s7685 + $0x1f0] sm:$0xff]
      %v7749 = vld [vmem:[%s7685 + $0x1f8] sm:$0xff]
      %v7750 = vld [vmem:[%s7685 + $0x200] sm:$0xff]
      %v7751 = vld [vmem:[%s7685 + $0x208] sm:$0xff]
      %v7752 = vld [vmem:[%s7685 + $0x210] sm:$0xff]
      %v7753 = vld [vmem:[%s7685 + $0x218] sm:$0xff]
      %v7754 = vld [vmem:[%s7685 + $0x220] sm:$0xff]
      %v7755 = vld [vmem:[%s7685 + $0x228] sm:$0xff]
      %v7756 = vld [vmem:[%s7685 + $0x230] sm:$0xff]
      %v7757 = vld [vmem:[%s7685 + $0x238] sm:$0xff]
      %v7758 = vld [vmem:[%s7685 + $0x240] sm:$0xff]
      %v7759 = vld [vmem:[%s7685 + $0x248] sm:$0xff]
      %v7760 = vld [vmem:[%s7685 + $0x250] sm:$0xff]
      %v7761 = vld [vmem:[%s7685 + $0x258] sm:$0xff]
      %v7762 = vld [vmem:[%s7685 + $0x260] sm:$0xff]
      %v7763 = vld [vmem:[%s7685 + $0x268] sm:$0xff]
      %v7764 = vld [vmem:[%s7685 + $0x270] sm:$0xff]
      %v7765 = vld [vmem:[%s7685 + $0x278] sm:$0xff]
      %v7766 = vld [vmem:[%s7685 + $0x280] sm:$0xff]
      %v7767 = vld [vmem:[%s7685 + $0x288] sm:$0xff]
      %v7768 = vld [vmem:[%s7685 + $0x290] sm:$0xff]
      %v7769 = vld [vmem:[%s7685 + $0x298] sm:$0xff]
      %v7770 = vld [vmem:[%s7685 + $0x2a0] sm:$0xff]
      %v7771 = vld [vmem:[%s7685 + $0x2a8] sm:$0xff]
      %v7772 = vld [vmem:[%s7685 + $0x2b0] sm:$0xff]
      %v7773 = vld [vmem:[%s7685 + $0x2b8] sm:$0xff]
      %v7774 = vld [vmem:[%s7685 + $0x2c0] sm:$0xff]
      %v7775 = vld [vmem:[%s7685 + $0x2c8] sm:$0xff]
      %v7776 = vld [vmem:[%s7685 + $0x2d0] sm:$0xff]
      %v7777 = vld [vmem:[%s7685 + $0x2d8] sm:$0xff]
      %v7778 = vld [vmem:[%s7685 + $0x2e0] sm:$0xff]
      %v7779 = vld [vmem:[%s7685 + $0x2e8] sm:$0xff]
      %v7780 = vld [vmem:[%s7685 + $0x2f0] sm:$0xff]
      %v7781 = vld [vmem:[%s7685 + $0x2f8] sm:$0xff]
      %v7782 = vld [vmem:[%s7685 + $0x300] sm:$0xff]
      %v7783 = vld [vmem:[%s7685 + $0x308] sm:$0xff]
      %v7784 = vld [vmem:[%s7685 + $0x310] sm:$0xff]
      %v7785 = vld [vmem:[%s7685 + $0x318] sm:$0xff]
      %v7786 = vld [vmem:[%s7685 + $0x320] sm:$0xff]
      %v7787 = vld [vmem:[%s7685 + $0x328] sm:$0xff]
      %v7788 = vld [vmem:[%s7685 + $0x330] sm:$0xff]
      %v7789 = vld [vmem:[%s7685 + $0x338] sm:$0xff]
      %v7790 = vld [vmem:[%s7685 + $0x340] sm:$0xff]
      %v7791 = vld [vmem:[%s7685 + $0x348] sm:$0xff]
      %v7792 = vld [vmem:[%s7685 + $0x350] sm:$0xff]
      %v7793 = vld [vmem:[%s7685 + $0x358] sm:$0xff]
      %v7794 = vld [vmem:[%s7685 + $0x360] sm:$0xff]
      %v7795 = vld [vmem:[%s7685 + $0x368] sm:$0xff]
      %v7796 = vld [vmem:[%s7685 + $0x370] sm:$0xff]
      %v7797 = vld [vmem:[%s7685 + $0x378] sm:$0xff]
      %v7798 = vld [vmem:[%s7685 + $0x380] sm:$0xff]
      %v7799 = vld [vmem:[%s7685 + $0x388] sm:$0xff]
      %v7800 = vld [vmem:[%s7685 + $0x390] sm:$0xff]
      %v7801 = vld [vmem:[%s7685 + $0x398] sm:$0xff]
      %v7802 = vld [vmem:[%s7685 + $0x3a0] sm:$0xff]
      %v7803 = vld [vmem:[%s7685 + $0x3a8] sm:$0xff]
      %v7804 = vld [vmem:[%s7685 + $0x3b0] sm:$0xff]
      %v7805 = vld [vmem:[%s7685 + $0x3b8] sm:$0xff]
      %v7806 = vld [vmem:[%s7685 + $0x3c0] sm:$0x1f]
      %v7807 = vld [vmem:[%s7685 + $0x3c8] sm:$0x1f]
      %v7808 = vld [vmem:[%s7685 + $0x3d0] sm:$0x1f]
      %v7809 = vld [vmem:[%s7685 + $0x3d8] sm:$0x1f]
      %v7810 = vld [vmem:[%s7685 + $0x3e0] sm:$0x1f]
      %v7811 = vld [vmem:[%s7685 + $0x3e8] sm:$0x1f]
      %v7812 = vld [vmem:[%s7685 + $0x3f0] sm:$0x1f]
      %v7813 = vld [vmem:[%s7685 + $0x3f8] sm:$0x1f]
      %v7814 = vrot.slane %v7183, 1
      %v7815 = vsel %vm7313, %v7814, 0
      %v7818 = vsel %vm7317, %v7806, 0
      %v7821 = vsel %vm7317, %v7807, 0
      %v7824 = vsel %vm7317, %v7808, 0
      %v7827 = vsel %vm7317, %v7809, 0
      %v7830 = vsel %vm7317, %v7810, 0
      %v7833 = vsel %vm7317, %v7811, 0
      %v7836 = vsel %vm7317, %v7812, 0
      %v7839 = vsel %vm7317, %v7813, 0
      %7841 = vmatprep.subr.mxu0 %v7687
      %7842 = vmatpush1.msra.mxu0 %v7686
      %7843 = vmatprep.subr.mxu0 %v7695
      %7844 = vmatpush1.msra.mxu0 %v7694
      %7845 = vmatprep.subr.mxu0 %v7703
      %7846 = vmatpush1.msra.mxu0 %v7702
      %7847 = vmatprep.subr.mxu0 %v7711
      %7848 = vmatpush1.msra.mxu0 %v7710
      %7849 = vmatprep.subr.mxu0 %v7719
      %7850 = vmatpush1.msra.mxu0 %v7718
      %7851 = vmatprep.subr.mxu0 %v7727
      %7852 = vmatpush1.msra.mxu0 %v7726
      %7853 = vmatprep.subr.mxu0 %v7735
      %7854 = vmatpush1.msra.mxu0 %v7734
      %7855 = vmatprep.subr.mxu0 %v7743
      %7856 = vmatpush1.msra.mxu0 %v7742
      %7857 = vmatprep.subr.mxu0 %v7751
      %7858 = vmatpush1.msra.mxu0 %v7750
      %7859 = vmatprep.subr.mxu0 %v7759
      %7860 = vmatpush1.msra.mxu0 %v7758
      %7861 = vmatprep.subr.mxu0 %v7767
      %7862 = vmatpush1.msra.mxu0 %v7766
      %7863 = vmatprep.subr.mxu0 %v7775
      %7864 = vmatpush1.msra.mxu0 %v7774
      %7865 = vmatprep.subr.mxu0 %v7783
      %7866 = vmatpush1.msra.mxu0 %v7782
      %7867 = vmatprep.subr.mxu0 %v7791
      %7868 = vmatpush1.msra.mxu0 %v7790
      %7869 = vmatprep.subr.mxu0 %v7799
      %7870 = vmatpush1.msra.mxu0 %v7798
      %7871 = vmatprep.subr.mxu0 %v7821
      %7872 = vmatpush1.msra.mxu0 %v7818
      %7873 = vmatprep.subr.mxu0 0.0
      %7874 = vmatpush1.msra.mxu0 0.0
      %7875 = vmatprep.subr.mxu0 0.0
      %7876 = vmatpush1.msra.mxu0 0.0
      %7877 = vmatprep.subr.mxu0 0.0
      %7878 = vmatpush1.msra.mxu0 0.0
      %7879 = vmatprep.subr.mxu0 0.0
      %7880 = vmatpush1.msra.mxu0 0.0
      %7881 = vmatprep.subr.mxu0 0.0
      %7882 = vmatpush1.msra.mxu0 0.0
      %7883 = vmatprep.subr.mxu0 0.0
      %7884 = vmatpush1.msra.mxu0 0.0
      %7885 = vmatprep.subr.mxu0 0.0
      %7886 = vmatpush1.msra.mxu0 0.0
      %7887 = vmatprep.subr.mxu0 0.0
      %7888 = vmatpush1.msra.mxu0 0.0
      %7889 = vmatprep.subr.mxu0 0.0
      %7890 = vmatpush1.msra.mxu0 0.0
      %7891 = vmatprep.subr.mxu0 0.0
      %7892 = vmatpush1.msra.mxu0 0.0
      %7893 = vmatprep.subr.mxu0 0.0
      %7894 = vmatpush1.msra.mxu0 0.0
      %7895 = vmatprep.subr.mxu0 0.0
      %7896 = vmatpush1.msra.mxu0 0.0
      %7897 = vmatprep.subr.mxu0 0.0
      %7898 = vmatpush1.msra.mxu0 0.0
      %7899 = vmatprep.subr.mxu0 0.0
      %7900 = vmatpush1.msra.mxu0 0.0
      %7901 = vmatprep.subr.mxu0 0.0
      %7902 = vmatpush1.msra.mxu0 0.0
      %7903 = vmatprep.subr.mxu0 0.0
      %7904 = vmatpush1.msra.mxu0 0.0
      %7905 = vmatprep.mubr.f32.mxu0 0.0
      %7906 = vmatmul.mubr.f32.gmra.mrb[0].mxu0 %v7815
      %v7907 = vpop.f32.mrb[0].mxu0
      %v7908 = vadd.f32 0.0, %v7907
      %v7909 = vpop.f32.mrb[0].mxu0
      %v7910 = vadd.f32 0.0, %v7909
      %7911 = vdwg.mxu0
      %7912 = vmatprep.subr.mxu0 %v7689
      %7913 = vmatpush1.msra.mxu0 %v7688
      %7914 = vmatprep.subr.mxu0 %v7697
      %7915 = vmatpush1.msra.mxu0 %v7696
      %7916 = vmatprep.subr.mxu0 %v7705
      %7917 = vmatpush1.msra.mxu0 %v7704
      %7918 = vmatprep.subr.mxu0 %v7713
      %7919 = vmatpush1.msra.mxu0 %v7712
      %7920 = vmatprep.subr.mxu0 %v7721
      %7921 = vmatpush1.msra.mxu0 %v7720
      %7922 = vmatprep.subr.mxu0 %v7729
      %7923 = vmatpush1.msra.mxu0 %v7728
      %7924 = vmatprep.subr.mxu0 %v7737
      %7925 = vmatpush1.msra.mxu0 %v7736
      %7926 = vmatprep.subr.mxu0 %v7745
      %7927 = vmatpush1.msra.mxu0 %v7744
      %7928 = vmatprep.subr.mxu0 %v7753
      %7929 = vmatpush1.msra.mxu0 %v7752
      %7930 = vmatprep.subr.mxu0 %v7761
      %7931 = vmatpush1.msra.mxu0 %v7760
      %7932 = vmatprep.subr.mxu0 %v7769
      %7933 = vmatpush1.msra.mxu0 %v7768
      %7934 = vmatprep.subr.mxu0 %v7777
      %7935 = vmatpush1.msra.mxu0 %v7776
      %7936 = vmatprep.subr.mxu0 %v7785
      %7937 = vmatpush1.msra.mxu0 %v7784
      %7938 = vmatprep.subr.mxu0 %v7793
      %7939 = vmatpush1.msra.mxu0 %v7792
      %7940 = vmatprep.subr.mxu0 %v7801
      %7941 = vmatpush1.msra.mxu0 %v7800
      %7942 = vmatprep.subr.mxu0 %v7827
      %7943 = vmatpush1.msra.mxu0 %v7824
      %7944 = vmatprep.subr.mxu0 0.0
      %7945 = vmatpush1.msra.mxu0 0.0
      %7946 = vmatprep.subr.mxu0 0.0
      %7947 = vmatpush1.msra.mxu0 0.0
      %7948 = vmatprep.subr.mxu0 0.0
      %7949 = vmatpush1.msra.mxu0 0.0
      %7950 = vmatprep.subr.mxu0 0.0
      %7951 = vmatpush1.msra.mxu0 0.0
      %7952 = vmatprep.subr.mxu0 0.0
      %7953 = vmatpush1.msra.mxu0 0.0
      %7954 = vmatprep.subr.mxu0 0.0
      %7955 = vmatpush1.msra.mxu0 0.0
      %7956 = vmatprep.subr.mxu0 0.0
      %7957 = vmatpush1.msra.mxu0 0.0
      %7958 = vmatprep.subr.mxu0 0.0
      %7959 = vmatpush1.msra.mxu0 0.0
      %7960 = vmatprep.subr.mxu0 0.0
      %7961 = vmatpush1.msra.mxu0 0.0
      %7962 = vmatprep.subr.mxu0 0.0
      %7963 = vmatpush1.msra.mxu0 0.0
      %7964 = vmatprep.subr.mxu0 0.0
      %7965 = vmatpush1.msra.mxu0 0.0
      %7966 = vmatprep.subr.mxu0 0.0
      %7967 = vmatpush1.msra.mxu0 0.0
      %7968 = vmatprep.subr.mxu0 0.0
      %7969 = vmatpush1.msra.mxu0 0.0
      %7970 = vmatprep.subr.mxu0 0.0
      %7971 = vmatpush1.msra.mxu0 0.0
      %7972 = vmatprep.subr.mxu0 0.0
      %7973 = vmatpush1.msra.mxu0 0.0
      %7974 = vmatprep.subr.mxu0 0.0
      %7975 = vmatpush1.msra.mxu0 0.0
      %7976 = vmatprep.mubr.f32.mxu0 0.0
      %7977 = vmatmul.mubr.f32.gmra.mrb[0].mxu0 %v7815
      %v7978 = vpop.f32.mrb[0].mxu0
      %v7979 = vadd.f32 0.0, %v7978
      %v7980 = vpop.f32.mrb[0].mxu0
      %v7981 = vadd.f32 0.0, %v7980
      %7982 = vdwg.mxu0
      %7983 = vmatprep.subr.mxu0 %v7691
      %7984 = vmatpush1.msra.mxu0 %v7690
      %7985 = vmatprep.subr.mxu0 %v7699
      %7986 = vmatpush1.msra.mxu0 %v7698
      %7987 = vmatprep.subr.mxu0 %v7707
      %7988 = vmatpush1.msra.mxu0 %v7706
      %7989 = vmatprep.subr.mxu0 %v7715
      %7990 = vmatpush1.msra.mxu0 %v7714
      %7991 = vmatprep.subr.mxu0 %v7723
      %7992 = vmatpush1.msra.mxu0 %v7722
      %7993 = vmatprep.subr.mxu0 %v7731
      %7994 = vmatpush1.msra.mxu0 %v7730
      %7995 = vmatprep.subr.mxu0 %v7739
      %7996 = vmatpush1.msra.mxu0 %v7738
      %7997 = vmatprep.subr.mxu0 %v7747
      %7998 = vmatpush1.msra.mxu0 %v7746
      %7999 = vmatprep.subr.mxu0 %v7755
      %8000 = vmatpush1.msra.mxu0 %v7754
      %8001 = vmatprep.subr.mxu0 %v7763
      %8002 = vmatpush1.msra.mxu0 %v7762
      %8003 = vmatprep.subr.mxu0 %v7771
      %8004 = vmatpush1.msra.mxu0 %v7770
      %8005 = vmatprep.subr.mxu0 %v7779
      %8006 = vmatpush1.msra.mxu0 %v7778
      %8007 = vmatprep.subr.mxu0 %v7787
      %8008 = vmatpush1.msra.mxu0 %v7786
      %8009 = vmatprep.subr.mxu0 %v7795
      %8010 = vmatpush1.msra.mxu0 %v7794
      %8011 = vmatprep.subr.mxu0 %v7803
      %8012 = vmatpush1.msra.mxu0 %v7802
      %8013 = vmatprep.subr.mxu0 %v7833
      %8014 = vmatpush1.msra.mxu0 %v7830
      %8015 = vmatprep.subr.mxu0 0.0
      %8016 = vmatpush1.msra.mxu0 0.0
      %8017 = vmatprep.subr.mxu0 0.0
      %8018 = vmatpush1.msra.mxu0 0.0
      %8019 = vmatprep.subr.mxu0 0.0
      %8020 = vmatpush1.msra.mxu0 0.0
      %8021 = vmatprep.subr.mxu0 0.0
      %8022 = vmatpush1.msra.mxu0 0.0
      %8023 = vmatprep.subr.mxu0 0.0
      %8024 = vmatpush1.msra.mxu0 0.0
      %8025 = vmatprep.subr.mxu0 0.0
      %8026 = vmatpush1.msra.mxu0 0.0
      %8027 = vmatprep.subr.mxu0 0.0
      %8028 = vmatpush1.msra.mxu0 0.0
      %8029 = vmatprep.subr.mxu0 0.0
      %8030 = vmatpush1.msra.mxu0 0.0
      %8031 = vmatprep.subr.mxu0 0.0
      %8032 = vmatpush1.msra.mxu0 0.0
      %8033 = vmatprep.subr.mxu0 0.0
      %8034 = vmatpush1.msra.mxu0 0.0
      %8035 = vmatprep.subr.mxu0 0.0
      %8036 = vmatpush1.msra.mxu0 0.0
      %8037 = vmatprep.subr.mxu0 0.0
      %8038 = vmatpush1.msra.mxu0 0.0
      %8039 = vmatprep.subr.mxu0 0.0
      %8040 = vmatpush1.msra.mxu0 0.0
      %8041 = vmatprep.subr.mxu0 0.0
      %8042 = vmatpush1.msra.mxu0 0.0
      %8043 = vmatprep.subr.mxu0 0.0
      %8044 = vmatpush1.msra.mxu0 0.0
      %8045 = vmatprep.subr.mxu0 0.0
      %8046 = vmatpush1.msra.mxu0 0.0
      %8047 = vmatprep.mubr.f32.mxu0 0.0
      %8048 = vmatmul.mubr.f32.gmra.mrb[0].mxu0 %v7815
      %v8049 = vpop.f32.mrb[0].mxu0
      %v8050 = vadd.f32 0.0, %v8049
      %v8051 = vpop.f32.mrb[0].mxu0
      %v8052 = vadd.f32 0.0, %v8051
      %8053 = vdwg.mxu0
      %8054 = vmatprep.subr.mxu0 %v7693
      %8055 = vmatpush1.msra.mxu0 %v7692
      %8056 = vmatprep.subr.mxu0 %v7701
      %8057 = vmatpush1.msra.mxu0 %v7700
      %8058 = vmatprep.subr.mxu0 %v7709
      %8059 = vmatpush1.msra.mxu0 %v7708
      %8060 = vmatprep.subr.mxu0 %v7717
      %8061 = vmatpush1.msra.mxu0 %v7716
      %8062 = vmatprep.subr.mxu0 %v7725
      %8063 = vmatpush1.msra.mxu0 %v7724
      %8064 = vmatprep.subr.mxu0 %v7733
      %8065 = vmatpush1.msra.mxu0 %v7732
      %8066 = vmatprep.subr.mxu0 %v7741
      %8067 = vmatpush1.msra.mxu0 %v7740
      %8068 = vmatprep.subr.mxu0 %v7749
      %8069 = vmatpush1.msra.mxu0 %v7748
      %8070 = vmatprep.subr.mxu0 %v7757
      %8071 = vmatpush1.msra.mxu0 %v7756
      %8072 = vmatprep.subr.mxu0 %v7765
      %8073 = vmatpush1.msra.mxu0 %v7764
      %8074 = vmatprep.subr.mxu0 %v7773
      %8075 = vmatpush1.msra.mxu0 %v7772
      %8076 = vmatprep.subr.mxu0 %v7781
      %8077 = vmatpush1.msra.mxu0 %v7780
      %8078 = vmatprep.subr.mxu0 %v7789
      %8079 = vmatpush1.msra.mxu0 %v7788
      %8080 = vmatprep.subr.mxu0 %v7797
      %8081 = vmatpush1.msra.mxu0 %v7796
      %8082 = vmatprep.subr.mxu0 %v7805
      %8083 = vmatpush1.msra.mxu0 %v7804
      %8084 = vmatprep.subr.mxu0 %v7839
      %8085 = vmatpush1.msra.mxu0 %v7836
      %8086 = vmatprep.subr.mxu0 0.0
      %8087 = vmatpush1.msra.mxu0 0.0
      %8088 = vmatprep.subr.mxu0 0.0
      %8089 = vmatpush1.msra.mxu0 0.0
      %8090 = vmatprep.subr.mxu0 0.0
      %8091 = vmatpush1.msra.mxu0 0.0
      %8092 = vmatprep.subr.mxu0 0.0
      %8093 = vmatpush1.msra.mxu0 0.0
      %8094 = vmatprep.subr.mxu0 0.0
      %8095 = vmatpush1.msra.mxu0 0.0
      %8096 = vmatprep.subr.mxu0 0.0
      %8097 = vmatpush1.msra.mxu0 0.0
      %8098 = vmatprep.subr.mxu0 0.0
      %8099 = vmatpush1.msra.mxu0 0.0
      %8100 = vmatprep.subr.mxu0 0.0
      %8101 = vmatpush1.msra.mxu0 0.0
      %8102 = vmatprep.subr.mxu0 0.0
      %8103 = vmatpush1.msra.mxu0 0.0
      %8104 = vmatprep.subr.mxu0 0.0
      %8105 = vmatpush1.msra.mxu0 0.0
      %8106 = vmatprep.subr.mxu0 0.0
      %8107 = vmatpush1.msra.mxu0 0.0
      %8108 = vmatprep.subr.mxu0 0.0
      %8109 = vmatpush1.msra.mxu0 0.0
      %8110 = vmatprep.subr.mxu0 0.0
      %8111 = vmatpush1.msra.mxu0 0.0
      %8112 = vmatprep.subr.mxu0 0.0
      %8113 = vmatpush1.msra.mxu0 0.0
      %8114 = vmatprep.subr.mxu0 0.0
      %8115 = vmatpush1.msra.mxu0 0.0
      %8116 = vmatprep.subr.mxu0 0.0
      %8117 = vmatpush1.msra.mxu0 0.0
      %8118 = vmatprep.mubr.f32.mxu0 0.0
      %8119 = vmatmul.mubr.f32.gmra.mrb[0].mxu0 %v7815
      %v8120 = vpop.f32.mrb[0].mxu0
      %v8121 = vadd.f32 0.0, %v8120
      %v8122 = vpop.f32.mrb[0].mxu0
      %v8123 = vadd.f32 0.0, %v8122
      %8124 = vdwg.mxu0
      %v8133 = vcombine.low %v7908, %v7910
      %v8134 = vcombine.low %v7979, %v7981
      %v8135 = vcombine.low %v8050, %v8052
      %v8136 = vcombine.low %v8121, %v8123
      %v8138 = vunpack.c.l.s4 1966171168
      %v8139 = vunpack.c.0.s8 %v8138
      %v8140 = vlaneseq
      %v8141 = vshrl.u32 %v8140, 7
      %v8142 = vsub.s32 %v8139, %v8141
      %v8143 = vrot.slane %v8133, %v8142
      %v8145 = vunpack.c.l.s4 1966171168
      %v8146 = vunpack.c.0.s8 %v8145
      %v8147 = vlaneseq
      %v8148 = vshrl.u32 %v8147, 7
      %v8149 = vsub.s32 %v8146, %v8148
      %v8150 = vrot.slane %v8134, %v8149
      %v8152 = vunpack.c.l.s4 1966171168
      %v8153 = vunpack.c.0.s8 %v8152
      %v8154 = vlaneseq
      %v8155 = vshrl.u32 %v8154, 7
      %v8156 = vsub.s32 %v8153, %v8155
      %v8157 = vrot.slane %v8135, %v8156
      %v8159 = vunpack.c.l.s4 1966171168
      %v8160 = vunpack.c.0.s8 %v8159
      %v8161 = vlaneseq
      %v8162 = vshrl.u32 %v8161, 7
      %v8163 = vsub.s32 %v8160, %v8162
      %v8164 = vrot.slane %v8136, %v8163
      %v8165 = vcombine.low %v8143, %v8150
      %v8166 = vcombine.low %v8157, %v8164
      %v8168 = vunpack.c.l.s4 1966171168
      %v8169 = vunpack.c.0.s8 %v8168
      %v8170 = vlaneseq
      %v8171 = vshrl.u32 %v8170, 7
      %v8172 = vsub.s32 %v8169, %v8171
      %v8173 = vrot.slane %v8165, %v8172
      %v8175 = vunpack.c.l.s4 1966171168
      %v8176 = vunpack.c.0.s8 %v8175
      %v8177 = vlaneseq
      %v8178 = vshrl.u32 %v8177, 7
      %v8179 = vsub.s32 %v8176, %v8178
      %v8180 = vrot.slane %v8166, %v8179
      %v8181 = vcombine.low %v8173, %v8180
      %v8183 = vadd.f32 %v7684, %v8181
      %s8184 = scalar_lea.vmem %s18, 2048
      %v8185 = vld [vmem:[%s8184] sm:$0xff]
      %v8186 = vld [vmem:[%s8184 + $0x8] sm:$0xff]
      %v8187 = vld [vmem:[%s8184 + $0x10] sm:$0xff]
      %v8188 = vld [vmem:[%s8184 + $0x18] sm:$0xff]
      %v8189 = vld [vmem:[%s8184 + $0x20] sm:$0xff]
      %v8190 = vld [vmem:[%s8184 + $0x28] sm:$0xff]
      %v8191 = vld [vmem:[%s8184 + $0x30] sm:$0xff]
      %v8192 = vld [vmem:[%s8184 + $0x38] sm:$0xff]
      %v8193 = vld [vmem:[%s8184 + $0x40] sm:$0xff]
      %v8194 = vld [vmem:[%s8184 + $0x48] sm:$0xff]
      %v8195 = vld [vmem:[%s8184 + $0x50] sm:$0xff]
      %v8196 = vld [vmem:[%s8184 + $0x58] sm:$0xff]
      %v8197 = vld [vmem:[%s8184 + $0x60] sm:$0xff]
      %v8198 = vld [vmem:[%s8184 + $0x68] sm:$0xff]
      %v8199 = vld [vmem:[%s8184 + $0x70] sm:$0xff]
      %v8200 = vld [vmem:[%s8184 + $0x78] sm:$0xff]
      %v8201 = vld [vmem:[%s8184 + $0x80] sm:$0xff]
      %v8202 = vld [vmem:[%s8184 + $0x88] sm:$0xff]
      %v8203 = vld [vmem:[%s8184 + $0x90] sm:$0xff]
      %v8204 = vld [vmem:[%s8184 + $0x98] sm:$0xff]
      %v8205 = vld [vmem:[%s8184 + $0xa0] sm:$0xff]
      %v8206 = vld [vmem:[%s8184 + $0xa8] sm:$0xff]
      %v8207 = vld [vmem:[%s8184 + $0xb0] sm:$0xff]
      %v8208 = vld [vmem:[%s8184 + $0xb8] sm:$0xff]
      %v8209 = vld [vmem:[%s8184 + $0xc0] sm:$0xff]
      %v8210 = vld [vmem:[%s8184 + $0xc8] sm:$0xff]
      %v8211 = vld [vmem:[%s8184 + $0xd0] sm:$0xff]
      %v8212 = vld [vmem:[%s8184 + $0xd8] sm:$0xff]
      %v8213 = vld [vmem:[%s8184 + $0xe0] sm:$0xff]
      %v8214 = vld [vmem:[%s8184 + $0xe8] sm:$0xff]
      %v8215 = vld [vmem:[%s8184 + $0xf0] sm:$0xff]
      %v8216 = vld [vmem:[%s8184 + $0xf8] sm:$0xff]
      %v8217 = vld [vmem:[%s8184 + $0x100] sm:$0xff]
      %v8218 = vld [vmem:[%s8184 + $0x108] sm:$0xff]
      %v8219 = vld [vmem:[%s8184 + $0x110] sm:$0xff]
      %v8220 = vld [vmem:[%s8184 + $0x118] sm:$0xff]
      %v8221 = vld [vmem:[%s8184 + $0x120] sm:$0xff]
      %v8222 = vld [vmem:[%s8184 + $0x128] sm:$0xff]
      %v8223 = vld [vmem:[%s8184 + $0x130] sm:$0xff]
      %v8224 = vld [vmem:[%s8184 + $0x138] sm:$0xff]
      %v8225 = vld [vmem:[%s8184 + $0x140] sm:$0xff]
      %v8226 = vld [vmem:[%s8184 + $0x148] sm:$0xff]
      %v8227 = vld [vmem:[%s8184 + $0x150] sm:$0xff]
      %v8228 = vld [vmem:[%s8184 + $0x158] sm:$0xff]
      %v8229 = vld [vmem:[%s8184 + $0x160] sm:$0xff]
      %v8230 = vld [vmem:[%s8184 + $0x168] sm:$0xff]
      %v8231 = vld [vmem:[%s8184 + $0x170] sm:$0xff]
      %v8232 = vld [vmem:[%s8184 + $0x178] sm:$0xff]
      %v8233 = vld [vmem:[%s8184 + $0x180] sm:$0xff]
      %v8234 = vld [vmem:[%s8184 + $0x188] sm:$0xff]
      %v8235 = vld [vmem:[%s8184 + $0x190] sm:$0xff]
      %v8236 = vld [vmem:[%s8184 + $0x198] sm:$0xff]
      %v8237 = vld [vmem:[%s8184 + $0x1a0] sm:$0xff]
      %v8238 = vld [vmem:[%s8184 + $0x1a8] sm:$0xff]
      %v8239 = vld [vmem:[%s8184 + $0x1b0] sm:$0xff]
      %v8240 = vld [vmem:[%s8184 + $0x1b8] sm:$0xff]
      %v8241 = vld [vmem:[%s8184 + $0x1c0] sm:$0xff]
      %v8242 = vld [vmem:[%s8184 + $0x1c8] sm:$0xff]
      %v8243 = vld [vmem:[%s8184 + $0x1d0] sm:$0xff]
      %v8244 = vld [vmem:[%s8184 + $0x1d8] sm:$0xff]
      %v8245 = vld [vmem:[%s8184 + $0x1e0] sm:$0xff]
      %v8246 = vld [vmem:[%s8184 + $0x1e8] sm:$0xff]
      %v8247 = vld [vmem:[%s8184 + $0x1f0] sm:$0xff]
      %v8248 = vld [vmem:[%s8184 + $0x1f8] sm:$0xff]
      %v8249 = vld [vmem:[%s8184 + $0x200] sm:$0xff]
      %v8250 = vld [vmem:[%s8184 + $0x208] sm:$0xff]
      %v8251 = vld [vmem:[%s8184 + $0x210] sm:$0xff]
      %v8252 = vld [vmem:[%s8184 + $0x218] sm:$0xff]
      %v8253 = vld [vmem:[%s8184 + $0x220] sm:$0xff]
      %v8254 = vld [vmem:[%s8184 + $0x228] sm:$0xff]
      %v8255 = vld [vmem:[%s8184 + $0x230] sm:$0xff]
      %v8256 = vld [vmem:[%s8184 + $0x238] sm:$0xff]
      %v8257 = vld [vmem:[%s8184 + $0x240] sm:$0xff]
      %v8258 = vld [vmem:[%s8184 + $0x248] sm:$0xff]
      %v8259 = vld [vmem:[%s8184 + $0x250] sm:$0xff]
      %v8260 = vld [vmem:[%s8184 + $0x258] sm:$0xff]
      %v8261 = vld [vmem:[%s8184 + $0x260] sm:$0xff]
      %v8262 = vld [vmem:[%s8184 + $0x268] sm:$0xff]
      %v8263 = vld [vmem:[%s8184 + $0x270] sm:$0xff]
      %v8264 = vld [vmem:[%s8184 + $0x278] sm:$0xff]
      %v8265 = vld [vmem:[%s8184 + $0x280] sm:$0xff]
      %v8266 = vld [vmem:[%s8184 + $0x288] sm:$0xff]
      %v8267 = vld [vmem:[%s8184 + $0x290] sm:$0xff]
      %v8268 = vld [vmem:[%s8184 + $0x298] sm:$0xff]
      %v8269 = vld [vmem:[%s8184 + $0x2a0] sm:$0xff]
      %v8270 = vld [vmem:[%s8184 + $0x2a8] sm:$0xff]
      %v8271 = vld [vmem:[%s8184 + $0x2b0] sm:$0xff]
      %v8272 = vld [vmem:[%s8184 + $0x2b8] sm:$0xff]
      %v8273 = vld [vmem:[%s8184 + $0x2c0] sm:$0xff]
      %v8274 = vld [vmem:[%s8184 + $0x2c8] sm:$0xff]
      %v8275 = vld [vmem:[%s8184 + $0x2d0] sm:$0xff]
      %v8276 = vld [vmem:[%s8184 + $0x2d8] sm:$0xff]
      %v8277 = vld [vmem:[%s8184 + $0x2e0] sm:$0xff]
      %v8278 = vld [vmem:[%s8184 + $0x2e8] sm:$0xff]
      %v8279 = vld [vmem:[%s8184 + $0x2f0] sm:$0xff]
      %v8280 = vld [vmem:[%s8184 + $0x2f8] sm:$0xff]
      %v8281 = vld [vmem:[%s8184 + $0x300] sm:$0xff]
      %v8282 = vld [vmem:[%s8184 + $0x308] sm:$0xff]
      %v8283 = vld [vmem:[%s8184 + $0x310] sm:$0xff]
      %v8284 = vld [vmem:[%s8184 + $0x318] sm:$0xff]
      %v8285 = vld [vmem:[%s8184 + $0x320] sm:$0xff]
      %v8286 = vld [vmem:[%s8184 + $0x328] sm:$0xff]
      %v8287 = vld [vmem:[%s8184 + $0x330] sm:$0xff]
      %v8288 = vld [vmem:[%s8184 + $0x338] sm:$0xff]
      %v8289 = vld [vmem:[%s8184 + $0x340] sm:$0xff]
      %v8290 = vld [vmem:[%s8184 + $0x348] sm:$0xff]
      %v8291 = vld [vmem:[%s8184 + $0x350] sm:$0xff]
      %v8292 = vld [vmem:[%s8184 + $0x358] sm:$0xff]
      %v8293 = vld [vmem:[%s8184 + $0x360] sm:$0xff]
      %v8294 = vld [vmem:[%s8184 + $0x368] sm:$0xff]
      %v8295 = vld [vmem:[%s8184 + $0x370] sm:$0xff]
      %v8296 = vld [vmem:[%s8184 + $0x378] sm:$0xff]
      %v8297 = vld [vmem:[%s8184 + $0x380] sm:$0xff]
      %v8298 = vld [vmem:[%s8184 + $0x388] sm:$0xff]
      %v8299 = vld [vmem:[%s8184 + $0x390] sm:$0xff]
      %v8300 = vld [vmem:[%s8184 + $0x398] sm:$0xff]
      %v8301 = vld [vmem:[%s8184 + $0x3a0] sm:$0xff]
      %v8302 = vld [vmem:[%s8184 + $0x3a8] sm:$0xff]
      %v8303 = vld [vmem:[%s8184 + $0x3b0] sm:$0xff]
      %v8304 = vld [vmem:[%s8184 + $0x3b8] sm:$0xff]
      %v8305 = vld [vmem:[%s8184 + $0x3c0] sm:$0x1f]
      %v8306 = vld [vmem:[%s8184 + $0x3c8] sm:$0x1f]
      %v8307 = vld [vmem:[%s8184 + $0x3d0] sm:$0x1f]
      %v8308 = vld [vmem:[%s8184 + $0x3d8] sm:$0x1f]
      %v8309 = vld [vmem:[%s8184 + $0x3e0] sm:$0x1f]
      %v8310 = vld [vmem:[%s8184 + $0x3e8] sm:$0x1f]
      %v8311 = vld [vmem:[%s8184 + $0x3f0] sm:$0x1f]
      %v8312 = vld [vmem:[%s8184 + $0x3f8] sm:$0x1f]
      %v8313 = vrot.slane %v7183, 2
      %v8314 = vsel %vm7313, %v8313, 0
      %v8317 = vsel %vm7317, %v8305, 0
      %v8320 = vsel %vm7317, %v8306, 0
      %v8323 = vsel %vm7317, %v8307, 0
      %v8326 = vsel %vm7317, %v8308, 0
      %v8329 = vsel %vm7317, %v8309, 0
      %v8332 = vsel %vm7317, %v8310, 0
      %v8335 = vsel %vm7317, %v8311, 0
      %v8338 = vsel %vm7317, %v8312, 0
      %8340 = vmatprep.subr.mxu0 %v8186
      %8341 = vmatpush1.msra.mxu0 %v8185
      %8342 = vmatprep.subr.mxu0 %v8194
      %8343 = vmatpush1.msra.mxu0 %v8193
      %8344 = vmatprep.subr.mxu0 %v8202
      %8345 = vmatpush1.msra.mxu0 %v8201
      %8346 = vmatprep.subr.mxu0 %v8210
      %8347 = vmatpush1.msra.mxu0 %v8209
      %8348 = vmatprep.subr.mxu0 %v8218
      %8349 = vmatpush1.msra.mxu0 %v8217
      %8350 = vmatprep.subr.mxu0 %v8226
      %8351 = vmatpush1.msra.mxu0 %v8225
      %8352 = vmatprep.subr.mxu0 %v8234
      %8353 = vmatpush1.msra.mxu0 %v8233
      %8354 = vmatprep.subr.mxu0 %v8242
      %8355 = vmatpush1.msra.mxu0 %v8241
      %8356 = vmatprep.subr.mxu0 %v8250
      %8357 = vmatpush1.msra.mxu0 %v8249
      %8358 = vmatprep.subr.mxu0 %v8258
      %8359 = vmatpush1.msra.mxu0 %v8257
      %8360 = vmatprep.subr.mxu0 %v8266
      %8361 = vmatpush1.msra.mxu0 %v8265
      %8362 = vmatprep.subr.mxu0 %v8274
      %8363 = vmatpush1.msra.mxu0 %v8273
      %8364 = vmatprep.subr.mxu0 %v8282
      %8365 = vmatpush1.msra.mxu0 %v8281
      %8366 = vmatprep.subr.mxu0 %v8290
      %8367 = vmatpush1.msra.mxu0 %v8289
      %8368 = vmatprep.subr.mxu0 %v8298
      %8369 = vmatpush1.msra.mxu0 %v8297
      %8370 = vmatprep.subr.mxu0 %v8320
      %8371 = vmatpush1.msra.mxu0 %v8317
      %8372 = vmatprep.subr.mxu0 0.0
      %8373 = vmatpush1.msra.mxu0 0.0
      %8374 = vmatprep.subr.mxu0 0.0
      %8375 = vmatpush1.msra.mxu0 0.0
      %8376 = vmatprep.subr.mxu0 0.0
      %8377 = vmatpush1.msra.mxu0 0.0
      %8378 = vmatprep.subr.mxu0 0.0
      %8379 = vmatpush1.msra.mxu0 0.0
      %8380 = vmatprep.subr.mxu0 0.0
      %8381 = vmatpush1.msra.mxu0 0.0
      %8382 = vmatprep.subr.mxu0 0.0
      %8383 = vmatpush1.msra.mxu0 0.0
      %8384 = vmatprep.subr.mxu0 0.0
      %8385 = vmatpush1.msra.mxu0 0.0
      %8386 = vmatprep.subr.mxu0 0.0
      %8387 = vmatpush1.msra.mxu0 0.0
      %8388 = vmatprep.subr.mxu0 0.0
      %8389 = vmatpush1.msra.mxu0 0.0
      %8390 = vmatprep.subr.mxu0 0.0
      %8391 = vmatpush1.msra.mxu0 0.0
      %8392 = vmatprep.subr.mxu0 0.0
      %8393 = vmatpush1.msra.mxu0 0.0
      %8394 = vmatprep.subr.mxu0 0.0
      %8395 = vmatpush1.msra.mxu0 0.0
      %8396 = vmatprep.subr.mxu0 0.0
      %8397 = vmatpush1.msra.mxu0 0.0
      %8398 = vmatprep.subr.mxu0 0.0
      %8399 = vmatpush1.msra.mxu0 0.0
      %8400 = vmatprep.subr.mxu0 0.0
      %8401 = vmatpush1.msra.mxu0 0.0
      %8402 = vmatprep.subr.mxu0 0.0
      %8403 = vmatpush1.msra.mxu0 0.0
      %8404 = vmatprep.mubr.f32.mxu0 0.0
      %8405 = vmatmul.mubr.f32.gmra.mrb[0].mxu0 %v8314
      %v8406 = vpop.f32.mrb[0].mxu0
      %v8407 = vadd.f32 0.0, %v8406
      %v8408 = vpop.f32.mrb[0].mxu0
      %v8409 = vadd.f32 0.0, %v8408
      %8410 = vdwg.mxu0
      %8411 = vmatprep.subr.mxu0 %v8188
      %8412 = vmatpush1.msra.mxu0 %v8187
      %8413 = vmatprep.subr.mxu0 %v8196
      %8414 = vmatpush1.msra.mxu0 %v8195
      %8415 = vmatprep.subr.mxu0 %v8204
      %8416 = vmatpush1.msra.mxu0 %v8203
      %8417 = vmatprep.subr.mxu0 %v8212
      %8418 = vmatpush1.msra.mxu0 %v8211
      %8419 = vmatprep.subr.mxu0 %v8220
      %8420 = vmatpush1.msra.mxu0 %v8219
      %8421 = vmatprep.subr.mxu0 %v8228
      %8422 = vmatpush1.msra.mxu0 %v8227
      %8423 = vmatprep.subr.mxu0 %v8236
      %8424 = vmatpush1.msra.mxu0 %v8235
      %8425 = vmatprep.subr.mxu0 %v8244
      %8426 = vmatpush1.msra.mxu0 %v8243
      %8427 = vmatprep.subr.mxu0 %v8252
      %8428 = vmatpush1.msra.mxu0 %v8251
      %8429 = vmatprep.subr.mxu0 %v8260
      %8430 = vmatpush1.msra.mxu0 %v8259
      %8431 = vmatprep.subr.mxu0 %v8268
      %8432 = vmatpush1.msra.mxu0 %v8267
      %8433 = vmatprep.subr.mxu0 %v8276
      %8434 = vmatpush1.msra.mxu0 %v8275
      %8435 = vmatprep.subr.mxu0 %v8284
      %8436 = vmatpush1.msra.mxu0 %v8283
      %8437 = vmatprep.subr.mxu0 %v8292
      %8438 = vmatpush1.msra.mxu0 %v8291
      %8439 = vmatprep.subr.mxu0 %v8300
      %8440 = vmatpush1.msra.mxu0 %v8299
      %8441 = vmatprep.subr.mxu0 %v8326
      %8442 = vmatpush1.msra.mxu0 %v8323
      %8443 = vmatprep.subr.mxu0 0.0
      %8444 = vmatpush1.msra.mxu0 0.0
      %8445 = vmatprep.subr.mxu0 0.0
      %8446 = vmatpush1.msra.mxu0 0.0
      %8447 = vmatprep.subr.mxu0 0.0
      %8448 = vmatpush1.msra.mxu0 0.0
      %8449 = vmatprep.subr.mxu0 0.0
      %8450 = vmatpush1.msra.mxu0 0.0
      %8451 = vmatprep.subr.mxu0 0.0
      %8452 = vmatpush1.msra.mxu0 0.0
      %8453 = vmatprep.subr.mxu0 0.0
      %8454 = vmatpush1.msra.mxu0 0.0
      %8455 = vmatprep.subr.mxu0 0.0
      %8456 = vmatpush1.msra.mxu0 0.0
      %8457 = vmatprep.subr.mxu0 0.0
      %8458 = vmatpush1.msra.mxu0 0.0
      %8459 = vmatprep.subr.mxu0 0.0
      %8460 = vmatpush1.msra.mxu0 0.0
      %8461 = vmatprep.subr.mxu0 0.0
      %8462 = vmatpush1.msra.mxu0 0.0
      %8463 = vmatprep.subr.mxu0 0.0
      %8464 = vmatpush1.msra.mxu0 0.0
      %8465 = vmatprep.subr.mxu0 0.0
      %8466 = vmatpush1.msra.mxu0 0.0
      %8467 = vmatprep.subr.mxu0 0.0
      %8468 = vmatpush1.msra.mxu0 0.0
      %8469 = vmatprep.subr.mxu0 0.0
      %8470 = vmatpush1.msra.mxu0 0.0
      %8471 = vmatprep.subr.mxu0 0.0
      %8472 = vmatpush1.msra.mxu0 0.0
      %8473 = vmatprep.subr.mxu0 0.0
      %8474 = vmatpush1.msra.mxu0 0.0
      %8475 = vmatprep.mubr.f32.mxu0 0.0
      %8476 = vmatmul.mubr.f32.gmra.mrb[0].mxu0 %v8314
      %v8477 = vpop.f32.mrb[0].mxu0
      %v8478 = vadd.f32 0.0, %v8477
      %v8479 = vpop.f32.mrb[0].mxu0
      %v8480 = vadd.f32 0.0, %v8479
      %8481 = vdwg.mxu0
      %8482 = vmatprep.subr.mxu0 %v8190
      %8483 = vmatpush1.msra.mxu0 %v8189
      %8484 = vmatprep.subr.mxu0 %v8198
      %8485 = vmatpush1.msra.mxu0 %v8197
      %8486 = vmatprep.subr.mxu0 %v8206
      %8487 = vmatpush1.msra.mxu0 %v8205
      %8488 = vmatprep.subr.mxu0 %v8214
      %8489 = vmatpush1.msra.mxu0 %v8213
      %8490 = vmatprep.subr.mxu0 %v8222
      %8491 = vmatpush1.msra.mxu0 %v8221
      %8492 = vmatprep.subr.mxu0 %v8230
      %8493 = vmatpush1.msra.mxu0 %v8229
      %8494 = vmatprep.subr.mxu0 %v8238
      %8495 = vmatpush1.msra.mxu0 %v8237
      %8496 = vmatprep.subr.mxu0 %v8246
      %8497 = vmatpush1.msra.mxu0 %v8245
      %8498 = vmatprep.subr.mxu0 %v8254
      %8499 = vmatpush1.msra.mxu0 %v8253
      %8500 = vmatprep.subr.mxu0 %v8262
      %8501 = vmatpush1.msra.mxu0 %v8261
      %8502 = vmatprep.subr.mxu0 %v8270
      %8503 = vmatpush1.msra.mxu0 %v8269
      %8504 = vmatprep.subr.mxu0 %v8278
      %8505 = vmatpush1.msra.mxu0 %v8277
      %8506 = vmatprep.subr.mxu0 %v8286
      %8507 = vmatpush1.msra.mxu0 %v8285
      %8508 = vmatprep.subr.mxu0 %v8294
      %8509 = vmatpush1.msra.mxu0 %v8293
      %8510 = vmatprep.subr.mxu0 %v8302
      %8511 = vmatpush1.msra.mxu0 %v8301
      %8512 = vmatprep.subr.mxu0 %v8332
      %8513 = vmatpush1.msra.mxu0 %v8329
      %8514 = vmatprep.subr.mxu0 0.0
      %8515 = vmatpush1.msra.mxu0 0.0
      %8516 = vmatprep.subr.mxu0 0.0
      %8517 = vmatpush1.msra.mxu0 0.0
      %8518 = vmatprep.subr.mxu0 0.0
      %8519 = vmatpush1.msra.mxu0 0.0
      %8520 = vmatprep.subr.mxu0 0.0
      %8521 = vmatpush1.msra.mxu0 0.0
      %8522 = vmatprep.subr.mxu0 0.0
      %8523 = vmatpush1.msra.mxu0 0.0
      %8524 = vmatprep.subr.mxu0 0.0
      %8525 = vmatpush1.msra.mxu0 0.0
      %8526 = vmatprep.subr.mxu0 0.0
      %8527 = vmatpush1.msra.mxu0 0.0
      %8528 = vmatprep.subr.mxu0 0.0
      %8529 = vmatpush1.msra.mxu0 0.0
      %8530 = vmatprep.subr.mxu0 0.0
      %8531 = vmatpush1.msra.mxu0 0.0
      %8532 = vmatprep.subr.mxu0 0.0
      %8533 = vmatpush1.msra.mxu0 0.0
      %8534 = vmatprep.subr.mxu0 0.0
      %8535 = vmatpush1.msra.mxu0 0.0
      %8536 = vmatprep.subr.mxu0 0.0
      %8537 = vmatpush1.msra.mxu0 0.0
      %8538 = vmatprep.subr.mxu0 0.0
      %8539 = vmatpush1.msra.mxu0 0.0
      %8540 = vmatprep.subr.mxu0 0.0
      %8541 = vmatpush1.msra.mxu0 0.0
      %8542 = vmatprep.subr.mxu0 0.0
      %8543 = vmatpush1.msra.mxu0 0.0
      %8544 = vmatprep.subr.mxu0 0.0
      %8545 = vmatpush1.msra.mxu0 0.0
      %8546 = vmatprep.mubr.f32.mxu0 0.0
      %8547 = vmatmul.mubr.f32.gmra.mrb[0].mxu0 %v8314
      %v8548 = vpop.f32.mrb[0].mxu0
      %v8549 = vadd.f32 0.0, %v8548
      %v8550 = vpop.f32.mrb[0].mxu0
      %v8551 = vadd.f32 0.0, %v8550
      %8552 = vdwg.mxu0
      %8553 = vmatprep.subr.mxu0 %v8192
      %8554 = vmatpush1.msra.mxu0 %v8191
      %8555 = vmatprep.subr.mxu0 %v8200
      %8556 = vmatpush1.msra.mxu0 %v8199
      %8557 = vmatprep.subr.mxu0 %v8208
      %8558 = vmatpush1.msra.mxu0 %v8207
      %8559 = vmatprep.subr.mxu0 %v8216
      %8560 = vmatpush1.msra.mxu0 %v8215
      %8561 = vmatprep.subr.mxu0 %v8224
      %8562 = vmatpush1.msra.mxu0 %v8223
      %8563 = vmatprep.subr.mxu0 %v8232
      %8564 = vmatpush1.msra.mxu0 %v8231
      %8565 = vmatprep.subr.mxu0 %v8240
      %8566 = vmatpush1.msra.mxu0 %v8239
      %8567 = vmatprep.subr.mxu0 %v8248
      %8568 = vmatpush1.msra.mxu0 %v8247
      %8569 = vmatprep.subr.mxu0 %v8256
      %8570 = vmatpush1.msra.mxu0 %v8255
      %8571 = vmatprep.subr.mxu0 %v8264
      %8572 = vmatpush1.msra.mxu0 %v8263
      %8573 = vmatprep.subr.mxu0 %v8272
      %8574 = vmatpush1.msra.mxu0 %v8271
      %8575 = vmatprep.subr.mxu0 %v8280
      %8576 = vmatpush1.msra.mxu0 %v8279
      %8577 = vmatprep.subr.mxu0 %v8288
      %8578 = vmatpush1.msra.mxu0 %v8287
      %8579 = vmatprep.subr.mxu0 %v8296
      %8580 = vmatpush1.msra.mxu0 %v8295
      %8581 = vmatprep.subr.mxu0 %v8304
      %8582 = vmatpush1.msra.mxu0 %v8303
      %8583 = vmatprep.subr.mxu0 %v8338
      %8584 = vmatpush1.msra.mxu0 %v8335
      %8585 = vmatprep.subr.mxu0 0.0
      %8586 = vmatpush1.msra.mxu0 0.0
      %8587 = vmatprep.subr.mxu0 0.0
      %8588 = vmatpush1.msra.mxu0 0.0
      %8589 = vmatprep.subr.mxu0 0.0
      %8590 = vmatpush1.msra.mxu0 0.0
      %8591 = vmatprep.subr.mxu0 0.0
      %8592 = vmatpush1.msra.mxu0 0.0
      %8593 = vmatprep.subr.mxu0 0.0
      %8594 = vmatpush1.msra.mxu0 0.0
      %8595 = vmatprep.subr.mxu0 0.0
      %8596 = vmatpush1.msra.mxu0 0.0
      %8597 = vmatprep.subr.mxu0 0.0
      %8598 = vmatpush1.msra.mxu0 0.0
      %8599 = vmatprep.subr.mxu0 0.0
      %8600 = vmatpush1.msra.mxu0 0.0
      %8601 = vmatprep.subr.mxu0 0.0
      %8602 = vmatpush1.msra.mxu0 0.0
      %8603 = vmatprep.subr.mxu0 0.0
      %8604 = vmatpush1.msra.mxu0 0.0
      %8605 = vmatprep.subr.mxu0 0.0
      %8606 = vmatpush1.msra.mxu0 0.0
      %8607 = vmatprep.subr.mxu0 0.0
      %8608 = vmatpush1.msra.mxu0 0.0
      %8609 = vmatprep.subr.mxu0 0.0
      %8610 = vmatpush1.msra.mxu0 0.0
      %8611 = vmatprep.subr.mxu0 0.0
      %8612 = vmatpush1.msra.mxu0 0.0
      %8613 = vmatprep.subr.mxu0 0.0
      %8614 = vmatpush1.msra.mxu0 0.0
      %8615 = vmatprep.subr.mxu0 0.0
      %8616 = vmatpush1.msra.mxu0 0.0
      %8617 = vmatprep.mubr.f32.mxu0 0.0
      %8618 = vmatmul.mubr.f32.gmra.mrb[0].mxu0 %v8314
      %v8619 = vpop.f32.mrb[0].mxu0
      %v8620 = vadd.f32 0.0, %v8619
      %v8621 = vpop.f32.mrb[0].mxu0
      %v8622 = vadd.f32 0.0, %v8621
      %8623 = vdwg.mxu0
      %v8632 = vcombine.low %v8407, %v8409
      %v8633 = vcombine.low %v8478, %v8480
      %v8634 = vcombine.low %v8549, %v8551
      %v8635 = vcombine.low %v8620, %v8622
      %v8637 = vunpack.c.l.s4 1966171168
      %v8638 = vunpack.c.0.s8 %v8637
      %v8639 = vlaneseq
      %v8640 = vshrl.u32 %v8639, 7
      %v8641 = vsub.s32 %v8638, %v8640
      %v8642 = vrot.slane %v8632, %v8641
      %v8644 = vunpack.c.l.s4 1966171168
      %v8645 = vunpack.c.0.s8 %v8644
      %v8646 = vlaneseq
      %v8647 = vshrl.u32 %v8646, 7
      %v8648 = vsub.s32 %v8645, %v8647
      %v8649 = vrot.slane %v8633, %v8648
      %v8651 = vunpack.c.l.s4 1966171168
      %v8652 = vunpack.c.0.s8 %v8651
      %v8653 = vlaneseq
      %v8654 = vshrl.u32 %v8653, 7
      %v8655 = vsub.s32 %v8652, %v8654
      %v8656 = vrot.slane %v8634, %v8655
      %v8658 = vunpack.c.l.s4 1966171168
      %v8659 = vunpack.c.0.s8 %v8658
      %v8660 = vlaneseq
      %v8661 = vshrl.u32 %v8660, 7
      %v8662 = vsub.s32 %v8659, %v8661
      %v8663 = vrot.slane %v8635, %v8662
      %v8664 = vcombine.low %v8642, %v8649
      %v8665 = vcombine.low %v8656, %v8663
      %v8667 = vunpack.c.l.s4 1966171168
      %v8668 = vunpack.c.0.s8 %v8667
      %v8669 = vlaneseq
      %v8670 = vshrl.u32 %v8669, 7
      %v8671 = vsub.s32 %v8668, %v8670
      %v8672 = vrot.slane %v8664, %v8671
      %v8674 = vunpack.c.l.s4 1966171168
      %v8675 = vunpack.c.0.s8 %v8674
      %v8676 = vlaneseq
      %v8677 = vshrl.u32 %v8676, 7
      %v8678 = vsub.s32 %v8675, %v8677
      %v8679 = vrot.slane %v8665, %v8678
      %v8680 = vcombine.low %v8672, %v8679
      %v8682 = vadd.f32 %v8183, %v8680
      %s8683 = scalar_lea.vmem %s18, 3072
      %v8684 = vld [vmem:[%s8683] sm:$0xff]
      %v8685 = vld [vmem:[%s8683 + $0x8] sm:$0xff]
      %v8686 = vld [vmem:[%s8683 + $0x10] sm:$0xff]
      %v8687 = vld [vmem:[%s8683 + $0x18] sm:$0xff]
      %v8688 = vld [vmem:[%s8683 + $0x20] sm:$0xff]
      %v8689 = vld [vmem:[%s8683 + $0x28] sm:$0xff]
      %v8690 = vld [vmem:[%s8683 + $0x30] sm:$0xff]
      %v8691 = vld [vmem:[%s8683 + $0x38] sm:$0xff]
      %v8692 = vld [vmem:[%s8683 + $0x40] sm:$0xff]
      %v8693 = vld [vmem:[%s8683 + $0x48] sm:$0xff]
      %v8694 = vld [vmem:[%s8683 + $0x50] sm:$0xff]
      %v8695 = vld [vmem:[%s8683 + $0x58] sm:$0xff]
      %v8696 = vld [vmem:[%s8683 + $0x60] sm:$0xff]
      %v8697 = vld [vmem:[%s8683 + $0x68] sm:$0xff]
      %v8698 = vld [vmem:[%s8683 + $0x70] sm:$0xff]
      %v8699 = vld [vmem:[%s8683 + $0x78] sm:$0xff]
      %v8700 = vld [vmem:[%s8683 + $0x80] sm:$0xff]
      %v8701 = vld [vmem:[%s8683 + $0x88] sm:$0xff]
      %v8702 = vld [vmem:[%s8683 + $0x90] sm:$0xff]
      %v8703 = vld [vmem:[%s8683 + $0x98] sm:$0xff]
      %v8704 = vld [vmem:[%s8683 + $0xa0] sm:$0xff]
      %v8705 = vld [vmem:[%s8683 + $0xa8] sm:$0xff]
      %v8706 = vld [vmem:[%s8683 + $0xb0] sm:$0xff]
      %v8707 = vld [vmem:[%s8683 + $0xb8] sm:$0xff]
      %v8708 = vld [vmem:[%s8683 + $0xc0] sm:$0xff]
      %v8709 = vld [vmem:[%s8683 + $0xc8] sm:$0xff]
      %v8710 = vld [vmem:[%s8683 + $0xd0] sm:$0xff]
      %v8711 = vld [vmem:[%s8683 + $0xd8] sm:$0xff]
      %v8712 = vld [vmem:[%s8683 + $0xe0] sm:$0xff]
      %v8713 = vld [vmem:[%s8683 + $0xe8] sm:$0xff]
      %v8714 = vld [vmem:[%s8683 + $0xf0] sm:$0xff]
      %v8715 = vld [vmem:[%s8683 + $0xf8] sm:$0xff]
      %v8716 = vld [vmem:[%s8683 + $0x100] sm:$0xff]
      %v8717 = vld [vmem:[%s8683 + $0x108] sm:$0xff]
      %v8718 = vld [vmem:[%s8683 + $0x110] sm:$0xff]
      %v8719 = vld [vmem:[%s8683 + $0x118] sm:$0xff]
      %v8720 = vld [vmem:[%s8683 + $0x120] sm:$0xff]
      %v8721 = vld [vmem:[%s8683 + $0x128] sm:$0xff]
      %v8722 = vld [vmem:[%s8683 + $0x130] sm:$0xff]
      %v8723 = vld [vmem:[%s8683 + $0x138] sm:$0xff]
      %v8724 = vld [vmem:[%s8683 + $0x140] sm:$0xff]
      %v8725 = vld [vmem:[%s8683 + $0x148] sm:$0xff]
      %v8726 = vld [vmem:[%s8683 + $0x150] sm:$0xff]
      %v8727 = vld [vmem:[%s8683 + $0x158] sm:$0xff]
      %v8728 = vld [vmem:[%s8683 + $0x160] sm:$0xff]
      %v8729 = vld [vmem:[%s8683 + $0x168] sm:$0xff]
      %v8730 = vld [vmem:[%s8683 + $0x170] sm:$0xff]
      %v8731 = vld [vmem:[%s8683 + $0x178] sm:$0xff]
      %v8732 = vld [vmem:[%s8683 + $0x180] sm:$0xff]
      %v8733 = vld [vmem:[%s8683 + $0x188] sm:$0xff]
      %v8734 = vld [vmem:[%s8683 + $0x190] sm:$0xff]
      %v8735 = vld [vmem:[%s8683 + $0x198] sm:$0xff]
      %v8736 = vld [vmem:[%s8683 + $0x1a0] sm:$0xff]
      %v8737 = vld [vmem:[%s8683 + $0x1a8] sm:$0xff]
      %v8738 = vld [vmem:[%s8683 + $0x1b0] sm:$0xff]
      %v8739 = vld [vmem:[%s8683 + $0x1b8] sm:$0xff]
      %v8740 = vld [vmem:[%s8683 + $0x1c0] sm:$0xff]
      %v8741 = vld [vmem:[%s8683 + $0x1c8] sm:$0xff]
      %v8742 = vld [vmem:[%s8683 + $0x1d0] sm:$0xff]
      %v8743 = vld [vmem:[%s8683 + $0x1d8] sm:$0xff]
      %v8744 = vld [vmem:[%s8683 + $0x1e0] sm:$0xff]
      %v8745 = vld [vmem:[%s8683 + $0x1e8] sm:$0xff]
      %v8746 = vld [vmem:[%s8683 + $0x1f0] sm:$0xff]
      %v8747 = vld [vmem:[%s8683 + $0x1f8] sm:$0xff]
      %v8748 = vld [vmem:[%s8683 + $0x200] sm:$0xff]
      %v8749 = vld [vmem:[%s8683 + $0x208] sm:$0xff]
      %v8750 = vld [vmem:[%s8683 + $0x210] sm:$0xff]
      %v8751 = vld [vmem:[%s8683 + $0x218] sm:$0xff]
      %v8752 = vld [vmem:[%s8683 + $0x220] sm:$0xff]
      %v8753 = vld [vmem:[%s8683 + $0x228] sm:$0xff]
      %v8754 = vld [vmem:[%s8683 + $0x230] sm:$0xff]
      %v8755 = vld [vmem:[%s8683 + $0x238] sm:$0xff]
      %v8756 = vld [vmem:[%s8683 + $0x240] sm:$0xff]
      %v8757 = vld [vmem:[%s8683 + $0x248] sm:$0xff]
      %v8758 = vld [vmem:[%s8683 + $0x250] sm:$0xff]
      %v8759 = vld [vmem:[%s8683 + $0x258] sm:$0xff]
      %v8760 = vld [vmem:[%s8683 + $0x260] sm:$0xff]
      %v8761 = vld [vmem:[%s8683 + $0x268] sm:$0xff]
      %v8762 = vld [vmem:[%s8683 + $0x270] sm:$0xff]
      %v8763 = vld [vmem:[%s8683 + $0x278] sm:$0xff]
      %v8764 = vld [vmem:[%s8683 + $0x280] sm:$0xff]
      %v8765 = vld [vmem:[%s8683 + $0x288] sm:$0xff]
      %v8766 = vld [vmem:[%s8683 + $0x290] sm:$0xff]
      %v8767 = vld [vmem:[%s8683 + $0x298] sm:$0xff]
      %v8768 = vld [vmem:[%s8683 + $0x2a0] sm:$0xff]
      %v8769 = vld [vmem:[%s8683 + $0x2a8] sm:$0xff]
      %v8770 = vld [vmem:[%s8683 + $0x2b0] sm:$0xff]
      %v8771 = vld [vmem:[%s8683 + $0x2b8] sm:$0xff]
      %v8772 = vld [vmem:[%s8683 + $0x2c0] sm:$0xff]
      %v8773 = vld [vmem:[%s8683 + $0x2c8] sm:$0xff]
      %v8774 = vld [vmem:[%s8683 + $0x2d0] sm:$0xff]
      %v8775 = vld [vmem:[%s8683 + $0x2d8] sm:$0xff]
      %v8776 = vld [vmem:[%s8683 + $0x2e0] sm:$0xff]
      %v8777 = vld [vmem:[%s8683 + $0x2e8] sm:$0xff]
      %v8778 = vld [vmem:[%s8683 + $0x2f0] sm:$0xff]
      %v8779 = vld [vmem:[%s8683 + $0x2f8] sm:$0xff]
      %v8780 = vld [vmem:[%s8683 + $0x300] sm:$0xff]
      %v8781 = vld [vmem:[%s8683 + $0x308] sm:$0xff]
      %v8782 = vld [vmem:[%s8683 + $0x310] sm:$0xff]
      %v8783 = vld [vmem:[%s8683 + $0x318] sm:$0xff]
      %v8784 = vld [vmem:[%s8683 + $0x320] sm:$0xff]
      %v8785 = vld [vmem:[%s8683 + $0x328] sm:$0xff]
      %v8786 = vld [vmem:[%s8683 + $0x330] sm:$0xff]
      %v8787 = vld [vmem:[%s8683 + $0x338] sm:$0xff]
      %v8788 = vld [vmem:[%s8683 + $0x340] sm:$0xff]
      %v8789 = vld [vmem:[%s8683 + $0x348] sm:$0xff]
      %v8790 = vld [vmem:[%s8683 + $0x350] sm:$0xff]
      %v8791 = vld [vmem:[%s8683 + $0x358] sm:$0xff]
      %v8792 = vld [vmem:[%s8683 + $0x360] sm:$0xff]
      %v8793 = vld [vmem:[%s8683 + $0x368] sm:$0xff]
      %v8794 = vld [vmem:[%s8683 + $0x370] sm:$0xff]
      %v8795 = vld [vmem:[%s8683 + $0x378] sm:$0xff]
      %v8796 = vld [vmem:[%s8683 + $0x380] sm:$0xff]
      %v8797 = vld [vmem:[%s8683 + $0x388] sm:$0xff]
      %v8798 = vld [vmem:[%s8683 + $0x390] sm:$0xff]
      %v8799 = vld [vmem:[%s8683 + $0x398] sm:$0xff]
      %v8800 = vld [vmem:[%s8683 + $0x3a0] sm:$0xff]
      %v8801 = vld [vmem:[%s8683 + $0x3a8] sm:$0xff]
      %v8802 = vld [vmem:[%s8683 + $0x3b0] sm:$0xff]
      %v8803 = vld [vmem:[%s8683 + $0x3b8] sm:$0xff]
      %v8804 = vld [vmem:[%s8683 + $0x3c0] sm:$0x1f]
      %v8805 = vld [vmem:[%s8683 + $0x3c8] sm:$0x1f]
      %v8806 = vld [vmem:[%s8683 + $0x3d0] sm:$0x1f]
      %v8807 = vld [vmem:[%s8683 + $0x3d8] sm:$0x1f]
      %v8808 = vld [vmem:[%s8683 + $0x3e0] sm:$0x1f]
      %v8809 = vld [vmem:[%s8683 + $0x3e8] sm:$0x1f]
      %v8810 = vld [vmem:[%s8683 + $0x3f0] sm:$0x1f]
      %v8811 = vld [vmem:[%s8683 + $0x3f8] sm:$0x1f]
      %v8812 = vrot.slane %v7183, 3
      %v8813 = vsel %vm7313, %v8812, 0
      %v8816 = vsel %vm7317, %v8804, 0
      %v8819 = vsel %vm7317, %v8805, 0
      %v8822 = vsel %vm7317, %v8806, 0
      %v8825 = vsel %vm7317, %v8807, 0
      %v8828 = vsel %vm7317, %v8808, 0
      %v8831 = vsel %vm7317, %v8809, 0
      %v8834 = vsel %vm7317, %v8810, 0
      %v8837 = vsel %vm7317, %v8811, 0
      %8839 = vmatprep.subr.mxu0 %v8685
      %8840 = vmatpush1.msra.mxu0 %v8684
      %8841 = vmatprep.subr.mxu0 %v8693
      %8842 = vmatpush1.msra.mxu0 %v8692
      %8843 = vmatprep.subr.mxu0 %v8701
      %8844 = vmatpush1.msra.mxu0 %v8700
      %8845 = vmatprep.subr.mxu0 %v8709
      %8846 = vmatpush1.msra.mxu0 %v8708
      %8847 = vmatprep.subr.mxu0 %v8717
      %8848 = vmatpush1.msra.mxu0 %v8716
      %8849 = vmatprep.subr.mxu0 %v8725
      %8850 = vmatpush1.msra.mxu0 %v8724
      %8851 = vmatprep.subr.mxu0 %v8733
      %8852 = vmatpush1.msra.mxu0 %v8732
      %8853 = vmatprep.subr.mxu0 %v8741
      %8854 = vmatpush1.msra.mxu0 %v8740
      %8855 = vmatprep.subr.mxu0 %v8749
      %8856 = vmatpush1.msra.mxu0 %v8748
      %8857 = vmatprep.subr.mxu0 %v8757
      %8858 = vmatpush1.msra.mxu0 %v8756
      %8859 = vmatprep.subr.mxu0 %v8765
      %8860 = vmatpush1.msra.mxu0 %v8764
      %8861 = vmatprep.subr.mxu0 %v8773
      %8862 = vmatpush1.msra.mxu0 %v8772
      %8863 = vmatprep.subr.mxu0 %v8781
      %8864 = vmatpush1.msra.mxu0 %v8780
      %8865 = vmatprep.subr.mxu0 %v8789
      %8866 = vmatpush1.msra.mxu0 %v8788
      %8867 = vmatprep.subr.mxu0 %v8797
      %8868 = vmatpush1.msra.mxu0 %v8796
      %8869 = vmatprep.subr.mxu0 %v8819
      %8870 = vmatpush1.msra.mxu0 %v8816
      %8871 = vmatprep.subr.mxu0 0.0
      %8872 = vmatpush1.msra.mxu0 0.0
      %8873 = vmatprep.subr.mxu0 0.0
      %8874 = vmatpush1.msra.mxu0 0.0
      %8875 = vmatprep.subr.mxu0 0.0
      %8876 = vmatpush1.msra.mxu0 0.0
      %8877 = vmatprep.subr.mxu0 0.0
      %8878 = vmatpush1.msra.mxu0 0.0
      %8879 = vmatprep.subr.mxu0 0.0
      %8880 = vmatpush1.msra.mxu0 0.0
      %8881 = vmatprep.subr.mxu0 0.0
      %8882 = vmatpush1.msra.mxu0 0.0
      %8883 = vmatprep.subr.mxu0 0.0
      %8884 = vmatpush1.msra.mxu0 0.0
      %8885 = vmatprep.subr.mxu0 0.0
      %8886 = vmatpush1.msra.mxu0 0.0
      %8887 = vmatprep.subr.mxu0 0.0
      %8888 = vmatpush1.msra.mxu0 0.0
      %8889 = vmatprep.subr.mxu0 0.0
      %8890 = vmatpush1.msra.mxu0 0.0
      %8891 = vmatprep.subr.mxu0 0.0
      %8892 = vmatpush1.msra.mxu0 0.0
      %8893 = vmatprep.subr.mxu0 0.0
      %8894 = vmatpush1.msra.mxu0 0.0
      %8895 = vmatprep.subr.mxu0 0.0
      %8896 = vmatpush1.msra.mxu0 0.0
      %8897 = vmatprep.subr.mxu0 0.0
      %8898 = vmatpush1.msra.mxu0 0.0
      %8899 = vmatprep.subr.mxu0 0.0
      %8900 = vmatpush1.msra.mxu0 0.0
      %8901 = vmatprep.subr.mxu0 0.0
      %8902 = vmatpush1.msra.mxu0 0.0
      %8903 = vmatprep.mubr.f32.mxu0 0.0
      %8904 = vmatmul.mubr.f32.gmra.mrb[0].mxu0 %v8813
      %v8905 = vpop.f32.mrb[0].mxu0
      %v8906 = vadd.f32 0.0, %v8905
      %v8907 = vpop.f32.mrb[0].mxu0
      %v8908 = vadd.f32 0.0, %v8907
      %8909 = vdwg.mxu0
      %8910 = vmatprep.subr.mxu0 %v8687
      %8911 = vmatpush1.msra.mxu0 %v8686
      %8912 = vmatprep.subr.mxu0 %v8695
      %8913 = vmatpush1.msra.mxu0 %v8694
      %8914 = vmatprep.subr.mxu0 %v8703
      %8915 = vmatpush1.msra.mxu0 %v8702
      %8916 = vmatprep.subr.mxu0 %v8711
      %8917 = vmatpush1.msra.mxu0 %v8710
      %8918 = vmatprep.subr.mxu0 %v8719
      %8919 = vmatpush1.msra.mxu0 %v8718
      %8920 = vmatprep.subr.mxu0 %v8727
      %8921 = vmatpush1.msra.mxu0 %v8726
      %8922 = vmatprep.subr.mxu0 %v8735
      %8923 = vmatpush1.msra.mxu0 %v8734
      %8924 = vmatprep.subr.mxu0 %v8743
      %8925 = vmatpush1.msra.mxu0 %v8742
      %8926 = vmatprep.subr.mxu0 %v8751
      %8927 = vmatpush1.msra.mxu0 %v8750
      %8928 = vmatprep.subr.mxu0 %v8759
      %8929 = vmatpush1.msra.mxu0 %v8758
      %8930 = vmatprep.subr.mxu0 %v8767
      %8931 = vmatpush1.msra.mxu0 %v8766
      %8932 = vmatprep.subr.mxu0 %v8775
      %8933 = vmatpush1.msra.mxu0 %v8774
      %8934 = vmatprep.subr.mxu0 %v8783
      %8935 = vmatpush1.msra.mxu0 %v8782
      %8936 = vmatprep.subr.mxu0 %v8791
      %8937 = vmatpush1.msra.mxu0 %v8790
      %8938 = vmatprep.subr.mxu0 %v8799
      %8939 = vmatpush1.msra.mxu0 %v8798
      %8940 = vmatprep.subr.mxu0 %v8825
      %8941 = vmatpush1.msra.mxu0 %v8822
      %8942 = vmatprep.subr.mxu0 0.0
      %8943 = vmatpush1.msra.mxu0 0.0
      %8944 = vmatprep.subr.mxu0 0.0
      %8945 = vmatpush1.msra.mxu0 0.0
      %8946 = vmatprep.subr.mxu0 0.0
      %8947 = vmatpush1.msra.mxu0 0.0
      %8948 = vmatprep.subr.mxu0 0.0
      %8949 = vmatpush1.msra.mxu0 0.0
      %8950 = vmatprep.subr.mxu0 0.0
      %8951 = vmatpush1.msra.mxu0 0.0
      %8952 = vmatprep.subr.mxu0 0.0
      %8953 = vmatpush1.msra.mxu0 0.0
      %8954 = vmatprep.subr.mxu0 0.0
      %8955 = vmatpush1.msra.mxu0 0.0
      %8956 = vmatprep.subr.mxu0 0.0
      %8957 = vmatpush1.msra.mxu0 0.0
      %8958 = vmatprep.subr.mxu0 0.0
      %8959 = vmatpush1.msra.mxu0 0.0
      %8960 = vmatprep.subr.mxu0 0.0
      %8961 = vmatpush1.msra.mxu0 0.0
      %8962 = vmatprep.subr.mxu0 0.0
      %8963 = vmatpush1.msra.mxu0 0.0
      %8964 = vmatprep.subr.mxu0 0.0
      %8965 = vmatpush1.msra.mxu0 0.0
      %8966 = vmatprep.subr.mxu0 0.0
      %8967 = vmatpush1.msra.mxu0 0.0
      %8968 = vmatprep.subr.mxu0 0.0
      %8969 = vmatpush1.msra.mxu0 0.0
      %8970 = vmatprep.subr.mxu0 0.0
      %8971 = vmatpush1.msra.mxu0 0.0
      %8972 = vmatprep.subr.mxu0 0.0
      %8973 = vmatpush1.msra.mxu0 0.0
      %8974 = vmatprep.mubr.f32.mxu0 0.0
      %8975 = vmatmul.mubr.f32.gmra.mrb[0].mxu0 %v8813
      %v8976 = vpop.f32.mrb[0].mxu0
      %v8977 = vadd.f32 0.0, %v8976
      %v8978 = vpop.f32.mrb[0].mxu0
      %v8979 = vadd.f32 0.0, %v8978
      %8980 = vdwg.mxu0
      %8981 = vmatprep.subr.mxu0 %v8689
      %8982 = vmatpush1.msra.mxu0 %v8688
      %8983 = vmatprep.subr.mxu0 %v8697
      %8984 = vmatpush1.msra.mxu0 %v8696
      %8985 = vmatprep.subr.mxu0 %v8705
      %8986 = vmatpush1.msra.mxu0 %v8704
      %8987 = vmatprep.subr.mxu0 %v8713
      %8988 = vmatpush1.msra.mxu0 %v8712
      %8989 = vmatprep.subr.mxu0 %v8721
      %8990 = vmatpush1.msra.mxu0 %v8720
      %8991 = vmatprep.subr.mxu0 %v8729
      %8992 = vmatpush1.msra.mxu0 %v8728
      %8993 = vmatprep.subr.mxu0 %v8737
      %8994 = vmatpush1.msra.mxu0 %v8736
      %8995 = vmatprep.subr.mxu0 %v8745
      %8996 = vmatpush1.msra.mxu0 %v8744
      %8997 = vmatprep.subr.mxu0 %v8753
      %8998 = vmatpush1.msra.mxu0 %v8752
      %8999 = vmatprep.subr.mxu0 %v8761
      %9000 = vmatpush1.msra.mxu0 %v8760
      %9001 = vmatprep.subr.mxu0 %v8769
      %9002 = vmatpush1.msra.mxu0 %v8768
      %9003 = vmatprep.subr.mxu0 %v8777
      %9004 = vmatpush1.msra.mxu0 %v8776
      %9005 = vmatprep.subr.mxu0 %v8785
      %9006 = vmatpush1.msra.mxu0 %v8784
      %9007 = vmatprep.subr.mxu0 %v8793
      %9008 = vmatpush1.msra.mxu0 %v8792
      %9009 = vmatprep.subr.mxu0 %v8801
      %9010 = vmatpush1.msra.mxu0 %v8800
      %9011 = vmatprep.subr.mxu0 %v8831
      %9012 = vmatpush1.msra.mxu0 %v8828
      %9013 = vmatprep.subr.mxu0 0.0
      %9014 = vmatpush1.msra.mxu0 0.0
      %9015 = vmatprep.subr.mxu0 0.0
      %9016 = vmatpush1.msra.mxu0 0.0
      %9017 = vmatprep.subr.mxu0 0.0
      %9018 = vmatpush1.msra.mxu0 0.0
      %9019 = vmatprep.subr.mxu0 0.0
      %9020 = vmatpush1.msra.mxu0 0.0
      %9021 = vmatprep.subr.mxu0 0.0
      %9022 = vmatpush1.msra.mxu0 0.0
      %9023 = vmatprep.subr.mxu0 0.0
      %9024 = vmatpush1.msra.mxu0 0.0
      %9025 = vmatprep.subr.mxu0 0.0
      %9026 = vmatpush1.msra.mxu0 0.0
      %9027 = vmatprep.subr.mxu0 0.0
      %9028 = vmatpush1.msra.mxu0 0.0
      %9029 = vmatprep.subr.mxu0 0.0
      %9030 = vmatpush1.msra.mxu0 0.0
      %9031 = vmatprep.subr.mxu0 0.0
      %9032 = vmatpush1.msra.mxu0 0.0
      %9033 = vmatprep.subr.mxu0 0.0
      %9034 = vmatpush1.msra.mxu0 0.0
      %9035 = vmatprep.subr.mxu0 0.0
      %9036 = vmatpush1.msra.mxu0 0.0
      %9037 = vmatprep.subr.mxu0 0.0
      %9038 = vmatpush1.msra.mxu0 0.0
      %9039 = vmatprep.subr.mxu0 0.0
      %9040 = vmatpush1.msra.mxu0 0.0
      %9041 = vmatprep.subr.mxu0 0.0
      %9042 = vmatpush1.msra.mxu0 0.0
      %9043 = vmatprep.subr.mxu0 0.0
      %9044 = vmatpush1.msra.mxu0 0.0
      %9045 = vmatprep.mubr.f32.mxu0 0.0
      %9046 = vmatmul.mubr.f32.gmra.mrb[0].mxu0 %v8813
      %v9047 = vpop.f32.mrb[0].mxu0
      %v9048 = vadd.f32 0.0, %v9047
      %v9049 = vpop.f32.mrb[0].mxu0
      %v9050 = vadd.f32 0.0, %v9049
      %9051 = vdwg.mxu0
      %9052 = vmatprep.subr.mxu0 %v8691
      %9053 = vmatpush1.msra.mxu0 %v8690
      %9054 = vmatprep.subr.mxu0 %v8699
      %9055 = vmatpush1.msra.mxu0 %v8698
      %9056 = vmatprep.subr.mxu0 %v8707
      %9057 = vmatpush1.msra.mxu0 %v8706
      %9058 = vmatprep.subr.mxu0 %v8715
      %9059 = vmatpush1.msra.mxu0 %v8714
      %9060 = vmatprep.subr.mxu0 %v8723
      %9061 = vmatpush1.msra.mxu0 %v8722
      %9062 = vmatprep.subr.mxu0 %v8731
      %9063 = vmatpush1.msra.mxu0 %v8730
      %9064 = vmatprep.subr.mxu0 %v8739
      %9065 = vmatpush1.msra.mxu0 %v8738
      %9066 = vmatprep.subr.mxu0 %v8747
      %9067 = vmatpush1.msra.mxu0 %v8746
      %9068 = vmatprep.subr.mxu0 %v8755
      %9069 = vmatpush1.msra.mxu0 %v8754
      %9070 = vmatprep.subr.mxu0 %v8763
      %9071 = vmatpush1.msra.mxu0 %v8762
      %9072 = vmatprep.subr.mxu0 %v8771
      %9073 = vmatpush1.msra.mxu0 %v8770
      %9074 = vmatprep.subr.mxu0 %v8779
      %9075 = vmatpush1.msra.mxu0 %v8778
      %9076 = vmatprep.subr.mxu0 %v8787
      %9077 = vmatpush1.msra.mxu0 %v8786
      %9078 = vmatprep.subr.mxu0 %v8795
      %9079 = vmatpush1.msra.mxu0 %v8794
      %9080 = vmatprep.subr.mxu0 %v8803
      %9081 = vmatpush1.msra.mxu0 %v8802
      %9082 = vmatprep.subr.mxu0 %v8837
      %9083 = vmatpush1.msra.mxu0 %v8834
      %9084 = vmatprep.subr.mxu0 0.0
      %9085 = vmatpush1.msra.mxu0 0.0
      %9086 = vmatprep.subr.mxu0 0.0
      %9087 = vmatpush1.msra.mxu0 0.0
      %9088 = vmatprep.subr.mxu0 0.0
      %9089 = vmatpush1.msra.mxu0 0.0
      %9090 = vmatprep.subr.mxu0 0.0
      %9091 = vmatpush1.msra.mxu0 0.0
      %9092 = vmatprep.subr.mxu0 0.0
      %9093 = vmatpush1.msra.mxu0 0.0
      %9094 = vmatprep.subr.mxu0 0.0
      %9095 = vmatpush1.msra.mxu0 0.0
      %9096 = vmatprep.subr.mxu0 0.0
      %9097 = vmatpush1.msra.mxu0 0.0
      %9098 = vmatprep.subr.mxu0 0.0
      %9099 = vmatpush1.msra.mxu0 0.0
      %9100 = vmatprep.subr.mxu0 0.0
      %9101 = vmatpush1.msra.mxu0 0.0
      %9102 = vmatprep.subr.mxu0 0.0
      %9103 = vmatpush1.msra.mxu0 0.0
      %9104 = vmatprep.subr.mxu0 0.0
      %9105 = vmatpush1.msra.mxu0 0.0
      %9106 = vmatprep.subr.mxu0 0.0
      %9107 = vmatpush1.msra.mxu0 0.0
      %9108 = vmatprep.subr.mxu0 0.0
      %9109 = vmatpush1.msra.mxu0 0.0
      %9110 = vmatprep.subr.mxu0 0.0
      %9111 = vmatpush1.msra.mxu0 0.0
      %9112 = vmatprep.subr.mxu0 0.0
      %9113 = vmatpush1.msra.mxu0 0.0
      %9114 = vmatprep.subr.mxu0 0.0
      %9115 = vmatpush1.msra.mxu0 0.0
      %9116 = vmatprep.mubr.f32.mxu0 0.0
      %9117 = vmatmul.mubr.f32.gmra.mrb[0].mxu0 %v8813
      %v9118 = vpop.f32.mrb[0].mxu0
      %v9119 = vadd.f32 0.0, %v9118
      %v9120 = vpop.f32.mrb[0].mxu0
      %v9121 = vadd.f32 0.0, %v9120
      %9122 = vdwg.mxu0
      %v9131 = vcombine.low %v8906, %v8908
      %v9132 = vcombine.low %v8977, %v8979
      %v9133 = vcombine.low %v9048, %v9050
      %v9134 = vcombine.low %v9119, %v9121
      %v9136 = vunpack.c.l.s4 1966171168
      %v9137 = vunpack.c.0.s8 %v9136
      %v9138 = vlaneseq
      %v9139 = vshrl.u32 %v9138, 7
      %v9140 = vsub.s32 %v9137, %v9139
      %v9141 = vrot.slane %v9131, %v9140
      %v9143 = vunpack.c.l.s4 1966171168
      %v9144 = vunpack.c.0.s8 %v9143
      %v9145 = vlaneseq
      %v9146 = vshrl.u32 %v9145, 7
      %v9147 = vsub.s32 %v9144, %v9146
      %v9148 = vrot.slane %v9132, %v9147
      %v9150 = vunpack.c.l.s4 1966171168
      %v9151 = vunpack.c.0.s8 %v9150
      %v9152 = vlaneseq
      %v9153 = vshrl.u32 %v9152, 7
      %v9154 = vsub.s32 %v9151, %v9153
      %v9155 = vrot.slane %v9133, %v9154
      %v9157 = vunpack.c.l.s4 1966171168
      %v9158 = vunpack.c.0.s8 %v9157
      %v9159 = vlaneseq
      %v9160 = vshrl.u32 %v9159, 7
      %v9161 = vsub.s32 %v9158, %v9160
      %v9162 = vrot.slane %v9134, %v9161
      %v9163 = vcombine.low %v9141, %v9148
      %v9164 = vcombine.low %v9155, %v9162
      %v9166 = vunpack.c.l.s4 1966171168
      %v9167 = vunpack.c.0.s8 %v9166
      %v9168 = vlaneseq
      %v9169 = vshrl.u32 %v9168, 7
      %v9170 = vsub.s32 %v9167, %v9169
      %v9171 = vrot.slane %v9163, %v9170
      %v9173 = vunpack.c.l.s4 1966171168
      %v9174 = vunpack.c.0.s8 %v9173
      %v9175 = vlaneseq
      %v9176 = vshrl.u32 %v9175, 7
      %v9177 = vsub.s32 %v9174, %v9176
      %v9178 = vrot.slane %v9164, %v9177
      %v9179 = vcombine.low %v9171, %v9178
      %v9181 = vadd.f32 %v8682, %v9179
      %s9182 = scalar_lea.vmem %s18, 4096
      %v9183 = vld [vmem:[%s9182] sm:$0xff]
      %v9184 = vld [vmem:[%s9182 + $0x8] sm:$0xff]
      %v9185 = vld [vmem:[%s9182 + $0x10] sm:$0xff]
      %v9186 = vld [vmem:[%s9182 + $0x18] sm:$0xff]
      %v9187 = vld [vmem:[%s9182 + $0x20] sm:$0xff]
      %v9188 = vld [vmem:[%s9182 + $0x28] sm:$0xff]
      %v9189 = vld [vmem:[%s9182 + $0x30] sm:$0xff]
      %v9190 = vld [vmem:[%s9182 + $0x38] sm:$0xff]
      %v9191 = vld [vmem:[%s9182 + $0x40] sm:$0xff]
      %v9192 = vld [vmem:[%s9182 + $0x48] sm:$0xff]
      %v9193 = vld [vmem:[%s9182 + $0x50] sm:$0xff]
      %v9194 = vld [vmem:[%s9182 + $0x58] sm:$0xff]
      %v9195 = vld [vmem:[%s9182 + $0x60] sm:$0xff]
      %v9196 = vld [vmem:[%s9182 + $0x68] sm:$0xff]
      %v9197 = vld [vmem:[%s9182 + $0x70] sm:$0xff]
      %v9198 = vld [vmem:[%s9182 + $0x78] sm:$0xff]
      %v9199 = vld [vmem:[%s9182 + $0x80] sm:$0xff]
      %v9200 = vld [vmem:[%s9182 + $0x88] sm:$0xff]
      %v9201 = vld [vmem:[%s9182 + $0x90] sm:$0xff]
      %v9202 = vld [vmem:[%s9182 + $0x98] sm:$0xff]
      %v9203 = vld [vmem:[%s9182 + $0xa0] sm:$0xff]
      %v9204 = vld [vmem:[%s9182 + $0xa8] sm:$0xff]
      %v9205 = vld [vmem:[%s9182 + $0xb0] sm:$0xff]
      %v9206 = vld [vmem:[%s9182 + $0xb8] sm:$0xff]
      %v9207 = vld [vmem:[%s9182 + $0xc0] sm:$0xff]
      %v9208 = vld [vmem:[%s9182 + $0xc8] sm:$0xff]
      %v9209 = vld [vmem:[%s9182 + $0xd0] sm:$0xff]
      %v9210 = vld [vmem:[%s9182 + $0xd8] sm:$0xff]
      %v9211 = vld [vmem:[%s9182 + $0xe0] sm:$0xff]
      %v9212 = vld [vmem:[%s9182 + $0xe8] sm:$0xff]
      %v9213 = vld [vmem:[%s9182 + $0xf0] sm:$0xff]
      %v9214 = vld [vmem:[%s9182 + $0xf8] sm:$0xff]
      %v9215 = vld [vmem:[%s9182 + $0x100] sm:$0xff]
      %v9216 = vld [vmem:[%s9182 + $0x108] sm:$0xff]
      %v9217 = vld [vmem:[%s9182 + $0x110] sm:$0xff]
      %v9218 = vld [vmem:[%s9182 + $0x118] sm:$0xff]
      %v9219 = vld [vmem:[%s9182 + $0x120] sm:$0xff]
      %v9220 = vld [vmem:[%s9182 + $0x128] sm:$0xff]
      %v9221 = vld [vmem:[%s9182 + $0x130] sm:$0xff]
      %v9222 = vld [vmem:[%s9182 + $0x138] sm:$0xff]
      %v9223 = vld [vmem:[%s9182 + $0x140] sm:$0xff]
      %v9224 = vld [vmem:[%s9182 + $0x148] sm:$0xff]
      %v9225 = vld [vmem:[%s9182 + $0x150] sm:$0xff]
      %v9226 = vld [vmem:[%s9182 + $0x158] sm:$0xff]
      %v9227 = vld [vmem:[%s9182 + $0x160] sm:$0xff]
      %v9228 = vld [vmem:[%s9182 + $0x168] sm:$0xff]
      %v9229 = vld [vmem:[%s9182 + $0x170] sm:$0xff]
      %v9230 = vld [vmem:[%s9182 + $0x178] sm:$0xff]
      %v9231 = vld [vmem:[%s9182 + $0x180] sm:$0xff]
      %v9232 = vld [vmem:[%s9182 + $0x188] sm:$0xff]
      %v9233 = vld [vmem:[%s9182 + $0x190] sm:$0xff]
      %v9234 = vld [vmem:[%s9182 + $0x198] sm:$0xff]
      %v9235 = vld [vmem:[%s9182 + $0x1a0] sm:$0xff]
      %v9236 = vld [vmem:[%s9182 + $0x1a8] sm:$0xff]
      %v9237 = vld [vmem:[%s9182 + $0x1b0] sm:$0xff]
      %v9238 = vld [vmem:[%s9182 + $0x1b8] sm:$0xff]
      %v9239 = vld [vmem:[%s9182 + $0x1c0] sm:$0xff]
      %v9240 = vld [vmem:[%s9182 + $0x1c8] sm:$0xff]
      %v9241 = vld [vmem:[%s9182 + $0x1d0] sm:$0xff]
      %v9242 = vld [vmem:[%s9182 + $0x1d8] sm:$0xff]
      %v9243 = vld [vmem:[%s9182 + $0x1e0] sm:$0xff]
      %v9244 = vld [vmem:[%s9182 + $0x1e8] sm:$0xff]
      %v9245 = vld [vmem:[%s9182 + $0x1f0] sm:$0xff]
      %v9246 = vld [vmem:[%s9182 + $0x1f8] sm:$0xff]
      %v9247 = vld [vmem:[%s9182 + $0x200] sm:$0xff]
      %v9248 = vld [vmem:[%s9182 + $0x208] sm:$0xff]
      %v9249 = vld [vmem:[%s9182 + $0x210] sm:$0xff]
      %v9250 = vld [vmem:[%s9182 + $0x218] sm:$0xff]
      %v9251 = vld [vmem:[%s9182 + $0x220] sm:$0xff]
      %v9252 = vld [vmem:[%s9182 + $0x228] sm:$0xff]
      %v9253 = vld [vmem:[%s9182 + $0x230] sm:$0xff]
      %v9254 = vld [vmem:[%s9182 + $0x238] sm:$0xff]
      %v9255 = vld [vmem:[%s9182 + $0x240] sm:$0xff]
      %v9256 = vld [vmem:[%s9182 + $0x248] sm:$0xff]
      %v9257 = vld [vmem:[%s9182 + $0x250] sm:$0xff]
      %v9258 = vld [vmem:[%s9182 + $0x258] sm:$0xff]
      %v9259 = vld [vmem:[%s9182 + $0x260] sm:$0xff]
      %v9260 = vld [vmem:[%s9182 + $0x268] sm:$0xff]
      %v9261 = vld [vmem:[%s9182 + $0x270] sm:$0xff]
      %v9262 = vld [vmem:[%s9182 + $0x278] sm:$0xff]
      %v9263 = vld [vmem:[%s9182 + $0x280] sm:$0xff]
      %v9264 = vld [vmem:[%s9182 + $0x288] sm:$0xff]
      %v9265 = vld [vmem:[%s9182 + $0x290] sm:$0xff]
      %v9266 = vld [vmem:[%s9182 + $0x298] sm:$0xff]
      %v9267 = vld [vmem:[%s9182 + $0x2a0] sm:$0xff]
      %v9268 = vld [vmem:[%s9182 + $0x2a8] sm:$0xff]
      %v9269 = vld [vmem:[%s9182 + $0x2b0] sm:$0xff]
      %v9270 = vld [vmem:[%s9182 + $0x2b8] sm:$0xff]
      %v9271 = vld [vmem:[%s9182 + $0x2c0] sm:$0xff]
      %v9272 = vld [vmem:[%s9182 + $0x2c8] sm:$0xff]
      %v9273 = vld [vmem:[%s9182 + $0x2d0] sm:$0xff]
      %v9274 = vld [vmem:[%s9182 + $0x2d8] sm:$0xff]
      %v9275 = vld [vmem:[%s9182 + $0x2e0] sm:$0xff]
      %v9276 = vld [vmem:[%s9182 + $0x2e8] sm:$0xff]
      %v9277 = vld [vmem:[%s9182 + $0x2f0] sm:$0xff]
      %v9278 = vld [vmem:[%s9182 + $0x2f8] sm:$0xff]
      %v9279 = vld [vmem:[%s9182 + $0x300] sm:$0xff]
      %v9280 = vld [vmem:[%s9182 + $0x308] sm:$0xff]
      %v9281 = vld [vmem:[%s9182 + $0x310] sm:$0xff]
      %v9282 = vld [vmem:[%s9182 + $0x318] sm:$0xff]
      %v9283 = vld [vmem:[%s9182 + $0x320] sm:$0xff]
      %v9284 = vld [vmem:[%s9182 + $0x328] sm:$0xff]
      %v9285 = vld [vmem:[%s9182 + $0x330] sm:$0xff]
      %v9286 = vld [vmem:[%s9182 + $0x338] sm:$0xff]
      %v9287 = vld [vmem:[%s9182 + $0x340] sm:$0xff]
      %v9288 = vld [vmem:[%s9182 + $0x348] sm:$0xff]
      %v9289 = vld [vmem:[%s9182 + $0x350] sm:$0xff]
      %v9290 = vld [vmem:[%s9182 + $0x358] sm:$0xff]
      %v9291 = vld [vmem:[%s9182 + $0x360] sm:$0xff]
      %v9292 = vld [vmem:[%s9182 + $0x368] sm:$0xff]
      %v9293 = vld [vmem:[%s9182 + $0x370] sm:$0xff]
      %v9294 = vld [vmem:[%s9182 + $0x378] sm:$0xff]
      %v9295 = vld [vmem:[%s9182 + $0x380] sm:$0xff]
      %v9296 = vld [vmem:[%s9182 + $0x388] sm:$0xff]
      %v9297 = vld [vmem:[%s9182 + $0x390] sm:$0xff]
      %v9298 = vld [vmem:[%s9182 + $0x398] sm:$0xff]
      %v9299 = vld [vmem:[%s9182 + $0x3a0] sm:$0xff]
      %v9300 = vld [vmem:[%s9182 + $0x3a8] sm:$0xff]
      %v9301 = vld [vmem:[%s9182 + $0x3b0] sm:$0xff]
      %v9302 = vld [vmem:[%s9182 + $0x3b8] sm:$0xff]
      %v9303 = vld [vmem:[%s9182 + $0x3c0] sm:$0x1f]
      %v9304 = vld [vmem:[%s9182 + $0x3c8] sm:$0x1f]
      %v9305 = vld [vmem:[%s9182 + $0x3d0] sm:$0x1f]
      %v9306 = vld [vmem:[%s9182 + $0x3d8] sm:$0x1f]
      %v9307 = vld [vmem:[%s9182 + $0x3e0] sm:$0x1f]
      %v9308 = vld [vmem:[%s9182 + $0x3e8] sm:$0x1f]
      %v9309 = vld [vmem:[%s9182 + $0x3f0] sm:$0x1f]
      %v9310 = vld [vmem:[%s9182 + $0x3f8] sm:$0x1f]
      %v9311 = vrot.slane %v7183, 4
      %v9312 = vsel %vm7313, %v9311, 0
      %v9315 = vsel %vm7317, %v9303, 0
      %v9318 = vsel %vm7317, %v9304, 0
      %v9321 = vsel %vm7317, %v9305, 0
      %v9324 = vsel %vm7317, %v9306, 0
      %v9327 = vsel %vm7317, %v9307, 0
      %v9330 = vsel %vm7317, %v9308, 0
      %v9333 = vsel %vm7317, %v9309, 0
      %v9336 = vsel %vm7317, %v9310, 0
      %9338 = vmatprep.subr.mxu0 %v9184
      %9339 = vmatpush1.msra.mxu0 %v9183
      %9340 = vmatprep.subr.mxu0 %v9192
      %9341 = vmatpush1.msra.mxu0 %v9191
      %9342 = vmatprep.subr.mxu0 %v9200
      %9343 = vmatpush1.msra.mxu0 %v9199
      %9344 = vmatprep.subr.mxu0 %v9208
      %9345 = vmatpush1.msra.mxu0 %v9207
      %9346 = vmatprep.subr.mxu0 %v9216
      %9347 = vmatpush1.msra.mxu0 %v9215
      %9348 = vmatprep.subr.mxu0 %v9224
      %9349 = vmatpush1.msra.mxu0 %v9223
      %9350 = vmatprep.subr.mxu0 %v9232
      %9351 = vmatpush1.msra.mxu0 %v9231
      %9352 = vmatprep.subr.mxu0 %v9240
      %9353 = vmatpush1.msra.mxu0 %v9239
      %9354 = vmatprep.subr.mxu0 %v9248
      %9355 = vmatpush1.msra.mxu0 %v9247
      %9356 = vmatprep.subr.mxu0 %v9256
      %9357 = vmatpush1.msra.mxu0 %v9255
      %9358 = vmatprep.subr.mxu0 %v9264
      %9359 = vmatpush1.msra.mxu0 %v9263
      %9360 = vmatprep.subr.mxu0 %v9272
      %9361 = vmatpush1.msra.mxu0 %v9271
      %9362 = vmatprep.subr.mxu0 %v9280
      %9363 = vmatpush1.msra.mxu0 %v9279
      %9364 = vmatprep.subr.mxu0 %v9288
      %9365 = vmatpush1.msra.mxu0 %v9287
      %9366 = vmatprep.subr.mxu0 %v9296
      %9367 = vmatpush1.msra.mxu0 %v9295
      %9368 = vmatprep.subr.mxu0 %v9318
      %9369 = vmatpush1.msra.mxu0 %v9315
      %9370 = vmatprep.subr.mxu0 0.0
      %9371 = vmatpush1.msra.mxu0 0.0
      %9372 = vmatprep.subr.mxu0 0.0
      %9373 = vmatpush1.msra.mxu0 0.0
      %9374 = vmatprep.subr.mxu0 0.0
      %9375 = vmatpush1.msra.mxu0 0.0
      %9376 = vmatprep.subr.mxu0 0.0
      %9377 = vmatpush1.msra.mxu0 0.0
      %9378 = vmatprep.subr.mxu0 0.0
      %9379 = vmatpush1.msra.mxu0 0.0
      %9380 = vmatprep.subr.mxu0 0.0
      %9381 = vmatpush1.msra.mxu0 0.0
      %9382 = vmatprep.subr.mxu0 0.0
      %9383 = vmatpush1.msra.mxu0 0.0
      %9384 = vmatprep.subr.mxu0 0.0
      %9385 = vmatpush1.msra.mxu0 0.0
      %9386 = vmatprep.subr.mxu0 0.0
      %9387 = vmatpush1.msra.mxu0 0.0
      %9388 = vmatprep.subr.mxu0 0.0
      %9389 = vmatpush1.msra.mxu0 0.0
      %9390 = vmatprep.subr.mxu0 0.0
      %9391 = vmatpush1.msra.mxu0 0.0
      %9392 = vmatprep.subr.mxu0 0.0
      %9393 = vmatpush1.msra.mxu0 0.0
      %9394 = vmatprep.subr.mxu0 0.0
      %9395 = vmatpush1.msra.mxu0 0.0
      %9396 = vmatprep.subr.mxu0 0.0
      %9397 = vmatpush1.msra.mxu0 0.0
      %9398 = vmatprep.subr.mxu0 0.0
      %9399 = vmatpush1.msra.mxu0 0.0
      %9400 = vmatprep.subr.mxu0 0.0
      %9401 = vmatpush1.msra.mxu0 0.0
      %9402 = vmatprep.mubr.f32.mxu0 0.0
      %9403 = vmatmul.mubr.f32.gmra.mrb[0].mxu0 %v9312
      %v9404 = vpop.f32.mrb[0].mxu0
      %v9405 = vadd.f32 0.0, %v9404
      %v9406 = vpop.f32.mrb[0].mxu0
      %v9407 = vadd.f32 0.0, %v9406
      %9408 = vdwg.mxu0
      %9409 = vmatprep.subr.mxu0 %v9186
      %9410 = vmatpush1.msra.mxu0 %v9185
      %9411 = vmatprep.subr.mxu0 %v9194
      %9412 = vmatpush1.msra.mxu0 %v9193
      %9413 = vmatprep.subr.mxu0 %v9202
      %9414 = vmatpush1.msra.mxu0 %v9201
      %9415 = vmatprep.subr.mxu0 %v9210
      %9416 = vmatpush1.msra.mxu0 %v9209
      %9417 = vmatprep.subr.mxu0 %v9218
      %9418 = vmatpush1.msra.mxu0 %v9217
      %9419 = vmatprep.subr.mxu0 %v9226
      %9420 = vmatpush1.msra.mxu0 %v9225
      %9421 = vmatprep.subr.mxu0 %v9234
      %9422 = vmatpush1.msra.mxu0 %v9233
      %9423 = vmatprep.subr.mxu0 %v9242
      %9424 = vmatpush1.msra.mxu0 %v9241
      %9425 = vmatprep.subr.mxu0 %v9250
      %9426 = vmatpush1.msra.mxu0 %v9249
      %9427 = vmatprep.subr.mxu0 %v9258
      %9428 = vmatpush1.msra.mxu0 %v9257
      %9429 = vmatprep.subr.mxu0 %v9266
      %9430 = vmatpush1.msra.mxu0 %v9265
      %9431 = vmatprep.subr.mxu0 %v9274
      %9432 = vmatpush1.msra.mxu0 %v9273
      %9433 = vmatprep.subr.mxu0 %v9282
      %9434 = vmatpush1.msra.mxu0 %v9281
      %9435 = vmatprep.subr.mxu0 %v9290
      %9436 = vmatpush1.msra.mxu0 %v9289
      %9437 = vmatprep.subr.mxu0 %v9298
      %9438 = vmatpush1.msra.mxu0 %v9297
      %9439 = vmatprep.subr.mxu0 %v9324
      %9440 = vmatpush1.msra.mxu0 %v9321
      %9441 = vmatprep.subr.mxu0 0.0
      %9442 = vmatpush1.msra.mxu0 0.0
      %9443 = vmatprep.subr.mxu0 0.0
      %9444 = vmatpush1.msra.mxu0 0.0
      %9445 = vmatprep.subr.mxu0 0.0
      %9446 = vmatpush1.msra.mxu0 0.0
      %9447 = vmatprep.subr.mxu0 0.0
      %9448 = vmatpush1.msra.mxu0 0.0
      %9449 = vmatprep.subr.mxu0 0.0
      %9450 = vmatpush1.msra.mxu0 0.0
      %9451 = vmatprep.subr.mxu0 0.0
      %9452 = vmatpush1.msra.mxu0 0.0
      %9453 = vmatprep.subr.mxu0 0.0
      %9454 = vmatpush1.msra.mxu0 0.0
      %9455 = vmatprep.subr.mxu0 0.0
      %9456 = vmatpush1.msra.mxu0 0.0
      %9457 = vmatprep.subr.mxu0 0.0
      %9458 = vmatpush1.msra.mxu0 0.0
      %9459 = vmatprep.subr.mxu0 0.0
      %9460 = vmatpush1.msra.mxu0 0.0
      %9461 = vmatprep.subr.mxu0 0.0
      %9462 = vmatpush1.msra.mxu0 0.0
      %9463 = vmatprep.subr.mxu0 0.0
      %9464 = vmatpush1.msra.mxu0 0.0
      %9465 = vmatprep.subr.mxu0 0.0
      %9466 = vmatpush1.msra.mxu0 0.0
      %9467 = vmatprep.subr.mxu0 0.0
      %9468 = vmatpush1.msra.mxu0 0.0
      %9469 = vmatprep.subr.mxu0 0.0
      %9470 = vmatpush1.msra.mxu0 0.0
      %9471 = vmatprep.subr.mxu0 0.0
      %9472 = vmatpush1.msra.mxu0 0.0
      %9473 = vmatprep.mubr.f32.mxu0 0.0
      %9474 = vmatmul.mubr.f32.gmra.mrb[0].mxu0 %v9312
      %v9475 = vpop.f32.mrb[0].mxu0
      %v9476 = vadd.f32 0.0, %v9475
      %v9477 = vpop.f32.mrb[0].mxu0
      %v9478 = vadd.f32 0.0, %v9477
      %9479 = vdwg.mxu0
      %9480 = vmatprep.subr.mxu0 %v9188
      %9481 = vmatpush1.msra.mxu0 %v9187
      %9482 = vmatprep.subr.mxu0 %v9196
      %9483 = vmatpush1.msra.mxu0 %v9195
      %9484 = vmatprep.subr.mxu0 %v9204
      %9485 = vmatpush1.msra.mxu0 %v9203
      %9486 = vmatprep.subr.mxu0 %v9212
      %9487 = vmatpush1.msra.mxu0 %v9211
      %9488 = vmatprep.subr.mxu0 %v9220
      %9489 = vmatpush1.msra.mxu0 %v9219
      %9490 = vmatprep.subr.mxu0 %v9228
      %9491 = vmatpush1.msra.mxu0 %v9227
      %9492 = vmatprep.subr.mxu0 %v9236
      %9493 = vmatpush1.msra.mxu0 %v9235
      %9494 = vmatprep.subr.mxu0 %v9244
      %9495 = vmatpush1.msra.mxu0 %v9243
      %9496 = vmatprep.subr.mxu0 %v9252
      %9497 = vmatpush1.msra.mxu0 %v9251
      %9498 = vmatprep.subr.mxu0 %v9260
      %9499 = vmatpush1.msra.mxu0 %v9259
      %9500 = vmatprep.subr.mxu0 %v9268
      %9501 = vmatpush1.msra.mxu0 %v9267
      %9502 = vmatprep.subr.mxu0 %v9276
      %9503 = vmatpush1.msra.mxu0 %v9275
      %9504 = vmatprep.subr.mxu0 %v9284
      %9505 = vmatpush1.msra.mxu0 %v9283
      %9506 = vmatprep.subr.mxu0 %v9292
      %9507 = vmatpush1.msra.mxu0 %v9291
      %9508 = vmatprep.subr.mxu0 %v9300
      %9509 = vmatpush1.msra.mxu0 %v9299
      %9510 = vmatprep.subr.mxu0 %v9330
      %9511 = vmatpush1.msra.mxu0 %v9327
      %9512 = vmatprep.subr.mxu0 0.0
      %9513 = vmatpush1.msra.mxu0 0.0
      %9514 = vmatprep.subr.mxu0 0.0
      %9515 = vmatpush1.msra.mxu0 0.0
      %9516 = vmatprep.subr.mxu0 0.0
      %9517 = vmatpush1.msra.mxu0 0.0
      %9518 = vmatprep.subr.mxu0 0.0
      %9519 = vmatpush1.msra.mxu0 0.0
      %9520 = vmatprep.subr.mxu0 0.0
      %9521 = vmatpush1.msra.mxu0 0.0
      %9522 = vmatprep.subr.mxu0 0.0
      %9523 = vmatpush1.msra.mxu0 0.0
      %9524 = vmatprep.subr.mxu0 0.0
      %9525 = vmatpush1.msra.mxu0 0.0
      %9526 = vmatprep.subr.mxu0 0.0
      %9527 = vmatpush1.msra.mxu0 0.0
      %9528 = vmatprep.subr.mxu0 0.0
      %9529 = vmatpush1.msra.mxu0 0.0
      %9530 = vmatprep.subr.mxu0 0.0
      %9531 = vmatpush1.msra.mxu0 0.0
      %9532 = vmatprep.subr.mxu0 0.0
      %9533 = vmatpush1.msra.mxu0 0.0
      %9534 = vmatprep.subr.mxu0 0.0
      %9535 = vmatpush1.msra.mxu0 0.0
      %9536 = vmatprep.subr.mxu0 0.0
      %9537 = vmatpush1.msra.mxu0 0.0
      %9538 = vmatprep.subr.mxu0 0.0
      %9539 = vmatpush1.msra.mxu0 0.0
      %9540 = vmatprep.subr.mxu0 0.0
      %9541 = vmatpush1.msra.mxu0 0.0
      %9542 = vmatprep.subr.mxu0 0.0
      %9543 = vmatpush1.msra.mxu0 0.0
      %9544 = vmatprep.mubr.f32.mxu0 0.0
      %9545 = vmatmul.mubr.f32.gmra.mrb[0].mxu0 %v9312
      %v9546 = vpop.f32.mrb[0].mxu0
      %v9547 = vadd.f32 0.0, %v9546
      %v9548 = vpop.f32.mrb[0].mxu0
      %v9549 = vadd.f32 0.0, %v9548
      %9550 = vdwg.mxu0
      %9551 = vmatprep.subr.mxu0 %v9190
      %9552 = vmatpush1.msra.mxu0 %v9189
      %9553 = vmatprep.subr.mxu0 %v9198
      %9554 = vmatpush1.msra.mxu0 %v9197
      %9555 = vmatprep.subr.mxu0 %v9206
      %9556 = vmatpush1.msra.mxu0 %v9205
      %9557 = vmatprep.subr.mxu0 %v9214
      %9558 = vmatpush1.msra.mxu0 %v9213
      %9559 = vmatprep.subr.mxu0 %v9222
      %9560 = vmatpush1.msra.mxu0 %v9221
      %9561 = vmatprep.subr.mxu0 %v9230
      %9562 = vmatpush1.msra.mxu0 %v9229
      %9563 = vmatprep.subr.mxu0 %v9238
      %9564 = vmatpush1.msra.mxu0 %v9237
      %9565 = vmatprep.subr.mxu0 %v9246
      %9566 = vmatpush1.msra.mxu0 %v9245
      %9567 = vmatprep.subr.mxu0 %v9254
      %9568 = vmatpush1.msra.mxu0 %v9253
      %9569 = vmatprep.subr.mxu0 %v9262
      %9570 = vmatpush1.msra.mxu0 %v9261
      %9571 = vmatprep.subr.mxu0 %v9270
      %9572 = vmatpush1.msra.mxu0 %v9269
      %9573 = vmatprep.subr.mxu0 %v9278
      %9574 = vmatpush1.msra.mxu0 %v9277
      %9575 = vmatprep.subr.mxu0 %v9286
      %9576 = vmatpush1.msra.mxu0 %v9285
      %9577 = vmatprep.subr.mxu0 %v9294
      %9578 = vmatpush1.msra.mxu0 %v9293
      %9579 = vmatprep.subr.mxu0 %v9302
      %9580 = vmatpush1.msra.mxu0 %v9301
      %9581 = vmatprep.subr.mxu0 %v9336
      %9582 = vmatpush1.msra.mxu0 %v9333
      %9583 = vmatprep.subr.mxu0 0.0
      %9584 = vmatpush1.msra.mxu0 0.0
      %9585 = vmatprep.subr.mxu0 0.0
      %9586 = vmatpush1.msra.mxu0 0.0
      %9587 = vmatprep.subr.mxu0 0.0
      %9588 = vmatpush1.msra.mxu0 0.0
      %9589 = vmatprep.subr.mxu0 0.0
      %9590 = vmatpush1.msra.mxu0 0.0
      %9591 = vmatprep.subr.mxu0 0.0
      %9592 = vmatpush1.msra.mxu0 0.0
      %9593 = vmatprep.subr.mxu0 0.0
      %9594 = vmatpush1.msra.mxu0 0.0
      %9595 = vmatprep.subr.mxu0 0.0
      %9596 = vmatpush1.msra.mxu0 0.0
      %9597 = vmatprep.subr.mxu0 0.0
      %9598 = vmatpush1.msra.mxu0 0.0
      %9599 = vmatprep.subr.mxu0 0.0
      %9600 = vmatpush1.msra.mxu0 0.0
      %9601 = vmatprep.subr.mxu0 0.0
      %9602 = vmatpush1.msra.mxu0 0.0
      %9603 = vmatprep.subr.mxu0 0.0
      %9604 = vmatpush1.msra.mxu0 0.0
      %9605 = vmatprep.subr.mxu0 0.0
      %9606 = vmatpush1.msra.mxu0 0.0
      %9607 = vmatprep.subr.mxu0 0.0
      %9608 = vmatpush1.msra.mxu0 0.0
      %9609 = vmatprep.subr.mxu0 0.0
      %9610 = vmatpush1.msra.mxu0 0.0
      %9611 = vmatprep.subr.mxu0 0.0
      %9612 = vmatpush1.msra.mxu0 0.0
      %9613 = vmatprep.subr.mxu0 0.0
      %9614 = vmatpush1.msra.mxu0 0.0
      %9615 = vmatprep.mubr.f32.mxu0 0.0
      %9616 = vmatmul.mubr.f32.gmra.mrb[0].mxu0 %v9312
      %v9617 = vpop.f32.mrb[0].mxu0
      %v9618 = vadd.f32 0.0, %v9617
      %v9619 = vpop.f32.mrb[0].mxu0
      %v9620 = vadd.f32 0.0, %v9619
      %9621 = vdwg.mxu0
      %v9630 = vcombine.low %v9405, %v9407
      %v9631 = vcombine.low %v9476, %v9478
      %v9632 = vcombine.low %v9547, %v9549
      %v9633 = vcombine.low %v9618, %v9620
      %v9635 = vunpack.c.l.s4 1966171168
      %v9636 = vunpack.c.0.s8 %v9635
      %v9637 = vlaneseq
      %v9638 = vshrl.u32 %v9637, 7
      %v9639 = vsub.s32 %v9636, %v9638
      %v9640 = vrot.slane %v9630, %v9639
      %v9642 = vunpack.c.l.s4 1966171168
      %v9643 = vunpack.c.0.s8 %v9642
      %v9644 = vlaneseq
      %v9645 = vshrl.u32 %v9644, 7
      %v9646 = vsub.s32 %v9643, %v9645
      %v9647 = vrot.slane %v9631, %v9646
      %v9649 = vunpack.c.l.s4 1966171168
      %v9650 = vunpack.c.0.s8 %v9649
      %v9651 = vlaneseq
      %v9652 = vshrl.u32 %v9651, 7
      %v9653 = vsub.s32 %v9650, %v9652
      %v9654 = vrot.slane %v9632, %v9653
      %v9656 = vunpack.c.l.s4 1966171168
      %v9657 = vunpack.c.0.s8 %v9656
      %v9658 = vlaneseq
      %v9659 = vshrl.u32 %v9658, 7
      %v9660 = vsub.s32 %v9657, %v9659
      %v9661 = vrot.slane %v9633, %v9660
      %v9662 = vcombine.low %v9640, %v9647
      %v9663 = vcombine.low %v9654, %v9661
      %v9665 = vunpack.c.l.s4 1966171168
      %v9666 = vunpack.c.0.s8 %v9665
      %v9667 = vlaneseq
      %v9668 = vshrl.u32 %v9667, 7
      %v9669 = vsub.s32 %v9666, %v9668
      %v9670 = vrot.slane %v9662, %v9669
      %v9672 = vunpack.c.l.s4 1966171168
      %v9673 = vunpack.c.0.s8 %v9672
      %v9674 = vlaneseq
      %v9675 = vshrl.u32 %v9674, 7
      %v9676 = vsub.s32 %v9673, %v9675
      %v9677 = vrot.slane %v9663, %v9676
      %v9678 = vcombine.low %v9670, %v9677
      %v9680 = vadd.f32 %v9181, %v9678
      %s9681 = scalar_lea.vmem %s18, 5120
      %v9682 = vld [vmem:[%s9681] sm:$0xff]
      %v9683 = vld [vmem:[%s9681 + $0x8] sm:$0xff]
      %v9684 = vld [vmem:[%s9681 + $0x10] sm:$0xff]
      %v9685 = vld [vmem:[%s9681 + $0x18] sm:$0xff]
      %v9686 = vld [vmem:[%s9681 + $0x20] sm:$0xff]
      %v9687 = vld [vmem:[%s9681 + $0x28] sm:$0xff]
      %v9688 = vld [vmem:[%s9681 + $0x30] sm:$0xff]
      %v9689 = vld [vmem:[%s9681 + $0x38] sm:$0xff]
      %v9690 = vld [vmem:[%s9681 + $0x40] sm:$0xff]
      %v9691 = vld [vmem:[%s9681 + $0x48] sm:$0xff]
      %v9692 = vld [vmem:[%s9681 + $0x50] sm:$0xff]
      %v9693 = vld [vmem:[%s9681 + $0x58] sm:$0xff]
      %v9694 = vld [vmem:[%s9681 + $0x60] sm:$0xff]
      %v9695 = vld [vmem:[%s9681 + $0x68] sm:$0xff]
      %v9696 = vld [vmem:[%s9681 + $0x70] sm:$0xff]
      %v9697 = vld [vmem:[%s9681 + $0x78] sm:$0xff]
      %v9698 = vld [vmem:[%s9681 + $0x80] sm:$0xff]
      %v9699 = vld [vmem:[%s9681 + $0x88] sm:$0xff]
      %v9700 = vld [vmem:[%s9681 + $0x90] sm:$0xff]
      %v9701 = vld [vmem:[%s9681 + $0x98] sm:$0xff]
      %v9702 = vld [vmem:[%s9681 + $0xa0] sm:$0xff]
      %v9703 = vld [vmem:[%s9681 + $0xa8] sm:$0xff]
      %v9704 = vld [vmem:[%s9681 + $0xb0] sm:$0xff]
      %v9705 = vld [vmem:[%s9681 + $0xb8] sm:$0xff]
      %v9706 = vld [vmem:[%s9681 + $0xc0] sm:$0xff]
      %v9707 = vld [vmem:[%s9681 + $0xc8] sm:$0xff]
      %v9708 = vld [vmem:[%s9681 + $0xd0] sm:$0xff]
      %v9709 = vld [vmem:[%s9681 + $0xd8] sm:$0xff]
      %v9710 = vld [vmem:[%s9681 + $0xe0] sm:$0xff]
      %v9711 = vld [vmem:[%s9681 + $0xe8] sm:$0xff]
      %v9712 = vld [vmem:[%s9681 + $0xf0] sm:$0xff]
      %v9713 = vld [vmem:[%s9681 + $0xf8] sm:$0xff]
      %v9714 = vld [vmem:[%s9681 + $0x100] sm:$0xff]
      %v9715 = vld [vmem:[%s9681 + $0x108] sm:$0xff]
      %v9716 = vld [vmem:[%s9681 + $0x110] sm:$0xff]
      %v9717 = vld [vmem:[%s9681 + $0x118] sm:$0xff]
      %v9718 = vld [vmem:[%s9681 + $0x120] sm:$0xff]
      %v9719 = vld [vmem:[%s9681 + $0x128] sm:$0xff]
      %v9720 = vld [vmem:[%s9681 + $0x130] sm:$0xff]
      %v9721 = vld [vmem:[%s9681 + $0x138] sm:$0xff]
      %v9722 = vld [vmem:[%s9681 + $0x140] sm:$0xff]
      %v9723 = vld [vmem:[%s9681 + $0x148] sm:$0xff]
      %v9724 = vld [vmem:[%s9681 + $0x150] sm:$0xff]
      %v9725 = vld [vmem:[%s9681 + $0x158] sm:$0xff]
      %v9726 = vld [vmem:[%s9681 + $0x160] sm:$0xff]
      %v9727 = vld [vmem:[%s9681 + $0x168] sm:$0xff]
      %v9728 = vld [vmem:[%s9681 + $0x170] sm:$0xff]
      %v9729 = vld [vmem:[%s9681 + $0x178] sm:$0xff]
      %v9730 = vld [vmem:[%s9681 + $0x180] sm:$0xff]
      %v9731 = vld [vmem:[%s9681 + $0x188] sm:$0xff]
      %v9732 = vld [vmem:[%s9681 + $0x190] sm:$0xff]
      %v9733 = vld [vmem:[%s9681 + $0x198] sm:$0xff]
      %v9734 = vld [vmem:[%s9681 + $0x1a0] sm:$0xff]
      %v9735 = vld [vmem:[%s9681 + $0x1a8] sm:$0xff]
      %v9736 = vld [vmem:[%s9681 + $0x1b0] sm:$0xff]
      %v9737 = vld [vmem:[%s9681 + $0x1b8] sm:$0xff]
      %v9738 = vld [vmem:[%s9681 + $0x1c0] sm:$0xff]
      %v9739 = vld [vmem:[%s9681 + $0x1c8] sm:$0xff]
      %v9740 = vld [vmem:[%s9681 + $0x1d0] sm:$0xff]
      %v9741 = vld [vmem:[%s9681 + $0x1d8] sm:$0xff]
      %v9742 = vld [vmem:[%s9681 + $0x1e0] sm:$0xff]
      %v9743 = vld [vmem:[%s9681 + $0x1e8] sm:$0xff]
      %v9744 = vld [vmem:[%s9681 + $0x1f0] sm:$0xff]
      %v9745 = vld [vmem:[%s9681 + $0x1f8] sm:$0xff]
      %v9746 = vld [vmem:[%s9681 + $0x200] sm:$0xff]
      %v9747 = vld [vmem:[%s9681 + $0x208] sm:$0xff]
      %v9748 = vld [vmem:[%s9681 + $0x210] sm:$0xff]
      %v9749 = vld [vmem:[%s9681 + $0x218] sm:$0xff]
      %v9750 = vld [vmem:[%s9681 + $0x220] sm:$0xff]
      %v9751 = vld [vmem:[%s9681 + $0x228] sm:$0xff]
      %v9752 = vld [vmem:[%s9681 + $0x230] sm:$0xff]
      %v9753 = vld [vmem:[%s9681 + $0x238] sm:$0xff]
      %v9754 = vld [vmem:[%s9681 + $0x240] sm:$0xff]
      %v9755 = vld [vmem:[%s9681 + $0x248] sm:$0xff]
      %v9756 = vld [vmem:[%s9681 + $0x250] sm:$0xff]
      %v9757 = vld [vmem:[%s9681 + $0x258] sm:$0xff]
      %v9758 = vld [vmem:[%s9681 + $0x260] sm:$0xff]
      %v9759 = vld [vmem:[%s9681 + $0x268] sm:$0xff]
      %v9760 = vld [vmem:[%s9681 + $0x270] sm:$0xff]
      %v9761 = vld [vmem:[%s9681 + $0x278] sm:$0xff]
      %v9762 = vld [vmem:[%s9681 + $0x280] sm:$0xff]
      %v9763 = vld [vmem:[%s9681 + $0x288] sm:$0xff]
      %v9764 = vld [vmem:[%s9681 + $0x290] sm:$0xff]
      %v9765 = vld [vmem:[%s9681 + $0x298] sm:$0xff]
      %v9766 = vld [vmem:[%s9681 + $0x2a0] sm:$0xff]
      %v9767 = vld [vmem:[%s9681 + $0x2a8] sm:$0xff]
      %v9768 = vld [vmem:[%s9681 + $0x2b0] sm:$0xff]
      %v9769 = vld [vmem:[%s9681 + $0x2b8] sm:$0xff]
      %v9770 = vld [vmem:[%s9681 + $0x2c0] sm:$0xff]
      %v9771 = vld [vmem:[%s9681 + $0x2c8] sm:$0xff]
      %v9772 = vld [vmem:[%s9681 + $0x2d0] sm:$0xff]
      %v9773 = vld [vmem:[%s9681 + $0x2d8] sm:$0xff]
      %v9774 = vld [vmem:[%s9681 + $0x2e0] sm:$0xff]
      %v9775 = vld [vmem:[%s9681 + $0x2e8] sm:$0xff]
      %v9776 = vld [vmem:[%s9681 + $0x2f0] sm:$0xff]
      %v9777 = vld [vmem:[%s9681 + $0x2f8] sm:$0xff]
      %v9778 = vld [vmem:[%s9681 + $0x300] sm:$0xff]
      %v9779 = vld [vmem:[%s9681 + $0x308] sm:$0xff]
      %v9780 = vld [vmem:[%s9681 + $0x310] sm:$0xff]
      %v9781 = vld [vmem:[%s9681 + $0x318] sm:$0xff]
      %v9782 = vld [vmem:[%s9681 + $0x320] sm:$0xff]
      %v9783 = vld [vmem:[%s9681 + $0x328] sm:$0xff]
      %v9784 = vld [vmem:[%s9681 + $0x330] sm:$0xff]
      %v9785 = vld [vmem:[%s9681 + $0x338] sm:$0xff]
      %v9786 = vld [vmem:[%s9681 + $0x340] sm:$0xff]
      %v9787 = vld [vmem:[%s9681 + $0x348] sm:$0xff]
      %v9788 = vld [vmem:[%s9681 + $0x350] sm:$0xff]
      %v9789 = vld [vmem:[%s9681 + $0x358] sm:$0xff]
      %v9790 = vld [vmem:[%s9681 + $0x360] sm:$0xff]
      %v9791 = vld [vmem:[%s9681 + $0x368] sm:$0xff]
      %v9792 = vld [vmem:[%s9681 + $0x370] sm:$0xff]
      %v9793 = vld [vmem:[%s9681 + $0x378] sm:$0xff]
      %v9794 = vld [vmem:[%s9681 + $0x380] sm:$0xff]
      %v9795 = vld [vmem:[%s9681 + $0x388] sm:$0xff]
      %v9796 = vld [vmem:[%s9681 + $0x390] sm:$0xff]
      %v9797 = vld [vmem:[%s9681 + $0x398] sm:$0xff]
      %v9798 = vld [vmem:[%s9681 + $0x3a0] sm:$0xff]
      %v9799 = vld [vmem:[%s9681 + $0x3a8] sm:$0xff]
      %v9800 = vld [vmem:[%s9681 + $0x3b0] sm:$0xff]
      %v9801 = vld [vmem:[%s9681 + $0x3b8] sm:$0xff]
      %v9802 = vld [vmem:[%s9681 + $0x3c0] sm:$0x1f]
      %v9803 = vld [vmem:[%s9681 + $0x3c8] sm:$0x1f]
      %v9804 = vld [vmem:[%s9681 + $0x3d0] sm:$0x1f]
      %v9805 = vld [vmem:[%s9681 + $0x3d8] sm:$0x1f]
      %v9806 = vld [vmem:[%s9681 + $0x3e0] sm:$0x1f]
      %v9807 = vld [vmem:[%s9681 + $0x3e8] sm:$0x1f]
      %v9808 = vld [vmem:[%s9681 + $0x3f0] sm:$0x1f]
      %v9809 = vld [vmem:[%s9681 + $0x3f8] sm:$0x1f]
      %v9810 = vrot.slane %v7183, 5
      %v9811 = vsel %vm7313, %v9810, 0
      %v9814 = vsel %vm7317, %v9802, 0
      %v9817 = vsel %vm7317, %v9803, 0
      %v9820 = vsel %vm7317, %v9804, 0
      %v9823 = vsel %vm7317, %v9805, 0
      %v9826 = vsel %vm7317, %v9806, 0
      %v9829 = vsel %vm7317, %v9807, 0
      %v9832 = vsel %vm7317, %v9808, 0
      %v9835 = vsel %vm7317, %v9809, 0
      %9837 = vmatprep.subr.mxu0 %v9683
      %9838 = vmatpush1.msra.mxu0 %v9682
      %9839 = vmatprep.subr.mxu0 %v9691
      %9840 = vmatpush1.msra.mxu0 %v9690
      %9841 = vmatprep.subr.mxu0 %v9699
      %9842 = vmatpush1.msra.mxu0 %v9698
      %9843 = vmatprep.subr.mxu0 %v9707
      %9844 = vmatpush1.msra.mxu0 %v9706
      %9845 = vmatprep.subr.mxu0 %v9715
      %9846 = vmatpush1.msra.mxu0 %v9714
      %9847 = vmatprep.subr.mxu0 %v9723
      %9848 = vmatpush1.msra.mxu0 %v9722
      %9849 = vmatprep.subr.mxu0 %v9731
      %9850 = vmatpush1.msra.mxu0 %v9730
      %9851 = vmatprep.subr.mxu0 %v9739
      %9852 = vmatpush1.msra.mxu0 %v9738
      %9853 = vmatprep.subr.mxu0 %v9747
      %9854 = vmatpush1.msra.mxu0 %v9746
      %9855 = vmatprep.subr.mxu0 %v9755
      %9856 = vmatpush1.msra.mxu0 %v9754
      %9857 = vmatprep.subr.mxu0 %v9763
      %9858 = vmatpush1.msra.mxu0 %v9762
      %9859 = vmatprep.subr.mxu0 %v9771
      %9860 = vmatpush1.msra.mxu0 %v9770
      %9861 = vmatprep.subr.mxu0 %v9779
      %9862 = vmatpush1.msra.mxu0 %v9778
      %9863 = vmatprep.subr.mxu0 %v9787
      %9864 = vmatpush1.msra.mxu0 %v9786
      %9865 = vmatprep.subr.mxu0 %v9795
      %9866 = vmatpush1.msra.mxu0 %v9794
      %9867 = vmatprep.subr.mxu0 %v9817
      %9868 = vmatpush1.msra.mxu0 %v9814
      %9869 = vmatprep.subr.mxu0 0.0
      %9870 = vmatpush1.msra.mxu0 0.0
      %9871 = vmatprep.subr.mxu0 0.0
      %9872 = vmatpush1.msra.mxu0 0.0
      %9873 = vmatprep.subr.mxu0 0.0
      %9874 = vmatpush1.msra.mxu0 0.0
      %9875 = vmatprep.subr.mxu0 0.0
      %9876 = vmatpush1.msra.mxu0 0.0
      %9877 = vmatprep.subr.mxu0 0.0
      %9878 = vmatpush1.msra.mxu0 0.0
      %9879 = vmatprep.subr.mxu0 0.0
      %9880 = vmatpush1.msra.mxu0 0.0
      %9881 = vmatprep.subr.mxu0 0.0
      %9882 = vmatpush1.msra.mxu0 0.0
      %9883 = vmatprep.subr.mxu0 0.0
      %9884 = vmatpush1.msra.mxu0 0.0
      %9885 = vmatprep.subr.mxu0 0.0
      %9886 = vmatpush1.msra.mxu0 0.0
      %9887 = vmatprep.subr.mxu0 0.0
      %9888 = vmatpush1.msra.mxu0 0.0
      %9889 = vmatprep.subr.mxu0 0.0
      %9890 = vmatpush1.msra.mxu0 0.0
      %9891 = vmatprep.subr.mxu0 0.0
      %9892 = vmatpush1.msra.mxu0 0.0
      %9893 = vmatprep.subr.mxu0 0.0
      %9894 = vmatpush1.msra.mxu0 0.0
      %9895 = vmatprep.subr.mxu0 0.0
      %9896 = vmatpush1.msra.mxu0 0.0
      %9897 = vmatprep.subr.mxu0 0.0
      %9898 = vmatpush1.msra.mxu0 0.0
      %9899 = vmatprep.subr.mxu0 0.0
      %9900 = vmatpush1.msra.mxu0 0.0
      %9901 = vmatprep.mubr.f32.mxu0 0.0
      %9902 = vmatmul.mubr.f32.gmra.mrb[0].mxu0 %v9811
      %v9903 = vpop.f32.mrb[0].mxu0
      %v9904 = vadd.f32 0.0, %v9903
      %v9905 = vpop.f32.mrb[0].mxu0
      %v9906 = vadd.f32 0.0, %v9905
      %9907 = vdwg.mxu0
      %9908 = vmatprep.subr.mxu0 %v9685
      %9909 = vmatpush1.msra.mxu0 %v9684
      %9910 = vmatprep.subr.mxu0 %v9693
      %9911 = vmatpush1.msra.mxu0 %v9692
      %9912 = vmatprep.subr.mxu0 %v9701
      %9913 = vmatpush1.msra.mxu0 %v9700
      %9914 = vmatprep.subr.mxu0 %v9709
      %9915 = vmatpush1.msra.mxu0 %v9708
      %9916 = vmatprep.subr.mxu0 %v9717
      %9917 = vmatpush1.msra.mxu0 %v9716
      %9918 = vmatprep.subr.mxu0 %v9725
      %9919 = vmatpush1.msra.mxu0 %v9724
      %9920 = vmatprep.subr.mxu0 %v9733
      %9921 = vmatpush1.msra.mxu0 %v9732
      %9922 = vmatprep.subr.mxu0 %v9741
      %9923 = vmatpush1.msra.mxu0 %v9740
      %9924 = vmatprep.subr.mxu0 %v9749
      %9925 = vmatpush1.msra.mxu0 %v9748
      %9926 = vmatprep.subr.mxu0 %v9757
      %9927 = vmatpush1.msra.mxu0 %v9756
      %9928 = vmatprep.subr.mxu0 %v9765
      %9929 = vmatpush1.msra.mxu0 %v9764
      %9930 = vmatprep.subr.mxu0 %v9773
      %9931 = vmatpush1.msra.mxu0 %v9772
      %9932 = vmatprep.subr.mxu0 %v9781
      %9933 = vmatpush1.msra.mxu0 %v9780
      %9934 = vmatprep.subr.mxu0 %v9789
      %9935 = vmatpush1.msra.mxu0 %v9788
      %9936 = vmatprep.subr.mxu0 %v9797
      %9937 = vmatpush1.msra.mxu0 %v9796
      %9938 = vmatprep.subr.mxu0 %v9823
      %9939 = vmatpush1.msra.mxu0 %v9820
      %9940 = vmatprep.subr.mxu0 0.0
      %9941 = vmatpush1.msra.mxu0 0.0
      %9942 = vmatprep.subr.mxu0 0.0
      %9943 = vmatpush1.msra.mxu0 0.0
      %9944 = vmatprep.subr.mxu0 0.0
      %9945 = vmatpush1.msra.mxu0 0.0
      %9946 = vmatprep.subr.mxu0 0.0
      %9947 = vmatpush1.msra.mxu0 0.0
      %9948 = vmatprep.subr.mxu0 0.0
      %9949 = vmatpush1.msra.mxu0 0.0
      %9950 = vmatprep.subr.mxu0 0.0
      %9951 = vmatpush1.msra.mxu0 0.0
      %9952 = vmatprep.subr.mxu0 0.0
      %9953 = vmatpush1.msra.mxu0 0.0
      %9954 = vmatprep.subr.mxu0 0.0
      %9955 = vmatpush1.msra.mxu0 0.0
      %9956 = vmatprep.subr.mxu0 0.0
      %9957 = vmatpush1.msra.mxu0 0.0
      %9958 = vmatprep.subr.mxu0 0.0
      %9959 = vmatpush1.msra.mxu0 0.0
      %9960 = vmatprep.subr.mxu0 0.0
      %9961 = vmatpush1.msra.mxu0 0.0
      %9962 = vmatprep.subr.mxu0 0.0
      %9963 = vmatpush1.msra.mxu0 0.0
      %9964 = vmatprep.subr.mxu0 0.0
      %9965 = vmatpush1.msra.mxu0 0.0
      %9966 = vmatprep.subr.mxu0 0.0
      %9967 = vmatpush1.msra.mxu0 0.0
      %9968 = vmatprep.subr.mxu0 0.0
      %9969 = vmatpush1.msra.mxu0 0.0
      %9970 = vmatprep.subr.mxu0 0.0
      %9971 = vmatpush1.msra.mxu0 0.0
      %9972 = vmatprep.mubr.f32.mxu0 0.0
      %9973 = vmatmul.mubr.f32.gmra.mrb[0].mxu0 %v9811
      %v9974 = vpop.f32.mrb[0].mxu0
      %v9975 = vadd.f32 0.0, %v9974
      %v9976 = vpop.f32.mrb[0].mxu0
      %v9977 = vadd.f32 0.0, %v9976
      %9978 = vdwg.mxu0
      %9979 = vmatprep.subr.mxu0 %v9687
      %9980 = vmatpush1.msra.mxu0 %v9686
      %9981 = vmatprep.subr.mxu0 %v9695
      %9982 = vmatpush1.msra.mxu0 %v9694
      %9983 = vmatprep.subr.mxu0 %v9703
      %9984 = vmatpush1.msra.mxu0 %v9702
      %9985 = vmatprep.subr.mxu0 %v9711
      %9986 = vmatpush1.msra.mxu0 %v9710
      %9987 = vmatprep.subr.mxu0 %v9719
      %9988 = vmatpush1.msra.mxu0 %v9718
      %9989 = vmatprep.subr.mxu0 %v9727
      %9990 = vmatpush1.msra.mxu0 %v9726
      %9991 = vmatprep.subr.mxu0 %v9735
      %9992 = vmatpush1.msra.mxu0 %v9734
      %9993 = vmatprep.subr.mxu0 %v9743
      %9994 = vmatpush1.msra.mxu0 %v9742
      %9995 = vmatprep.subr.mxu0 %v9751
      %9996 = vmatpush1.msra.mxu0 %v9750
      %9997 = vmatprep.subr.mxu0 %v9759
      %9998 = vmatpush1.msra.mxu0 %v9758
      %9999 = vmatprep.subr.mxu0 %v9767
      %10000 = vmatpush1.msra.mxu0 %v9766
      %10001 = vmatprep.subr.mxu0 %v9775
      %10002 = vmatpush1.msra.mxu0 %v9774
      %10003 = vmatprep.subr.mxu0 %v9783
      %10004 = vmatpush1.msra.mxu0 %v9782
      %10005 = vmatprep.subr.mxu0 %v9791
      %10006 = vmatpush1.msra.mxu0 %v9790
      %10007 = vmatprep.subr.mxu0 %v9799
      %10008 = vmatpush1.msra.mxu0 %v9798
      %10009 = vmatprep.subr.mxu0 %v9829
      %10010 = vmatpush1.msra.mxu0 %v9826
      %10011 = vmatprep.subr.mxu0 0.0
      %10012 = vmatpush1.msra.mxu0 0.0
      %10013 = vmatprep.subr.mxu0 0.0
      %10014 = vmatpush1.msra.mxu0 0.0
      %10015 = vmatprep.subr.mxu0 0.0
      %10016 = vmatpush1.msra.mxu0 0.0
      %10017 = vmatprep.subr.mxu0 0.0
      %10018 = vmatpush1.msra.mxu0 0.0
      %10019 = vmatprep.subr.mxu0 0.0
      %10020 = vmatpush1.msra.mxu0 0.0
      %10021 = vmatprep.subr.mxu0 0.0
      %10022 = vmatpush1.msra.mxu0 0.0
      %10023 = vmatprep.subr.mxu0 0.0
      %10024 = vmatpush1.msra.mxu0 0.0
      %10025 = vmatprep.subr.mxu0 0.0
      %10026 = vmatpush1.msra.mxu0 0.0
      %10027 = vmatprep.subr.mxu0 0.0
      %10028 = vmatpush1.msra.mxu0 0.0
      %10029 = vmatprep.subr.mxu0 0.0
      %10030 = vmatpush1.msra.mxu0 0.0
      %10031 = vmatprep.subr.mxu0 0.0
      %10032 = vmatpush1.msra.mxu0 0.0
      %10033 = vmatprep.subr.mxu0 0.0
      %10034 = vmatpush1.msra.mxu0 0.0
      %10035 = vmatprep.subr.mxu0 0.0
      %10036 = vmatpush1.msra.mxu0 0.0
      %10037 = vmatprep.subr.mxu0 0.0
      %10038 = vmatpush1.msra.mxu0 0.0
      %10039 = vmatprep.subr.mxu0 0.0
      %10040 = vmatpush1.msra.mxu0 0.0
      %10041 = vmatprep.subr.mxu0 0.0
      %10042 = vmatpush1.msra.mxu0 0.0
      %10043 = vmatprep.mubr.f32.mxu0 0.0
      %10044 = vmatmul.mubr.f32.gmra.mrb[0].mxu0 %v9811
      %v10045 = vpop.f32.mrb[0].mxu0
      %v10046 = vadd.f32 0.0, %v10045
      %v10047 = vpop.f32.mrb[0].mxu0
      %v10048 = vadd.f32 0.0, %v10047
      %10049 = vdwg.mxu0
      %10050 = vmatprep.subr.mxu0 %v9689
      %10051 = vmatpush1.msra.mxu0 %v9688
      %10052 = vmatprep.subr.mxu0 %v9697
      %10053 = vmatpush1.msra.mxu0 %v9696
      %10054 = vmatprep.subr.mxu0 %v9705
      %10055 = vmatpush1.msra.mxu0 %v9704
      %10056 = vmatprep.subr.mxu0 %v9713
      %10057 = vmatpush1.msra.mxu0 %v9712
      %10058 = vmatprep.subr.mxu0 %v9721
      %10059 = vmatpush1.msra.mxu0 %v9720
      %10060 = vmatprep.subr.mxu0 %v9729
      %10061 = vmatpush1.msra.mxu0 %v9728
      %10062 = vmatprep.subr.mxu0 %v9737
      %10063 = vmatpush1.msra.mxu0 %v9736
      %10064 = vmatprep.subr.mxu0 %v9745
      %10065 = vmatpush1.msra.mxu0 %v9744
      %10066 = vmatprep.subr.mxu0 %v9753
      %10067 = vmatpush1.msra.mxu0 %v9752
      %10068 = vmatprep.subr.mxu0 %v9761
      %10069 = vmatpush1.msra.mxu0 %v9760
      %10070 = vmatprep.subr.mxu0 %v9769
      %10071 = vmatpush1.msra.mxu0 %v9768
      %10072 = vmatprep.subr.mxu0 %v9777
      %10073 = vmatpush1.msra.mxu0 %v9776
      %10074 = vmatprep.subr.mxu0 %v9785
      %10075 = vmatpush1.msra.mxu0 %v9784
      %10076 = vmatprep.subr.mxu0 %v9793
      %10077 = vmatpush1.msra.mxu0 %v9792
      %10078 = vmatprep.subr.mxu0 %v9801
      %10079 = vmatpush1.msra.mxu0 %v9800
      %10080 = vmatprep.subr.mxu0 %v9835
      %10081 = vmatpush1.msra.mxu0 %v9832
      %10082 = vmatprep.subr.mxu0 0.0
      %10083 = vmatpush1.msra.mxu0 0.0
      %10084 = vmatprep.subr.mxu0 0.0
      %10085 = vmatpush1.msra.mxu0 0.0
      %10086 = vmatprep.subr.mxu0 0.0
      %10087 = vmatpush1.msra.mxu0 0.0
      %10088 = vmatprep.subr.mxu0 0.0
      %10089 = vmatpush1.msra.mxu0 0.0
      %10090 = vmatprep.subr.mxu0 0.0
      %10091 = vmatpush1.msra.mxu0 0.0
      %10092 = vmatprep.subr.mxu0 0.0
      %10093 = vmatpush1.msra.mxu0 0.0
      %10094 = vmatprep.subr.mxu0 0.0
      %10095 = vmatpush1.msra.mxu0 0.0
      %10096 = vmatprep.subr.mxu0 0.0
      %10097 = vmatpush1.msra.mxu0 0.0
      %10098 = vmatprep.subr.mxu0 0.0
      %10099 = vmatpush1.msra.mxu0 0.0
      %10100 = vmatprep.subr.mxu0 0.0
      %10101 = vmatpush1.msra.mxu0 0.0
      %10102 = vmatprep.subr.mxu0 0.0
      %10103 = vmatpush1.msra.mxu0 0.0
      %10104 = vmatprep.subr.mxu0 0.0
      %10105 = vmatpush1.msra.mxu0 0.0
      %10106 = vmatprep.subr.mxu0 0.0
      %10107 = vmatpush1.msra.mxu0 0.0
      %10108 = vmatprep.subr.mxu0 0.0
      %10109 = vmatpush1.msra.mxu0 0.0
      %10110 = vmatprep.subr.mxu0 0.0
      %10111 = vmatpush1.msra.mxu0 0.0
      %10112 = vmatprep.subr.mxu0 0.0
      %10113 = vmatpush1.msra.mxu0 0.0
      %10114 = vmatprep.mubr.f32.mxu0 0.0
      %10115 = vmatmul.mubr.f32.gmra.mrb[0].mxu0 %v9811
      %v10116 = vpop.f32.mrb[0].mxu0
      %v10117 = vadd.f32 0.0, %v10116
      %v10118 = vpop.f32.mrb[0].mxu0
      %v10119 = vadd.f32 0.0, %v10118
      %10120 = vdwg.mxu0
      %v10129 = vcombine.low %v9904, %v9906
      %v10130 = vcombine.low %v9975, %v9977
      %v10131 = vcombine.low %v10046, %v10048
      %v10132 = vcombine.low %v10117, %v10119
      %v10134 = vunpack.c.l.s4 1966171168
      %v10135 = vunpack.c.0.s8 %v10134
      %v10136 = vlaneseq
      %v10137 = vshrl.u32 %v10136, 7
      %v10138 = vsub.s32 %v10135, %v10137
      %v10139 = vrot.slane %v10129, %v10138
      %v10141 = vunpack.c.l.s4 1966171168
      %v10142 = vunpack.c.0.s8 %v10141
      %v10143 = vlaneseq
      %v10144 = vshrl.u32 %v10143, 7
      %v10145 = vsub.s32 %v10142, %v10144
      %v10146 = vrot.slane %v10130, %v10145
      %v10148 = vunpack.c.l.s4 1966171168
      %v10149 = vunpack.c.0.s8 %v10148
      %v10150 = vlaneseq
      %v10151 = vshrl.u32 %v10150, 7
      %v10152 = vsub.s32 %v10149, %v10151
      %v10153 = vrot.slane %v10131, %v10152
      %v10155 = vunpack.c.l.s4 1966171168
      %v10156 = vunpack.c.0.s8 %v10155
      %v10157 = vlaneseq
      %v10158 = vshrl.u32 %v10157, 7
      %v10159 = vsub.s32 %v10156, %v10158
      %v10160 = vrot.slane %v10132, %v10159
      %v10161 = vcombine.low %v10139, %v10146
      %v10162 = vcombine.low %v10153, %v10160
      %v10164 = vunpack.c.l.s4 1966171168
      %v10165 = vunpack.c.0.s8 %v10164
      %v10166 = vlaneseq
      %v10167 = vshrl.u32 %v10166, 7
      %v10168 = vsub.s32 %v10165, %v10167
      %v10169 = vrot.slane %v10161, %v10168
      %v10171 = vunpack.c.l.s4 1966171168
      %v10172 = vunpack.c.0.s8 %v10171
      %v10173 = vlaneseq
      %v10174 = vshrl.u32 %v10173, 7
      %v10175 = vsub.s32 %v10172, %v10174
      %v10176 = vrot.slane %v10162, %v10175
      %v10177 = vcombine.low %v10169, %v10176
      %v10179 = vadd.f32 %v9680, %v10177
      %s10180 = scalar_lea.vmem %s18, 6144
      %v10181 = vld [vmem:[%s10180] sm:$0xff]
      %v10182 = vld [vmem:[%s10180 + $0x8] sm:$0xff]
      %v10183 = vld [vmem:[%s10180 + $0x10] sm:$0xff]
      %v10184 = vld [vmem:[%s10180 + $0x18] sm:$0xff]
      %v10185 = vld [vmem:[%s10180 + $0x20] sm:$0xff]
      %v10186 = vld [vmem:[%s10180 + $0x28] sm:$0xff]
      %v10187 = vld [vmem:[%s10180 + $0x30] sm:$0xff]
      %v10188 = vld [vmem:[%s10180 + $0x38] sm:$0xff]
      %v10189 = vld [vmem:[%s10180 + $0x40] sm:$0xff]
      %v10190 = vld [vmem:[%s10180 + $0x48] sm:$0xff]
      %v10191 = vld [vmem:[%s10180 + $0x50] sm:$0xff]
      %v10192 = vld [vmem:[%s10180 + $0x58] sm:$0xff]
      %v10193 = vld [vmem:[%s10180 + $0x60] sm:$0xff]
      %v10194 = vld [vmem:[%s10180 + $0x68] sm:$0xff]
      %v10195 = vld [vmem:[%s10180 + $0x70] sm:$0xff]
      %v10196 = vld [vmem:[%s10180 + $0x78] sm:$0xff]
      %v10197 = vld [vmem:[%s10180 + $0x80] sm:$0xff]
      %v10198 = vld [vmem:[%s10180 + $0x88] sm:$0xff]
      %v10199 = vld [vmem:[%s10180 + $0x90] sm:$0xff]
      %v10200 = vld [vmem:[%s10180 + $0x98] sm:$0xff]
      %v10201 = vld [vmem:[%s10180 + $0xa0] sm:$0xff]
      %v10202 = vld [vmem:[%s10180 + $0xa8] sm:$0xff]
      %v10203 = vld [vmem:[%s10180 + $0xb0] sm:$0xff]
      %v10204 = vld [vmem:[%s10180 + $0xb8] sm:$0xff]
      %v10205 = vld [vmem:[%s10180 + $0xc0] sm:$0xff]
      %v10206 = vld [vmem:[%s10180 + $0xc8] sm:$0xff]
      %v10207 = vld [vmem:[%s10180 + $0xd0] sm:$0xff]
      %v10208 = vld [vmem:[%s10180 + $0xd8] sm:$0xff]
      %v10209 = vld [vmem:[%s10180 + $0xe0] sm:$0xff]
      %v10210 = vld [vmem:[%s10180 + $0xe8] sm:$0xff]
      %v10211 = vld [vmem:[%s10180 + $0xf0] sm:$0xff]
      %v10212 = vld [vmem:[%s10180 + $0xf8] sm:$0xff]
      %v10213 = vld [vmem:[%s10180 + $0x100] sm:$0xff]
      %v10214 = vld [vmem:[%s10180 + $0x108] sm:$0xff]
      %v10215 = vld [vmem:[%s10180 + $0x110] sm:$0xff]
      %v10216 = vld [vmem:[%s10180 + $0x118] sm:$0xff]
      %v10217 = vld [vmem:[%s10180 + $0x120] sm:$0xff]
      %v10218 = vld [vmem:[%s10180 + $0x128] sm:$0xff]
      %v10219 = vld [vmem:[%s10180 + $0x130] sm:$0xff]
      %v10220 = vld [vmem:[%s10180 + $0x138] sm:$0xff]
      %v10221 = vld [vmem:[%s10180 + $0x140] sm:$0xff]
      %v10222 = vld [vmem:[%s10180 + $0x148] sm:$0xff]
      %v10223 = vld [vmem:[%s10180 + $0x150] sm:$0xff]
      %v10224 = vld [vmem:[%s10180 + $0x158] sm:$0xff]
      %v10225 = vld [vmem:[%s10180 + $0x160] sm:$0xff]
      %v10226 = vld [vmem:[%s10180 + $0x168] sm:$0xff]
      %v10227 = vld [vmem:[%s10180 + $0x170] sm:$0xff]
      %v10228 = vld [vmem:[%s10180 + $0x178] sm:$0xff]
      %v10229 = vld [vmem:[%s10180 + $0x180] sm:$0xff]
      %v10230 = vld [vmem:[%s10180 + $0x188] sm:$0xff]
      %v10231 = vld [vmem:[%s10180 + $0x190] sm:$0xff]
      %v10232 = vld [vmem:[%s10180 + $0x198] sm:$0xff]
      %v10233 = vld [vmem:[%s10180 + $0x1a0] sm:$0xff]
      %v10234 = vld [vmem:[%s10180 + $0x1a8] sm:$0xff]
      %v10235 = vld [vmem:[%s10180 + $0x1b0] sm:$0xff]
      %v10236 = vld [vmem:[%s10180 + $0x1b8] sm:$0xff]
      %v10237 = vld [vmem:[%s10180 + $0x1c0] sm:$0xff]
      %v10238 = vld [vmem:[%s10180 + $0x1c8] sm:$0xff]
      %v10239 = vld [vmem:[%s10180 + $0x1d0] sm:$0xff]
      %v10240 = vld [vmem:[%s10180 + $0x1d8] sm:$0xff]
      %v10241 = vld [vmem:[%s10180 + $0x1e0] sm:$0xff]
      %v10242 = vld [vmem:[%s10180 + $0x1e8] sm:$0xff]
      %v10243 = vld [vmem:[%s10180 + $0x1f0] sm:$0xff]
      %v10244 = vld [vmem:[%s10180 + $0x1f8] sm:$0xff]
      %v10245 = vld [vmem:[%s10180 + $0x200] sm:$0xff]
      %v10246 = vld [vmem:[%s10180 + $0x208] sm:$0xff]
      %v10247 = vld [vmem:[%s10180 + $0x210] sm:$0xff]
      %v10248 = vld [vmem:[%s10180 + $0x218] sm:$0xff]
      %v10249 = vld [vmem:[%s10180 + $0x220] sm:$0xff]
      %v10250 = vld [vmem:[%s10180 + $0x228] sm:$0xff]
      %v10251 = vld [vmem:[%s10180 + $0x230] sm:$0xff]
      %v10252 = vld [vmem:[%s10180 + $0x238] sm:$0xff]
      %v10253 = vld [vmem:[%s10180 + $0x240] sm:$0xff]
      %v10254 = vld [vmem:[%s10180 + $0x248] sm:$0xff]
      %v10255 = vld [vmem:[%s10180 + $0x250] sm:$0xff]
      %v10256 = vld [vmem:[%s10180 + $0x258] sm:$0xff]
      %v10257 = vld [vmem:[%s10180 + $0x260] sm:$0xff]
      %v10258 = vld [vmem:[%s10180 + $0x268] sm:$0xff]
      %v10259 = vld [vmem:[%s10180 + $0x270] sm:$0xff]
      %v10260 = vld [vmem:[%s10180 + $0x278] sm:$0xff]
      %v10261 = vld [vmem:[%s10180 + $0x280] sm:$0xff]
      %v10262 = vld [vmem:[%s10180 + $0x288] sm:$0xff]
      %v10263 = vld [vmem:[%s10180 + $0x290] sm:$0xff]
      %v10264 = vld [vmem:[%s10180 + $0x298] sm:$0xff]
      %v10265 = vld [vmem:[%s10180 + $0x2a0] sm:$0xff]
      %v10266 = vld [vmem:[%s10180 + $0x2a8] sm:$0xff]
      %v10267 = vld [vmem:[%s10180 + $0x2b0] sm:$0xff]
      %v10268 = vld [vmem:[%s10180 + $0x2b8] sm:$0xff]
      %v10269 = vld [vmem:[%s10180 + $0x2c0] sm:$0xff]
      %v10270 = vld [vmem:[%s10180 + $0x2c8] sm:$0xff]
      %v10271 = vld [vmem:[%s10180 + $0x2d0] sm:$0xff]
      %v10272 = vld [vmem:[%s10180 + $0x2d8] sm:$0xff]
      %v10273 = vld [vmem:[%s10180 + $0x2e0] sm:$0xff]
      %v10274 = vld [vmem:[%s10180 + $0x2e8] sm:$0xff]
      %v10275 = vld [vmem:[%s10180 + $0x2f0] sm:$0xff]
      %v10276 = vld [vmem:[%s10180 + $0x2f8] sm:$0xff]
      %v10277 = vld [vmem:[%s10180 + $0x300] sm:$0xff]
      %v10278 = vld [vmem:[%s10180 + $0x308] sm:$0xff]
      %v10279 = vld [vmem:[%s10180 + $0x310] sm:$0xff]
      %v10280 = vld [vmem:[%s10180 + $0x318] sm:$0xff]
      %v10281 = vld [vmem:[%s10180 + $0x320] sm:$0xff]
      %v10282 = vld [vmem:[%s10180 + $0x328] sm:$0xff]
      %v10283 = vld [vmem:[%s10180 + $0x330] sm:$0xff]
      %v10284 = vld [vmem:[%s10180 + $0x338] sm:$0xff]
      %v10285 = vld [vmem:[%s10180 + $0x340] sm:$0xff]
      %v10286 = vld [vmem:[%s10180 + $0x348] sm:$0xff]
      %v10287 = vld [vmem:[%s10180 + $0x350] sm:$0xff]
      %v10288 = vld [vmem:[%s10180 + $0x358] sm:$0xff]
      %v10289 = vld [vmem:[%s10180 + $0x360] sm:$0xff]
      %v10290 = vld [vmem:[%s10180 + $0x368] sm:$0xff]
      %v10291 = vld [vmem:[%s10180 + $0x370] sm:$0xff]
      %v10292 = vld [vmem:[%s10180 + $0x378] sm:$0xff]
      %v10293 = vld [vmem:[%s10180 + $0x380] sm:$0xff]
      %v10294 = vld [vmem:[%s10180 + $0x388] sm:$0xff]
      %v10295 = vld [vmem:[%s10180 + $0x390] sm:$0xff]
      %v10296 = vld [vmem:[%s10180 + $0x398] sm:$0xff]
      %v10297 = vld [vmem:[%s10180 + $0x3a0] sm:$0xff]
      %v10298 = vld [vmem:[%s10180 + $0x3a8] sm:$0xff]
      %v10299 = vld [vmem:[%s10180 + $0x3b0] sm:$0xff]
      %v10300 = vld [vmem:[%s10180 + $0x3b8] sm:$0xff]
      %v10301 = vld [vmem:[%s10180 + $0x3c0] sm:$0x1f]
      %v10302 = vld [vmem:[%s10180 + $0x3c8] sm:$0x1f]
      %v10303 = vld [vmem:[%s10180 + $0x3d0] sm:$0x1f]
      %v10304 = vld [vmem:[%s10180 + $0x3d8] sm:$0x1f]
      %v10305 = vld [vmem:[%s10180 + $0x3e0] sm:$0x1f]
      %v10306 = vld [vmem:[%s10180 + $0x3e8] sm:$0x1f]
      %v10307 = vld [vmem:[%s10180 + $0x3f0] sm:$0x1f]
      %v10308 = vld [vmem:[%s10180 + $0x3f8] sm:$0x1f]
      %v10309 = vrot.slane %v7183, 6
      %v10310 = vsel %vm7313, %v10309, 0
      %v10313 = vsel %vm7317, %v10301, 0
      %v10316 = vsel %vm7317, %v10302, 0
      %v10319 = vsel %vm7317, %v10303, 0
      %v10322 = vsel %vm7317, %v10304, 0
      %v10325 = vsel %vm7317, %v10305, 0
      %v10328 = vsel %vm7317, %v10306, 0
      %v10331 = vsel %vm7317, %v10307, 0
      %v10334 = vsel %vm7317, %v10308, 0
      %10336 = vmatprep.subr.mxu0 %v10182
      %10337 = vmatpush1.msra.mxu0 %v10181
      %10338 = vmatprep.subr.mxu0 %v10190
      %10339 = vmatpush1.msra.mxu0 %v10189
      %10340 = vmatprep.subr.mxu0 %v10198
      %10341 = vmatpush1.msra.mxu0 %v10197
      %10342 = vmatprep.subr.mxu0 %v10206
      %10343 = vmatpush1.msra.mxu0 %v10205
      %10344 = vmatprep.subr.mxu0 %v10214
      %10345 = vmatpush1.msra.mxu0 %v10213
      %10346 = vmatprep.subr.mxu0 %v10222
      %10347 = vmatpush1.msra.mxu0 %v10221
      %10348 = vmatprep.subr.mxu0 %v10230
      %10349 = vmatpush1.msra.mxu0 %v10229
      %10350 = vmatprep.subr.mxu0 %v10238
      %10351 = vmatpush1.msra.mxu0 %v10237
      %10352 = vmatprep.subr.mxu0 %v10246
      %10353 = vmatpush1.msra.mxu0 %v10245
      %10354 = vmatprep.subr.mxu0 %v10254
      %10355 = vmatpush1.msra.mxu0 %v10253
      %10356 = vmatprep.subr.mxu0 %v10262
      %10357 = vmatpush1.msra.mxu0 %v10261
      %10358 = vmatprep.subr.mxu0 %v10270
      %10359 = vmatpush1.msra.mxu0 %v10269
      %10360 = vmatprep.subr.mxu0 %v10278
      %10361 = vmatpush1.msra.mxu0 %v10277
      %10362 = vmatprep.subr.mxu0 %v10286
      %10363 = vmatpush1.msra.mxu0 %v10285
      %10364 = vmatprep.subr.mxu0 %v10294
      %10365 = vmatpush1.msra.mxu0 %v10293
      %10366 = vmatprep.subr.mxu0 %v10316
      %10367 = vmatpush1.msra.mxu0 %v10313
      %10368 = vmatprep.subr.mxu0 0.0
      %10369 = vmatpush1.msra.mxu0 0.0
      %10370 = vmatprep.subr.mxu0 0.0
      %10371 = vmatpush1.msra.mxu0 0.0
      %10372 = vmatprep.subr.mxu0 0.0
      %10373 = vmatpush1.msra.mxu0 0.0
      %10374 = vmatprep.subr.mxu0 0.0
      %10375 = vmatpush1.msra.mxu0 0.0
      %10376 = vmatprep.subr.mxu0 0.0
      %10377 = vmatpush1.msra.mxu0 0.0
      %10378 = vmatprep.subr.mxu0 0.0
      %10379 = vmatpush1.msra.mxu0 0.0
      %10380 = vmatprep.subr.mxu0 0.0
      %10381 = vmatpush1.msra.mxu0 0.0
      %10382 = vmatprep.subr.mxu0 0.0
      %10383 = vmatpush1.msra.mxu0 0.0
      %10384 = vmatprep.subr.mxu0 0.0
      %10385 = vmatpush1.msra.mxu0 0.0
      %10386 = vmatprep.subr.mxu0 0.0
      %10387 = vmatpush1.msra.mxu0 0.0
      %10388 = vmatprep.subr.mxu0 0.0
      %10389 = vmatpush1.msra.mxu0 0.0
      %10390 = vmatprep.subr.mxu0 0.0
      %10391 = vmatpush1.msra.mxu0 0.0
      %10392 = vmatprep.subr.mxu0 0.0
      %10393 = vmatpush1.msra.mxu0 0.0
      %10394 = vmatprep.subr.mxu0 0.0
      %10395 = vmatpush1.msra.mxu0 0.0
      %10396 = vmatprep.subr.mxu0 0.0
      %10397 = vmatpush1.msra.mxu0 0.0
      %10398 = vmatprep.subr.mxu0 0.0
      %10399 = vmatpush1.msra.mxu0 0.0
      %10400 = vmatprep.mubr.f32.mxu0 0.0
      %10401 = vmatmul.mubr.f32.gmra.mrb[0].mxu0 %v10310
      %v10402 = vpop.f32.mrb[0].mxu0
      %v10403 = vadd.f32 0.0, %v10402
      %v10404 = vpop.f32.mrb[0].mxu0
      %v10405 = vadd.f32 0.0, %v10404
      %10406 = vdwg.mxu0
      %10407 = vmatprep.subr.mxu0 %v10184
      %10408 = vmatpush1.msra.mxu0 %v10183
      %10409 = vmatprep.subr.mxu0 %v10192
      %10410 = vmatpush1.msra.mxu0 %v10191
      %10411 = vmatprep.subr.mxu0 %v10200
      %10412 = vmatpush1.msra.mxu0 %v10199
      %10413 = vmatprep.subr.mxu0 %v10208
      %10414 = vmatpush1.msra.mxu0 %v10207
      %10415 = vmatprep.subr.mxu0 %v10216
      %10416 = vmatpush1.msra.mxu0 %v10215
      %10417 = vmatprep.subr.mxu0 %v10224
      %10418 = vmatpush1.msra.mxu0 %v10223
      %10419 = vmatprep.subr.mxu0 %v10232
      %10420 = vmatpush1.msra.mxu0 %v10231
      %10421 = vmatprep.subr.mxu0 %v10240
      %10422 = vmatpush1.msra.mxu0 %v10239
      %10423 = vmatprep.subr.mxu0 %v10248
      %10424 = vmatpush1.msra.mxu0 %v10247
      %10425 = vmatprep.subr.mxu0 %v10256
      %10426 = vmatpush1.msra.mxu0 %v10255
      %10427 = vmatprep.subr.mxu0 %v10264
      %10428 = vmatpush1.msra.mxu0 %v10263
      %10429 = vmatprep.subr.mxu0 %v10272
      %10430 = vmatpush1.msra.mxu0 %v10271
      %10431 = vmatprep.subr.mxu0 %v10280
      %10432 = vmatpush1.msra.mxu0 %v10279
      %10433 = vmatprep.subr.mxu0 %v10288
      %10434 = vmatpush1.msra.mxu0 %v10287
      %10435 = vmatprep.subr.mxu0 %v10296
      %10436 = vmatpush1.msra.mxu0 %v10295
      %10437 = vmatprep.subr.mxu0 %v10322
      %10438 = vmatpush1.msra.mxu0 %v10319
      %10439 = vmatprep.subr.mxu0 0.0
      %10440 = vmatpush1.msra.mxu0 0.0
      %10441 = vmatprep.subr.mxu0 0.0
      %10442 = vmatpush1.msra.mxu0 0.0
      %10443 = vmatprep.subr.mxu0 0.0
      %10444 = vmatpush1.msra.mxu0 0.0
      %10445 = vmatprep.subr.mxu0 0.0
      %10446 = vmatpush1.msra.mxu0 0.0
      %10447 = vmatprep.subr.mxu0 0.0
      %10448 = vmatpush1.msra.mxu0 0.0
      %10449 = vmatprep.subr.mxu0 0.0
      %10450 = vmatpush1.msra.mxu0 0.0
      %10451 = vmatprep.subr.mxu0 0.0
      %10452 = vmatpush1.msra.mxu0 0.0
      %10453 = vmatprep.subr.mxu0 0.0
      %10454 = vmatpush1.msra.mxu0 0.0
      %10455 = vmatprep.subr.mxu0 0.0
      %10456 = vmatpush1.msra.mxu0 0.0
      %10457 = vmatprep.subr.mxu0 0.0
      %10458 = vmatpush1.msra.mxu0 0.0
      %10459 = vmatprep.subr.mxu0 0.0
      %10460 = vmatpush1.msra.mxu0 0.0
      %10461 = vmatprep.subr.mxu0 0.0
      %10462 = vmatpush1.msra.mxu0 0.0
      %10463 = vmatprep.subr.mxu0 0.0
      %10464 = vmatpush1.msra.mxu0 0.0
      %10465 = vmatprep.subr.mxu0 0.0
      %10466 = vmatpush1.msra.mxu0 0.0
      %10467 = vmatprep.subr.mxu0 0.0
      %10468 = vmatpush1.msra.mxu0 0.0
      %10469 = vmatprep.subr.mxu0 0.0
      %10470 = vmatpush1.msra.mxu0 0.0
      %10471 = vmatprep.mubr.f32.mxu0 0.0
      %10472 = vmatmul.mubr.f32.gmra.mrb[0].mxu0 %v10310
      %v10473 = vpop.f32.mrb[0].mxu0
      %v10474 = vadd.f32 0.0, %v10473
      %v10475 = vpop.f32.mrb[0].mxu0
      %v10476 = vadd.f32 0.0, %v10475
      %10477 = vdwg.mxu0
      %10478 = vmatprep.subr.mxu0 %v10186
      %10479 = vmatpush1.msra.mxu0 %v10185
      %10480 = vmatprep.subr.mxu0 %v10194
      %10481 = vmatpush1.msra.mxu0 %v10193
      %10482 = vmatprep.subr.mxu0 %v10202
      %10483 = vmatpush1.msra.mxu0 %v10201
      %10484 = vmatprep.subr.mxu0 %v10210
      %10485 = vmatpush1.msra.mxu0 %v10209
      %10486 = vmatprep.subr.mxu0 %v10218
      %10487 = vmatpush1.msra.mxu0 %v10217
      %10488 = vmatprep.subr.mxu0 %v10226
      %10489 = vmatpush1.msra.mxu0 %v10225
      %10490 = vmatprep.subr.mxu0 %v10234
      %10491 = vmatpush1.msra.mxu0 %v10233
      %10492 = vmatprep.subr.mxu0 %v10242
      %10493 = vmatpush1.msra.mxu0 %v10241
      %10494 = vmatprep.subr.mxu0 %v10250
      %10495 = vmatpush1.msra.mxu0 %v10249
      %10496 = vmatprep.subr.mxu0 %v10258
      %10497 = vmatpush1.msra.mxu0 %v10257
      %10498 = vmatprep.subr.mxu0 %v10266
      %10499 = vmatpush1.msra.mxu0 %v10265
      %10500 = vmatprep.subr.mxu0 %v10274
      %10501 = vmatpush1.msra.mxu0 %v10273
      %10502 = vmatprep.subr.mxu0 %v10282
      %10503 = vmatpush1.msra.mxu0 %v10281
      %10504 = vmatprep.subr.mxu0 %v10290
      %10505 = vmatpush1.msra.mxu0 %v10289
      %10506 = vmatprep.subr.mxu0 %v10298
      %10507 = vmatpush1.msra.mxu0 %v10297
      %10508 = vmatprep.subr.mxu0 %v10328
      %10509 = vmatpush1.msra.mxu0 %v10325
      %10510 = vmatprep.subr.mxu0 0.0
      %10511 = vmatpush1.msra.mxu0 0.0
      %10512 = vmatprep.subr.mxu0 0.0
      %10513 = vmatpush1.msra.mxu0 0.0
      %10514 = vmatprep.subr.mxu0 0.0
      %10515 = vmatpush1.msra.mxu0 0.0
      %10516 = vmatprep.subr.mxu0 0.0
      %10517 = vmatpush1.msra.mxu0 0.0
      %10518 = vmatprep.subr.mxu0 0.0
      %10519 = vmatpush1.msra.mxu0 0.0
      %10520 = vmatprep.subr.mxu0 0.0
      %10521 = vmatpush1.msra.mxu0 0.0
      %10522 = vmatprep.subr.mxu0 0.0
      %10523 = vmatpush1.msra.mxu0 0.0
      %10524 = vmatprep.subr.mxu0 0.0
      %10525 = vmatpush1.msra.mxu0 0.0
      %10526 = vmatprep.subr.mxu0 0.0
      %10527 = vmatpush1.msra.mxu0 0.0
      %10528 = vmatprep.subr.mxu0 0.0
      %10529 = vmatpush1.msra.mxu0 0.0
      %10530 = vmatprep.subr.mxu0 0.0
      %10531 = vmatpush1.msra.mxu0 0.0
      %10532 = vmatprep.subr.mxu0 0.0
      %10533 = vmatpush1.msra.mxu0 0.0
      %10534 = vmatprep.subr.mxu0 0.0
      %10535 = vmatpush1.msra.mxu0 0.0
      %10536 = vmatprep.subr.mxu0 0.0
      %10537 = vmatpush1.msra.mxu0 0.0
      %10538 = vmatprep.subr.mxu0 0.0
      %10539 = vmatpush1.msra.mxu0 0.0
      %10540 = vmatprep.subr.mxu0 0.0
      %10541 = vmatpush1.msra.mxu0 0.0
      %10542 = vmatprep.mubr.f32.mxu0 0.0
      %10543 = vmatmul.mubr.f32.gmra.mrb[0].mxu0 %v10310
      %v10544 = vpop.f32.mrb[0].mxu0
      %v10545 = vadd.f32 0.0, %v10544
      %v10546 = vpop.f32.mrb[0].mxu0
      %v10547 = vadd.f32 0.0, %v10546
      %10548 = vdwg.mxu0
      %10549 = vmatprep.subr.mxu0 %v10188
      %10550 = vmatpush1.msra.mxu0 %v10187
      %10551 = vmatprep.subr.mxu0 %v10196
      %10552 = vmatpush1.msra.mxu0 %v10195
      %10553 = vmatprep.subr.mxu0 %v10204
      %10554 = vmatpush1.msra.mxu0 %v10203
      %10555 = vmatprep.subr.mxu0 %v10212
      %10556 = vmatpush1.msra.mxu0 %v10211
      %10557 = vmatprep.subr.mxu0 %v10220
      %10558 = vmatpush1.msra.mxu0 %v10219
      %10559 = vmatprep.subr.mxu0 %v10228
      %10560 = vmatpush1.msra.mxu0 %v10227
      %10561 = vmatprep.subr.mxu0 %v10236
      %10562 = vmatpush1.msra.mxu0 %v10235
      %10563 = vmatprep.subr.mxu0 %v10244
      %10564 = vmatpush1.msra.mxu0 %v10243
      %10565 = vmatprep.subr.mxu0 %v10252
      %10566 = vmatpush1.msra.mxu0 %v10251
      %10567 = vmatprep.subr.mxu0 %v10260
      %10568 = vmatpush1.msra.mxu0 %v10259
      %10569 = vmatprep.subr.mxu0 %v10268
      %10570 = vmatpush1.msra.mxu0 %v10267
      %10571 = vmatprep.subr.mxu0 %v10276
      %10572 = vmatpush1.msra.mxu0 %v10275
      %10573 = vmatprep.subr.mxu0 %v10284
      %10574 = vmatpush1.msra.mxu0 %v10283
      %10575 = vmatprep.subr.mxu0 %v10292
      %10576 = vmatpush1.msra.mxu0 %v10291
      %10577 = vmatprep.subr.mxu0 %v10300
      %10578 = vmatpush1.msra.mxu0 %v10299
      %10579 = vmatprep.subr.mxu0 %v10334
      %10580 = vmatpush1.msra.mxu0 %v10331
      %10581 = vmatprep.subr.mxu0 0.0
      %10582 = vmatpush1.msra.mxu0 0.0
      %10583 = vmatprep.subr.mxu0 0.0
      %10584 = vmatpush1.msra.mxu0 0.0
      %10585 = vmatprep.subr.mxu0 0.0
      %10586 = vmatpush1.msra.mxu0 0.0
      %10587 = vmatprep.subr.mxu0 0.0
      %10588 = vmatpush1.msra.mxu0 0.0
      %10589 = vmatprep.subr.mxu0 0.0
      %10590 = vmatpush1.msra.mxu0 0.0
      %10591 = vmatprep.subr.mxu0 0.0
      %10592 = vmatpush1.msra.mxu0 0.0
      %10593 = vmatprep.subr.mxu0 0.0
      %10594 = vmatpush1.msra.mxu0 0.0
      %10595 = vmatprep.subr.mxu0 0.0
      %10596 = vmatpush1.msra.mxu0 0.0
      %10597 = vmatprep.subr.mxu0 0.0
      %10598 = vmatpush1.msra.mxu0 0.0
      %10599 = vmatprep.subr.mxu0 0.0
      %10600 = vmatpush1.msra.mxu0 0.0
      %10601 = vmatprep.subr.mxu0 0.0
      %10602 = vmatpush1.msra.mxu0 0.0
      %10603 = vmatprep.subr.mxu0 0.0
      %10604 = vmatpush1.msra.mxu0 0.0
      %10605 = vmatprep.subr.mxu0 0.0
      %10606 = vmatpush1.msra.mxu0 0.0
      %10607 = vmatprep.subr.mxu0 0.0
      %10608 = vmatpush1.msra.mxu0 0.0
      %10609 = vmatprep.subr.mxu0 0.0
      %10610 = vmatpush1.msra.mxu0 0.0
      %10611 = vmatprep.subr.mxu0 0.0
      %10612 = vmatpush1.msra.mxu0 0.0
      %10613 = vmatprep.mubr.f32.mxu0 0.0
      %10614 = vmatmul.mubr.f32.gmra.mrb[0].mxu0 %v10310
      %v10615 = vpop.f32.mrb[0].mxu0
      %v10616 = vadd.f32 0.0, %v10615
      %v10617 = vpop.f32.mrb[0].mxu0
      %v10618 = vadd.f32 0.0, %v10617
      %10619 = vdwg.mxu0
      %v10628 = vcombine.low %v10403, %v10405
      %v10629 = vcombine.low %v10474, %v10476
      %v10630 = vcombine.low %v10545, %v10547
      %v10631 = vcombine.low %v10616, %v10618
      %v10633 = vunpack.c.l.s4 1966171168
      %v10634 = vunpack.c.0.s8 %v10633
      %v10635 = vlaneseq
      %v10636 = vshrl.u32 %v10635, 7
      %v10637 = vsub.s32 %v10634, %v10636
      %v10638 = vrot.slane %v10628, %v10637
      %v10640 = vunpack.c.l.s4 1966171168
      %v10641 = vunpack.c.0.s8 %v10640
      %v10642 = vlaneseq
      %v10643 = vshrl.u32 %v10642, 7
      %v10644 = vsub.s32 %v10641, %v10643
      %v10645 = vrot.slane %v10629, %v10644
      %v10647 = vunpack.c.l.s4 1966171168
      %v10648 = vunpack.c.0.s8 %v10647
      %v10649 = vlaneseq
      %v10650 = vshrl.u32 %v10649, 7
      %v10651 = vsub.s32 %v10648, %v10650
      %v10652 = vrot.slane %v10630, %v10651
      %v10654 = vunpack.c.l.s4 1966171168
      %v10655 = vunpack.c.0.s8 %v10654
      %v10656 = vlaneseq
      %v10657 = vshrl.u32 %v10656, 7
      %v10658 = vsub.s32 %v10655, %v10657
      %v10659 = vrot.slane %v10631, %v10658
      %v10660 = vcombine.low %v10638, %v10645
      %v10661 = vcombine.low %v10652, %v10659
      %v10663 = vunpack.c.l.s4 1966171168
      %v10664 = vunpack.c.0.s8 %v10663
      %v10665 = vlaneseq
      %v10666 = vshrl.u32 %v10665, 7
      %v10667 = vsub.s32 %v10664, %v10666
      %v10668 = vrot.slane %v10660, %v10667
      %v10670 = vunpack.c.l.s4 1966171168
      %v10671 = vunpack.c.0.s8 %v10670
      %v10672 = vlaneseq
      %v10673 = vshrl.u32 %v10672, 7
      %v10674 = vsub.s32 %v10671, %v10673
      %v10675 = vrot.slane %v10661, %v10674
      %v10676 = vcombine.low %v10668, %v10675
      %v10678 = vadd.f32 %v10179, %v10676
      %s10679 = scalar_lea.vmem %s18, 7168
      %v10680 = vld [vmem:[%s10679] sm:$0xff]
      %v10681 = vld [vmem:[%s10679 + $0x8] sm:$0xff]
      %v10682 = vld [vmem:[%s10679 + $0x10] sm:$0xff]
      %v10683 = vld [vmem:[%s10679 + $0x18] sm:$0xff]
      %v10684 = vld [vmem:[%s10679 + $0x20] sm:$0xff]
      %v10685 = vld [vmem:[%s10679 + $0x28] sm:$0xff]
      %v10686 = vld [vmem:[%s10679 + $0x30] sm:$0xff]
      %v10687 = vld [vmem:[%s10679 + $0x38] sm:$0xff]
      %v10688 = vld [vmem:[%s10679 + $0x40] sm:$0xff]
      %v10689 = vld [vmem:[%s10679 + $0x48] sm:$0xff]
      %v10690 = vld [vmem:[%s10679 + $0x50] sm:$0xff]
      %v10691 = vld [vmem:[%s10679 + $0x58] sm:$0xff]
      %v10692 = vld [vmem:[%s10679 + $0x60] sm:$0xff]
      %v10693 = vld [vmem:[%s10679 + $0x68] sm:$0xff]
      %v10694 = vld [vmem:[%s10679 + $0x70] sm:$0xff]
      %v10695 = vld [vmem:[%s10679 + $0x78] sm:$0xff]
      %v10696 = vld [vmem:[%s10679 + $0x80] sm:$0xff]
      %v10697 = vld [vmem:[%s10679 + $0x88] sm:$0xff]
      %v10698 = vld [vmem:[%s10679 + $0x90] sm:$0xff]
      %v10699 = vld [vmem:[%s10679 + $0x98] sm:$0xff]
      %v10700 = vld [vmem:[%s10679 + $0xa0] sm:$0xff]
      %v10701 = vld [vmem:[%s10679 + $0xa8] sm:$0xff]
      %v10702 = vld [vmem:[%s10679 + $0xb0] sm:$0xff]
      %v10703 = vld [vmem:[%s10679 + $0xb8] sm:$0xff]
      %v10704 = vld [vmem:[%s10679 + $0xc0] sm:$0xff]
      %v10705 = vld [vmem:[%s10679 + $0xc8] sm:$0xff]
      %v10706 = vld [vmem:[%s10679 + $0xd0] sm:$0xff]
      %v10707 = vld [vmem:[%s10679 + $0xd8] sm:$0xff]
      %v10708 = vld [vmem:[%s10679 + $0xe0] sm:$0xff]
      %v10709 = vld [vmem:[%s10679 + $0xe8] sm:$0xff]
      %v10710 = vld [vmem:[%s10679 + $0xf0] sm:$0xff]
      %v10711 = vld [vmem:[%s10679 + $0xf8] sm:$0xff]
      %v10712 = vld [vmem:[%s10679 + $0x100] sm:$0xff]
      %v10713 = vld [vmem:[%s10679 + $0x108] sm:$0xff]
      %v10714 = vld [vmem:[%s10679 + $0x110] sm:$0xff]
      %v10715 = vld [vmem:[%s10679 + $0x118] sm:$0xff]
      %v10716 = vld [vmem:[%s10679 + $0x120] sm:$0xff]
      %v10717 = vld [vmem:[%s10679 + $0x128] sm:$0xff]
      %v10718 = vld [vmem:[%s10679 + $0x130] sm:$0xff]
      %v10719 = vld [vmem:[%s10679 + $0x138] sm:$0xff]
      %v10720 = vld [vmem:[%s10679 + $0x140] sm:$0xff]
      %v10721 = vld [vmem:[%s10679 + $0x148] sm:$0xff]
      %v10722 = vld [vmem:[%s10679 + $0x150] sm:$0xff]
      %v10723 = vld [vmem:[%s10679 + $0x158] sm:$0xff]
      %v10724 = vld [vmem:[%s10679 + $0x160] sm:$0xff]
      %v10725 = vld [vmem:[%s10679 + $0x168] sm:$0xff]
      %v10726 = vld [vmem:[%s10679 + $0x170] sm:$0xff]
      %v10727 = vld [vmem:[%s10679 + $0x178] sm:$0xff]
      %v10728 = vld [vmem:[%s10679 + $0x180] sm:$0xff]
      %v10729 = vld [vmem:[%s10679 + $0x188] sm:$0xff]
      %v10730 = vld [vmem:[%s10679 + $0x190] sm:$0xff]
      %v10731 = vld [vmem:[%s10679 + $0x198] sm:$0xff]
      %v10732 = vld [vmem:[%s10679 + $0x1a0] sm:$0xff]
      %v10733 = vld [vmem:[%s10679 + $0x1a8] sm:$0xff]
      %v10734 = vld [vmem:[%s10679 + $0x1b0] sm:$0xff]
      %v10735 = vld [vmem:[%s10679 + $0x1b8] sm:$0xff]
      %v10736 = vld [vmem:[%s10679 + $0x1c0] sm:$0xff]
      %v10737 = vld [vmem:[%s10679 + $0x1c8] sm:$0xff]
      %v10738 = vld [vmem:[%s10679 + $0x1d0] sm:$0xff]
      %v10739 = vld [vmem:[%s10679 + $0x1d8] sm:$0xff]
      %v10740 = vld [vmem:[%s10679 + $0x1e0] sm:$0xff]
      %v10741 = vld [vmem:[%s10679 + $0x1e8] sm:$0xff]
      %v10742 = vld [vmem:[%s10679 + $0x1f0] sm:$0xff]
      %v10743 = vld [vmem:[%s10679 + $0x1f8] sm:$0xff]
      %v10744 = vld [vmem:[%s10679 + $0x200] sm:$0xff]
      %v10745 = vld [vmem:[%s10679 + $0x208] sm:$0xff]
      %v10746 = vld [vmem:[%s10679 + $0x210] sm:$0xff]
      %v10747 = vld [vmem:[%s10679 + $0x218] sm:$0xff]
      %v10748 = vld [vmem:[%s10679 + $0x220] sm:$0xff]
      %v10749 = vld [vmem:[%s10679 + $0x228] sm:$0xff]
      %v10750 = vld [vmem:[%s10679 + $0x230] sm:$0xff]
      %v10751 = vld [vmem:[%s10679 + $0x238] sm:$0xff]
      %v10752 = vld [vmem:[%s10679 + $0x240] sm:$0xff]
      %v10753 = vld [vmem:[%s10679 + $0x248] sm:$0xff]
      %v10754 = vld [vmem:[%s10679 + $0x250] sm:$0xff]
      %v10755 = vld [vmem:[%s10679 + $0x258] sm:$0xff]
      %v10756 = vld [vmem:[%s10679 + $0x260] sm:$0xff]
      %v10757 = vld [vmem:[%s10679 + $0x268] sm:$0xff]
      %v10758 = vld [vmem:[%s10679 + $0x270] sm:$0xff]
      %v10759 = vld [vmem:[%s10679 + $0x278] sm:$0xff]
      %v10760 = vld [vmem:[%s10679 + $0x280] sm:$0xff]
      %v10761 = vld [vmem:[%s10679 + $0x288] sm:$0xff]
      %v10762 = vld [vmem:[%s10679 + $0x290] sm:$0xff]
      %v10763 = vld [vmem:[%s10679 + $0x298] sm:$0xff]
      %v10764 = vld [vmem:[%s10679 + $0x2a0] sm:$0xff]
      %v10765 = vld [vmem:[%s10679 + $0x2a8] sm:$0xff]
      %v10766 = vld [vmem:[%s10679 + $0x2b0] sm:$0xff]
      %v10767 = vld [vmem:[%s10679 + $0x2b8] sm:$0xff]
      %v10768 = vld [vmem:[%s10679 + $0x2c0] sm:$0xff]
      %v10769 = vld [vmem:[%s10679 + $0x2c8] sm:$0xff]
      %v10770 = vld [vmem:[%s10679 + $0x2d0] sm:$0xff]
      %v10771 = vld [vmem:[%s10679 + $0x2d8] sm:$0xff]
      %v10772 = vld [vmem:[%s10679 + $0x2e0] sm:$0xff]
      %v10773 = vld [vmem:[%s10679 + $0x2e8] sm:$0xff]
      %v10774 = vld [vmem:[%s10679 + $0x2f0] sm:$0xff]
      %v10775 = vld [vmem:[%s10679 + $0x2f8] sm:$0xff]
      %v10776 = vld [vmem:[%s10679 + $0x300] sm:$0xff]
      %v10777 = vld [vmem:[%s10679 + $0x308] sm:$0xff]
      %v10778 = vld [vmem:[%s10679 + $0x310] sm:$0xff]
      %v10779 = vld [vmem:[%s10679 + $0x318] sm:$0xff]
      %v10780 = vld [vmem:[%s10679 + $0x320] sm:$0xff]
      %v10781 = vld [vmem:[%s10679 + $0x328] sm:$0xff]
      %v10782 = vld [vmem:[%s10679 + $0x330] sm:$0xff]
      %v10783 = vld [vmem:[%s10679 + $0x338] sm:$0xff]
      %v10784 = vld [vmem:[%s10679 + $0x340] sm:$0xff]
      %v10785 = vld [vmem:[%s10679 + $0x348] sm:$0xff]
      %v10786 = vld [vmem:[%s10679 + $0x350] sm:$0xff]
      %v10787 = vld [vmem:[%s10679 + $0x358] sm:$0xff]
      %v10788 = vld [vmem:[%s10679 + $0x360] sm:$0xff]
      %v10789 = vld [vmem:[%s10679 + $0x368] sm:$0xff]
      %v10790 = vld [vmem:[%s10679 + $0x370] sm:$0xff]
      %v10791 = vld [vmem:[%s10679 + $0x378] sm:$0xff]
      %v10792 = vld [vmem:[%s10679 + $0x380] sm:$0xff]
      %v10793 = vld [vmem:[%s10679 + $0x388] sm:$0xff]
      %v10794 = vld [vmem:[%s10679 + $0x390] sm:$0xff]
      %v10795 = vld [vmem:[%s10679 + $0x398] sm:$0xff]
      %v10796 = vld [vmem:[%s10679 + $0x3a0] sm:$0xff]
      %v10797 = vld [vmem:[%s10679 + $0x3a8] sm:$0xff]
      %v10798 = vld [vmem:[%s10679 + $0x3b0] sm:$0xff]
      %v10799 = vld [vmem:[%s10679 + $0x3b8] sm:$0xff]
      %v10800 = vld [vmem:[%s10679 + $0x3c0] sm:$0x1f]
      %v10801 = vld [vmem:[%s10679 + $0x3c8] sm:$0x1f]
      %v10802 = vld [vmem:[%s10679 + $0x3d0] sm:$0x1f]
      %v10803 = vld [vmem:[%s10679 + $0x3d8] sm:$0x1f]
      %v10804 = vld [vmem:[%s10679 + $0x3e0] sm:$0x1f]
      %v10805 = vld [vmem:[%s10679 + $0x3e8] sm:$0x1f]
      %v10806 = vld [vmem:[%s10679 + $0x3f0] sm:$0x1f]
      %v10807 = vld [vmem:[%s10679 + $0x3f8] sm:$0x1f]
      %v10808 = vrot.slane %v7183, 7
      %v10809 = vsel %vm7313, %v10808, 0
      %v10812 = vsel %vm7317, %v10800, 0
      %v10815 = vsel %vm7317, %v10801, 0
      %v10818 = vsel %vm7317, %v10802, 0
      %v10821 = vsel %vm7317, %v10803, 0
      %v10824 = vsel %vm7317, %v10804, 0
      %v10827 = vsel %vm7317, %v10805, 0
      %v10830 = vsel %vm7317, %v10806, 0
      %v10833 = vsel %vm7317, %v10807, 0
      %10835 = vmatprep.subr.mxu0 %v10681
      %10836 = vmatpush1.msra.mxu0 %v10680
      %10837 = vmatprep.subr.mxu0 %v10689
      %10838 = vmatpush1.msra.mxu0 %v10688
      %10839 = vmatprep.subr.mxu0 %v10697
      %10840 = vmatpush1.msra.mxu0 %v10696
      %10841 = vmatprep.subr.mxu0 %v10705
      %10842 = vmatpush1.msra.mxu0 %v10704
      %10843 = vmatprep.subr.mxu0 %v10713
      %10844 = vmatpush1.msra.mxu0 %v10712
      %10845 = vmatprep.subr.mxu0 %v10721
      %10846 = vmatpush1.msra.mxu0 %v10720
      %10847 = vmatprep.subr.mxu0 %v10729
      %10848 = vmatpush1.msra.mxu0 %v10728
      %10849 = vmatprep.subr.mxu0 %v10737
      %10850 = vmatpush1.msra.mxu0 %v10736
      %10851 = vmatprep.subr.mxu0 %v10745
      %10852 = vmatpush1.msra.mxu0 %v10744
      %10853 = vmatprep.subr.mxu0 %v10753
      %10854 = vmatpush1.msra.mxu0 %v10752
      %10855 = vmatprep.subr.mxu0 %v10761
      %10856 = vmatpush1.msra.mxu0 %v10760
      %10857 = vmatprep.subr.mxu0 %v10769
      %10858 = vmatpush1.msra.mxu0 %v10768
      %10859 = vmatprep.subr.mxu0 %v10777
      %10860 = vmatpush1.msra.mxu0 %v10776
      %10861 = vmatprep.subr.mxu0 %v10785
      %10862 = vmatpush1.msra.mxu0 %v10784
      %10863 = vmatprep.subr.mxu0 %v10793
      %10864 = vmatpush1.msra.mxu0 %v10792
      %10865 = vmatprep.subr.mxu0 %v10815
      %10866 = vmatpush1.msra.mxu0 %v10812
      %10867 = vmatprep.subr.mxu0 0.0
      %10868 = vmatpush1.msra.mxu0 0.0
      %10869 = vmatprep.subr.mxu0 0.0
      %10870 = vmatpush1.msra.mxu0 0.0
      %10871 = vmatprep.subr.mxu0 0.0
      %10872 = vmatpush1.msra.mxu0 0.0
      %10873 = vmatprep.subr.mxu0 0.0
      %10874 = vmatpush1.msra.mxu0 0.0
      %10875 = vmatprep.subr.mxu0 0.0
      %10876 = vmatpush1.msra.mxu0 0.0
      %10877 = vmatprep.subr.mxu0 0.0
      %10878 = vmatpush1.msra.mxu0 0.0
      %10879 = vmatprep.subr.mxu0 0.0
      %10880 = vmatpush1.msra.mxu0 0.0
      %10881 = vmatprep.subr.mxu0 0.0
      %10882 = vmatpush1.msra.mxu0 0.0
      %10883 = vmatprep.subr.mxu0 0.0
      %10884 = vmatpush1.msra.mxu0 0.0
      %10885 = vmatprep.subr.mxu0 0.0
      %10886 = vmatpush1.msra.mxu0 0.0
      %10887 = vmatprep.subr.mxu0 0.0
      %10888 = vmatpush1.msra.mxu0 0.0
      %10889 = vmatprep.subr.mxu0 0.0
      %10890 = vmatpush1.msra.mxu0 0.0
      %10891 = vmatprep.subr.mxu0 0.0
      %10892 = vmatpush1.msra.mxu0 0.0
      %10893 = vmatprep.subr.mxu0 0.0
      %10894 = vmatpush1.msra.mxu0 0.0
      %10895 = vmatprep.subr.mxu0 0.0
      %10896 = vmatpush1.msra.mxu0 0.0
      %10897 = vmatprep.subr.mxu0 0.0
      %10898 = vmatpush1.msra.mxu0 0.0
      %10899 = vmatprep.mubr.f32.mxu0 0.0
      %10900 = vmatmul.mubr.f32.gmra.mrb[0].mxu0 %v10809
      %v10901 = vpop.f32.mrb[0].mxu0
      %v10902 = vadd.f32 0.0, %v10901
      %v10903 = vpop.f32.mrb[0].mxu0
      %v10904 = vadd.f32 0.0, %v10903
      %10905 = vdwg.mxu0
      %10906 = vmatprep.subr.mxu0 %v10683
      %10907 = vmatpush1.msra.mxu0 %v10682
      %10908 = vmatprep.subr.mxu0 %v10691
      %10909 = vmatpush1.msra.mxu0 %v10690
      %10910 = vmatprep.subr.mxu0 %v10699
      %10911 = vmatpush1.msra.mxu0 %v10698
      %10912 = vmatprep.subr.mxu0 %v10707
      %10913 = vmatpush1.msra.mxu0 %v10706
      %10914 = vmatprep.subr.mxu0 %v10715
      %10915 = vmatpush1.msra.mxu0 %v10714
      %10916 = vmatprep.subr.mxu0 %v10723
      %10917 = vmatpush1.msra.mxu0 %v10722
      %10918 = vmatprep.subr.mxu0 %v10731
      %10919 = vmatpush1.msra.mxu0 %v10730
      %10920 = vmatprep.subr.mxu0 %v10739
      %10921 = vmatpush1.msra.mxu0 %v10738
      %10922 = vmatprep.subr.mxu0 %v10747
      %10923 = vmatpush1.msra.mxu0 %v10746
      %10924 = vmatprep.subr.mxu0 %v10755
      %10925 = vmatpush1.msra.mxu0 %v10754
      %10926 = vmatprep.subr.mxu0 %v10763
      %10927 = vmatpush1.msra.mxu0 %v10762
      %10928 = vmatprep.subr.mxu0 %v10771
      %10929 = vmatpush1.msra.mxu0 %v10770
      %10930 = vmatprep.subr.mxu0 %v10779
      %10931 = vmatpush1.msra.mxu0 %v10778
      %10932 = vmatprep.subr.mxu0 %v10787
      %10933 = vmatpush1.msra.mxu0 %v10786
      %10934 = vmatprep.subr.mxu0 %v10795
      %10935 = vmatpush1.msra.mxu0 %v10794
      %10936 = vmatprep.subr.mxu0 %v10821
      %10937 = vmatpush1.msra.mxu0 %v10818
      %10938 = vmatprep.subr.mxu0 0.0
      %10939 = vmatpush1.msra.mxu0 0.0
      %10940 = vmatprep.subr.mxu0 0.0
      %10941 = vmatpush1.msra.mxu0 0.0
      %10942 = vmatprep.subr.mxu0 0.0
      %10943 = vmatpush1.msra.mxu0 0.0
      %10944 = vmatprep.subr.mxu0 0.0
      %10945 = vmatpush1.msra.mxu0 0.0
      %10946 = vmatprep.subr.mxu0 0.0
      %10947 = vmatpush1.msra.mxu0 0.0
      %10948 = vmatprep.subr.mxu0 0.0
      %10949 = vmatpush1.msra.mxu0 0.0
      %10950 = vmatprep.subr.mxu0 0.0
      %10951 = vmatpush1.msra.mxu0 0.0
      %10952 = vmatprep.subr.mxu0 0.0
      %10953 = vmatpush1.msra.mxu0 0.0
      %10954 = vmatprep.subr.mxu0 0.0
      %10955 = vmatpush1.msra.mxu0 0.0
      %10956 = vmatprep.subr.mxu0 0.0
      %10957 = vmatpush1.msra.mxu0 0.0
      %10958 = vmatprep.subr.mxu0 0.0
      %10959 = vmatpush1.msra.mxu0 0.0
      %10960 = vmatprep.subr.mxu0 0.0
      %10961 = vmatpush1.msra.mxu0 0.0
      %10962 = vmatprep.subr.mxu0 0.0
      %10963 = vmatpush1.msra.mxu0 0.0
      %10964 = vmatprep.subr.mxu0 0.0
      %10965 = vmatpush1.msra.mxu0 0.0
      %10966 = vmatprep.subr.mxu0 0.0
      %10967 = vmatpush1.msra.mxu0 0.0
      %10968 = vmatprep.subr.mxu0 0.0
      %10969 = vmatpush1.msra.mxu0 0.0
      %10970 = vmatprep.mubr.f32.mxu0 0.0
      %10971 = vmatmul.mubr.f32.gmra.mrb[0].mxu0 %v10809
      %v10972 = vpop.f32.mrb[0].mxu0
      %v10973 = vadd.f32 0.0, %v10972
      %v10974 = vpop.f32.mrb[0].mxu0
      %v10975 = vadd.f32 0.0, %v10974
      %10976 = vdwg.mxu0
      %10977 = vmatprep.subr.mxu0 %v10685
      %10978 = vmatpush1.msra.mxu0 %v10684
      %10979 = vmatprep.subr.mxu0 %v10693
      %10980 = vmatpush1.msra.mxu0 %v10692
      %10981 = vmatprep.subr.mxu0 %v10701
      %10982 = vmatpush1.msra.mxu0 %v10700
      %10983 = vmatprep.subr.mxu0 %v10709
      %10984 = vmatpush1.msra.mxu0 %v10708
      %10985 = vmatprep.subr.mxu0 %v10717
      %10986 = vmatpush1.msra.mxu0 %v10716
      %10987 = vmatprep.subr.mxu0 %v10725
      %10988 = vmatpush1.msra.mxu0 %v10724
      %10989 = vmatprep.subr.mxu0 %v10733
      %10990 = vmatpush1.msra.mxu0 %v10732
      %10991 = vmatprep.subr.mxu0 %v10741
      %10992 = vmatpush1.msra.mxu0 %v10740
      %10993 = vmatprep.subr.mxu0 %v10749
      %10994 = vmatpush1.msra.mxu0 %v10748
      %10995 = vmatprep.subr.mxu0 %v10757
      %10996 = vmatpush1.msra.mxu0 %v10756
      %10997 = vmatprep.subr.mxu0 %v10765
      %10998 = vmatpush1.msra.mxu0 %v10764
      %10999 = vmatprep.subr.mxu0 %v10773
      %11000 = vmatpush1.msra.mxu0 %v10772
      %11001 = vmatprep.subr.mxu0 %v10781
      %11002 = vmatpush1.msra.mxu0 %v10780
      %11003 = vmatprep.subr.mxu0 %v10789
      %11004 = vmatpush1.msra.mxu0 %v10788
      %11005 = vmatprep.subr.mxu0 %v10797
      %11006 = vmatpush1.msra.mxu0 %v10796
      %11007 = vmatprep.subr.mxu0 %v10827
      %11008 = vmatpush1.msra.mxu0 %v10824
      %11009 = vmatprep.subr.mxu0 0.0
      %11010 = vmatpush1.msra.mxu0 0.0
      %11011 = vmatprep.subr.mxu0 0.0
      %11012 = vmatpush1.msra.mxu0 0.0
      %11013 = vmatprep.subr.mxu0 0.0
      %11014 = vmatpush1.msra.mxu0 0.0
      %11015 = vmatprep.subr.mxu0 0.0
      %11016 = vmatpush1.msra.mxu0 0.0
      %11017 = vmatprep.subr.mxu0 0.0
      %11018 = vmatpush1.msra.mxu0 0.0
      %11019 = vmatprep.subr.mxu0 0.0
      %11020 = vmatpush1.msra.mxu0 0.0
      %11021 = vmatprep.subr.mxu0 0.0
      %11022 = vmatpush1.msra.mxu0 0.0
      %11023 = vmatprep.subr.mxu0 0.0
      %11024 = vmatpush1.msra.mxu0 0.0
      %11025 = vmatprep.subr.mxu0 0.0
      %11026 = vmatpush1.msra.mxu0 0.0
      %11027 = vmatprep.subr.mxu0 0.0
      %11028 = vmatpush1.msra.mxu0 0.0
      %11029 = vmatprep.subr.mxu0 0.0
      %11030 = vmatpush1.msra.mxu0 0.0
      %11031 = vmatprep.subr.mxu0 0.0
      %11032 = vmatpush1.msra.mxu0 0.0
      %11033 = vmatprep.subr.mxu0 0.0
      %11034 = vmatpush1.msra.mxu0 0.0
      %11035 = vmatprep.subr.mxu0 0.0
      %11036 = vmatpush1.msra.mxu0 0.0
      %11037 = vmatprep.subr.mxu0 0.0
      %11038 = vmatpush1.msra.mxu0 0.0
      %11039 = vmatprep.subr.mxu0 0.0
      %11040 = vmatpush1.msra.mxu0 0.0
      %11041 = vmatprep.mubr.f32.mxu0 0.0
      %11042 = vmatmul.mubr.f32.gmra.mrb[0].mxu0 %v10809
      %v11043 = vpop.f32.mrb[0].mxu0
      %v11044 = vadd.f32 0.0, %v11043
      %v11045 = vpop.f32.mrb[0].mxu0
      %v11046 = vadd.f32 0.0, %v11045
      %11047 = vdwg.mxu0
      %11048 = vmatprep.subr.mxu0 %v10687
      %11049 = vmatpush1.msra.mxu0 %v10686
      %11050 = vmatprep.subr.mxu0 %v10695
      %11051 = vmatpush1.msra.mxu0 %v10694
      %11052 = vmatprep.subr.mxu0 %v10703
      %11053 = vmatpush1.msra.mxu0 %v10702
      %11054 = vmatprep.subr.mxu0 %v10711
      %11055 = vmatpush1.msra.mxu0 %v10710
      %11056 = vmatprep.subr.mxu0 %v10719
      %11057 = vmatpush1.msra.mxu0 %v10718
      %11058 = vmatprep.subr.mxu0 %v10727
      %11059 = vmatpush1.msra.mxu0 %v10726
      %11060 = vmatprep.subr.mxu0 %v10735
      %11061 = vmatpush1.msra.mxu0 %v10734
      %11062 = vmatprep.subr.mxu0 %v10743
      %11063 = vmatpush1.msra.mxu0 %v10742
      %11064 = vmatprep.subr.mxu0 %v10751
      %11065 = vmatpush1.msra.mxu0 %v10750
      %11066 = vmatprep.subr.mxu0 %v10759
      %11067 = vmatpush1.msra.mxu0 %v10758
      %11068 = vmatprep.subr.mxu0 %v10767
      %11069 = vmatpush1.msra.mxu0 %v10766
      %11070 = vmatprep.subr.mxu0 %v10775
      %11071 = vmatpush1.msra.mxu0 %v10774
      %11072 = vmatprep.subr.mxu0 %v10783
      %11073 = vmatpush1.msra.mxu0 %v10782
      %11074 = vmatprep.subr.mxu0 %v10791
      %11075 = vmatpush1.msra.mxu0 %v10790
      %11076 = vmatprep.subr.mxu0 %v10799
      %11077 = vmatpush1.msra.mxu0 %v10798
      %11078 = vmatprep.subr.mxu0 %v10833
      %11079 = vmatpush1.msra.mxu0 %v10830
      %11080 = vmatprep.subr.mxu0 0.0
      %11081 = vmatpush1.msra.mxu0 0.0
      %11082 = vmatprep.subr.mxu0 0.0
      %11083 = vmatpush1.msra.mxu0 0.0
      %11084 = vmatprep.subr.mxu0 0.0
      %11085 = vmatpush1.msra.mxu0 0.0
      %11086 = vmatprep.subr.mxu0 0.0
      %11087 = vmatpush1.msra.mxu0 0.0
      %11088 = vmatprep.subr.mxu0 0.0
      %11089 = vmatpush1.msra.mxu0 0.0
      %11090 = vmatprep.subr.mxu0 0.0
      %11091 = vmatpush1.msra.mxu0 0.0
      %11092 = vmatprep.subr.mxu0 0.0
      %11093 = vmatpush1.msra.mxu0 0.0
      %11094 = vmatprep.subr.mxu0 0.0
      %11095 = vmatpush1.msra.mxu0 0.0
      %11096 = vmatprep.subr.mxu0 0.0
      %11097 = vmatpush1.msra.mxu0 0.0
      %11098 = vmatprep.subr.mxu0 0.0
      %11099 = vmatpush1.msra.mxu0 0.0
      %11100 = vmatprep.subr.mxu0 0.0
      %11101 = vmatpush1.msra.mxu0 0.0
      %11102 = vmatprep.subr.mxu0 0.0
      %11103 = vmatpush1.msra.mxu0 0.0
      %11104 = vmatprep.subr.mxu0 0.0
      %11105 = vmatpush1.msra.mxu0 0.0
      %11106 = vmatprep.subr.mxu0 0.0
      %11107 = vmatpush1.msra.mxu0 0.0
      %11108 = vmatprep.subr.mxu0 0.0
      %11109 = vmatpush1.msra.mxu0 0.0
      %11110 = vmatprep.subr.mxu0 0.0
      %11111 = vmatpush1.msra.mxu0 0.0
      %11112 = vmatprep.mubr.f32.mxu0 0.0
      %11113 = vmatmul.mubr.f32.gmra.mrb[0].mxu0 %v10809
      %v11114 = vpop.f32.mrb[0].mxu0
      %v11115 = vadd.f32 0.0, %v11114
      %v11116 = vpop.f32.mrb[0].mxu0
      %v11117 = vadd.f32 0.0, %v11116
      %11118 = vdwg.mxu0
      %v11127 = vcombine.low %v10902, %v10904
      %v11128 = vcombine.low %v10973, %v10975
      %v11129 = vcombine.low %v11044, %v11046
      %v11130 = vcombine.low %v11115, %v11117
      %v11132 = vunpack.c.l.s4 1966171168
      %v11133 = vunpack.c.0.s8 %v11132
      %v11134 = vlaneseq
      %v11135 = vshrl.u32 %v11134, 7
      %v11136 = vsub.s32 %v11133, %v11135
      %v11137 = vrot.slane %v11127, %v11136
      %v11139 = vunpack.c.l.s4 1966171168
      %v11140 = vunpack.c.0.s8 %v11139
      %v11141 = vlaneseq
      %v11142 = vshrl.u32 %v11141, 7
      %v11143 = vsub.s32 %v11140, %v11142
      %v11144 = vrot.slane %v11128, %v11143
      %v11146 = vunpack.c.l.s4 1966171168
      %v11147 = vunpack.c.0.s8 %v11146
      %v11148 = vlaneseq
      %v11149 = vshrl.u32 %v11148, 7
      %v11150 = vsub.s32 %v11147, %v11149
      %v11151 = vrot.slane %v11129, %v11150
      %v11153 = vunpack.c.l.s4 1966171168
      %v11154 = vunpack.c.0.s8 %v11153
      %v11155 = vlaneseq
      %v11156 = vshrl.u32 %v11155, 7
      %v11157 = vsub.s32 %v11154, %v11156
      %v11158 = vrot.slane %v11130, %v11157
      %v11159 = vcombine.low %v11137, %v11144
      %v11160 = vcombine.low %v11151, %v11158
      %v11162 = vunpack.c.l.s4 1966171168
      %v11163 = vunpack.c.0.s8 %v11162
      %v11164 = vlaneseq
      %v11165 = vshrl.u32 %v11164, 7
      %v11166 = vsub.s32 %v11163, %v11165
      %v11167 = vrot.slane %v11159, %v11166
      %v11169 = vunpack.c.l.s4 1966171168
      %v11170 = vunpack.c.0.s8 %v11169
      %v11171 = vlaneseq
      %v11172 = vshrl.u32 %v11171, 7
      %v11173 = vsub.s32 %v11170, %v11172
      %v11174 = vrot.slane %v11160, %v11173
      %v11175 = vcombine.low %v11167, %v11174
      %v11177 = vadd.f32 %v10678, %v11175
      %vm11178 = vcmp.ge.f32.partialorder %v11177, 0.0
      %v11179 = vmul.f32 %v11177, 0.01
      %v11180 = vsel %vm11178, %v11177, %v11179
      %v11181 = vlaneseq
      %vm11182 = vcmp.ge.s32.totalorder %v11181, 0
      %vm11183 = vcmp.lt.s32.totalorder %v11181, 1000
      %vm11184 = vmand %vm11182, %vm11183
      %11185 = vst.msk [vmem:[%s624] sm:$0xff] %vm11184, %v11180
      %p11186 = scmp.lt.s32.totalorder %s31, 1
      %s11187 = scalar_select %p11186, %s31, 1
      %s11188 = smul.addr %s11187, 8
      %s11189 = scalar_lea.vmem %s20, %s11188
      // Predicated region
      $region101: #{forward.1} parent=99 // pred_check
        %p11190 = pneg %p474
      $region102: #{forward.1} parent=99 // pred_check_branch
        %11192 = sbr.rel (%p11190) target = $region104
      $region103: #{forward.1} parent=99 // pred_region
        _
      $region104: #{forward.1} parent=99 // pred_fallthru
        _
    $region100: #{forward.1} parent=5 // pred_fallthru
      _
    %p11193 = scmp.le.s32.totalorder 2, %s26
    // Predicated region
    $region105: #{forward.1} parent=5 // pred_check
      %p11194 = pneg %p11193
    $region106: #{forward.1} parent=5 // pred_check_branch
      %11196 = sbr.rel (%p11194) target = $region108
    $region107: #{forward.1} parent=5 // pred_region
      %s11197 = ssub.s32 %s26, 2
      // Predicated region
      $region109: #{forward.1} parent=107 // pred_check
        %p11198 = pneg %p480
      $region110: #{forward.1} parent=107 // pred_check_branch
        %11200 = sbr.rel (%p11198) target = $region112
      $region111: #{forward.1} parent=107 // pred_region
        %p11201 = scmp.lt.s32.totalorder %s32, 1
        %s11202 = scalar_select %p11201, %s32, 1
        %s11203 = smul.addr %s11202, 8
        %s11204 = scalar_lea.vmem %s20, %s11203
      $region112: #{forward.1} parent=107 // pred_fallthru
        _
    $region108: #{forward.1} parent=5 // pred_fallthru
      _
  $region6: #{forward.1} parent=0 // loop_footer
    %s30 = sadd.s32 1, %s26
  $region7: #{forward.1} parent=0 // loop_footer_branch
    %25 = sbr.rel target = $region3
  $region8: #{forward.1} parent=0 // loop_exit
    _

</llo_original>
